<compile_context>
chip_gen: v5e
topology: v5e:2x2
jax: 0.10.0
libtpu: 0.0.40
codegen_flags: <defaults>
</compile_context>

<pallas_src>
import jax
import jax.numpy as jnp
from jax.experimental import pallas as pl
from jax.experimental.pallas import tpu as pltpu

_COMPILER_PARAMS = pltpu.CompilerParams(
    dimension_semantics=("parallel",),
    vmem_limit_bytes=32 * 1024 * 1024,
)


def _round_up(x, m):
    return (x + m - 1) // m * m


# ---------------------------------------------------------------------------
# Pallas kernels
# ---------------------------------------------------------------------------
def _conv_leaky_kernel(p_ref, w_ref, b_ref, o_ref):
    # p_ref: (TM, 9*Cin) bf16   w_ref: (9*Cin, Cout) bf16   b_ref: (1, Cout) f32
    acc = jnp.dot(p_ref[...], w_ref[...], preferred_element_type=jnp.float32)
    acc = acc + b_ref[...]
    o_ref[...] = jnp.where(acc > 0, acc, 0.01 * acc).astype(o_ref.dtype)


def _conv_leaky_pool_kernel(p00_ref, p01_ref, p10_ref, p11_ref,
                            w_ref, b_ref, o_ref):
    # Fused conv + LeakyReLU + MaxPool2d(2): max over the 4 pool-corner conv
    # results, then (shared) bias + LeakyReLU (LeakyReLU is monotonic -> exact).
    w = w_ref[...]
    acc = jnp.dot(p00_ref[...], w, preferred_element_type=jnp.float32)
    acc = jnp.maximum(acc, jnp.dot(p01_ref[...], w,
                                   preferred_element_type=jnp.float32))
    acc = jnp.maximum(acc, jnp.dot(p10_ref[...], w,
                                   preferred_element_type=jnp.float32))
    acc = jnp.maximum(acc, jnp.dot(p11_ref[...], w,
                                   preferred_element_type=jnp.float32))
    acc = acc + b_ref[...]
    o_ref[...] = jnp.where(acc > 0, acc, 0.01 * acc).astype(o_ref.dtype)


def _linear_sigmoid_kernel(x_ref, w_ref, b_ref, o_ref):
    y = jnp.dot(x_ref[...], w_ref[...], preferred_element_type=jnp.float32)
    y = y + b_ref[...]
    o_ref[...] = jax.nn.sigmoid(y).astype(o_ref.dtype)


# ---------------------------------------------------------------------------
# Generic row-tiled pallas_call wrapper
# ---------------------------------------------------------------------------
def _row_tiled_call(kernel, row_inputs, full_inputs, M, n_out, out_dtype,
                    tm_target=512):
    """Runs `kernel(row_tiles..., full_blocks..., out_tile)` on a 1-D grid over
    the row dimension M.  Row inputs are padded to a multiple of the tile so
    every block is full (no reliance on ragged-block semantics)."""
    TM = min(tm_target, _round_up(M, 16))
    Mp = _round_up(M, TM)

    def pad_rows(x):
        pad = Mp - x.shape[0]
        return jnp.pad(x, ((0, pad), (0, 0))) if pad else x

    row_inputs = [pad_rows(x) for x in row_inputs]
    in_specs = (
        [pl.BlockSpec((TM, x.shape[1]), lambda i: (i, 0)) for x in row_inputs]
        + [pl.BlockSpec(x.shape, lambda i: (0, 0)) for x in full_inputs]
    )
    out = pl.pallas_call(
        kernel,
        grid=(Mp // TM,),
        in_specs=in_specs,
        out_specs=pl.BlockSpec((TM, n_out), lambda i: (i, 0)),
        out_shape=jax.ShapeDtypeStruct((Mp, n_out), out_dtype),
        compiler_params=_COMPILER_PARAMS,
    )(*row_inputs, *full_inputs)
    return out[:M]


# ---------------------------------------------------------------------------
# im2col glue (wrapper-side layout plumbing; emits lane-dense (M, 9*Cin) slabs)
# ---------------------------------------------------------------------------
def _im2col(x_nhwc):
    N, H, W, C = x_nhwc.shape
    xp = jnp.pad(x_nhwc, ((0, 0), (1, 1), (1, 1), (0, 0)))
    taps = [xp[:, dy:dy + H, dx:dx + W, :] for dy in range(3) for dx in range(3)]
    return jnp.concatenate(taps, axis=-1).reshape(N * H * W, 9 * C)


def _im2col_pool_corners(x_nhwc):
    """Four (N*(H/2)*(W/2), 9*Cin) patch slabs, one per 2x2 pool corner."""
    N, H, W, C = x_nhwc.shape
    Ho, Wo = H // 2, W // 2
    xp = jnp.pad(x_nhwc, ((0, 0), (1, 1), (1, 1), (0, 0)))
    corners = []
    for py in range(2):
        for px in range(2):
            taps = [xp[:, py + dy:py + dy + H:2, px + dx:px + dx + W:2, :]
                    for dy in range(3) for dx in range(3)]
            corners.append(
                jnp.concatenate(taps, axis=-1).reshape(N * Ho * Wo, 9 * C))
    return corners


# ---------------------------------------------------------------------------
# Layer wrappers (activations flow as bf16; accumulation stays f32 in-kernel)
# ---------------------------------------------------------------------------
def conv3x3_leaky(x_nhwc, w_mat, b_row):
    N, H, W, _ = x_nhwc.shape
    Cout = w_mat.shape[1]
    patches = _im2col(x_nhwc)                              # bf16 slab
    out = _row_tiled_call(_conv_leaky_kernel, [patches], [w_mat, b_row],
                          N * H * W, Cout, jnp.bfloat16)
    return out.reshape(N, H, W, Cout)


def conv3x3_leaky_pool(x_nhwc, w_mat, b_row):
    N, H, W, _ = x_nhwc.shape
    Cout = w_mat.shape[1]
    Ho, Wo = H // 2, W // 2
    corners = _im2col_pool_corners(x_nhwc)                 # 4 bf16 slabs
    out = _row_tiled_call(_conv_leaky_pool_kernel, corners, [w_mat, b_row],
                          N * Ho * Wo, Cout, jnp.bfloat16)
    return out.reshape(N, Ho, Wo, Cout)


def conv5_linear_sigmoid(x_nhwc, w_comb, b_comb):
    # conv5(16->1, pad=1) + Flatten + Linear(49,10) + Sigmoid, folded into one
    # (N, 49*144) @ (49*144, 10) matmul (exact algebraic rewrite).
    N, H, W, C = x_nhwc.shape                              # (N, 7, 7, 16)
    x = _im2col(x_nhwc).reshape(N, H * W * 9 * C)          # (N, 7056) bf16
    return _row_tiled_call(_linear_sigmoid_kernel, [x], [w_comb, b_comb],
                           N, w_comb.shape[1], jnp.float32, tm_target=256)


# ---------------------------------------------------------------------------
# Parameter preparation (done ONCE, outside the jitted forward)
# ---------------------------------------------------------------------------
def prepare_params(params):
    def conv_mat(w_oihw):
        cout, cin = w_oihw.shape[0], w_oihw.shape[1]
        # (Cout,Cin,3,3) -> (3,3,Cin,Cout) -> (9*Cin, Cout), bf16 for the MXU.
        return (jnp.transpose(w_oihw, (2, 3, 1, 0))
                .reshape(9 * cin, cout).astype(jnp.bfloat16))

    def bias_row(b):
        return b.reshape(1, -1).astype(jnp.float32)

    # Fold conv5 (144 -> 1) into the Linear(49, 10):
    #   y = (P5 @ w5 + b5) @ wl + bl  ==  P5_flat @ (w5 ⊗ wl) + (b5 * Σ wl + bl)
    w5f = jnp.transpose(params["w5"], (2, 3, 1, 0)).reshape(9 * 16)     # (144,)
    wl = params["wl"]                                                   # (49,10)
    w_comb = (wl[:, None, :] * w5f[None, :, None]).reshape(49 * 144, 10)
    b_comb = params["b5"][0] * jnp.sum(wl, axis=0) + params["bl"]       # (10,)

    return {
        "w1": conv_mat(params["w1"]), "b1": bias_row(params["b1"]),
        "w2": conv_mat(params["w2"]), "b2": bias_row(params["b2"]),
        "w3": conv_mat(params["w3"]), "b3": bias_row(params["b3"]),
        "w4": conv_mat(params["w4"]), "b4": bias_row(params["b4"]),
        "wlc": w_comb.astype(jnp.bfloat16), "blc": bias_row(b_comb),
    }


# ---------------------------------------------------------------------------
# Full model forward (mirrors DeeperConvModel.forward)
# ---------------------------------------------------------------------------
def deeper_conv_model(x, kp):
    N = x.shape[0]
    x = x.reshape(N, 1, 28, 28)                     # torch x.view(N,1,28,28)
    x = jnp.transpose(x, (0, 2, 3, 1))              # -> NHWC
    x = x.astype(jnp.bfloat16)                      # MXU operand dtype, once
    x = conv3x3_leaky(x, kp["w1"], kp["b1"])        # (N,28,28,64)
    x = conv3x3_leaky_pool(x, kp["w2"], kp["b2"])   # (N,14,14,32)  conv+pool
    x = conv3x3_leaky(x, kp["w3"], kp["b3"])        # (N,14,14,32)
    x = conv3x3_leaky_pool(x, kp["w4"], kp["b4"])   # (N,7,7,16)    conv+pool
    return conv5_linear_sigmoid(x, kp["wlc"], kp["blc"])             # (N,10)


def init_params(key):
    """Deterministic synthetic parameters matching the nn.Module shapes."""
    ks = jax.random.split(key, 12)

    def conv_w(k, cout, cin):
        scale = 1.0 / jnp.sqrt(cin * 9.0)
        return jax.random.uniform(k, (cout, cin, 3, 3), jnp.float32, -scale, scale)

    def bias(k, c, fan_in):
        scale = 1.0 / jnp.sqrt(float(fan_in))
        return jax.random.uniform(k, (c,), jnp.float32, -scale, scale)

    return {
        "w1": conv_w(ks[0], 64, 1),   "b1": bias(ks[1], 64, 9),
        "w2": conv_w(ks[2], 32, 64),  "b2": bias(ks[3], 32, 64 * 9),
        "w3": conv_w(ks[4], 32, 32),  "b3": bias(ks[5], 32, 32 * 9),
        "w4": conv_w(ks[6], 16, 32),  "b4": bias(ks[7], 16, 32 * 9),
        "w5": conv_w(ks[8], 1, 16),   "b5": bias(ks[9], 1, 16 * 9),
        "wl": jax.random.uniform(ks[10], (49, 10), jnp.float32,
                                 -1.0 / jnp.sqrt(49.0), 1.0 / jnp.sqrt(49.0)),
        "bl": bias(ks[11], 10, 49),
    }


if __name__ == "__main__":
    key = jax.random.PRNGKey(0)
    k_param, k_x = jax.random.split(key)
    params = init_params(k_param)
    kernel_params = prepare_params(params)          # once, outside jit
    # batch=2, flattened 28x28 images (the forward views to (N,1,28,28))
    x = jax.random.normal(k_x, (2, 784), jnp.float32)

    fwd = jax.jit(deeper_conv_model)
    out = fwd(x, kernel_params)
    out = jax.block_until_ready(out)

    assert out.shape == (2, 10), out.shape
    assert bool(jnp.all(jnp.isfinite(out)))
    assert bool(jnp.all((out >= 0.0) & (out <= 1.0)))  # sigmoid range
    print("KERNEL_OK")
</pallas_src>

<mosaic_0001>
module attributes {stable_mosaic.version = 11 : i64} {
  func.func @_conv_leaky_kernel(%arg0: i32, %arg1: memref<512x9xbf16, #tpu.memory_space<vmem>>, %arg2: memref<9x64xbf16, #tpu.memory_space<vmem>>, %arg3: memref<1x64xf32, #tpu.memory_space<vmem>>, %arg4: memref<512x64xbf16, #tpu.memory_space<vmem>>) attributes {dimension_semantics = [#tpu.dimension_semantics<parallel>], iteration_bounds = array<i64: 4>, scalar_prefetch = 0 : i64, scratch_operands = 0 : i64, tpu.core_type = #tpu.core_type<tc>, window_params = [{transform_indices = @transform_0, window_bounds = array<i64: 512, 9>}, {pipeline_mode = #tpu.pipeline_mode<synchronous>, transform_indices = @transform_1, window_bounds = array<i64: 9, 64>}, {pipeline_mode = #tpu.pipeline_mode<synchronous>, transform_indices = @transform_2, window_bounds = array<i64: 1, 64>}, {transform_indices = @transform_3, window_bounds = array<i64: 512, 64>}]} {
    %c0 = arith.constant 0 : index
    %c0_0 = arith.constant 0 : index
    %0 = vector.load %arg1[%c0, %c0_0] : memref<512x9xbf16, #tpu.memory_space<vmem>>, vector<512x9xbf16>
    %c0_1 = arith.constant 0 : index
    %c0_2 = arith.constant 0 : index
    %1 = vector.load %arg2[%c0_1, %c0_2] : memref<9x64xbf16, #tpu.memory_space<vmem>>, vector<9x64xbf16>
    %cst = arith.constant dense<0.000000e+00> : vector<512x64xf32>
    %2 = tpu.matmul %0, %1, %cst {dimension_numbers = #tpu.dot_dimension_numbers<[1], [0], [0], [1], [0, 0, 1, 1], [], []>} : vector<512x9xbf16>, vector<9x64xbf16>, vector<512x64xf32> -> vector<512x64xf32>
    %c0_3 = arith.constant 0 : index
    %c0_4 = arith.constant 0 : index
    %3 = vector.load %arg3[%c0_3, %c0_4] : memref<1x64xf32, #tpu.memory_space<vmem>>, vector<1x64xf32>
    %4 = vector.broadcast %3 : vector<1x64xf32> to vector<512x64xf32>
    %5 = arith.addf %2, %4 : vector<512x64xf32>
    %cst_5 = arith.constant 0.000000e+00 : f32
    %6 = vector.broadcast %cst_5 : f32 to vector<512x64xf32>
    %7 = arith.cmpf ogt, %5, %6 : vector<512x64xf32>
    %cst_6 = arith.constant 0.00999999977 : f32
    %8 = vector.broadcast %cst_6 : f32 to vector<512x64xf32>
    %9 = arith.mulf %8, %5 : vector<512x64xf32>
    %10 = arith.select %7, %5, %9 : vector<512x64xi1>, vector<512x64xf32>
    %11 = arith.truncf %10 : vector<512x64xf32> to vector<512x64xbf16>
    %c0_7 = arith.constant 0 : index
    %c0_8 = arith.constant 0 : index
    %12 = vector.load %arg4[%c0_7, %c0_8] : memref<512x64xbf16, #tpu.memory_space<vmem>>, vector<512x64xbf16>
    tpu.vector_store %arg4[%c0_7, %c0_8], %11 {strides = array<i32>} : memref<512x64xbf16, #tpu.memory_space<vmem>>, vector<512x64xbf16>,
    return
  }
  func.func @transform_0(%arg0: i32) -> (i32, i32) {
    %c0_i32 = arith.constant 0 : i32
    %c0_i32_0 = arith.constant 0 : i32
    return %arg0, %c0_i32 : i32, i32
  }
  func.func @transform_1(%arg0: i32) -> (i32, i32) {
    %c0_i32 = arith.constant 0 : i32
    %c0_i32_0 = arith.constant 0 : i32
    %c0_i32_1 = arith.constant 0 : i32
    return %c0_i32, %c0_i32_0 : i32, i32
  }
  func.func @transform_2(%arg0: i32) -> (i32, i32) {
    %c0_i32 = arith.constant 0 : i32
    %c0_i32_0 = arith.constant 0 : i32
    %c0_i32_1 = arith.constant 0 : i32
    return %c0_i32, %c0_i32_0 : i32, i32
  }
  func.func @transform_3(%arg0: i32) -> (i32, i32) {
    %c0_i32 = arith.constant 0 : i32
    %c0_i32_0 = arith.constant 0 : i32
    return %arg0, %c0_i32 : i32, i32
  }
}

module attributes {stable_mosaic.version = 11 : i64} {
  func.func @_conv_leaky_pool_kernel(%arg0: i32, %arg1: memref<400x576xbf16, #tpu.memory_space<vmem>>, %arg2: memref<400x576xbf16, #tpu.memory_space<vmem>>, %arg3: memref<400x576xbf16, #tpu.memory_space<vmem>>, %arg4: memref<400x576xbf16, #tpu.memory_space<vmem>>, %arg5: memref<576x32xbf16, #tpu.memory_space<vmem>>, %arg6: memref<1x32xf32, #tpu.memory_space<vmem>>, %arg7: memref<400x32xbf16, #tpu.memory_space<vmem>>) attributes {dimension_semantics = [#tpu.dimension_semantics<parallel>], iteration_bounds = array<i64: 1>, scalar_prefetch = 0 : i64, scratch_operands = 0 : i64, tpu.core_type = #tpu.core_type<tc>, window_params = [{transform_indices = @transform_0, window_bounds = array<i64: 400, 576>}, {transform_indices = @transform_1, window_bounds = array<i64: 400, 576>}, {transform_indices = @transform_2, window_bounds = array<i64: 400, 576>}, {transform_indices = @transform_3, window_bounds = array<i64: 400, 576>}, {pipeline_mode = #tpu.pipeline_mode<synchronous>, transform_indices = @transform_4, window_bounds = array<i64: 576, 32>}, {pipeline_mode = #tpu.pipeline_mode<synchronous>, transform_indices = @transform_5, window_bounds = array<i64: 1, 32>}, {transform_indices = @transform_6, window_bounds = array<i64: 400, 32>}]} {
    %c0 = arith.constant 0 : index
    %c0_0 = arith.constant 0 : index
    %0 = vector.load %arg5[%c0, %c0_0] : memref<576x32xbf16, #tpu.memory_space<vmem>>, vector<576x32xbf16>
    %c0_1 = arith.constant 0 : index
    %c0_2 = arith.constant 0 : index
    %1 = vector.load %arg1[%c0_1, %c0_2] : memref<400x576xbf16, #tpu.memory_space<vmem>>, vector<400x576xbf16>
    %cst = arith.constant dense<0.000000e+00> : vector<400x32xf32>
    %2 = tpu.matmul %1, %0, %cst {dimension_numbers = #tpu.dot_dimension_numbers<[1], [0], [0], [1], [0, 0, 1, 1], [], []>} : vector<400x576xbf16>, vector<576x32xbf16>, vector<400x32xf32> -> vector<400x32xf32>
    %c0_3 = arith.constant 0 : index
    %c0_4 = arith.constant 0 : index
    %3 = vector.load %arg2[%c0_3, %c0_4] : memref<400x576xbf16, #tpu.memory_space<vmem>>, vector<400x576xbf16>
    %cst_5 = arith.constant dense<0.000000e+00> : vector<400x32xf32>
    %4 = tpu.matmul %3, %0, %cst_5 {dimension_numbers = #tpu.dot_dimension_numbers<[1], [0], [0], [1], [0, 0, 1, 1], [], []>} : vector<400x576xbf16>, vector<576x32xbf16>, vector<400x32xf32> -> vector<400x32xf32>
    %5 = arith.maximumf %2, %4 : vector<400x32xf32>
    %c0_6 = arith.constant 0 : index
    %c0_7 = arith.constant 0 : index
    %6 = vector.load %arg3[%c0_6, %c0_7] : memref<400x576xbf16, #tpu.memory_space<vmem>>, vector<400x576xbf16>
    %cst_8 = arith.constant dense<0.000000e+00> : vector<400x32xf32>
    %7 = tpu.matmul %6, %0, %cst_8 {dimension_numbers = #tpu.dot_dimension_numbers<[1], [0], [0], [1], [0, 0, 1, 1], [], []>} : vector<400x576xbf16>, vector<576x32xbf16>, vector<400x32xf32> -> vector<400x32xf32>
    %8 = arith.maximumf %5, %7 : vector<400x32xf32>
    %c0_9 = arith.constant 0 : index
    %c0_10 = arith.constant 0 : index
    %9 = vector.load %arg4[%c0_9, %c0_10] : memref<400x576xbf16, #tpu.memory_space<vmem>>, vector<400x576xbf16>
    %cst_11 = arith.constant dense<0.000000e+00> : vector<400x32xf32>
    %10 = tpu.matmul %9, %0, %cst_11 {dimension_numbers = #tpu.dot_dimension_numbers<[1], [0], [0], [1], [0, 0, 1, 1], [], []>} : vector<400x576xbf16>, vector<576x32xbf16>, vector<400x32xf32> -> vector<400x32xf32>
    %11 = arith.maximumf %8, %10 : vector<400x32xf32>
    %c0_12 = arith.constant 0 : index
    %c0_13 = arith.constant 0 : index
    %12 = vector.load %arg6[%c0_12, %c0_13] : memref<1x32xf32, #tpu.memory_space<vmem>>, vector<1x32xf32>
    %13 = vector.broadcast %12 : vector<1x32xf32> to vector<400x32xf32>
    %14 = arith.addf %11, %13 : vector<400x32xf32>
    %cst_14 = arith.constant 0.000000e+00 : f32
    %15 = vector.broadcast %cst_14 : f32 to vector<400x32xf32>
    %16 = arith.cmpf ogt, %14, %15 : vector<400x32xf32>
    %cst_15 = arith.constant 0.00999999977 : f32
    %17 = vector.broadcast %cst_15 : f32 to vector<400x32xf32>
    %18 = arith.mulf %17, %14 : vector<400x32xf32>
    %19 = arith.select %16, %14, %18 : vector<400x32xi1>, vector<400x32xf32>
    %20 = arith.truncf %19 : vector<400x32xf32> to vector<400x32xbf16>
    %c0_16 = arith.constant 0 : index
    %c0_17 = arith.constant 0 : index
    %21 = vector.load %arg7[%c0_16, %c0_17] : memref<400x32xbf16, #tpu.memory_space<vmem>>, vector<400x32xbf16>
    tpu.vector_store %arg7[%c0_16, %c0_17], %20 {strides = array<i32>} : memref<400x32xbf16, #tpu.memory_space<vmem>>, vector<400x32xbf16>,
    return
  }
  func.func @transform_0(%arg0: i32) -> (i32, i32) {
    %c0_i32 = arith.constant 0 : i32
    %c0_i32_0 = arith.constant 0 : i32
    return %arg0, %c0_i32 : i32, i32
  }
  func.func @transform_1(%arg0: i32) -> (i32, i32) {
    %c0_i32 = arith.constant 0 : i32
    %c0_i32_0 = arith.constant 0 : i32
    return %arg0, %c0_i32 : i32, i32
  }
  func.func @transform_2(%arg0: i32) -> (i32, i32) {
    %c0_i32 = arith.constant 0 : i32
    %c0_i32_0 = arith.constant 0 : i32
    return %arg0, %c0_i32 : i32, i32
  }
  func.func @transform_3(%arg0: i32) -> (i32, i32) {
    %c0_i32 = arith.constant 0 : i32
    %c0_i32_0 = arith.constant 0 : i32
    return %arg0, %c0_i32 : i32, i32
  }
  func.func @transform_4(%arg0: i32) -> (i32, i32) {
    %c0_i32 = arith.constant 0 : i32
    %c0_i32_0 = arith.constant 0 : i32
    %c0_i32_1 = arith.constant 0 : i32
    return %c0_i32, %c0_i32_0 : i32, i32
  }
  func.func @transform_5(%arg0: i32) -> (i32, i32) {
    %c0_i32 = arith.constant 0 : i32
    %c0_i32_0 = arith.constant 0 : i32
    %c0_i32_1 = arith.constant 0 : i32
    return %c0_i32, %c0_i32_0 : i32, i32
  }
  func.func @transform_6(%arg0: i32) -> (i32, i32) {
    %c0_i32 = arith.constant 0 : i32
    %c0_i32_0 = arith.constant 0 : i32
    return %arg0, %c0_i32 : i32, i32
  }
}

module attributes {stable_mosaic.version = 11 : i64} {
  func.func @_conv_leaky_kernel(%arg0: i32, %arg1: memref<400x288xbf16, #tpu.memory_space<vmem>>, %arg2: memref<288x32xbf16, #tpu.memory_space<vmem>>, %arg3: memref<1x32xf32, #tpu.memory_space<vmem>>, %arg4: memref<400x32xbf16, #tpu.memory_space<vmem>>) attributes {dimension_semantics = [#tpu.dimension_semantics<parallel>], iteration_bounds = array<i64: 1>, scalar_prefetch = 0 : i64, scratch_operands = 0 : i64, tpu.core_type = #tpu.core_type<tc>, window_params = [{transform_indices = @transform_0, window_bounds = array<i64: 400, 288>}, {pipeline_mode = #tpu.pipeline_mode<synchronous>, transform_indices = @transform_1, window_bounds = array<i64: 288, 32>}, {pipeline_mode = #tpu.pipeline_mode<synchronous>, transform_indices = @transform_2, window_bounds = array<i64: 1, 32>}, {transform_indices = @transform_3, window_bounds = array<i64: 400, 32>}]} {
    %c0 = arith.constant 0 : index
    %c0_0 = arith.constant 0 : index
    %0 = vector.load %arg1[%c0, %c0_0] : memref<400x288xbf16, #tpu.memory_space<vmem>>, vector<400x288xbf16>
    %c0_1 = arith.constant 0 : index
    %c0_2 = arith.constant 0 : index
    %1 = vector.load %arg2[%c0_1, %c0_2] : memref<288x32xbf16, #tpu.memory_space<vmem>>, vector<288x32xbf16>
    %cst = arith.constant dense<0.000000e+00> : vector<400x32xf32>
    %2 = tpu.matmul %0, %1, %cst {dimension_numbers = #tpu.dot_dimension_numbers<[1], [0], [0], [1], [0, 0, 1, 1], [], []>} : vector<400x288xbf16>, vector<288x32xbf16>, vector<400x32xf32> -> vector<400x32xf32>
    %c0_3 = arith.constant 0 : index
    %c0_4 = arith.constant 0 : index
    %3 = vector.load %arg3[%c0_3, %c0_4] : memref<1x32xf32, #tpu.memory_space<vmem>>, vector<1x32xf32>
    %4 = vector.broadcast %3 : vector<1x32xf32> to vector<400x32xf32>
    %5 = arith.addf %2, %4 : vector<400x32xf32>
    %cst_5 = arith.constant 0.000000e+00 : f32
    %6 = vector.broadcast %cst_5 : f32 to vector<400x32xf32>
    %7 = arith.cmpf ogt, %5, %6 : vector<400x32xf32>
    %cst_6 = arith.constant 0.00999999977 : f32
    %8 = vector.broadcast %cst_6 : f32 to vector<400x32xf32>
    %9 = arith.mulf %8, %5 : vector<400x32xf32>
    %10 = arith.select %7, %5, %9 : vector<400x32xi1>, vector<400x32xf32>
    %11 = arith.truncf %10 : vector<400x32xf32> to vector<400x32xbf16>
    %c0_7 = arith.constant 0 : index
    %c0_8 = arith.constant 0 : index
    %12 = vector.load %arg4[%c0_7, %c0_8] : memref<400x32xbf16, #tpu.memory_space<vmem>>, vector<400x32xbf16>
    tpu.vector_store %arg4[%c0_7, %c0_8], %11 {strides = array<i32>} : memref<400x32xbf16, #tpu.memory_space<vmem>>, vector<400x32xbf16>,
    return
  }
  func.func @transform_0(%arg0: i32) -> (i32, i32) {
    %c0_i32 = arith.constant 0 : i32
    %c0_i32_0 = arith.constant 0 : i32
    return %arg0, %c0_i32 : i32, i32
  }
  func.func @transform_1(%arg0: i32) -> (i32, i32) {
    %c0_i32 = arith.constant 0 : i32
    %c0_i32_0 = arith.constant 0 : i32
    %c0_i32_1 = arith.constant 0 : i32
    return %c0_i32, %c0_i32_0 : i32, i32
  }
  func.func @transform_2(%arg0: i32) -> (i32, i32) {
    %c0_i32 = arith.constant 0 : i32
    %c0_i32_0 = arith.constant 0 : i32
    %c0_i32_1 = arith.constant 0 : i32
    return %c0_i32, %c0_i32_0 : i32, i32
  }
  func.func @transform_3(%arg0: i32) -> (i32, i32) {
    %c0_i32 = arith.constant 0 : i32
    %c0_i32_0 = arith.constant 0 : i32
    return %arg0, %c0_i32 : i32, i32
  }
}

module attributes {stable_mosaic.version = 11 : i64} {
  func.func @_conv_leaky_pool_kernel(%arg0: i32, %arg1: memref<112x288xbf16, #tpu.memory_space<vmem>>, %arg2: memref<112x288xbf16, #tpu.memory_space<vmem>>, %arg3: memref<112x288xbf16, #tpu.memory_space<vmem>>, %arg4: memref<112x288xbf16, #tpu.memory_space<vmem>>, %arg5: memref<288x16xbf16, #tpu.memory_space<vmem>>, %arg6: memref<1x16xf32, #tpu.memory_space<vmem>>, %arg7: memref<112x16xbf16, #tpu.memory_space<vmem>>) attributes {dimension_semantics = [#tpu.dimension_semantics<parallel>], iteration_bounds = array<i64: 1>, scalar_prefetch = 0 : i64, scratch_operands = 0 : i64, tpu.core_type = #tpu.core_type<tc>, window_params = [{transform_indices = @transform_0, window_bounds = array<i64: 112, 288>}, {transform_indices = @transform_1, window_bounds = array<i64: 112, 288>}, {transform_indices = @transform_2, window_bounds = array<i64: 112, 288>}, {transform_indices = @transform_3, window_bounds = array<i64: 112, 288>}, {pipeline_mode = #tpu.pipeline_mode<synchronous>, transform_indices = @transform_4, window_bounds = array<i64: 288, 16>}, {pipeline_mode = #tpu.pipeline_mode<synchronous>, transform_indices = @transform_5, window_bounds = array<i64: 1, 16>}, {transform_indices = @transform_6, window_bounds = array<i64: 112, 16>}]} {
    %c0 = arith.constant 0 : index
    %c0_0 = arith.constant 0 : index
    %0 = vector.load %arg5[%c0, %c0_0] : memref<288x16xbf16, #tpu.memory_space<vmem>>, vector<288x16xbf16>
    %c0_1 = arith.constant 0 : index
    %c0_2 = arith.constant 0 : index
    %1 = vector.load %arg1[%c0_1, %c0_2] : memref<112x288xbf16, #tpu.memory_space<vmem>>, vector<112x288xbf16>
    %cst = arith.constant dense<0.000000e+00> : vector<112x16xf32>
    %2 = tpu.matmul %1, %0, %cst {dimension_numbers = #tpu.dot_dimension_numbers<[1], [0], [0], [1], [0, 0, 1, 1], [], []>} : vector<112x288xbf16>, vector<288x16xbf16>, vector<112x16xf32> -> vector<112x16xf32>
    %c0_3 = arith.constant 0 : index
    %c0_4 = arith.constant 0 : index
    %3 = vector.load %arg2[%c0_3, %c0_4] : memref<112x288xbf16, #tpu.memory_space<vmem>>, vector<112x288xbf16>
    %cst_5 = arith.constant dense<0.000000e+00> : vector<112x16xf32>
    %4 = tpu.matmul %3, %0, %cst_5 {dimension_numbers = #tpu.dot_dimension_numbers<[1], [0], [0], [1], [0, 0, 1, 1], [], []>} : vector<112x288xbf16>, vector<288x16xbf16>, vector<112x16xf32> -> vector<112x16xf32>
    %5 = arith.maximumf %2, %4 : vector<112x16xf32>
    %c0_6 = arith.constant 0 : index
    %c0_7 = arith.constant 0 : index
    %6 = vector.load %arg3[%c0_6, %c0_7] : memref<112x288xbf16, #tpu.memory_space<vmem>>, vector<112x288xbf16>
    %cst_8 = arith.constant dense<0.000000e+00> : vector<112x16xf32>
    %7 = tpu.matmul %6, %0, %cst_8 {dimension_numbers = #tpu.dot_dimension_numbers<[1], [0], [0], [1], [0, 0, 1, 1], [], []>} : vector<112x288xbf16>, vector<288x16xbf16>, vector<112x16xf32> -> vector<112x16xf32>
    %8 = arith.maximumf %5, %7 : vector<112x16xf32>
    %c0_9 = arith.constant 0 : index
    %c0_10 = arith.constant 0 : index
    %9 = vector.load %arg4[%c0_9, %c0_10] : memref<112x288xbf16, #tpu.memory_space<vmem>>, vector<112x288xbf16>
    %cst_11 = arith.constant dense<0.000000e+00> : vector<112x16xf32>
    %10 = tpu.matmul %9, %0, %cst_11 {dimension_numbers = #tpu.dot_dimension_numbers<[1], [0], [0], [1], [0, 0, 1, 1], [], []>} : vector<112x288xbf16>, vector<288x16xbf16>, vector<112x16xf32> -> vector<112x16xf32>
    %11 = arith.maximumf %8, %10 : vector<112x16xf32>
    %c0_12 = arith.constant 0 : index
    %c0_13 = arith.constant 0 : index
    %12 = vector.load %arg6[%c0_12, %c0_13] : memref<1x16xf32, #tpu.memory_space<vmem>>, vector<1x16xf32>
    %13 = vector.broadcast %12 : vector<1x16xf32> to vector<112x16xf32>
    %14 = arith.addf %11, %13 : vector<112x16xf32>
    %cst_14 = arith.constant 0.000000e+00 : f32
    %15 = vector.broadcast %cst_14 : f32 to vector<112x16xf32>
    %16 = arith.cmpf ogt, %14, %15 : vector<112x16xf32>
    %cst_15 = arith.constant 0.00999999977 : f32
    %17 = vector.broadcast %cst_15 : f32 to vector<112x16xf32>
    %18 = arith.mulf %17, %14 : vector<112x16xf32>
    %19 = arith.select %16, %14, %18 : vector<112x16xi1>, vector<112x16xf32>
    %20 = arith.truncf %19 : vector<112x16xf32> to vector<112x16xbf16>
    %c0_16 = arith.constant 0 : index
    %c0_17 = arith.constant 0 : index
    %21 = vector.load %arg7[%c0_16, %c0_17] : memref<112x16xbf16, #tpu.memory_space<vmem>>, vector<112x16xbf16>
    tpu.vector_store %arg7[%c0_16, %c0_17], %20 {strides = array<i32>} : memref<112x16xbf16, #tpu.memory_space<vmem>>, vector<112x16xbf16>,
    return
  }
  func.func @transform_0(%arg0: i32) -> (i32, i32) {
    %c0_i32 = arith.constant 0 : i32
    %c0_i32_0 = arith.constant 0 : i32
    return %arg0, %c0_i32 : i32, i32
  }
  func.func @transform_1(%arg0: i32) -> (i32, i32) {
    %c0_i32 = arith.constant 0 : i32
    %c0_i32_0 = arith.constant 0 : i32
    return %arg0, %c0_i32 : i32, i32
  }
  func.func @transform_2(%arg0: i32) -> (i32, i32) {
    %c0_i32 = arith.constant 0 : i32
    %c0_i32_0 = arith.constant 0 : i32
    return %arg0, %c0_i32 : i32, i32
  }
  func.func @transform_3(%arg0: i32) -> (i32, i32) {
    %c0_i32 = arith.constant 0 : i32
    %c0_i32_0 = arith.constant 0 : i32
    return %arg0, %c0_i32 : i32, i32
  }
  func.func @transform_4(%arg0: i32) -> (i32, i32) {
    %c0_i32 = arith.constant 0 : i32
    %c0_i32_0 = arith.constant 0 : i32
    %c0_i32_1 = arith.constant 0 : i32
    return %c0_i32, %c0_i32_0 : i32, i32
  }
  func.func @transform_5(%arg0: i32) -> (i32, i32) {
    %c0_i32 = arith.constant 0 : i32
    %c0_i32_0 = arith.constant 0 : i32
    %c0_i32_1 = arith.constant 0 : i32
    return %c0_i32, %c0_i32_0 : i32, i32
  }
  func.func @transform_6(%arg0: i32) -> (i32, i32) {
    %c0_i32 = arith.constant 0 : i32
    %c0_i32_0 = arith.constant 0 : i32
    return %arg0, %c0_i32 : i32, i32
  }
}

module attributes {stable_mosaic.version = 11 : i64} {
  func.func @_linear_sigmoid_kernel(%arg0: i32, %arg1: memref<16x7056xbf16, #tpu.memory_space<vmem>>, %arg2: memref<7056x10xbf16, #tpu.memory_space<vmem>>, %arg3: memref<1x10xf32, #tpu.memory_space<vmem>>, %arg4: memref<16x10xf32, #tpu.memory_space<vmem>>) attributes {dimension_semantics = [#tpu.dimension_semantics<parallel>], iteration_bounds = array<i64: 1>, scalar_prefetch = 0 : i64, scratch_operands = 0 : i64, tpu.core_type = #tpu.core_type<tc>, window_params = [{transform_indices = @transform_0, window_bounds = array<i64: 16, 7056>}, {pipeline_mode = #tpu.pipeline_mode<synchronous>, transform_indices = @transform_1, window_bounds = array<i64: 7056, 10>}, {pipeline_mode = #tpu.pipeline_mode<synchronous>, transform_indices = @transform_2, window_bounds = array<i64: 1, 10>}, {transform_indices = @transform_3, window_bounds = array<i64: 16, 10>}]} {
    %c0 = arith.constant 0 : index
    %c0_0 = arith.constant 0 : index
    %0 = vector.load %arg1[%c0, %c0_0] : memref<16x7056xbf16, #tpu.memory_space<vmem>>, vector<16x7056xbf16>
    %c0_1 = arith.constant 0 : index
    %c0_2 = arith.constant 0 : index
    %1 = vector.load %arg2[%c0_1, %c0_2] : memref<7056x10xbf16, #tpu.memory_space<vmem>>, vector<7056x10xbf16>
    %cst = arith.constant dense<0.000000e+00> : vector<16x10xf32>
    %2 = tpu.matmul %0, %1, %cst {dimension_numbers = #tpu.dot_dimension_numbers<[1], [0], [0], [1], [0, 0, 1, 1], [], []>} : vector<16x7056xbf16>, vector<7056x10xbf16>, vector<16x10xf32> -> vector<16x10xf32>
    %c0_3 = arith.constant 0 : index
    %c0_4 = arith.constant 0 : index
    %3 = vector.load %arg3[%c0_3, %c0_4] : memref<1x10xf32, #tpu.memory_space<vmem>>, vector<1x10xf32>
    %4 = vector.broadcast %3 : vector<1x10xf32> to vector<16x10xf32>
    %5 = arith.addf %2, %4 : vector<16x10xf32>
    %6 = arith.negf %5 : vector<16x10xf32>
    %7 = math.exp %6 : vector<16x10xf32>
    %cst_5 = arith.constant 1.000000e+00 : f32
    %8 = vector.broadcast %cst_5 : f32 to vector<16x10xf32>
    %9 = arith.addf %8, %7 : vector<16x10xf32>
    %10 = arith.divf %8, %9 : vector<16x10xf32>
    %c0_6 = arith.constant 0 : index
    %c0_7 = arith.constant 0 : index
    %11 = vector.load %arg4[%c0_6, %c0_7] : memref<16x10xf32, #tpu.memory_space<vmem>>, vector<16x10xf32>
    tpu.vector_store %arg4[%c0_6, %c0_7], %10 {strides = array<i32>} : memref<16x10xf32, #tpu.memory_space<vmem>>, vector<16x10xf32>,
    return
  }
  func.func @transform_0(%arg0: i32) -> (i32, i32) {
    %c0_i32 = arith.constant 0 : i32
    %c0_i32_0 = arith.constant 0 : i32
    return %arg0, %c0_i32 : i32, i32
  }
  func.func @transform_1(%arg0: i32) -> (i32, i32) {
    %c0_i32 = arith.constant 0 : i32
    %c0_i32_0 = arith.constant 0 : i32
    %c0_i32_1 = arith.constant 0 : i32
    return %c0_i32, %c0_i32_0 : i32, i32
  }
  func.func @transform_2(%arg0: i32) -> (i32, i32) {
    %c0_i32 = arith.constant 0 : i32
    %c0_i32_0 = arith.constant 0 : i32
    %c0_i32_1 = arith.constant 0 : i32
    return %c0_i32, %c0_i32_0 : i32, i32
  }
  func.func @transform_3(%arg0: i32) -> (i32, i32) {
    %c0_i32 = arith.constant 0 : i32
    %c0_i32_0 = arith.constant 0 : i32
    return %arg0, %c0_i32 : i32, i32
  }
}

</mosaic_0001>

<llo_original>
// kernel: deeper_conv_model.5
$region0: #{deeper_conv_model.5}
  #allocation0 [shape = 'u32[]', space=smem, size = 0x4, offset = 0x4, fixed_abs, tag = 'smem constant byte address 0x4 - core index']
  #allocation1 [shape = 'u32[72,128]{1,0:T(1,128)}', space=vmem, size = 0x9000, scoped, tag = 'internal scratch']
  %s0 = inlined_call_operand.vmem [shape: bf16[2048,9], index: 0, kind: input, shape index: {}]
  %s1 = inlined_call_operand.vmem [shape: bf16[9,64], index: 1, kind: input, shape index: {}]
  %s2 = inlined_call_operand.vmem [shape: f32[1,64], index: 2, kind: input, shape index: {}]
  %s3 = inlined_call_operand.vmem [shape: bf16[2048,64], index: 3, kind: output, shape index: {}]
  %s4 = sld [smem:[#allocation0]]
  $region45: #{deeper_conv_model.5} parent=0
    _
  %s6 = ssub.s32 1, %s4
  %s7 = scalar_select 0, %s6, %s4
  loop: start=0, step=1, limit=6
  $region2: #{deeper_conv_model.5} parent=0 // loop_pre_header
    _
  $region3: #{deeper_conv_model.5} parent=0 // loop_header
    %s9 = sphi 0, %s13
    %p10 = scmp.ge.s32.totalorder %s9, 6
    %s19 = sphi 0, %s21
    %s22 = sphi 0, %s19
    %s23 = sphi 0, %s22
    %s39 = sphi 0, %s23
    %s43 = sphi 0, %s43
    %s45 = sphi 0, %s43
    %s46 = sphi 0, %s45
    %s60 = sphi 0, %s46
    %s64 = sphi 0, %s64
    %s66 = sphi 0, %s64
    %s67 = sphi 0, %s66
    %s81 = sphi 0, %s67
    %s87 = sphi 0, %s89
    %s90 = sphi 0, %s87
    %s91 = sphi 0, %s90
    %s107 = sphi 0, %s91
  $region4: #{deeper_conv_model.5} parent=0 // loop_header_branch
    %12 = sbr.rel (%p10) target = $region8
  $region5: #{deeper_conv_model.5} parent=0 // loop_body
    %s14 = ssub.s32 %s9, 1
    %s15 = ssub.s32 %s9, 2
    %s16 = sadd.s32 %s9, 1
    %s17 = ssub.s32 %s9, %s16
    %p18 = scmp.eq.s32.totalorder %s17, 0
    %s20 = sadd.s32 %s19, 1
    %s21 = scalar_select %p18, %s19, %s20
    %p24 = pneg %p18
    %p25 = scmp.eq.s32.totalorder %s9, 3
    %p26 = por %p24, %p25
    %p27 = scmp.ne.s32.totalorder %s19, %s22
    %p28 = scmp.eq.s32.totalorder %s9, 0
    %p29 = por %p27, %p28
    %p30 = scmp.ne.s32.totalorder %s19, %s22
    %p31 = scmp.eq.s32.totalorder %s14, 3
    %p32 = por %p30, %p31
    %p33 = scmp.ne.s32.totalorder %s22, %s23
    %p34 = scmp.eq.s32.totalorder %s14, 0
    %p35 = por %p33, %p34
    %p36 = scmp.ne.s32.totalorder %s22, %s23
    %p37 = scmp.eq.s32.totalorder %s15, 3
    %p38 = por %p36, %p37
    %p40 = scmp.ne.s32.totalorder %s23, %s39
    %p41 = scmp.eq.s32.totalorder %s15, 0
    %p42 = por %p40, %p41
    %s44 = sadd.s32 %s43, 1
    %p47 = scmp.eq.s32.totalorder %s9, 3
    %p48 = scmp.ne.s32.totalorder %s43, %s45
    %p49 = scmp.eq.s32.totalorder %s9, 0
    %p50 = por %p48, %p49
    %p51 = scmp.ne.s32.totalorder %s43, %s45
    %p52 = scmp.eq.s32.totalorder %s14, 3
    %p53 = por %p51, %p52
    %p54 = scmp.ne.s32.totalorder %s45, %s46
    %p55 = scmp.eq.s32.totalorder %s14, 0
    %p56 = por %p54, %p55
    %p57 = scmp.ne.s32.totalorder %s45, %s46
    %p58 = scmp.eq.s32.totalorder %s15, 3
    %p59 = por %p57, %p58
    %p61 = scmp.ne.s32.totalorder %s46, %s60
    %p62 = scmp.eq.s32.totalorder %s15, 0
    %p63 = por %p61, %p62
    %s65 = sadd.s32 %s64, 1
    %p68 = scmp.eq.s32.totalorder %s9, 3
    %p69 = scmp.ne.s32.totalorder %s64, %s66
    %p70 = scmp.eq.s32.totalorder %s9, 0
    %p71 = por %p69, %p70
    %p72 = scmp.ne.s32.totalorder %s64, %s66
    %p73 = scmp.eq.s32.totalorder %s14, 3
    %p74 = por %p72, %p73
    %p75 = scmp.ne.s32.totalorder %s66, %s67
    %p76 = scmp.eq.s32.totalorder %s14, 0
    %p77 = por %p75, %p76
    %p78 = scmp.ne.s32.totalorder %s66, %s67
    %p79 = scmp.eq.s32.totalorder %s15, 3
    %p80 = por %p78, %p79
    %p82 = scmp.ne.s32.totalorder %s67, %s81
    %p83 = scmp.eq.s32.totalorder %s15, 0
    %p84 = por %p82, %p83
    %s85 = ssub.s32 %s9, %s16
    %p86 = scmp.eq.s32.totalorder %s85, 0
    %s88 = sadd.s32 %s87, 1
    %s89 = scalar_select %p86, %s87, %s88
    %p92 = pneg %p86
    %p93 = scmp.eq.s32.totalorder %s9, 3
    %p94 = por %p92, %p93
    %p95 = scmp.ne.s32.totalorder %s87, %s90
    %p96 = scmp.eq.s32.totalorder %s9, 0
    %p97 = por %p95, %p96
    %p98 = scmp.ne.s32.totalorder %s87, %s90
    %p99 = scmp.eq.s32.totalorder %s14, 3
    %p100 = por %p98, %p99
    %p101 = scmp.ne.s32.totalorder %s90, %s91
    %p102 = scmp.eq.s32.totalorder %s14, 0
    %p103 = por %p101, %p102
    %p104 = scmp.ne.s32.totalorder %s90, %s91
    %p105 = scmp.eq.s32.totalorder %s15, 3
    %p106 = por %p104, %p105
    %p108 = scmp.ne.s32.totalorder %s91, %s107
    %p109 = scmp.eq.s32.totalorder %s15, 0
    %p110 = por %p108, %p109
    %p111 = scmp.le.s32.totalorder 1, %s9
    %p112 = scmp.lt.s32.totalorder %s9, 5
    %p113 = pnand %p111, %p112
    %p114 = pneg %p113
    // Predicated region
    $region9: #{deeper_conv_model.5} parent=5 // pred_check
      _
    $region10: #{deeper_conv_model.5} parent=5 // pred_check_branch
      %116 = sbr.rel (%p113) target = $region12
    $region11: #{deeper_conv_model.5} parent=5 // pred_region
      %s117 = ssub.s32 %s9, 1
      // Predicated region
      $region13: #{deeper_conv_model.5} parent=11 // pred_check
        %p118 = pneg %p56
      $region14: #{deeper_conv_model.5} parent=11 // pred_check_branch
        %120 = sbr.rel (%p118) target = $region16
      $region15: #{deeper_conv_model.5} parent=11 // pred_region
        _
      $region16: #{deeper_conv_model.5} parent=11 // pred_fallthru
        _
      // Predicated region
      $region17: #{deeper_conv_model.5} parent=11 // pred_check
        %p121 = pneg %p77
      $region18: #{deeper_conv_model.5} parent=11 // pred_check_branch
        %123 = sbr.rel (%p121) target = $region20
      $region19: #{deeper_conv_model.5} parent=11 // pred_region
        _
      $region20: #{deeper_conv_model.5} parent=11 // pred_fallthru
        _
    $region12: #{deeper_conv_model.5} parent=5 // pred_fallthru
      _
    %p124 = scmp.lt.s32.totalorder %s9, 4
    // Predicated region
    $region21: #{deeper_conv_model.5} parent=5 // pred_check
      %p125 = pneg %p124
    $region22: #{deeper_conv_model.5} parent=5 // pred_check_branch
      %127 = sbr.rel (%p125) target = $region24
    $region23: #{deeper_conv_model.5} parent=5 // pred_region
      // Predicated region
      $region25: #{deeper_conv_model.5} parent=23 // pred_check
        %p128 = pneg %p29
      $region26: #{deeper_conv_model.5} parent=23 // pred_check_branch
        %130 = sbr.rel (%p128) target = $region28
      $region27: #{deeper_conv_model.5} parent=23 // pred_region
        %s131 = smul.u32 64, %s9
        %p132 = scmp.lt.s32.totalorder %s131, 255
        %s133 = scalar_select %p132, %s131, 255
        %s134 = smul.addr %s133, 4
        %s135 = scalar_lea.vmem %s0, %s134
        %s136 = smul.u32 64, %s9
      $region28: #{deeper_conv_model.5} parent=23 // pred_fallthru
        _
    $region24: #{deeper_conv_model.5} parent=5 // pred_fallthru
      _
    %p137 = scmp.le.s32.totalorder 1, %s9
    %p138 = scmp.lt.s32.totalorder %s9, 5
    %p139 = pnand %p137, %p138
    %p140 = pneg %p139
    // Predicated region
    $region29: #{deeper_conv_model.5} parent=5 // pred_check
      _
    $region30: #{deeper_conv_model.5} parent=5 // pred_check_branch
      %142 = sbr.rel (%p139) target = $region32
    $region31: #{deeper_conv_model.5} parent=5 // pred_region
      %s143 = ssub.s32 %s9, 1
      %s144 = smul.u32 64, %s14
      %p145 = scmp.lt.s32.totalorder %s144, 255
      %s146 = scalar_select %p145, %s144, 255
      %s147 = smul.addr %s146, 4
      %s148 = scalar_lea.vmem %s0, %s147
      %p149 = pneg %p35
      %p150 = pneg %p32
      %p151 = pneg %p56
      %p152 = pneg %p53
      %p153 = pneg %p77
      %p154 = pneg %p74
      %p155 = pneg %p103
      %p156 = pneg %p100
      %s157 = smul.u32 64, %s14
      %p158 = scmp.lt.s32.totalorder %s157, 255
      %s159 = scalar_select %p158, %s157, 255
      %s160 = smul.addr %s159, 4
      %s161 = scalar_lea.vmem %s3, %s160
      %s162 = smul.u32 64, %s14
      %p163 = scmp.lt.s32.totalorder %s162, 255
      %s164 = scalar_select %p163, %s162, 255
      %s165 = smul.addr %s164, 4
      %s166 = scalar_lea.vmem %s0, %s165
      %s167 = smul.u32 64, %s14
      %s168 = smul.u32 64, %s14
      %p169 = scmp.lt.s32.totalorder %s168, 255
      %s170 = scalar_select %p169, %s168, 255
      %s171 = smul.addr %s170, 4
      %s172 = scalar_lea.vmem %s3, %s171
      %s173 = smul.u32 64, %s14
      %v175 = vld [vmem:[%s166] sm:$0xf]
      %v176 = vld [vmem:[%s166 + $0x4] sm:$0xf]
      %v177 = vld [vmem:[%s166 + $0x8] sm:$0xf]
      %v178 = vld [vmem:[%s166 + $0xc] sm:$0xf]
      %v179 = vld [vmem:[%s166 + $0x10] sm:$0xf]
      %v180 = vld [vmem:[%s166 + $0x14] sm:$0xf]
      %v181 = vld [vmem:[%s166 + $0x18] sm:$0xf]
      %v182 = vld [vmem:[%s166 + $0x1c] sm:$0xf]
      %v183 = vld [vmem:[%s166 + $0x20] sm:$0xf]
      %v184 = vld [vmem:[%s166 + $0x24] sm:$0xf]
      %v185 = vld [vmem:[%s166 + $0x28] sm:$0xf]
      %v186 = vld [vmem:[%s166 + $0x2c] sm:$0xf]
      %v187 = vld [vmem:[%s166 + $0x30] sm:$0xf]
      %v188 = vld [vmem:[%s166 + $0x34] sm:$0xf]
      %v189 = vld [vmem:[%s166 + $0x38] sm:$0xf]
      %v190 = vld [vmem:[%s166 + $0x3c] sm:$0xf]
      %v191 = vld [vmem:[%s166 + $0x40] sm:$0xf]
      %v192 = vld [vmem:[%s166 + $0x44] sm:$0xf]
      %v193 = vld [vmem:[%s166 + $0x48] sm:$0xf]
      %v194 = vld [vmem:[%s166 + $0x4c] sm:$0xf]
      %v195 = vld [vmem:[%s166 + $0x50] sm:$0xf]
      %v196 = vld [vmem:[%s166 + $0x54] sm:$0xf]
      %v197 = vld [vmem:[%s166 + $0x58] sm:$0xf]
      %v198 = vld [vmem:[%s166 + $0x5c] sm:$0xf]
      %v199 = vld [vmem:[%s166 + $0x60] sm:$0xf]
      %v200 = vld [vmem:[%s166 + $0x64] sm:$0xf]
      %v201 = vld [vmem:[%s166 + $0x68] sm:$0xf]
      %v202 = vld [vmem:[%s166 + $0x6c] sm:$0xf]
      %v203 = vld [vmem:[%s166 + $0x70] sm:$0xf]
      %v204 = vld [vmem:[%s166 + $0x74] sm:$0xf]
      %v205 = vld [vmem:[%s166 + $0x78] sm:$0xf]
      %v206 = vld [vmem:[%s166 + $0x7c] sm:$0xf]
      %v207 = vld [vmem:[%s166 + $0x80] sm:$0xf]
      %v208 = vld [vmem:[%s166 + $0x84] sm:$0xf]
      %v209 = vld [vmem:[%s166 + $0x88] sm:$0xf]
      %v210 = vld [vmem:[%s166 + $0x8c] sm:$0xf]
      %v211 = vld [vmem:[%s166 + $0x90] sm:$0xf]
      %v212 = vld [vmem:[%s166 + $0x94] sm:$0xf]
      %v213 = vld [vmem:[%s166 + $0x98] sm:$0xf]
      %v214 = vld [vmem:[%s166 + $0x9c] sm:$0xf]
      %v215 = vld [vmem:[%s166 + $0xa0] sm:$0xf]
      %v216 = vld [vmem:[%s166 + $0xa4] sm:$0xf]
      %v217 = vld [vmem:[%s166 + $0xa8] sm:$0xf]
      %v218 = vld [vmem:[%s166 + $0xac] sm:$0xf]
      %v219 = vld [vmem:[%s166 + $0xb0] sm:$0xf]
      %v220 = vld [vmem:[%s166 + $0xb4] sm:$0xf]
      %v221 = vld [vmem:[%s166 + $0xb8] sm:$0xf]
      %v222 = vld [vmem:[%s166 + $0xbc] sm:$0xf]
      %v223 = vld [vmem:[%s166 + $0xc0] sm:$0xf]
      %v224 = vld [vmem:[%s166 + $0xc4] sm:$0xf]
      %v225 = vld [vmem:[%s166 + $0xc8] sm:$0xf]
      %v226 = vld [vmem:[%s166 + $0xcc] sm:$0xf]
      %v227 = vld [vmem:[%s166 + $0xd0] sm:$0xf]
      %v228 = vld [vmem:[%s166 + $0xd4] sm:$0xf]
      %v229 = vld [vmem:[%s166 + $0xd8] sm:$0xf]
      %v230 = vld [vmem:[%s166 + $0xdc] sm:$0xf]
      %v231 = vld [vmem:[%s166 + $0xe0] sm:$0xf]
      %v232 = vld [vmem:[%s166 + $0xe4] sm:$0xf]
      %v233 = vld [vmem:[%s166 + $0xe8] sm:$0xf]
      %v234 = vld [vmem:[%s166 + $0xec] sm:$0xf]
      %v235 = vld [vmem:[%s166 + $0xf0] sm:$0xf]
      %v236 = vld [vmem:[%s166 + $0xf4] sm:$0xf]
      %v237 = vld [vmem:[%s166 + $0xf8] sm:$0xf]
      %v238 = vld [vmem:[%s166 + $0xfc] sm:$0xf]
      %v239 = vld [vmem:[%s1] sm:$0xf]
      %v240 = vld [vmem:[%s1 + $0x4] sm:$0x1]
      %v241 = vld [vmem:[%s2] sm:$0x1]
      %v243 = vperm.slane %v241, 0
      %v309 = vunpack.c.l.b16 %v175
      %v310 = vunpack.c.l.b16 %v176
      %v311 = vunpack.c.l.b16 %v177
      %v312 = vunpack.c.l.b16 %v178
      %v313 = vunpack.c.l.b16 %v179
      %v314 = vunpack.c.l.b16 %v180
      %v315 = vunpack.c.l.b16 %v181
      %v316 = vunpack.c.l.b16 %v182
      %v317 = vunpack.c.l.b16 %v183
      %v318 = vunpack.c.l.b16 %v184
      %v319 = vunpack.c.l.b16 %v185
      %v320 = vunpack.c.l.b16 %v186
      %v321 = vunpack.c.l.b16 %v187
      %v322 = vunpack.c.l.b16 %v188
      %v323 = vunpack.c.l.b16 %v189
      %v324 = vunpack.c.l.b16 %v190
      %v325 = vunpack.c.l.b16 %v191
      %v326 = vunpack.c.l.b16 %v192
      %v327 = vunpack.c.l.b16 %v193
      %v328 = vunpack.c.l.b16 %v194
      %v329 = vunpack.c.l.b16 %v195
      %v330 = vunpack.c.l.b16 %v196
      %v331 = vunpack.c.l.b16 %v197
      %v332 = vunpack.c.l.b16 %v198
      %v333 = vunpack.c.l.b16 %v199
      %v334 = vunpack.c.l.b16 %v200
      %v335 = vunpack.c.l.b16 %v201
      %v336 = vunpack.c.l.b16 %v202
      %v337 = vunpack.c.l.b16 %v203
      %v338 = vunpack.c.l.b16 %v204
      %v339 = vunpack.c.l.b16 %v205
      %v340 = vunpack.c.l.b16 %v206
      %v341 = vunpack.c.l.b16 %v207
      %v342 = vunpack.c.l.b16 %v208
      %v343 = vunpack.c.l.b16 %v209
      %v344 = vunpack.c.l.b16 %v210
      %v345 = vunpack.c.l.b16 %v211
      %v346 = vunpack.c.l.b16 %v212
      %v347 = vunpack.c.l.b16 %v213
      %v348 = vunpack.c.l.b16 %v214
      %v349 = vunpack.c.l.b16 %v215
      %v350 = vunpack.c.l.b16 %v216
      %v351 = vunpack.c.l.b16 %v217
      %v352 = vunpack.c.l.b16 %v218
      %v353 = vunpack.c.l.b16 %v219
      %v354 = vunpack.c.l.b16 %v220
      %v355 = vunpack.c.l.b16 %v221
      %v356 = vunpack.c.l.b16 %v222
      %v357 = vunpack.c.l.b16 %v223
      %v358 = vunpack.c.l.b16 %v224
      %v359 = vunpack.c.l.b16 %v225
      %v360 = vunpack.c.l.b16 %v226
      %v361 = vunpack.c.l.b16 %v227
      %v362 = vunpack.c.l.b16 %v228
      %v363 = vunpack.c.l.b16 %v229
      %v364 = vunpack.c.l.b16 %v230
      %v365 = vunpack.c.l.b16 %v231
      %v366 = vunpack.c.l.b16 %v232
      %v367 = vunpack.c.l.b16 %v233
      %v368 = vunpack.c.l.b16 %v234
      %v369 = vunpack.c.l.b16 %v235
      %v370 = vunpack.c.l.b16 %v236
      %v371 = vunpack.c.l.b16 %v237
      %v372 = vunpack.c.l.b16 %v238
      %v373 = vpack.c.b16 %v310, %v309
      %v374 = vpack.c.b16 %v312, %v311
      %v375 = vpack.c.b16 %v314, %v313
      %v376 = vpack.c.b16 %v316, %v315
      %v377 = vpack.c.b16 %v318, %v317
      %v378 = vpack.c.b16 %v320, %v319
      %v379 = vpack.c.b16 %v322, %v321
      %v380 = vpack.c.b16 %v324, %v323
      %v381 = vpack.c.b16 %v326, %v325
      %v382 = vpack.c.b16 %v328, %v327
      %v383 = vpack.c.b16 %v330, %v329
      %v384 = vpack.c.b16 %v332, %v331
      %v385 = vpack.c.b16 %v334, %v333
      %v386 = vpack.c.b16 %v336, %v335
      %v387 = vpack.c.b16 %v338, %v337
      %v388 = vpack.c.b16 %v340, %v339
      %v389 = vpack.c.b16 %v342, %v341
      %v390 = vpack.c.b16 %v344, %v343
      %v391 = vpack.c.b16 %v346, %v345
      %v392 = vpack.c.b16 %v348, %v347
      %v393 = vpack.c.b16 %v350, %v349
      %v394 = vpack.c.b16 %v352, %v351
      %v395 = vpack.c.b16 %v354, %v353
      %v396 = vpack.c.b16 %v356, %v355
      %v397 = vpack.c.b16 %v358, %v357
      %v398 = vpack.c.b16 %v360, %v359
      %v399 = vpack.c.b16 %v362, %v361
      %v400 = vpack.c.b16 %v364, %v363
      %v401 = vpack.c.b16 %v366, %v365
      %v402 = vpack.c.b16 %v368, %v367
      %v403 = vpack.c.b16 %v370, %v369
      %v404 = vpack.c.b16 %v372, %v371
      %v407 = vunpack.c.l.b16 %v239
      %v408 = vunpack.c.l.b16 %v240
      %v409 = vpack.c.b16 %v408, %v407
      %vm410 = vcmask 72704
      %v412 = vsel %vm410, %v373, 0
      %v415 = vsel %vm410, %v374, 0
      %v418 = vsel %vm410, %v375, 0
      %v421 = vsel %vm410, %v376, 0
      %v424 = vsel %vm410, %v377, 0
      %v427 = vsel %vm410, %v378, 0
      %v430 = vsel %vm410, %v379, 0
      %v433 = vsel %vm410, %v380, 0
      %v436 = vsel %vm410, %v381, 0
      %v439 = vsel %vm410, %v382, 0
      %v442 = vsel %vm410, %v383, 0
      %v445 = vsel %vm410, %v384, 0
      %v448 = vsel %vm410, %v385, 0
      %v451 = vsel %vm410, %v386, 0
      %v454 = vsel %vm410, %v387, 0
      %v457 = vsel %vm410, %v388, 0
      %v460 = vsel %vm410, %v389, 0
      %v463 = vsel %vm410, %v390, 0
      %v466 = vsel %vm410, %v391, 0
      %v469 = vsel %vm410, %v392, 0
      %v472 = vsel %vm410, %v393, 0
      %v475 = vsel %vm410, %v394, 0
      %v478 = vsel %vm410, %v395, 0
      %v481 = vsel %vm410, %v396, 0
      %v484 = vsel %vm410, %v397, 0
      %v487 = vsel %vm410, %v398, 0
      %v490 = vsel %vm410, %v399, 0
      %v493 = vsel %vm410, %v400, 0
      %v496 = vsel %vm410, %v401, 0
      %v499 = vsel %vm410, %v402, 0
      %v502 = vsel %vm410, %v403, 0
      %v505 = vsel %vm410, %v404, 0
      %vm507 = vcmask 1043456
      %vm508 = vcmask 1044480
      %v509 = vsel %vm507, 4294967295, 65535
      %v510 = vsel %vm508, %v509, 0
      %v512 = vand.u32 %v409, %v510
      %514 = vmatpush.bf16.msra.mxu0 0
      %515 = vmatpush.bf16.msra.mxu0 0
      %516 = vmatpush.bf16.msra.mxu0 0
      %517 = vmatpush.bf16.msra.mxu0 0
      %518 = vmatpush.bf16.msra.mxu0 0
      %519 = vmatpush.bf16.msra.mxu0 0
      %520 = vmatpush.bf16.msra.mxu0 0
      %521 = vmatpush.bf16.msra.mxu0 %v512
      %522 = vmatmul.bf16.gmra.mxu0 %v412
      %v523 = vpop.f32.mrf.mxu0
      %v524 = vadd.f32 %v243, %v523
      %v525 = vpop.f32.mrf.mxu0
      %v526 = vadd.f32 %v243, %v525
      %527 = vmatmul.bf16.gmra.mxu0 %v415
      %v528 = vpop.f32.mrf.mxu0
      %v529 = vadd.f32 %v243, %v528
      %v530 = vpop.f32.mrf.mxu0
      %v531 = vadd.f32 %v243, %v530
      %532 = vmatmul.bf16.gmra.mxu0 %v418
      %v533 = vpop.f32.mrf.mxu0
      %v534 = vadd.f32 %v243, %v533
      %v535 = vpop.f32.mrf.mxu0
      %v536 = vadd.f32 %v243, %v535
      %537 = vmatmul.bf16.gmra.mxu0 %v421
      %v538 = vpop.f32.mrf.mxu0
      %v539 = vadd.f32 %v243, %v538
      %v540 = vpop.f32.mrf.mxu0
      %v541 = vadd.f32 %v243, %v540
      %542 = vmatmul.bf16.gmra.mxu0 %v424
      %v543 = vpop.f32.mrf.mxu0
      %v544 = vadd.f32 %v243, %v543
      %v545 = vpop.f32.mrf.mxu0
      %v546 = vadd.f32 %v243, %v545
      %547 = vmatmul.bf16.gmra.mxu0 %v427
      %v548 = vpop.f32.mrf.mxu0
      %v549 = vadd.f32 %v243, %v548
      %v550 = vpop.f32.mrf.mxu0
      %v551 = vadd.f32 %v243, %v550
      %552 = vmatmul.bf16.gmra.mxu0 %v430
      %v553 = vpop.f32.mrf.mxu0
      %v554 = vadd.f32 %v243, %v553
      %v555 = vpop.f32.mrf.mxu0
      %v556 = vadd.f32 %v243, %v555
      %557 = vmatmul.bf16.gmra.mxu0 %v433
      %v558 = vpop.f32.mrf.mxu0
      %v559 = vadd.f32 %v243, %v558
      %v560 = vpop.f32.mrf.mxu0
      %v561 = vadd.f32 %v243, %v560
      %562 = vmatmul.bf16.gmra.mxu0 %v436
      %v563 = vpop.f32.mrf.mxu0
      %v564 = vadd.f32 %v243, %v563
      %v565 = vpop.f32.mrf.mxu0
      %v566 = vadd.f32 %v243, %v565
      %567 = vmatmul.bf16.gmra.mxu0 %v439
      %v568 = vpop.f32.mrf.mxu0
      %v569 = vadd.f32 %v243, %v568
      %v570 = vpop.f32.mrf.mxu0
      %v571 = vadd.f32 %v243, %v570
      %572 = vmatmul.bf16.gmra.mxu0 %v442
      %v573 = vpop.f32.mrf.mxu0
      %v574 = vadd.f32 %v243, %v573
      %v575 = vpop.f32.mrf.mxu0
      %v576 = vadd.f32 %v243, %v575
      %577 = vmatmul.bf16.gmra.mxu0 %v445
      %v578 = vpop.f32.mrf.mxu0
      %v579 = vadd.f32 %v243, %v578
      %v580 = vpop.f32.mrf.mxu0
      %v581 = vadd.f32 %v243, %v580
      %582 = vmatmul.bf16.gmra.mxu0 %v448
      %v583 = vpop.f32.mrf.mxu0
      %v584 = vadd.f32 %v243, %v583
      %v585 = vpop.f32.mrf.mxu0
      %v586 = vadd.f32 %v243, %v585
      %587 = vmatmul.bf16.gmra.mxu0 %v451
      %v588 = vpop.f32.mrf.mxu0
      %v589 = vadd.f32 %v243, %v588
      %v590 = vpop.f32.mrf.mxu0
      %v591 = vadd.f32 %v243, %v590
      %592 = vmatmul.bf16.gmra.mxu0 %v454
      %v593 = vpop.f32.mrf.mxu0
      %v594 = vadd.f32 %v243, %v593
      %v595 = vpop.f32.mrf.mxu0
      %v596 = vadd.f32 %v243, %v595
      %597 = vmatmul.bf16.gmra.mxu0 %v457
      %v598 = vpop.f32.mrf.mxu0
      %v599 = vadd.f32 %v243, %v598
      %v600 = vpop.f32.mrf.mxu0
      %v601 = vadd.f32 %v243, %v600
      %602 = vmatmul.bf16.gmra.mxu0 %v460
      %v603 = vpop.f32.mrf.mxu0
      %v604 = vadd.f32 %v243, %v603
      %v605 = vpop.f32.mrf.mxu0
      %v606 = vadd.f32 %v243, %v605
      %607 = vmatmul.bf16.gmra.mxu0 %v463
      %v608 = vpop.f32.mrf.mxu0
      %v609 = vadd.f32 %v243, %v608
      %v610 = vpop.f32.mrf.mxu0
      %v611 = vadd.f32 %v243, %v610
      %612 = vmatmul.bf16.gmra.mxu0 %v466
      %v613 = vpop.f32.mrf.mxu0
      %v614 = vadd.f32 %v243, %v613
      %v615 = vpop.f32.mrf.mxu0
      %v616 = vadd.f32 %v243, %v615
      %617 = vmatmul.bf16.gmra.mxu0 %v469
      %v618 = vpop.f32.mrf.mxu0
      %v619 = vadd.f32 %v243, %v618
      %v620 = vpop.f32.mrf.mxu0
      %v621 = vadd.f32 %v243, %v620
      %622 = vmatmul.bf16.gmra.mxu0 %v472
      %v623 = vpop.f32.mrf.mxu0
      %v624 = vadd.f32 %v243, %v623
      %v625 = vpop.f32.mrf.mxu0
      %v626 = vadd.f32 %v243, %v625
      %627 = vmatmul.bf16.gmra.mxu0 %v475
      %v628 = vpop.f32.mrf.mxu0
      %v629 = vadd.f32 %v243, %v628
      %v630 = vpop.f32.mrf.mxu0
      %v631 = vadd.f32 %v243, %v630
      %632 = vmatmul.bf16.gmra.mxu0 %v478
      %v633 = vpop.f32.mrf.mxu0
      %v634 = vadd.f32 %v243, %v633
      %v635 = vpop.f32.mrf.mxu0
      %v636 = vadd.f32 %v243, %v635
      %637 = vmatmul.bf16.gmra.mxu0 %v481
      %v638 = vpop.f32.mrf.mxu0
      %v639 = vadd.f32 %v243, %v638
      %v640 = vpop.f32.mrf.mxu0
      %v641 = vadd.f32 %v243, %v640
      %642 = vmatmul.bf16.gmra.mxu0 %v484
      %v643 = vpop.f32.mrf.mxu0
      %v644 = vadd.f32 %v243, %v643
      %v645 = vpop.f32.mrf.mxu0
      %v646 = vadd.f32 %v243, %v645
      %647 = vmatmul.bf16.gmra.mxu0 %v487
      %v648 = vpop.f32.mrf.mxu0
      %v649 = vadd.f32 %v243, %v648
      %v650 = vpop.f32.mrf.mxu0
      %v651 = vadd.f32 %v243, %v650
      %652 = vmatmul.bf16.gmra.mxu0 %v490
      %v653 = vpop.f32.mrf.mxu0
      %v654 = vadd.f32 %v243, %v653
      %v655 = vpop.f32.mrf.mxu0
      %v656 = vadd.f32 %v243, %v655
      %657 = vmatmul.bf16.gmra.mxu0 %v493
      %v658 = vpop.f32.mrf.mxu0
      %v659 = vadd.f32 %v243, %v658
      %v660 = vpop.f32.mrf.mxu0
      %v661 = vadd.f32 %v243, %v660
      %662 = vmatmul.bf16.gmra.mxu0 %v496
      %v663 = vpop.f32.mrf.mxu0
      %v664 = vadd.f32 %v243, %v663
      %v665 = vpop.f32.mrf.mxu0
      %v666 = vadd.f32 %v243, %v665
      %667 = vmatmul.bf16.gmra.mxu0 %v499
      %v668 = vpop.f32.mrf.mxu0
      %v669 = vadd.f32 %v243, %v668
      %v670 = vpop.f32.mrf.mxu0
      %v671 = vadd.f32 %v243, %v670
      %672 = vmatmul.bf16.gmra.mxu0 %v502
      %v673 = vpop.f32.mrf.mxu0
      %v674 = vadd.f32 %v243, %v673
      %v675 = vpop.f32.mrf.mxu0
      %v676 = vadd.f32 %v243, %v675
      %677 = vmatmul.bf16.gmra.mxu0 %v505
      %v678 = vpop.f32.mrf.mxu0
      %v679 = vadd.f32 %v243, %v678
      %v680 = vpop.f32.mrf.mxu0
      %v681 = vadd.f32 %v243, %v680
      %682 = vdwg.mxu0
      %vm683 = vcmp.gt.f32.partialorder %v524, 0.0
      %vm684 = vcmp.gt.f32.partialorder %v526, 0.0
      %vm685 = vcmp.gt.f32.partialorder %v529, 0.0
      %vm686 = vcmp.gt.f32.partialorder %v531, 0.0
      %vm687 = vcmp.gt.f32.partialorder %v534, 0.0
      %vm688 = vcmp.gt.f32.partialorder %v536, 0.0
      %vm689 = vcmp.gt.f32.partialorder %v539, 0.0
      %vm690 = vcmp.gt.f32.partialorder %v541, 0.0
      %vm691 = vcmp.gt.f32.partialorder %v544, 0.0
      %vm692 = vcmp.gt.f32.partialorder %v546, 0.0
      %vm693 = vcmp.gt.f32.partialorder %v549, 0.0
      %vm694 = vcmp.gt.f32.partialorder %v551, 0.0
      %vm695 = vcmp.gt.f32.partialorder %v554, 0.0
      %vm696 = vcmp.gt.f32.partialorder %v556, 0.0
      %vm697 = vcmp.gt.f32.partialorder %v559, 0.0
      %vm698 = vcmp.gt.f32.partialorder %v561, 0.0
      %vm699 = vcmp.gt.f32.partialorder %v564, 0.0
      %vm700 = vcmp.gt.f32.partialorder %v566, 0.0
      %vm701 = vcmp.gt.f32.partialorder %v569, 0.0
      %vm702 = vcmp.gt.f32.partialorder %v571, 0.0
      %vm703 = vcmp.gt.f32.partialorder %v574, 0.0
      %vm704 = vcmp.gt.f32.partialorder %v576, 0.0
      %vm705 = vcmp.gt.f32.partialorder %v579, 0.0
      %vm706 = vcmp.gt.f32.partialorder %v581, 0.0
      %vm707 = vcmp.gt.f32.partialorder %v584, 0.0
      %vm708 = vcmp.gt.f32.partialorder %v586, 0.0
      %vm709 = vcmp.gt.f32.partialorder %v589, 0.0
      %vm710 = vcmp.gt.f32.partialorder %v591, 0.0
      %vm711 = vcmp.gt.f32.partialorder %v594, 0.0
      %vm712 = vcmp.gt.f32.partialorder %v596, 0.0
      %vm713 = vcmp.gt.f32.partialorder %v599, 0.0
      %vm714 = vcmp.gt.f32.partialorder %v601, 0.0
      %vm715 = vcmp.gt.f32.partialorder %v604, 0.0
      %vm716 = vcmp.gt.f32.partialorder %v606, 0.0
      %vm717 = vcmp.gt.f32.partialorder %v609, 0.0
      %vm718 = vcmp.gt.f32.partialorder %v611, 0.0
      %vm719 = vcmp.gt.f32.partialorder %v614, 0.0
      %vm720 = vcmp.gt.f32.partialorder %v616, 0.0
      %vm721 = vcmp.gt.f32.partialorder %v619, 0.0
      %vm722 = vcmp.gt.f32.partialorder %v621, 0.0
      %vm723 = vcmp.gt.f32.partialorder %v624, 0.0
      %vm724 = vcmp.gt.f32.partialorder %v626, 0.0
      %vm725 = vcmp.gt.f32.partialorder %v629, 0.0
      %vm726 = vcmp.gt.f32.partialorder %v631, 0.0
      %vm727 = vcmp.gt.f32.partialorder %v634, 0.0
      %vm728 = vcmp.gt.f32.partialorder %v636, 0.0
      %vm729 = vcmp.gt.f32.partialorder %v639, 0.0
      %vm730 = vcmp.gt.f32.partialorder %v641, 0.0
      %vm731 = vcmp.gt.f32.partialorder %v644, 0.0
      %vm732 = vcmp.gt.f32.partialorder %v646, 0.0
      %vm733 = vcmp.gt.f32.partialorder %v649, 0.0
      %vm734 = vcmp.gt.f32.partialorder %v651, 0.0
      %vm735 = vcmp.gt.f32.partialorder %v654, 0.0
      %vm736 = vcmp.gt.f32.partialorder %v656, 0.0
      %vm737 = vcmp.gt.f32.partialorder %v659, 0.0
      %vm738 = vcmp.gt.f32.partialorder %v661, 0.0
      %vm739 = vcmp.gt.f32.partialorder %v664, 0.0
      %vm740 = vcmp.gt.f32.partialorder %v666, 0.0
      %vm741 = vcmp.gt.f32.partialorder %v669, 0.0
      %vm742 = vcmp.gt.f32.partialorder %v671, 0.0
      %vm743 = vcmp.gt.f32.partialorder %v674, 0.0
      %vm744 = vcmp.gt.f32.partialorder %v676, 0.0
      %vm745 = vcmp.gt.f32.partialorder %v679, 0.0
      %vm746 = vcmp.gt.f32.partialorder %v681, 0.0
      %v747 = vmul.f32 %v524, 0.01
      %v748 = vmul.f32 %v526, 0.01
      %v749 = vmul.f32 %v529, 0.01
      %v750 = vmul.f32 %v531, 0.01
      %v751 = vmul.f32 %v534, 0.01
      %v752 = vmul.f32 %v536, 0.01
      %v753 = vmul.f32 %v539, 0.01
      %v754 = vmul.f32 %v541, 0.01
      %v755 = vmul.f32 %v544, 0.01
      %v756 = vmul.f32 %v546, 0.01
      %v757 = vmul.f32 %v549, 0.01
      %v758 = vmul.f32 %v551, 0.01
      %v759 = vmul.f32 %v554, 0.01
      %v760 = vmul.f32 %v556, 0.01
      %v761 = vmul.f32 %v559, 0.01
      %v762 = vmul.f32 %v561, 0.01
      %v763 = vmul.f32 %v564, 0.01
      %v764 = vmul.f32 %v566, 0.01
      %v765 = vmul.f32 %v569, 0.01
      %v766 = vmul.f32 %v571, 0.01
      %v767 = vmul.f32 %v574, 0.01
      %v768 = vmul.f32 %v576, 0.01
      %v769 = vmul.f32 %v579, 0.01
      %v770 = vmul.f32 %v581, 0.01
      %v771 = vmul.f32 %v584, 0.01
      %v772 = vmul.f32 %v586, 0.01
      %v773 = vmul.f32 %v589, 0.01
      %v774 = vmul.f32 %v591, 0.01
      %v775 = vmul.f32 %v594, 0.01
      %v776 = vmul.f32 %v596, 0.01
      %v777 = vmul.f32 %v599, 0.01
      %v778 = vmul.f32 %v601, 0.01
      %v779 = vmul.f32 %v604, 0.01
      %v780 = vmul.f32 %v606, 0.01
      %v781 = vmul.f32 %v609, 0.01
      %v782 = vmul.f32 %v611, 0.01
      %v783 = vmul.f32 %v614, 0.01
      %v784 = vmul.f32 %v616, 0.01
      %v785 = vmul.f32 %v619, 0.01
      %v786 = vmul.f32 %v621, 0.01
      %v787 = vmul.f32 %v624, 0.01
      %v788 = vmul.f32 %v626, 0.01
      %v789 = vmul.f32 %v629, 0.01
      %v790 = vmul.f32 %v631, 0.01
      %v791 = vmul.f32 %v634, 0.01
      %v792 = vmul.f32 %v636, 0.01
      %v793 = vmul.f32 %v639, 0.01
      %v794 = vmul.f32 %v641, 0.01
      %v795 = vmul.f32 %v644, 0.01
      %v796 = vmul.f32 %v646, 0.01
      %v797 = vmul.f32 %v649, 0.01
      %v798 = vmul.f32 %v651, 0.01
      %v799 = vmul.f32 %v654, 0.01
      %v800 = vmul.f32 %v656, 0.01
      %v801 = vmul.f32 %v659, 0.01
      %v802 = vmul.f32 %v661, 0.01
      %v803 = vmul.f32 %v664, 0.01
      %v804 = vmul.f32 %v666, 0.01
      %v805 = vmul.f32 %v669, 0.01
      %v806 = vmul.f32 %v671, 0.01
      %v807 = vmul.f32 %v674, 0.01
      %v808 = vmul.f32 %v676, 0.01
      %v809 = vmul.f32 %v679, 0.01
      %v810 = vmul.f32 %v681, 0.01
      %v811 = vsel %vm683, %v524, %v747
      %v812 = vsel %vm684, %v526, %v748
      %v813 = vsel %vm685, %v529, %v749
      %v814 = vsel %vm686, %v531, %v750
      %v815 = vsel %vm687, %v534, %v751
      %v816 = vsel %vm688, %v536, %v752
      %v817 = vsel %vm689, %v539, %v753
      %v818 = vsel %vm690, %v541, %v754
      %v819 = vsel %vm691, %v544, %v755
      %v820 = vsel %vm692, %v546, %v756
      %v821 = vsel %vm693, %v549, %v757
      %v822 = vsel %vm694, %v551, %v758
      %v823 = vsel %vm695, %v554, %v759
      %v824 = vsel %vm696, %v556, %v760
      %v825 = vsel %vm697, %v559, %v761
      %v826 = vsel %vm698, %v561, %v762
      %v827 = vsel %vm699, %v564, %v763
      %v828 = vsel %vm700, %v566, %v764
      %v829 = vsel %vm701, %v569, %v765
      %v830 = vsel %vm702, %v571, %v766
      %v831 = vsel %vm703, %v574, %v767
      %v832 = vsel %vm704, %v576, %v768
      %v833 = vsel %vm705, %v579, %v769
      %v834 = vsel %vm706, %v581, %v770
      %v835 = vsel %vm707, %v584, %v771
      %v836 = vsel %vm708, %v586, %v772
      %v837 = vsel %vm709, %v589, %v773
      %v838 = vsel %vm710, %v591, %v774
      %v839 = vsel %vm711, %v594, %v775
      %v840 = vsel %vm712, %v596, %v776
      %v841 = vsel %vm713, %v599, %v777
      %v842 = vsel %vm714, %v601, %v778
      %v843 = vsel %vm715, %v604, %v779
      %v844 = vsel %vm716, %v606, %v780
      %v845 = vsel %vm717, %v609, %v781
      %v846 = vsel %vm718, %v611, %v782
      %v847 = vsel %vm719, %v614, %v783
      %v848 = vsel %vm720, %v616, %v784
      %v849 = vsel %vm721, %v619, %v785
      %v850 = vsel %vm722, %v621, %v786
      %v851 = vsel %vm723, %v624, %v787
      %v852 = vsel %vm724, %v626, %v788
      %v853 = vsel %vm725, %v629, %v789
      %v854 = vsel %vm726, %v631, %v790
      %v855 = vsel %vm727, %v634, %v791
      %v856 = vsel %vm728, %v636, %v792
      %v857 = vsel %vm729, %v639, %v793
      %v858 = vsel %vm730, %v641, %v794
      %v859 = vsel %vm731, %v644, %v795
      %v860 = vsel %vm732, %v646, %v796
      %v861 = vsel %vm733, %v649, %v797
      %v862 = vsel %vm734, %v651, %v798
      %v863 = vsel %vm735, %v654, %v799
      %v864 = vsel %vm736, %v656, %v800
      %v865 = vsel %vm737, %v659, %v801
      %v866 = vsel %vm738, %v661, %v802
      %v867 = vsel %vm739, %v664, %v803
      %v868 = vsel %vm740, %v666, %v804
      %v869 = vsel %vm741, %v669, %v805
      %v870 = vsel %vm742, %v671, %v806
      %v871 = vsel %vm743, %v674, %v807
      %v872 = vsel %vm744, %v676, %v808
      %v873 = vsel %vm745, %v679, %v809
      %v874 = vsel %vm746, %v681, %v810
      %v875 = vpack.c.bf16 %v811, %v811
      %v876 = vpack.c.bf16 %v812, %v812
      %v877 = vpack.c.bf16 %v813, %v813
      %v878 = vpack.c.bf16 %v814, %v814
      %v879 = vpack.c.bf16 %v815, %v815
      %v880 = vpack.c.bf16 %v816, %v816
      %v881 = vpack.c.bf16 %v817, %v817
      %v882 = vpack.c.bf16 %v818, %v818
      %v883 = vpack.c.bf16 %v819, %v819
      %v884 = vpack.c.bf16 %v820, %v820
      %v885 = vpack.c.bf16 %v821, %v821
      %v886 = vpack.c.bf16 %v822, %v822
      %v887 = vpack.c.bf16 %v823, %v823
      %v888 = vpack.c.bf16 %v824, %v824
      %v889 = vpack.c.bf16 %v825, %v825
      %v890 = vpack.c.bf16 %v826, %v826
      %v891 = vpack.c.bf16 %v827, %v827
      %v892 = vpack.c.bf16 %v828, %v828
      %v893 = vpack.c.bf16 %v829, %v829
      %v894 = vpack.c.bf16 %v830, %v830
      %v895 = vpack.c.bf16 %v831, %v831
      %v896 = vpack.c.bf16 %v832, %v832
      %v897 = vpack.c.bf16 %v833, %v833
      %v898 = vpack.c.bf16 %v834, %v834
      %v899 = vpack.c.bf16 %v835, %v835
      %v900 = vpack.c.bf16 %v836, %v836
      %v901 = vpack.c.bf16 %v837, %v837
      %v902 = vpack.c.bf16 %v838, %v838
      %v903 = vpack.c.bf16 %v839, %v839
      %v904 = vpack.c.bf16 %v840, %v840
      %v905 = vpack.c.bf16 %v841, %v841
      %v906 = vpack.c.bf16 %v842, %v842
      %v907 = vpack.c.bf16 %v843, %v843
      %v908 = vpack.c.bf16 %v844, %v844
      %v909 = vpack.c.bf16 %v845, %v845
      %v910 = vpack.c.bf16 %v846, %v846
      %v911 = vpack.c.bf16 %v847, %v847
      %v912 = vpack.c.bf16 %v848, %v848
      %v913 = vpack.c.bf16 %v849, %v849
      %v914 = vpack.c.bf16 %v850, %v850
      %v915 = vpack.c.bf16 %v851, %v851
      %v916 = vpack.c.bf16 %v852, %v852
      %v917 = vpack.c.bf16 %v853, %v853
      %v918 = vpack.c.bf16 %v854, %v854
      %v919 = vpack.c.bf16 %v855, %v855
      %v920 = vpack.c.bf16 %v856, %v856
      %v921 = vpack.c.bf16 %v857, %v857
      %v922 = vpack.c.bf16 %v858, %v858
      %v923 = vpack.c.bf16 %v859, %v859
      %v924 = vpack.c.bf16 %v860, %v860
      %v925 = vpack.c.bf16 %v861, %v861
      %v926 = vpack.c.bf16 %v862, %v862
      %v927 = vpack.c.bf16 %v863, %v863
      %v928 = vpack.c.bf16 %v864, %v864
      %v929 = vpack.c.bf16 %v865, %v865
      %v930 = vpack.c.bf16 %v866, %v866
      %v931 = vpack.c.bf16 %v867, %v867
      %v932 = vpack.c.bf16 %v868, %v868
      %v933 = vpack.c.bf16 %v869, %v869
      %v934 = vpack.c.bf16 %v870, %v870
      %v935 = vpack.c.bf16 %v871, %v871
      %v936 = vpack.c.bf16 %v872, %v872
      %v937 = vpack.c.bf16 %v873, %v873
      %v938 = vpack.c.bf16 %v874, %v874
      %vm939 = vcmask 519168
      %940 = vst.msk [vmem:[%s172] sm:$0xf] %vm939, %v875
      %941 = vst.msk [vmem:[%s172 + $0x4] sm:$0xf] %vm939, %v876
      %942 = vst.msk [vmem:[%s172 + $0x8] sm:$0xf] %vm939, %v877
      %943 = vst.msk [vmem:[%s172 + $0xc] sm:$0xf] %vm939, %v878
      %944 = vst.msk [vmem:[%s172 + $0x10] sm:$0xf] %vm939, %v879
      %945 = vst.msk [vmem:[%s172 + $0x14] sm:$0xf] %vm939, %v880
      %946 = vst.msk [vmem:[%s172 + $0x18] sm:$0xf] %vm939, %v881
      %947 = vst.msk [vmem:[%s172 + $0x1c] sm:$0xf] %vm939, %v882
      %948 = vst.msk [vmem:[%s172 + $0x20] sm:$0xf] %vm939, %v883
      %949 = vst.msk [vmem:[%s172 + $0x24] sm:$0xf] %vm939, %v884
      %950 = vst.msk [vmem:[%s172 + $0x28] sm:$0xf] %vm939, %v885
      %951 = vst.msk [vmem:[%s172 + $0x2c] sm:$0xf] %vm939, %v886
      %952 = vst.msk [vmem:[%s172 + $0x30] sm:$0xf] %vm939, %v887
      %953 = vst.msk [vmem:[%s172 + $0x34] sm:$0xf] %vm939, %v888
      %954 = vst.msk [vmem:[%s172 + $0x38] sm:$0xf] %vm939, %v889
      %955 = vst.msk [vmem:[%s172 + $0x3c] sm:$0xf] %vm939, %v890
      %956 = vst.msk [vmem:[%s172 + $0x40] sm:$0xf] %vm939, %v891
      %957 = vst.msk [vmem:[%s172 + $0x44] sm:$0xf] %vm939, %v892
      %958 = vst.msk [vmem:[%s172 + $0x48] sm:$0xf] %vm939, %v893
      %959 = vst.msk [vmem:[%s172 + $0x4c] sm:$0xf] %vm939, %v894
      %960 = vst.msk [vmem:[%s172 + $0x50] sm:$0xf] %vm939, %v895
      %961 = vst.msk [vmem:[%s172 + $0x54] sm:$0xf] %vm939, %v896
      %962 = vst.msk [vmem:[%s172 + $0x58] sm:$0xf] %vm939, %v897
      %963 = vst.msk [vmem:[%s172 + $0x5c] sm:$0xf] %vm939, %v898
      %964 = vst.msk [vmem:[%s172 + $0x60] sm:$0xf] %vm939, %v899
      %965 = vst.msk [vmem:[%s172 + $0x64] sm:$0xf] %vm939, %v900
      %966 = vst.msk [vmem:[%s172 + $0x68] sm:$0xf] %vm939, %v901
      %967 = vst.msk [vmem:[%s172 + $0x6c] sm:$0xf] %vm939, %v902
      %968 = vst.msk [vmem:[%s172 + $0x70] sm:$0xf] %vm939, %v903
      %969 = vst.msk [vmem:[%s172 + $0x74] sm:$0xf] %vm939, %v904
      %970 = vst.msk [vmem:[%s172 + $0x78] sm:$0xf] %vm939, %v905
      %971 = vst.msk [vmem:[%s172 + $0x7c] sm:$0xf] %vm939, %v906
      %972 = vst.msk [vmem:[%s172 + $0x80] sm:$0xf] %vm939, %v907
      %973 = vst.msk [vmem:[%s172 + $0x84] sm:$0xf] %vm939, %v908
      %974 = vst.msk [vmem:[%s172 + $0x88] sm:$0xf] %vm939, %v909
      %975 = vst.msk [vmem:[%s172 + $0x8c] sm:$0xf] %vm939, %v910
      %976 = vst.msk [vmem:[%s172 + $0x90] sm:$0xf] %vm939, %v911
      %977 = vst.msk [vmem:[%s172 + $0x94] sm:$0xf] %vm939, %v912
      %978 = vst.msk [vmem:[%s172 + $0x98] sm:$0xf] %vm939, %v913
      %979 = vst.msk [vmem:[%s172 + $0x9c] sm:$0xf] %vm939, %v914
      %980 = vst.msk [vmem:[%s172 + $0xa0] sm:$0xf] %vm939, %v915
      %981 = vst.msk [vmem:[%s172 + $0xa4] sm:$0xf] %vm939, %v916
      %982 = vst.msk [vmem:[%s172 + $0xa8] sm:$0xf] %vm939, %v917
      %983 = vst.msk [vmem:[%s172 + $0xac] sm:$0xf] %vm939, %v918
      %984 = vst.msk [vmem:[%s172 + $0xb0] sm:$0xf] %vm939, %v919
      %985 = vst.msk [vmem:[%s172 + $0xb4] sm:$0xf] %vm939, %v920
      %986 = vst.msk [vmem:[%s172 + $0xb8] sm:$0xf] %vm939, %v921
      %987 = vst.msk [vmem:[%s172 + $0xbc] sm:$0xf] %vm939, %v922
      %988 = vst.msk [vmem:[%s172 + $0xc0] sm:$0xf] %vm939, %v923
      %989 = vst.msk [vmem:[%s172 + $0xc4] sm:$0xf] %vm939, %v924
      %990 = vst.msk [vmem:[%s172 + $0xc8] sm:$0xf] %vm939, %v925
      %991 = vst.msk [vmem:[%s172 + $0xcc] sm:$0xf] %vm939, %v926
      %992 = vst.msk [vmem:[%s172 + $0xd0] sm:$0xf] %vm939, %v927
      %993 = vst.msk [vmem:[%s172 + $0xd4] sm:$0xf] %vm939, %v928
      %994 = vst.msk [vmem:[%s172 + $0xd8] sm:$0xf] %vm939, %v929
      %995 = vst.msk [vmem:[%s172 + $0xdc] sm:$0xf] %vm939, %v930
      %996 = vst.msk [vmem:[%s172 + $0xe0] sm:$0xf] %vm939, %v931
      %997 = vst.msk [vmem:[%s172 + $0xe4] sm:$0xf] %vm939, %v932
      %998 = vst.msk [vmem:[%s172 + $0xe8] sm:$0xf] %vm939, %v933
      %999 = vst.msk [vmem:[%s172 + $0xec] sm:$0xf] %vm939, %v934
      %1000 = vst.msk [vmem:[%s172 + $0xf0] sm:$0xf] %vm939, %v935
      %1001 = vst.msk [vmem:[%s172 + $0xf4] sm:$0xf] %vm939, %v936
      %1002 = vst.msk [vmem:[%s172 + $0xf8] sm:$0xf] %vm939, %v937
      %1003 = vst.msk [vmem:[%s172 + $0xfc] sm:$0xf] %vm939, %v938
      %s1004 = smul.u32 64, %s14
      %p1005 = scmp.lt.s32.totalorder %s1004, 255
      %s1006 = scalar_select %p1005, %s1004, 255
      %s1007 = smul.addr %s1006, 4
      %s1008 = scalar_lea.vmem %s3, %s1007
      // Predicated region
      $region33: #{deeper_conv_model.5} parent=31 // pred_check
        %p1009 = pneg %p100
      $region34: #{deeper_conv_model.5} parent=31 // pred_check_branch
        %1011 = sbr.rel (%p1009) target = $region36
      $region35: #{deeper_conv_model.5} parent=31 // pred_region
        %s1012 = smul.u32 64, %s14
      $region36: #{deeper_conv_model.5} parent=31 // pred_fallthru
        _
    $region32: #{deeper_conv_model.5} parent=5 // pred_fallthru
      _
    %p1013 = scmp.le.s32.totalorder 2, %s9
    // Predicated region
    $region37: #{deeper_conv_model.5} parent=5 // pred_check
      %p1014 = pneg %p1013
    $region38: #{deeper_conv_model.5} parent=5 // pred_check_branch
      %1016 = sbr.rel (%p1014) target = $region40
    $region39: #{deeper_conv_model.5} parent=5 // pred_region
      %s1017 = ssub.s32 %s9, 2
      // Predicated region
      $region41: #{deeper_conv_model.5} parent=39 // pred_check
        %p1018 = pneg %p106
      $region42: #{deeper_conv_model.5} parent=39 // pred_check_branch
        %1020 = sbr.rel (%p1018) target = $region44
      $region43: #{deeper_conv_model.5} parent=39 // pred_region
        %s1021 = smul.u32 64, %s15
        %p1022 = scmp.lt.s32.totalorder %s1021, 255
        %s1023 = scalar_select %p1022, %s1021, 255
        %s1024 = smul.addr %s1023, 4
        %s1025 = scalar_lea.vmem %s3, %s1024
      $region44: #{deeper_conv_model.5} parent=39 // pred_fallthru
        _
    $region40: #{deeper_conv_model.5} parent=5 // pred_fallthru
      _
  $region6: #{deeper_conv_model.5} parent=0 // loop_footer
    %s13 = sadd.s32 1, %s9
  $region7: #{deeper_conv_model.5} parent=0 // loop_footer_branch
    %8 = sbr.rel target = $region3
  $region8: #{deeper_conv_model.5} parent=0 // loop_exit
    _

// kernel: deeper_conv_model.7
$region0: #{deeper_conv_model.7}
  #allocation0 [shape = 'u32[]', space=smem, size = 0x4, offset = 0x4, fixed_abs, tag = 'smem constant byte address 0x4 - core index']
  #allocation1 [shape = 'u32[72,128]{1,0:T(1,128)}', space=vmem, size = 0x9000, scoped, tag = 'internal scratch']
  %s0 = inlined_call_operand.vmem [shape: bf16[400,288], index: 0, kind: input, shape index: {}]
  %s1 = inlined_call_operand.vmem [shape: bf16[288,32], index: 1, kind: input, shape index: {}]
  %s2 = inlined_call_operand.vmem [shape: f32[1,32], index: 2, kind: input, shape index: {}]
  %s3 = inlined_call_operand.vmem [shape: bf16[400,32], index: 3, kind: output, shape index: {}]
  %s4 = sld [smem:[#allocation0]]
  $region22: #{deeper_conv_model.7} parent=0
    _
  %s6 = ssub.s32 1, %s4
  %s7 = scalar_select 0, %s6, %s4
  // Predicated region
  $region2: #{deeper_conv_model.7} parent=0 // pred_check
    _
  $region3: #{deeper_conv_model.7} parent=0 // pred_check_branch
    %9 = sbr.rel (0) target = $region5
  $region4: #{deeper_conv_model.7} parent=0 // pred_region
    _
  $region5: #{deeper_conv_model.7} parent=0 // pred_fallthru
    _
  // Predicated region
  $region6: #{deeper_conv_model.7} parent=0 // pred_check
    _
  $region7: #{deeper_conv_model.7} parent=0 // pred_check_branch
    %11 = sbr.rel (0) target = $region9
  $region8: #{deeper_conv_model.7} parent=0 // pred_region
    _
  $region9: #{deeper_conv_model.7} parent=0 // pred_fallthru
    _
  // Predicated region
  $region10: #{deeper_conv_model.7} parent=0 // pred_check
    _
  $region11: #{deeper_conv_model.7} parent=0 // pred_check_branch
    %13 = sbr.rel (0) target = $region13
  $region12: #{deeper_conv_model.7} parent=0 // pred_region
    _
  $region13: #{deeper_conv_model.7} parent=0 // pred_fallthru
    _
  %v15 = vld [vmem:[%s0] sm:$0xff]
  %v16 = vld [vmem:[%s0 + $0x8] sm:$0xf]
  %v17 = vld [vmem:[%s0 + $0xc] sm:$0xff]
  %v18 = vld [vmem:[%s0 + $0x14] sm:$0xf]
  %v19 = vld [vmem:[%s0 + $0x18] sm:$0xff]
  %v20 = vld [vmem:[%s0 + $0x20] sm:$0xf]
  %v21 = vld [vmem:[%s0 + $0x24] sm:$0xff]
  %v22 = vld [vmem:[%s0 + $0x2c] sm:$0xf]
  %v23 = vld [vmem:[%s0 + $0x30] sm:$0xff]
  %v24 = vld [vmem:[%s0 + $0x38] sm:$0xf]
  %v25 = vld [vmem:[%s0 + $0x3c] sm:$0xff]
  %v26 = vld [vmem:[%s0 + $0x44] sm:$0xf]
  %v27 = vld [vmem:[%s0 + $0x48] sm:$0xff]
  %v28 = vld [vmem:[%s0 + $0x50] sm:$0xf]
  %v29 = vld [vmem:[%s0 + $0x54] sm:$0xff]
  %v30 = vld [vmem:[%s0 + $0x5c] sm:$0xf]
  %v31 = vld [vmem:[%s0 + $0x60] sm:$0xff]
  %v32 = vld [vmem:[%s0 + $0x68] sm:$0xf]
  %v33 = vld [vmem:[%s0 + $0x6c] sm:$0xff]
  %v34 = vld [vmem:[%s0 + $0x74] sm:$0xf]
  %v35 = vld [vmem:[%s0 + $0x78] sm:$0xff]
  %v36 = vld [vmem:[%s0 + $0x80] sm:$0xf]
  %v37 = vld [vmem:[%s0 + $0x84] sm:$0xff]
  %v38 = vld [vmem:[%s0 + $0x8c] sm:$0xf]
  %v39 = vld [vmem:[%s0 + $0x90] sm:$0xff]
  %v40 = vld [vmem:[%s0 + $0x98] sm:$0xf]
  %v41 = vld [vmem:[%s0 + $0x9c] sm:$0xff]
  %v42 = vld [vmem:[%s0 + $0xa4] sm:$0xf]
  %v43 = vld [vmem:[%s0 + $0xa8] sm:$0xff]
  %v44 = vld [vmem:[%s0 + $0xb0] sm:$0xf]
  %v45 = vld [vmem:[%s0 + $0xb4] sm:$0xff]
  %v46 = vld [vmem:[%s0 + $0xbc] sm:$0xf]
  %v47 = vld [vmem:[%s0 + $0xc0] sm:$0xff]
  %v48 = vld [vmem:[%s0 + $0xc8] sm:$0xf]
  %v49 = vld [vmem:[%s0 + $0xcc] sm:$0xff]
  %v50 = vld [vmem:[%s0 + $0xd4] sm:$0xf]
  %v51 = vld [vmem:[%s0 + $0xd8] sm:$0xff]
  %v52 = vld [vmem:[%s0 + $0xe0] sm:$0xf]
  %v53 = vld [vmem:[%s0 + $0xe4] sm:$0xff]
  %v54 = vld [vmem:[%s0 + $0xec] sm:$0xf]
  %v55 = vld [vmem:[%s0 + $0xf0] sm:$0xff]
  %v56 = vld [vmem:[%s0 + $0xf8] sm:$0xf]
  %v57 = vld [vmem:[%s0 + $0xfc] sm:$0xff]
  %v58 = vld [vmem:[%s0 + $0x104] sm:$0xf]
  %v59 = vld [vmem:[%s0 + $0x108] sm:$0xff]
  %v60 = vld [vmem:[%s0 + $0x110] sm:$0xf]
  %v61 = vld [vmem:[%s0 + $0x114] sm:$0xff]
  %v62 = vld [vmem:[%s0 + $0x11c] sm:$0xf]
  %v63 = vld [vmem:[%s0 + $0x120] sm:$0xff]
  %v64 = vld [vmem:[%s0 + $0x128] sm:$0xf]
  %v65 = vld [vmem:[%s0 + $0x12c] sm:$0xff]
  %v66 = vld [vmem:[%s0 + $0x134] sm:$0xf]
  %v67 = vld [vmem:[%s0 + $0x138] sm:$0xff]
  %v68 = vld [vmem:[%s0 + $0x140] sm:$0xf]
  %v69 = vld [vmem:[%s0 + $0x144] sm:$0xff]
  %v70 = vld [vmem:[%s0 + $0x14c] sm:$0xf]
  %v71 = vld [vmem:[%s0 + $0x150] sm:$0xff]
  %v72 = vld [vmem:[%s0 + $0x158] sm:$0xf]
  %v73 = vld [vmem:[%s0 + $0x15c] sm:$0xff]
  %v74 = vld [vmem:[%s0 + $0x164] sm:$0xf]
  %v75 = vld [vmem:[%s0 + $0x168] sm:$0xff]
  %v76 = vld [vmem:[%s0 + $0x170] sm:$0xf]
  %v77 = vld [vmem:[%s0 + $0x174] sm:$0xff]
  %v78 = vld [vmem:[%s0 + $0x17c] sm:$0xf]
  %v79 = vld [vmem:[%s0 + $0x180] sm:$0xff]
  %v80 = vld [vmem:[%s0 + $0x188] sm:$0xf]
  %v81 = vld [vmem:[%s0 + $0x18c] sm:$0xff]
  %v82 = vld [vmem:[%s0 + $0x194] sm:$0xf]
  %v83 = vld [vmem:[%s0 + $0x198] sm:$0xff]
  %v84 = vld [vmem:[%s0 + $0x1a0] sm:$0xf]
  %v85 = vld [vmem:[%s0 + $0x1a4] sm:$0xff]
  %v86 = vld [vmem:[%s0 + $0x1ac] sm:$0xf]
  %v87 = vld [vmem:[%s0 + $0x1b0] sm:$0xff]
  %v88 = vld [vmem:[%s0 + $0x1b8] sm:$0xf]
  %v89 = vld [vmem:[%s0 + $0x1bc] sm:$0xff]
  %v90 = vld [vmem:[%s0 + $0x1c4] sm:$0xf]
  %v91 = vld [vmem:[%s0 + $0x1c8] sm:$0xff]
  %v92 = vld [vmem:[%s0 + $0x1d0] sm:$0xf]
  %v93 = vld [vmem:[%s0 + $0x1d4] sm:$0xff]
  %v94 = vld [vmem:[%s0 + $0x1dc] sm:$0xf]
  %v95 = vld [vmem:[%s0 + $0x1e0] sm:$0xff]
  %v96 = vld [vmem:[%s0 + $0x1e8] sm:$0xf]
  %v97 = vld [vmem:[%s0 + $0x1ec] sm:$0xff]
  %v98 = vld [vmem:[%s0 + $0x1f4] sm:$0xf]
  %v99 = vld [vmem:[%s0 + $0x1f8] sm:$0xff]
  %v100 = vld [vmem:[%s0 + $0x200] sm:$0xf]
  %v101 = vld [vmem:[%s0 + $0x204] sm:$0xff]
  %v102 = vld [vmem:[%s0 + $0x20c] sm:$0xf]
  %v103 = vld [vmem:[%s0 + $0x210] sm:$0xff]
  %v104 = vld [vmem:[%s0 + $0x218] sm:$0xf]
  %v105 = vld [vmem:[%s0 + $0x21c] sm:$0xff]
  %v106 = vld [vmem:[%s0 + $0x224] sm:$0xf]
  %v107 = vld [vmem:[%s0 + $0x228] sm:$0xff]
  %v108 = vld [vmem:[%s0 + $0x230] sm:$0xf]
  %v109 = vld [vmem:[%s0 + $0x234] sm:$0xff]
  %v110 = vld [vmem:[%s0 + $0x23c] sm:$0xf]
  %v111 = vld [vmem:[%s0 + $0x240] sm:$0xff]
  %v112 = vld [vmem:[%s0 + $0x248] sm:$0xf]
  %v113 = vld [vmem:[%s0 + $0x24c] sm:$0xff]
  %v114 = vld [vmem:[%s0 + $0x254] sm:$0xf]
  %v115 = vld [vmem:[%s1] sm:$0xf]
  %v116 = vld [vmem:[%s1 + $0x4] sm:$0xf]
  %v117 = vld [vmem:[%s1 + $0x8] sm:$0xf]
  %v118 = vld [vmem:[%s1 + $0xc] sm:$0xf]
  %v119 = vld [vmem:[%s1 + $0x10] sm:$0xf]
  %v120 = vld [vmem:[%s1 + $0x14] sm:$0xf]
  %v121 = vld [vmem:[%s1 + $0x18] sm:$0xf]
  %v122 = vld [vmem:[%s1 + $0x1c] sm:$0xf]
  %v123 = vld [vmem:[%s1 + $0x20] sm:$0xf]
  %v124 = vld [vmem:[%s1 + $0x24] sm:$0xf]
  %v125 = vld [vmem:[%s1 + $0x28] sm:$0xf]
  %v126 = vld [vmem:[%s1 + $0x2c] sm:$0xf]
  %v127 = vld [vmem:[%s1 + $0x30] sm:$0xf]
  %v128 = vld [vmem:[%s1 + $0x34] sm:$0xf]
  %v129 = vld [vmem:[%s1 + $0x38] sm:$0xf]
  %v130 = vld [vmem:[%s1 + $0x3c] sm:$0xf]
  %v131 = vld [vmem:[%s1 + $0x40] sm:$0xf]
  %v132 = vld [vmem:[%s1 + $0x44] sm:$0xf]
  %v133 = vld [vmem:[%s1 + $0x48] sm:$0xf]
  %v134 = vld [vmem:[%s1 + $0x4c] sm:$0xf]
  %v135 = vld [vmem:[%s1 + $0x50] sm:$0xf]
  %v136 = vld [vmem:[%s1 + $0x54] sm:$0xf]
  %v137 = vld [vmem:[%s1 + $0x58] sm:$0xf]
  %v138 = vld [vmem:[%s1 + $0x5c] sm:$0xf]
  %v139 = vld [vmem:[%s1 + $0x60] sm:$0xf]
  %v140 = vld [vmem:[%s1 + $0x64] sm:$0xf]
  %v141 = vld [vmem:[%s1 + $0x68] sm:$0xf]
  %v142 = vld [vmem:[%s1 + $0x6c] sm:$0xf]
  %v143 = vld [vmem:[%s1 + $0x70] sm:$0xf]
  %v144 = vld [vmem:[%s1 + $0x74] sm:$0xf]
  %v145 = vld [vmem:[%s1 + $0x78] sm:$0xf]
  %v146 = vld [vmem:[%s1 + $0x7c] sm:$0xf]
  %v147 = vld [vmem:[%s1 + $0x80] sm:$0xf]
  %v148 = vld [vmem:[%s1 + $0x84] sm:$0xf]
  %v149 = vld [vmem:[%s1 + $0x88] sm:$0xf]
  %v150 = vld [vmem:[%s1 + $0x8c] sm:$0xf]
  %v151 = vld [vmem:[%s2] sm:$0x1]
  %v153 = vperm.slane %v151, 0
  %v255 = vunpack.c.l.b16 %v15
  %v256 = vunpack.c.h.b16 %v15
  %v257 = vunpack.c.l.b16 %v16
  %v258 = vunpack.c.l.b16 %v17
  %v259 = vunpack.c.h.b16 %v17
  %v260 = vunpack.c.l.b16 %v18
  %v261 = vunpack.c.l.b16 %v19
  %v262 = vunpack.c.h.b16 %v19
  %v263 = vunpack.c.l.b16 %v20
  %v264 = vunpack.c.l.b16 %v21
  %v265 = vunpack.c.h.b16 %v21
  %v266 = vunpack.c.l.b16 %v22
  %v267 = vunpack.c.l.b16 %v23
  %v268 = vunpack.c.h.b16 %v23
  %v269 = vunpack.c.l.b16 %v24
  %v270 = vunpack.c.l.b16 %v25
  %v271 = vunpack.c.h.b16 %v25
  %v272 = vunpack.c.l.b16 %v26
  %v273 = vunpack.c.l.b16 %v27
  %v274 = vunpack.c.h.b16 %v27
  %v275 = vunpack.c.l.b16 %v28
  %v276 = vunpack.c.l.b16 %v29
  %v277 = vunpack.c.h.b16 %v29
  %v278 = vunpack.c.l.b16 %v30
  %v279 = vunpack.c.l.b16 %v31
  %v280 = vunpack.c.h.b16 %v31
  %v281 = vunpack.c.l.b16 %v32
  %v282 = vunpack.c.l.b16 %v33
  %v283 = vunpack.c.h.b16 %v33
  %v284 = vunpack.c.l.b16 %v34
  %v285 = vunpack.c.l.b16 %v35
  %v286 = vunpack.c.h.b16 %v35
  %v287 = vunpack.c.l.b16 %v36
  %v288 = vunpack.c.l.b16 %v37
  %v289 = vunpack.c.h.b16 %v37
  %v290 = vunpack.c.l.b16 %v38
  %v291 = vunpack.c.l.b16 %v39
  %v292 = vunpack.c.h.b16 %v39
  %v293 = vunpack.c.l.b16 %v40
  %v294 = vunpack.c.l.b16 %v41
  %v295 = vunpack.c.h.b16 %v41
  %v296 = vunpack.c.l.b16 %v42
  %v297 = vunpack.c.l.b16 %v43
  %v298 = vunpack.c.h.b16 %v43
  %v299 = vunpack.c.l.b16 %v44
  %v300 = vunpack.c.l.b16 %v45
  %v301 = vunpack.c.h.b16 %v45
  %v302 = vunpack.c.l.b16 %v46
  %v303 = vunpack.c.l.b16 %v47
  %v304 = vunpack.c.h.b16 %v47
  %v305 = vunpack.c.l.b16 %v48
  %v306 = vunpack.c.l.b16 %v49
  %v307 = vunpack.c.h.b16 %v49
  %v308 = vunpack.c.l.b16 %v50
  %v309 = vunpack.c.l.b16 %v51
  %v310 = vunpack.c.h.b16 %v51
  %v311 = vunpack.c.l.b16 %v52
  %v312 = vunpack.c.l.b16 %v53
  %v313 = vunpack.c.h.b16 %v53
  %v314 = vunpack.c.l.b16 %v54
  %v315 = vunpack.c.l.b16 %v55
  %v316 = vunpack.c.h.b16 %v55
  %v317 = vunpack.c.l.b16 %v56
  %v318 = vunpack.c.l.b16 %v57
  %v319 = vunpack.c.h.b16 %v57
  %v320 = vunpack.c.l.b16 %v58
  %v321 = vunpack.c.l.b16 %v59
  %v322 = vunpack.c.h.b16 %v59
  %v323 = vunpack.c.l.b16 %v60
  %v324 = vunpack.c.l.b16 %v61
  %v325 = vunpack.c.h.b16 %v61
  %v326 = vunpack.c.l.b16 %v62
  %v327 = vunpack.c.l.b16 %v63
  %v328 = vunpack.c.h.b16 %v63
  %v329 = vunpack.c.l.b16 %v64
  %v330 = vunpack.c.l.b16 %v65
  %v331 = vunpack.c.h.b16 %v65
  %v332 = vunpack.c.l.b16 %v66
  %v333 = vunpack.c.l.b16 %v67
  %v334 = vunpack.c.h.b16 %v67
  %v335 = vunpack.c.l.b16 %v68
  %v336 = vunpack.c.l.b16 %v69
  %v337 = vunpack.c.h.b16 %v69
  %v338 = vunpack.c.l.b16 %v70
  %v339 = vunpack.c.l.b16 %v71
  %v340 = vunpack.c.h.b16 %v71
  %v341 = vunpack.c.l.b16 %v72
  %v342 = vunpack.c.l.b16 %v73
  %v343 = vunpack.c.h.b16 %v73
  %v344 = vunpack.c.l.b16 %v74
  %v345 = vunpack.c.l.b16 %v75
  %v346 = vunpack.c.h.b16 %v75
  %v347 = vunpack.c.l.b16 %v76
  %v348 = vunpack.c.l.b16 %v77
  %v349 = vunpack.c.h.b16 %v77
  %v350 = vunpack.c.l.b16 %v78
  %v351 = vunpack.c.l.b16 %v79
  %v352 = vunpack.c.h.b16 %v79
  %v353 = vunpack.c.l.b16 %v80
  %v354 = vunpack.c.l.b16 %v81
  %v355 = vunpack.c.h.b16 %v81
  %v356 = vunpack.c.l.b16 %v82
  %v357 = vunpack.c.l.b16 %v83
  %v358 = vunpack.c.h.b16 %v83
  %v359 = vunpack.c.l.b16 %v84
  %v360 = vunpack.c.l.b16 %v85
  %v361 = vunpack.c.h.b16 %v85
  %v362 = vunpack.c.l.b16 %v86
  %v363 = vunpack.c.l.b16 %v87
  %v364 = vunpack.c.h.b16 %v87
  %v365 = vunpack.c.l.b16 %v88
  %v366 = vunpack.c.l.b16 %v89
  %v367 = vunpack.c.h.b16 %v89
  %v368 = vunpack.c.l.b16 %v90
  %v369 = vunpack.c.l.b16 %v91
  %v370 = vunpack.c.h.b16 %v91
  %v371 = vunpack.c.l.b16 %v92
  %v372 = vunpack.c.l.b16 %v93
  %v373 = vunpack.c.h.b16 %v93
  %v374 = vunpack.c.l.b16 %v94
  %v375 = vunpack.c.l.b16 %v95
  %v376 = vunpack.c.h.b16 %v95
  %v377 = vunpack.c.l.b16 %v96
  %v378 = vunpack.c.l.b16 %v97
  %v379 = vunpack.c.h.b16 %v97
  %v380 = vunpack.c.l.b16 %v98
  %v381 = vunpack.c.l.b16 %v99
  %v382 = vunpack.c.h.b16 %v99
  %v383 = vunpack.c.l.b16 %v100
  %v384 = vunpack.c.l.b16 %v101
  %v385 = vunpack.c.h.b16 %v101
  %v386 = vunpack.c.l.b16 %v102
  %v387 = vunpack.c.l.b16 %v103
  %v388 = vunpack.c.h.b16 %v103
  %v389 = vunpack.c.l.b16 %v104
  %v390 = vunpack.c.l.b16 %v105
  %v391 = vunpack.c.h.b16 %v105
  %v392 = vunpack.c.l.b16 %v106
  %v393 = vunpack.c.l.b16 %v107
  %v394 = vunpack.c.h.b16 %v107
  %v395 = vunpack.c.l.b16 %v108
  %v396 = vunpack.c.l.b16 %v109
  %v397 = vunpack.c.h.b16 %v109
  %v398 = vunpack.c.l.b16 %v110
  %v399 = vunpack.c.l.b16 %v111
  %v400 = vunpack.c.h.b16 %v111
  %v401 = vunpack.c.l.b16 %v112
  %v402 = vunpack.c.l.b16 %v113
  %v403 = vunpack.c.h.b16 %v113
  %v404 = vunpack.c.l.b16 %v114
  %v405 = vpack.c.b16 %v258, %v255
  %v406 = vpack.c.b16 %v259, %v256
  %v407 = vpack.c.b16 %v260, %v257
  %v408 = vpack.c.b16 %v264, %v261
  %v409 = vpack.c.b16 %v265, %v262
  %v410 = vpack.c.b16 %v266, %v263
  %v411 = vpack.c.b16 %v270, %v267
  %v412 = vpack.c.b16 %v271, %v268
  %v413 = vpack.c.b16 %v272, %v269
  %v414 = vpack.c.b16 %v276, %v273
  %v415 = vpack.c.b16 %v277, %v274
  %v416 = vpack.c.b16 %v278, %v275
  %v417 = vpack.c.b16 %v282, %v279
  %v418 = vpack.c.b16 %v283, %v280
  %v419 = vpack.c.b16 %v284, %v281
  %v420 = vpack.c.b16 %v288, %v285
  %v421 = vpack.c.b16 %v289, %v286
  %v422 = vpack.c.b16 %v290, %v287
  %v423 = vpack.c.b16 %v294, %v291
  %v424 = vpack.c.b16 %v295, %v292
  %v425 = vpack.c.b16 %v296, %v293
  %v426 = vpack.c.b16 %v300, %v297
  %v427 = vpack.c.b16 %v301, %v298
  %v428 = vpack.c.b16 %v302, %v299
  %v429 = vpack.c.b16 %v306, %v303
  %v430 = vpack.c.b16 %v307, %v304
  %v431 = vpack.c.b16 %v308, %v305
  %v432 = vpack.c.b16 %v312, %v309
  %v433 = vpack.c.b16 %v313, %v310
  %v434 = vpack.c.b16 %v314, %v311
  %v435 = vpack.c.b16 %v318, %v315
  %v436 = vpack.c.b16 %v319, %v316
  %v437 = vpack.c.b16 %v320, %v317
  %v438 = vpack.c.b16 %v324, %v321
  %v439 = vpack.c.b16 %v325, %v322
  %v440 = vpack.c.b16 %v326, %v323
  %v441 = vpack.c.b16 %v330, %v327
  %v442 = vpack.c.b16 %v331, %v328
  %v443 = vpack.c.b16 %v332, %v329
  %v444 = vpack.c.b16 %v336, %v333
  %v445 = vpack.c.b16 %v337, %v334
  %v446 = vpack.c.b16 %v338, %v335
  %v447 = vpack.c.b16 %v342, %v339
  %v448 = vpack.c.b16 %v343, %v340
  %v449 = vpack.c.b16 %v344, %v341
  %v450 = vpack.c.b16 %v348, %v345
  %v451 = vpack.c.b16 %v349, %v346
  %v452 = vpack.c.b16 %v350, %v347
  %v453 = vpack.c.b16 %v354, %v351
  %v454 = vpack.c.b16 %v355, %v352
  %v455 = vpack.c.b16 %v356, %v353
  %v456 = vpack.c.b16 %v360, %v357
  %v457 = vpack.c.b16 %v361, %v358
  %v458 = vpack.c.b16 %v362, %v359
  %v459 = vpack.c.b16 %v366, %v363
  %v460 = vpack.c.b16 %v367, %v364
  %v461 = vpack.c.b16 %v368, %v365
  %v462 = vpack.c.b16 %v372, %v369
  %v463 = vpack.c.b16 %v373, %v370
  %v464 = vpack.c.b16 %v374, %v371
  %v465 = vpack.c.b16 %v378, %v375
  %v466 = vpack.c.b16 %v379, %v376
  %v467 = vpack.c.b16 %v380, %v377
  %v468 = vpack.c.b16 %v384, %v381
  %v469 = vpack.c.b16 %v385, %v382
  %v470 = vpack.c.b16 %v386, %v383
  %v471 = vpack.c.b16 %v390, %v387
  %v472 = vpack.c.b16 %v391, %v388
  %v473 = vpack.c.b16 %v392, %v389
  %v474 = vpack.c.b16 %v396, %v393
  %v475 = vpack.c.b16 %v397, %v394
  %v476 = vpack.c.b16 %v398, %v395
  %v477 = vpack.c.b16 %v402, %v399
  %v478 = vpack.c.b16 %v403, %v400
  %v479 = vpack.c.b16 %v404, %v401
  %v566 = vunpack.c.l.b16 %v115
  %v567 = vunpack.c.l.b16 %v116
  %v568 = vunpack.c.l.b16 %v117
  %v569 = vunpack.c.l.b16 %v118
  %v570 = vunpack.c.l.b16 %v119
  %v571 = vunpack.c.l.b16 %v120
  %v572 = vunpack.c.l.b16 %v121
  %v573 = vunpack.c.l.b16 %v122
  %v574 = vunpack.c.l.b16 %v123
  %v575 = vunpack.c.l.b16 %v124
  %v576 = vunpack.c.l.b16 %v125
  %v577 = vunpack.c.l.b16 %v126
  %v578 = vunpack.c.l.b16 %v127
  %v579 = vunpack.c.l.b16 %v128
  %v580 = vunpack.c.l.b16 %v129
  %v581 = vunpack.c.l.b16 %v130
  %v582 = vunpack.c.l.b16 %v131
  %v583 = vunpack.c.l.b16 %v132
  %v584 = vunpack.c.l.b16 %v133
  %v585 = vunpack.c.l.b16 %v134
  %v586 = vunpack.c.l.b16 %v135
  %v587 = vunpack.c.l.b16 %v136
  %v588 = vunpack.c.l.b16 %v137
  %v589 = vunpack.c.l.b16 %v138
  %v590 = vunpack.c.l.b16 %v139
  %v591 = vunpack.c.l.b16 %v140
  %v592 = vunpack.c.l.b16 %v141
  %v593 = vunpack.c.l.b16 %v142
  %v594 = vunpack.c.l.b16 %v143
  %v595 = vunpack.c.l.b16 %v144
  %v596 = vunpack.c.l.b16 %v145
  %v597 = vunpack.c.l.b16 %v146
  %v598 = vunpack.c.l.b16 %v147
  %v599 = vunpack.c.l.b16 %v148
  %v600 = vunpack.c.l.b16 %v149
  %v601 = vunpack.c.l.b16 %v150
  %v602 = vpack.c.b16 %v567, %v566
  %v603 = vpack.c.b16 %v569, %v568
  %v604 = vpack.c.b16 %v571, %v570
  %v605 = vpack.c.b16 %v573, %v572
  %v606 = vpack.c.b16 %v575, %v574
  %v607 = vpack.c.b16 %v577, %v576
  %v608 = vpack.c.b16 %v579, %v578
  %v609 = vpack.c.b16 %v581, %v580
  %v610 = vpack.c.b16 %v583, %v582
  %v611 = vpack.c.b16 %v585, %v584
  %v612 = vpack.c.b16 %v587, %v586
  %v613 = vpack.c.b16 %v589, %v588
  %v614 = vpack.c.b16 %v591, %v590
  %v615 = vpack.c.b16 %v593, %v592
  %v616 = vpack.c.b16 %v595, %v594
  %v617 = vpack.c.b16 %v597, %v596
  %v618 = vpack.c.b16 %v599, %v598
  %v619 = vpack.c.b16 %v601, %v600
  %vm638 = vcmask 261120
  %v640 = vsel %vm638, %v407, 0
  %v643 = vsel %vm638, %v410, 0
  %v646 = vsel %vm638, %v413, 0
  %v649 = vsel %vm638, %v416, 0
  %v652 = vsel %vm638, %v419, 0
  %v655 = vsel %vm638, %v422, 0
  %v658 = vsel %vm638, %v425, 0
  %v661 = vsel %vm638, %v428, 0
  %v664 = vsel %vm638, %v431, 0
  %v667 = vsel %vm638, %v434, 0
  %v670 = vsel %vm638, %v437, 0
  %v673 = vsel %vm638, %v440, 0
  %v676 = vsel %vm638, %v443, 0
  %v679 = vsel %vm638, %v446, 0
  %v682 = vsel %vm638, %v449, 0
  %v685 = vsel %vm638, %v452, 0
  %v688 = vsel %vm638, %v455, 0
  %v691 = vsel %vm638, %v458, 0
  %v694 = vsel %vm638, %v461, 0
  %v697 = vsel %vm638, %v464, 0
  %v700 = vsel %vm638, %v467, 0
  %v703 = vsel %vm638, %v470, 0
  %v706 = vsel %vm638, %v473, 0
  %v709 = vsel %vm638, %v476, 0
  %v712 = vsel %vm638, %v479, 0
  %714 = vmatpush.bf16.msra.mxu0 %v609
  %715 = vmatpush.bf16.msra.mxu0 %v608
  %716 = vmatpush.bf16.msra.mxu0 %v607
  %717 = vmatpush.bf16.msra.mxu0 %v606
  %718 = vmatpush.bf16.msra.mxu0 %v605
  %719 = vmatpush.bf16.msra.mxu0 %v604
  %720 = vmatpush.bf16.msra.mxu0 %v603
  %721 = vmatpush.bf16.msra.mxu0 %v602
  %722 = vmatmul.bf16.gmra.mxu0 %v405
  %v723 = vpop.f32.mrf.mxu0
  %v724 = vadd.f32 %v153, %v723
  %v725 = vpop.f32.mrf.mxu0
  %v726 = vadd.f32 %v153, %v725
  %727 = vmatmul.bf16.gmra.mxu0 %v408
  %v728 = vpop.f32.mrf.mxu0
  %v729 = vadd.f32 %v153, %v728
  %v730 = vpop.f32.mrf.mxu0
  %v731 = vadd.f32 %v153, %v730
  %732 = vmatmul.bf16.gmra.mxu0 %v411
  %v733 = vpop.f32.mrf.mxu0
  %v734 = vadd.f32 %v153, %v733
  %v735 = vpop.f32.mrf.mxu0
  %v736 = vadd.f32 %v153, %v735
  %737 = vmatmul.bf16.gmra.mxu0 %v414
  %v738 = vpop.f32.mrf.mxu0
  %v739 = vadd.f32 %v153, %v738
  %v740 = vpop.f32.mrf.mxu0
  %v741 = vadd.f32 %v153, %v740
  %742 = vmatmul.bf16.gmra.mxu0 %v417
  %v743 = vpop.f32.mrf.mxu0
  %v744 = vadd.f32 %v153, %v743
  %v745 = vpop.f32.mrf.mxu0
  %v746 = vadd.f32 %v153, %v745
  %747 = vmatmul.bf16.gmra.mxu0 %v420
  %v748 = vpop.f32.mrf.mxu0
  %v749 = vadd.f32 %v153, %v748
  %v750 = vpop.f32.mrf.mxu0
  %v751 = vadd.f32 %v153, %v750
  %752 = vmatmul.bf16.gmra.mxu0 %v423
  %v753 = vpop.f32.mrf.mxu0
  %v754 = vadd.f32 %v153, %v753
  %v755 = vpop.f32.mrf.mxu0
  %v756 = vadd.f32 %v153, %v755
  %757 = vmatmul.bf16.gmra.mxu0 %v426
  %v758 = vpop.f32.mrf.mxu0
  %v759 = vadd.f32 %v153, %v758
  %v760 = vpop.f32.mrf.mxu0
  %v761 = vadd.f32 %v153, %v760
  %762 = vmatmul.bf16.gmra.mxu0 %v429
  %v763 = vpop.f32.mrf.mxu0
  %v764 = vadd.f32 %v153, %v763
  %v765 = vpop.f32.mrf.mxu0
  %v766 = vadd.f32 %v153, %v765
  %767 = vmatmul.bf16.gmra.mxu0 %v432
  %v768 = vpop.f32.mrf.mxu0
  %v769 = vadd.f32 %v153, %v768
  %v770 = vpop.f32.mrf.mxu0
  %v771 = vadd.f32 %v153, %v770
  %772 = vmatmul.bf16.gmra.mxu0 %v435
  %v773 = vpop.f32.mrf.mxu0
  %v774 = vadd.f32 %v153, %v773
  %v775 = vpop.f32.mrf.mxu0
  %v776 = vadd.f32 %v153, %v775
  %777 = vmatmul.bf16.gmra.mxu0 %v438
  %v778 = vpop.f32.mrf.mxu0
  %v779 = vadd.f32 %v153, %v778
  %v780 = vpop.f32.mrf.mxu0
  %v781 = vadd.f32 %v153, %v780
  %782 = vmatmul.bf16.gmra.mxu0 %v441
  %v783 = vpop.f32.mrf.mxu0
  %v784 = vadd.f32 %v153, %v783
  %v785 = vpop.f32.mrf.mxu0
  %v786 = vadd.f32 %v153, %v785
  %787 = vmatmul.bf16.gmra.mxu0 %v444
  %v788 = vpop.f32.mrf.mxu0
  %v789 = vadd.f32 %v153, %v788
  %v790 = vpop.f32.mrf.mxu0
  %v791 = vadd.f32 %v153, %v790
  %792 = vmatmul.bf16.gmra.mxu0 %v447
  %v793 = vpop.f32.mrf.mxu0
  %v794 = vadd.f32 %v153, %v793
  %v795 = vpop.f32.mrf.mxu0
  %v796 = vadd.f32 %v153, %v795
  %797 = vmatmul.bf16.gmra.mxu0 %v450
  %v798 = vpop.f32.mrf.mxu0
  %v799 = vadd.f32 %v153, %v798
  %v800 = vpop.f32.mrf.mxu0
  %v801 = vadd.f32 %v153, %v800
  %802 = vmatmul.bf16.gmra.mxu0 %v453
  %v803 = vpop.f32.mrf.mxu0
  %v804 = vadd.f32 %v153, %v803
  %v805 = vpop.f32.mrf.mxu0
  %v806 = vadd.f32 %v153, %v805
  %807 = vmatmul.bf16.gmra.mxu0 %v456
  %v808 = vpop.f32.mrf.mxu0
  %v809 = vadd.f32 %v153, %v808
  %v810 = vpop.f32.mrf.mxu0
  %v811 = vadd.f32 %v153, %v810
  %812 = vmatmul.bf16.gmra.mxu0 %v459
  %v813 = vpop.f32.mrf.mxu0
  %v814 = vadd.f32 %v153, %v813
  %v815 = vpop.f32.mrf.mxu0
  %v816 = vadd.f32 %v153, %v815
  %817 = vmatmul.bf16.gmra.mxu0 %v462
  %v818 = vpop.f32.mrf.mxu0
  %v819 = vadd.f32 %v153, %v818
  %v820 = vpop.f32.mrf.mxu0
  %v821 = vadd.f32 %v153, %v820
  %822 = vmatmul.bf16.gmra.mxu0 %v465
  %v823 = vpop.f32.mrf.mxu0
  %v824 = vadd.f32 %v153, %v823
  %v825 = vpop.f32.mrf.mxu0
  %v826 = vadd.f32 %v153, %v825
  %827 = vmatmul.bf16.gmra.mxu0 %v468
  %v828 = vpop.f32.mrf.mxu0
  %v829 = vadd.f32 %v153, %v828
  %v830 = vpop.f32.mrf.mxu0
  %v831 = vadd.f32 %v153, %v830
  %832 = vmatmul.bf16.gmra.mxu0 %v471
  %v833 = vpop.f32.mrf.mxu0
  %v834 = vadd.f32 %v153, %v833
  %v835 = vpop.f32.mrf.mxu0
  %v836 = vadd.f32 %v153, %v835
  %837 = vmatmul.bf16.gmra.mxu0 %v474
  %v838 = vpop.f32.mrf.mxu0
  %v839 = vadd.f32 %v153, %v838
  %v840 = vpop.f32.mrf.mxu0
  %v841 = vadd.f32 %v153, %v840
  %842 = vmatmul.bf16.gmra.mxu0 %v477
  %v843 = vpop.f32.mrf.mxu0
  %v844 = vadd.f32 %v153, %v843
  %v845 = vpop.f32.mrf.mxu0
  %v846 = vadd.f32 %v153, %v845
  %847 = vdwg.mxu0
  %848 = vmatpush.bf16.msra.mxu0 %v617
  %849 = vmatpush.bf16.msra.mxu0 %v616
  %850 = vmatpush.bf16.msra.mxu0 %v615
  %851 = vmatpush.bf16.msra.mxu0 %v614
  %852 = vmatpush.bf16.msra.mxu0 %v613
  %853 = vmatpush.bf16.msra.mxu0 %v612
  %854 = vmatpush.bf16.msra.mxu0 %v611
  %855 = vmatpush.bf16.msra.mxu0 %v610
  %856 = vmatmul.bf16.gmra.mxu0 %v406
  %v857 = vpop.f32.mrf.mxu0
  %v858 = vadd.f32 %v724, %v857
  %v859 = vpop.f32.mrf.mxu0
  %v860 = vadd.f32 %v726, %v859
  %861 = vmatmul.bf16.gmra.mxu0 %v409
  %v862 = vpop.f32.mrf.mxu0
  %v863 = vadd.f32 %v729, %v862
  %v864 = vpop.f32.mrf.mxu0
  %v865 = vadd.f32 %v731, %v864
  %866 = vmatmul.bf16.gmra.mxu0 %v412
  %v867 = vpop.f32.mrf.mxu0
  %v868 = vadd.f32 %v734, %v867
  %v869 = vpop.f32.mrf.mxu0
  %v870 = vadd.f32 %v736, %v869
  %871 = vmatmul.bf16.gmra.mxu0 %v415
  %v872 = vpop.f32.mrf.mxu0
  %v873 = vadd.f32 %v739, %v872
  %v874 = vpop.f32.mrf.mxu0
  %v875 = vadd.f32 %v741, %v874
  %876 = vmatmul.bf16.gmra.mxu0 %v418
  %v877 = vpop.f32.mrf.mxu0
  %v878 = vadd.f32 %v744, %v877
  %v879 = vpop.f32.mrf.mxu0
  %v880 = vadd.f32 %v746, %v879
  %881 = vmatmul.bf16.gmra.mxu0 %v421
  %v882 = vpop.f32.mrf.mxu0
  %v883 = vadd.f32 %v749, %v882
  %v884 = vpop.f32.mrf.mxu0
  %v885 = vadd.f32 %v751, %v884
  %886 = vmatmul.bf16.gmra.mxu0 %v424
  %v887 = vpop.f32.mrf.mxu0
  %v888 = vadd.f32 %v754, %v887
  %v889 = vpop.f32.mrf.mxu0
  %v890 = vadd.f32 %v756, %v889
  %891 = vmatmul.bf16.gmra.mxu0 %v427
  %v892 = vpop.f32.mrf.mxu0
  %v893 = vadd.f32 %v759, %v892
  %v894 = vpop.f32.mrf.mxu0
  %v895 = vadd.f32 %v761, %v894
  %896 = vmatmul.bf16.gmra.mxu0 %v430
  %v897 = vpop.f32.mrf.mxu0
  %v898 = vadd.f32 %v764, %v897
  %v899 = vpop.f32.mrf.mxu0
  %v900 = vadd.f32 %v766, %v899
  %901 = vmatmul.bf16.gmra.mxu0 %v433
  %v902 = vpop.f32.mrf.mxu0
  %v903 = vadd.f32 %v769, %v902
  %v904 = vpop.f32.mrf.mxu0
  %v905 = vadd.f32 %v771, %v904
  %906 = vmatmul.bf16.gmra.mxu0 %v436
  %v907 = vpop.f32.mrf.mxu0
  %v908 = vadd.f32 %v774, %v907
  %v909 = vpop.f32.mrf.mxu0
  %v910 = vadd.f32 %v776, %v909
  %911 = vmatmul.bf16.gmra.mxu0 %v439
  %v912 = vpop.f32.mrf.mxu0
  %v913 = vadd.f32 %v779, %v912
  %v914 = vpop.f32.mrf.mxu0
  %v915 = vadd.f32 %v781, %v914
  %916 = vmatmul.bf16.gmra.mxu0 %v442
  %v917 = vpop.f32.mrf.mxu0
  %v918 = vadd.f32 %v784, %v917
  %v919 = vpop.f32.mrf.mxu0
  %v920 = vadd.f32 %v786, %v919
  %921 = vmatmul.bf16.gmra.mxu0 %v445
  %v922 = vpop.f32.mrf.mxu0
  %v923 = vadd.f32 %v789, %v922
  %v924 = vpop.f32.mrf.mxu0
  %v925 = vadd.f32 %v791, %v924
  %926 = vmatmul.bf16.gmra.mxu0 %v448
  %v927 = vpop.f32.mrf.mxu0
  %v928 = vadd.f32 %v794, %v927
  %v929 = vpop.f32.mrf.mxu0
  %v930 = vadd.f32 %v796, %v929
  %931 = vmatmul.bf16.gmra.mxu0 %v451
  %v932 = vpop.f32.mrf.mxu0
  %v933 = vadd.f32 %v799, %v932
  %v934 = vpop.f32.mrf.mxu0
  %v935 = vadd.f32 %v801, %v934
  %936 = vmatmul.bf16.gmra.mxu0 %v454
  %v937 = vpop.f32.mrf.mxu0
  %v938 = vadd.f32 %v804, %v937
  %v939 = vpop.f32.mrf.mxu0
  %v940 = vadd.f32 %v806, %v939
  %941 = vmatmul.bf16.gmra.mxu0 %v457
  %v942 = vpop.f32.mrf.mxu0
  %v943 = vadd.f32 %v809, %v942
  %v944 = vpop.f32.mrf.mxu0
  %v945 = vadd.f32 %v811, %v944
  %946 = vmatmul.bf16.gmra.mxu0 %v460
  %v947 = vpop.f32.mrf.mxu0
  %v948 = vadd.f32 %v814, %v947
  %v949 = vpop.f32.mrf.mxu0
  %v950 = vadd.f32 %v816, %v949
  %951 = vmatmul.bf16.gmra.mxu0 %v463
  %v952 = vpop.f32.mrf.mxu0
  %v953 = vadd.f32 %v819, %v952
  %v954 = vpop.f32.mrf.mxu0
  %v955 = vadd.f32 %v821, %v954
  %956 = vmatmul.bf16.gmra.mxu0 %v466
  %v957 = vpop.f32.mrf.mxu0
  %v958 = vadd.f32 %v824, %v957
  %v959 = vpop.f32.mrf.mxu0
  %v960 = vadd.f32 %v826, %v959
  %961 = vmatmul.bf16.gmra.mxu0 %v469
  %v962 = vpop.f32.mrf.mxu0
  %v963 = vadd.f32 %v829, %v962
  %v964 = vpop.f32.mrf.mxu0
  %v965 = vadd.f32 %v831, %v964
  %966 = vmatmul.bf16.gmra.mxu0 %v472
  %v967 = vpop.f32.mrf.mxu0
  %v968 = vadd.f32 %v834, %v967
  %v969 = vpop.f32.mrf.mxu0
  %v970 = vadd.f32 %v836, %v969
  %971 = vmatmul.bf16.gmra.mxu0 %v475
  %v972 = vpop.f32.mrf.mxu0
  %v973 = vadd.f32 %v839, %v972
  %v974 = vpop.f32.mrf.mxu0
  %v975 = vadd.f32 %v841, %v974
  %976 = vmatmul.bf16.gmra.mxu0 %v478
  %v977 = vpop.f32.mrf.mxu0
  %v978 = vadd.f32 %v844, %v977
  %v979 = vpop.f32.mrf.mxu0
  %v980 = vadd.f32 %v846, %v979
  %981 = vdwg.mxu0
  %982 = vmatpush.bf16.msra.mxu0 0
  %983 = vmatpush.bf16.msra.mxu0 0
  %984 = vmatpush.bf16.msra.mxu0 0
  %985 = vmatpush.bf16.msra.mxu0 0
  %986 = vmatpush.bf16.msra.mxu0 0
  %987 = vmatpush.bf16.msra.mxu0 0
  %988 = vmatpush.bf16.msra.mxu0 %v619
  %989 = vmatpush.bf16.msra.mxu0 %v618
  %990 = vmatmul.bf16.gmra.mxu0 %v640
  %v991 = vpop.f32.mrf.mxu0
  %v992 = vadd.f32 %v858, %v991
  %v993 = vpop.f32.mrf.mxu0
  %v994 = vadd.f32 %v860, %v993
  %995 = vmatmul.bf16.gmra.mxu0 %v643
  %v996 = vpop.f32.mrf.mxu0
  %v997 = vadd.f32 %v863, %v996
  %v998 = vpop.f32.mrf.mxu0
  %v999 = vadd.f32 %v865, %v998
  %1000 = vmatmul.bf16.gmra.mxu0 %v646
  %v1001 = vpop.f32.mrf.mxu0
  %v1002 = vadd.f32 %v868, %v1001
  %v1003 = vpop.f32.mrf.mxu0
  %v1004 = vadd.f32 %v870, %v1003
  %1005 = vmatmul.bf16.gmra.mxu0 %v649
  %v1006 = vpop.f32.mrf.mxu0
  %v1007 = vadd.f32 %v873, %v1006
  %v1008 = vpop.f32.mrf.mxu0
  %v1009 = vadd.f32 %v875, %v1008
  %1010 = vmatmul.bf16.gmra.mxu0 %v652
  %v1011 = vpop.f32.mrf.mxu0
  %v1012 = vadd.f32 %v878, %v1011
  %v1013 = vpop.f32.mrf.mxu0
  %v1014 = vadd.f32 %v880, %v1013
  %1015 = vmatmul.bf16.gmra.mxu0 %v655
  %v1016 = vpop.f32.mrf.mxu0
  %v1017 = vadd.f32 %v883, %v1016
  %v1018 = vpop.f32.mrf.mxu0
  %v1019 = vadd.f32 %v885, %v1018
  %1020 = vmatmul.bf16.gmra.mxu0 %v658
  %v1021 = vpop.f32.mrf.mxu0
  %v1022 = vadd.f32 %v888, %v1021
  %v1023 = vpop.f32.mrf.mxu0
  %v1024 = vadd.f32 %v890, %v1023
  %1025 = vmatmul.bf16.gmra.mxu0 %v661
  %v1026 = vpop.f32.mrf.mxu0
  %v1027 = vadd.f32 %v893, %v1026
  %v1028 = vpop.f32.mrf.mxu0
  %v1029 = vadd.f32 %v895, %v1028
  %1030 = vmatmul.bf16.gmra.mxu0 %v664
  %v1031 = vpop.f32.mrf.mxu0
  %v1032 = vadd.f32 %v898, %v1031
  %v1033 = vpop.f32.mrf.mxu0
  %v1034 = vadd.f32 %v900, %v1033
  %1035 = vmatmul.bf16.gmra.mxu0 %v667
  %v1036 = vpop.f32.mrf.mxu0
  %v1037 = vadd.f32 %v903, %v1036
  %v1038 = vpop.f32.mrf.mxu0
  %v1039 = vadd.f32 %v905, %v1038
  %1040 = vmatmul.bf16.gmra.mxu0 %v670
  %v1041 = vpop.f32.mrf.mxu0
  %v1042 = vadd.f32 %v908, %v1041
  %v1043 = vpop.f32.mrf.mxu0
  %v1044 = vadd.f32 %v910, %v1043
  %1045 = vmatmul.bf16.gmra.mxu0 %v673
  %v1046 = vpop.f32.mrf.mxu0
  %v1047 = vadd.f32 %v913, %v1046
  %v1048 = vpop.f32.mrf.mxu0
  %v1049 = vadd.f32 %v915, %v1048
  %1050 = vmatmul.bf16.gmra.mxu0 %v676
  %v1051 = vpop.f32.mrf.mxu0
  %v1052 = vadd.f32 %v918, %v1051
  %v1053 = vpop.f32.mrf.mxu0
  %v1054 = vadd.f32 %v920, %v1053
  %1055 = vmatmul.bf16.gmra.mxu0 %v679
  %v1056 = vpop.f32.mrf.mxu0
  %v1057 = vadd.f32 %v923, %v1056
  %v1058 = vpop.f32.mrf.mxu0
  %v1059 = vadd.f32 %v925, %v1058
  %1060 = vmatmul.bf16.gmra.mxu0 %v682
  %v1061 = vpop.f32.mrf.mxu0
  %v1062 = vadd.f32 %v928, %v1061
  %v1063 = vpop.f32.mrf.mxu0
  %v1064 = vadd.f32 %v930, %v1063
  %1065 = vmatmul.bf16.gmra.mxu0 %v685
  %v1066 = vpop.f32.mrf.mxu0
  %v1067 = vadd.f32 %v933, %v1066
  %v1068 = vpop.f32.mrf.mxu0
  %v1069 = vadd.f32 %v935, %v1068
  %1070 = vmatmul.bf16.gmra.mxu0 %v688
  %v1071 = vpop.f32.mrf.mxu0
  %v1072 = vadd.f32 %v938, %v1071
  %v1073 = vpop.f32.mrf.mxu0
  %v1074 = vadd.f32 %v940, %v1073
  %1075 = vmatmul.bf16.gmra.mxu0 %v691
  %v1076 = vpop.f32.mrf.mxu0
  %v1077 = vadd.f32 %v943, %v1076
  %v1078 = vpop.f32.mrf.mxu0
  %v1079 = vadd.f32 %v945, %v1078
  %1080 = vmatmul.bf16.gmra.mxu0 %v694
  %v1081 = vpop.f32.mrf.mxu0
  %v1082 = vadd.f32 %v948, %v1081
  %v1083 = vpop.f32.mrf.mxu0
  %v1084 = vadd.f32 %v950, %v1083
  %1085 = vmatmul.bf16.gmra.mxu0 %v697
  %v1086 = vpop.f32.mrf.mxu0
  %v1087 = vadd.f32 %v953, %v1086
  %v1088 = vpop.f32.mrf.mxu0
  %v1089 = vadd.f32 %v955, %v1088
  %1090 = vmatmul.bf16.gmra.mxu0 %v700
  %v1091 = vpop.f32.mrf.mxu0
  %v1092 = vadd.f32 %v958, %v1091
  %v1093 = vpop.f32.mrf.mxu0
  %v1094 = vadd.f32 %v960, %v1093
  %1095 = vmatmul.bf16.gmra.mxu0 %v703
  %v1096 = vpop.f32.mrf.mxu0
  %v1097 = vadd.f32 %v963, %v1096
  %v1098 = vpop.f32.mrf.mxu0
  %v1099 = vadd.f32 %v965, %v1098
  %1100 = vmatmul.bf16.gmra.mxu0 %v706
  %v1101 = vpop.f32.mrf.mxu0
  %v1102 = vadd.f32 %v968, %v1101
  %v1103 = vpop.f32.mrf.mxu0
  %v1104 = vadd.f32 %v970, %v1103
  %1105 = vmatmul.bf16.gmra.mxu0 %v709
  %v1106 = vpop.f32.mrf.mxu0
  %v1107 = vadd.f32 %v973, %v1106
  %v1108 = vpop.f32.mrf.mxu0
  %v1109 = vadd.f32 %v975, %v1108
  %1110 = vmatmul.bf16.gmra.mxu0 %v712
  %v1111 = vpop.f32.mrf.mxu0
  %v1112 = vadd.f32 %v978, %v1111
  %v1113 = vpop.f32.mrf.mxu0
  %v1114 = vadd.f32 %v980, %v1113
  %1115 = vdwg.mxu0
  %vm1116 = vcmp.gt.f32.partialorder %v992, 0.0
  %vm1117 = vcmp.gt.f32.partialorder %v994, 0.0
  %vm1118 = vcmp.gt.f32.partialorder %v997, 0.0
  %vm1119 = vcmp.gt.f32.partialorder %v999, 0.0
  %vm1120 = vcmp.gt.f32.partialorder %v1002, 0.0
  %vm1121 = vcmp.gt.f32.partialorder %v1004, 0.0
  %vm1122 = vcmp.gt.f32.partialorder %v1007, 0.0
  %vm1123 = vcmp.gt.f32.partialorder %v1009, 0.0
  %vm1124 = vcmp.gt.f32.partialorder %v1012, 0.0
  %vm1125 = vcmp.gt.f32.partialorder %v1014, 0.0
  %vm1126 = vcmp.gt.f32.partialorder %v1017, 0.0
  %vm1127 = vcmp.gt.f32.partialorder %v1019, 0.0
  %vm1128 = vcmp.gt.f32.partialorder %v1022, 0.0
  %vm1129 = vcmp.gt.f32.partialorder %v1024, 0.0
  %vm1130 = vcmp.gt.f32.partialorder %v1027, 0.0
  %vm1131 = vcmp.gt.f32.partialorder %v1029, 0.0
  %vm1132 = vcmp.gt.f32.partialorder %v1032, 0.0
  %vm1133 = vcmp.gt.f32.partialorder %v1034, 0.0
  %vm1134 = vcmp.gt.f32.partialorder %v1037, 0.0
  %vm1135 = vcmp.gt.f32.partialorder %v1039, 0.0
  %vm1136 = vcmp.gt.f32.partialorder %v1042, 0.0
  %vm1137 = vcmp.gt.f32.partialorder %v1044, 0.0
  %vm1138 = vcmp.gt.f32.partialorder %v1047, 0.0
  %vm1139 = vcmp.gt.f32.partialorder %v1049, 0.0
  %vm1140 = vcmp.gt.f32.partialorder %v1052, 0.0
  %vm1141 = vcmp.gt.f32.partialorder %v1054, 0.0
  %vm1142 = vcmp.gt.f32.partialorder %v1057, 0.0
  %vm1143 = vcmp.gt.f32.partialorder %v1059, 0.0
  %vm1144 = vcmp.gt.f32.partialorder %v1062, 0.0
  %vm1145 = vcmp.gt.f32.partialorder %v1064, 0.0
  %vm1146 = vcmp.gt.f32.partialorder %v1067, 0.0
  %vm1147 = vcmp.gt.f32.partialorder %v1069, 0.0
  %vm1148 = vcmp.gt.f32.partialorder %v1072, 0.0
  %vm1149 = vcmp.gt.f32.partialorder %v1074, 0.0
  %vm1150 = vcmp.gt.f32.partialorder %v1077, 0.0
  %vm1151 = vcmp.gt.f32.partialorder %v1079, 0.0
  %vm1152 = vcmp.gt.f32.partialorder %v1082, 0.0
  %vm1153 = vcmp.gt.f32.partialorder %v1084, 0.0
  %vm1154 = vcmp.gt.f32.partialorder %v1087, 0.0
  %vm1155 = vcmp.gt.f32.partialorder %v1089, 0.0
  %vm1156 = vcmp.gt.f32.partialorder %v1092, 0.0
  %vm1157 = vcmp.gt.f32.partialorder %v1094, 0.0
  %vm1158 = vcmp.gt.f32.partialorder %v1097, 0.0
  %vm1159 = vcmp.gt.f32.partialorder %v1099, 0.0
  %vm1160 = vcmp.gt.f32.partialorder %v1102, 0.0
  %vm1161 = vcmp.gt.f32.partialorder %v1104, 0.0
  %vm1162 = vcmp.gt.f32.partialorder %v1107, 0.0
  %vm1163 = vcmp.gt.f32.partialorder %v1109, 0.0
  %vm1164 = vcmp.gt.f32.partialorder %v1112, 0.0
  %vm1165 = vcmp.gt.f32.partialorder %v1114, 0.0
  %v1166 = vmul.f32 %v992, 0.01
  %v1167 = vmul.f32 %v994, 0.01
  %v1168 = vmul.f32 %v997, 0.01
  %v1169 = vmul.f32 %v999, 0.01
  %v1170 = vmul.f32 %v1002, 0.01
  %v1171 = vmul.f32 %v1004, 0.01
  %v1172 = vmul.f32 %v1007, 0.01
  %v1173 = vmul.f32 %v1009, 0.01
  %v1174 = vmul.f32 %v1012, 0.01
  %v1175 = vmul.f32 %v1014, 0.01
  %v1176 = vmul.f32 %v1017, 0.01
  %v1177 = vmul.f32 %v1019, 0.01
  %v1178 = vmul.f32 %v1022, 0.01
  %v1179 = vmul.f32 %v1024, 0.01
  %v1180 = vmul.f32 %v1027, 0.01
  %v1181 = vmul.f32 %v1029, 0.01
  %v1182 = vmul.f32 %v1032, 0.01
  %v1183 = vmul.f32 %v1034, 0.01
  %v1184 = vmul.f32 %v1037, 0.01
  %v1185 = vmul.f32 %v1039, 0.01
  %v1186 = vmul.f32 %v1042, 0.01
  %v1187 = vmul.f32 %v1044, 0.01
  %v1188 = vmul.f32 %v1047, 0.01
  %v1189 = vmul.f32 %v1049, 0.01
  %v1190 = vmul.f32 %v1052, 0.01
  %v1191 = vmul.f32 %v1054, 0.01
  %v1192 = vmul.f32 %v1057, 0.01
  %v1193 = vmul.f32 %v1059, 0.01
  %v1194 = vmul.f32 %v1062, 0.01
  %v1195 = vmul.f32 %v1064, 0.01
  %v1196 = vmul.f32 %v1067, 0.01
  %v1197 = vmul.f32 %v1069, 0.01
  %v1198 = vmul.f32 %v1072, 0.01
  %v1199 = vmul.f32 %v1074, 0.01
  %v1200 = vmul.f32 %v1077, 0.01
  %v1201 = vmul.f32 %v1079, 0.01
  %v1202 = vmul.f32 %v1082, 0.01
  %v1203 = vmul.f32 %v1084, 0.01
  %v1204 = vmul.f32 %v1087, 0.01
  %v1205 = vmul.f32 %v1089, 0.01
  %v1206 = vmul.f32 %v1092, 0.01
  %v1207 = vmul.f32 %v1094, 0.01
  %v1208 = vmul.f32 %v1097, 0.01
  %v1209 = vmul.f32 %v1099, 0.01
  %v1210 = vmul.f32 %v1102, 0.01
  %v1211 = vmul.f32 %v1104, 0.01
  %v1212 = vmul.f32 %v1107, 0.01
  %v1213 = vmul.f32 %v1109, 0.01
  %v1214 = vmul.f32 %v1112, 0.01
  %v1215 = vmul.f32 %v1114, 0.01
  %v1216 = vsel %vm1116, %v992, %v1166
  %v1217 = vsel %vm1117, %v994, %v1167
  %v1218 = vsel %vm1118, %v997, %v1168
  %v1219 = vsel %vm1119, %v999, %v1169
  %v1220 = vsel %vm1120, %v1002, %v1170
  %v1221 = vsel %vm1121, %v1004, %v1171
  %v1222 = vsel %vm1122, %v1007, %v1172
  %v1223 = vsel %vm1123, %v1009, %v1173
  %v1224 = vsel %vm1124, %v1012, %v1174
  %v1225 = vsel %vm1125, %v1014, %v1175
  %v1226 = vsel %vm1126, %v1017, %v1176
  %v1227 = vsel %vm1127, %v1019, %v1177
  %v1228 = vsel %vm1128, %v1022, %v1178
  %v1229 = vsel %vm1129, %v1024, %v1179
  %v1230 = vsel %vm1130, %v1027, %v1180
  %v1231 = vsel %vm1131, %v1029, %v1181
  %v1232 = vsel %vm1132, %v1032, %v1182
  %v1233 = vsel %vm1133, %v1034, %v1183
  %v1234 = vsel %vm1134, %v1037, %v1184
  %v1235 = vsel %vm1135, %v1039, %v1185
  %v1236 = vsel %vm1136, %v1042, %v1186
  %v1237 = vsel %vm1137, %v1044, %v1187
  %v1238 = vsel %vm1138, %v1047, %v1188
  %v1239 = vsel %vm1139, %v1049, %v1189
  %v1240 = vsel %vm1140, %v1052, %v1190
  %v1241 = vsel %vm1141, %v1054, %v1191
  %v1242 = vsel %vm1142, %v1057, %v1192
  %v1243 = vsel %vm1143, %v1059, %v1193
  %v1244 = vsel %vm1144, %v1062, %v1194
  %v1245 = vsel %vm1145, %v1064, %v1195
  %v1246 = vsel %vm1146, %v1067, %v1196
  %v1247 = vsel %vm1147, %v1069, %v1197
  %v1248 = vsel %vm1148, %v1072, %v1198
  %v1249 = vsel %vm1149, %v1074, %v1199
  %v1250 = vsel %vm1150, %v1077, %v1200
  %v1251 = vsel %vm1151, %v1079, %v1201
  %v1252 = vsel %vm1152, %v1082, %v1202
  %v1253 = vsel %vm1153, %v1084, %v1203
  %v1254 = vsel %vm1154, %v1087, %v1204
  %v1255 = vsel %vm1155, %v1089, %v1205
  %v1256 = vsel %vm1156, %v1092, %v1206
  %v1257 = vsel %vm1157, %v1094, %v1207
  %v1258 = vsel %vm1158, %v1097, %v1208
  %v1259 = vsel %vm1159, %v1099, %v1209
  %v1260 = vsel %vm1160, %v1102, %v1210
  %v1261 = vsel %vm1161, %v1104, %v1211
  %v1262 = vsel %vm1162, %v1107, %v1212
  %v1263 = vsel %vm1163, %v1109, %v1213
  %v1264 = vsel %vm1164, %v1112, %v1214
  %v1265 = vsel %vm1165, %v1114, %v1215
  %v1266 = vpack.c.bf16 %v1216, %v1216
  %v1267 = vpack.c.bf16 %v1217, %v1217
  %v1268 = vpack.c.bf16 %v1218, %v1218
  %v1269 = vpack.c.bf16 %v1219, %v1219
  %v1270 = vpack.c.bf16 %v1220, %v1220
  %v1271 = vpack.c.bf16 %v1221, %v1221
  %v1272 = vpack.c.bf16 %v1222, %v1222
  %v1273 = vpack.c.bf16 %v1223, %v1223
  %v1274 = vpack.c.bf16 %v1224, %v1224
  %v1275 = vpack.c.bf16 %v1225, %v1225
  %v1276 = vpack.c.bf16 %v1226, %v1226
  %v1277 = vpack.c.bf16 %v1227, %v1227
  %v1278 = vpack.c.bf16 %v1228, %v1228
  %v1279 = vpack.c.bf16 %v1229, %v1229
  %v1280 = vpack.c.bf16 %v1230, %v1230
  %v1281 = vpack.c.bf16 %v1231, %v1231
  %v1282 = vpack.c.bf16 %v1232, %v1232
  %v1283 = vpack.c.bf16 %v1233, %v1233
  %v1284 = vpack.c.bf16 %v1234, %v1234
  %v1285 = vpack.c.bf16 %v1235, %v1235
  %v1286 = vpack.c.bf16 %v1236, %v1236
  %v1287 = vpack.c.bf16 %v1237, %v1237
  %v1288 = vpack.c.bf16 %v1238, %v1238
  %v1289 = vpack.c.bf16 %v1239, %v1239
  %v1290 = vpack.c.bf16 %v1240, %v1240
  %v1291 = vpack.c.bf16 %v1241, %v1241
  %v1292 = vpack.c.bf16 %v1242, %v1242
  %v1293 = vpack.c.bf16 %v1243, %v1243
  %v1294 = vpack.c.bf16 %v1244, %v1244
  %v1295 = vpack.c.bf16 %v1245, %v1245
  %v1296 = vpack.c.bf16 %v1246, %v1246
  %v1297 = vpack.c.bf16 %v1247, %v1247
  %v1298 = vpack.c.bf16 %v1248, %v1248
  %v1299 = vpack.c.bf16 %v1249, %v1249
  %v1300 = vpack.c.bf16 %v1250, %v1250
  %v1301 = vpack.c.bf16 %v1251, %v1251
  %v1302 = vpack.c.bf16 %v1252, %v1252
  %v1303 = vpack.c.bf16 %v1253, %v1253
  %v1304 = vpack.c.bf16 %v1254, %v1254
  %v1305 = vpack.c.bf16 %v1255, %v1255
  %v1306 = vpack.c.bf16 %v1256, %v1256
  %v1307 = vpack.c.bf16 %v1257, %v1257
  %v1308 = vpack.c.bf16 %v1258, %v1258
  %v1309 = vpack.c.bf16 %v1259, %v1259
  %v1310 = vpack.c.bf16 %v1260, %v1260
  %v1311 = vpack.c.bf16 %v1261, %v1261
  %v1312 = vpack.c.bf16 %v1262, %v1262
  %v1313 = vpack.c.bf16 %v1263, %v1263
  %v1314 = vpack.c.bf16 %v1264, %v1264
  %v1315 = vpack.c.bf16 %v1265, %v1265
  %vm1316 = vcmask 257024
  %1317 = vst.msk [vmem:[%s3] sm:$0xf] %vm1316, %v1266
  %1318 = vst.msk [vmem:[%s3 + $0x4] sm:$0xf] %vm1316, %v1267
  %1319 = vst.msk [vmem:[%s3 + $0x8] sm:$0xf] %vm1316, %v1268
  %1320 = vst.msk [vmem:[%s3 + $0xc] sm:$0xf] %vm1316, %v1269
  %1321 = vst.msk [vmem:[%s3 + $0x10] sm:$0xf] %vm1316, %v1270
  %1322 = vst.msk [vmem:[%s3 + $0x14] sm:$0xf] %vm1316, %v1271
  %1323 = vst.msk [vmem:[%s3 + $0x18] sm:$0xf] %vm1316, %v1272
  %1324 = vst.msk [vmem:[%s3 + $0x1c] sm:$0xf] %vm1316, %v1273
  %1325 = vst.msk [vmem:[%s3 + $0x20] sm:$0xf] %vm1316, %v1274
  %1326 = vst.msk [vmem:[%s3 + $0x24] sm:$0xf] %vm1316, %v1275
  %1327 = vst.msk [vmem:[%s3 + $0x28] sm:$0xf] %vm1316, %v1276
  %1328 = vst.msk [vmem:[%s3 + $0x2c] sm:$0xf] %vm1316, %v1277
  %1329 = vst.msk [vmem:[%s3 + $0x30] sm:$0xf] %vm1316, %v1278
  %1330 = vst.msk [vmem:[%s3 + $0x34] sm:$0xf] %vm1316, %v1279
  %1331 = vst.msk [vmem:[%s3 + $0x38] sm:$0xf] %vm1316, %v1280
  %1332 = vst.msk [vmem:[%s3 + $0x3c] sm:$0xf] %vm1316, %v1281
  %1333 = vst.msk [vmem:[%s3 + $0x40] sm:$0xf] %vm1316, %v1282
  %1334 = vst.msk [vmem:[%s3 + $0x44] sm:$0xf] %vm1316, %v1283
  %1335 = vst.msk [vmem:[%s3 + $0x48] sm:$0xf] %vm1316, %v1284
  %1336 = vst.msk [vmem:[%s3 + $0x4c] sm:$0xf] %vm1316, %v1285
  %1337 = vst.msk [vmem:[%s3 + $0x50] sm:$0xf] %vm1316, %v1286
  %1338 = vst.msk [vmem:[%s3 + $0x54] sm:$0xf] %vm1316, %v1287
  %1339 = vst.msk [vmem:[%s3 + $0x58] sm:$0xf] %vm1316, %v1288
  %1340 = vst.msk [vmem:[%s3 + $0x5c] sm:$0xf] %vm1316, %v1289
  %1341 = vst.msk [vmem:[%s3 + $0x60] sm:$0xf] %vm1316, %v1290
  %1342 = vst.msk [vmem:[%s3 + $0x64] sm:$0xf] %vm1316, %v1291
  %1343 = vst.msk [vmem:[%s3 + $0x68] sm:$0xf] %vm1316, %v1292
  %1344 = vst.msk [vmem:[%s3 + $0x6c] sm:$0xf] %vm1316, %v1293
  %1345 = vst.msk [vmem:[%s3 + $0x70] sm:$0xf] %vm1316, %v1294
  %1346 = vst.msk [vmem:[%s3 + $0x74] sm:$0xf] %vm1316, %v1295
  %1347 = vst.msk [vmem:[%s3 + $0x78] sm:$0xf] %vm1316, %v1296
  %1348 = vst.msk [vmem:[%s3 + $0x7c] sm:$0xf] %vm1316, %v1297
  %1349 = vst.msk [vmem:[%s3 + $0x80] sm:$0xf] %vm1316, %v1298
  %1350 = vst.msk [vmem:[%s3 + $0x84] sm:$0xf] %vm1316, %v1299
  %1351 = vst.msk [vmem:[%s3 + $0x88] sm:$0xf] %vm1316, %v1300
  %1352 = vst.msk [vmem:[%s3 + $0x8c] sm:$0xf] %vm1316, %v1301
  %1353 = vst.msk [vmem:[%s3 + $0x90] sm:$0xf] %vm1316, %v1302
  %1354 = vst.msk [vmem:[%s3 + $0x94] sm:$0xf] %vm1316, %v1303
  %1355 = vst.msk [vmem:[%s3 + $0x98] sm:$0xf] %vm1316, %v1304
  %1356 = vst.msk [vmem:[%s3 + $0x9c] sm:$0xf] %vm1316, %v1305
  %1357 = vst.msk [vmem:[%s3 + $0xa0] sm:$0xf] %vm1316, %v1306
  %1358 = vst.msk [vmem:[%s3 + $0xa4] sm:$0xf] %vm1316, %v1307
  %1359 = vst.msk [vmem:[%s3 + $0xa8] sm:$0xf] %vm1316, %v1308
  %1360 = vst.msk [vmem:[%s3 + $0xac] sm:$0xf] %vm1316, %v1309
  %1361 = vst.msk [vmem:[%s3 + $0xb0] sm:$0xf] %vm1316, %v1310
  %1362 = vst.msk [vmem:[%s3 + $0xb4] sm:$0xf] %vm1316, %v1311
  %1363 = vst.msk [vmem:[%s3 + $0xb8] sm:$0xf] %vm1316, %v1312
  %1364 = vst.msk [vmem:[%s3 + $0xbc] sm:$0xf] %vm1316, %v1313
  %1365 = vst.msk [vmem:[%s3 + $0xc0] sm:$0xf] %vm1316, %v1314
  %1366 = vst.msk [vmem:[%s3 + $0xc4] sm:$0xf] %vm1316, %v1315
  // Predicated region
  $region14: #{deeper_conv_model.7} parent=0 // pred_check
    _
  $region15: #{deeper_conv_model.7} parent=0 // pred_check_branch
    %1368 = sbr.rel (0) target = $region17
  $region16: #{deeper_conv_model.7} parent=0 // pred_region
    _
  $region17: #{deeper_conv_model.7} parent=0 // pred_fallthru
    _
  // Predicated region
  $region18: #{deeper_conv_model.7} parent=0 // pred_check
    _
  $region19: #{deeper_conv_model.7} parent=0 // pred_check_branch
    %1370 = sbr.rel (0) target = $region21
  $region20: #{deeper_conv_model.7} parent=0 // pred_region
    _
  $region21: #{deeper_conv_model.7} parent=0 // pred_fallthru
    _

// kernel: deeper_conv_model.6
$region0: #{deeper_conv_model.6}
  #allocation0 [shape = 'u32[]', space=smem, size = 0x4, offset = 0x4, fixed_abs, tag = 'smem constant byte address 0x4 - core index']
  #allocation1 [shape = 'u32[72,128]{1,0:T(1,128)}', space=vmem, size = 0x9000, scoped, tag = 'internal scratch']
  %s0 = inlined_call_operand.vmem [shape: bf16[400,576], index: 0, kind: input, shape index: {}]
  %s1 = inlined_call_operand.vmem [shape: bf16[400,576], index: 1, kind: input, shape index: {}]
  %s2 = inlined_call_operand.vmem [shape: bf16[400,576], index: 2, kind: input, shape index: {}]
  %s3 = inlined_call_operand.vmem [shape: bf16[400,576], index: 3, kind: input, shape index: {}]
  %s4 = inlined_call_operand.vmem [shape: bf16[576,32], index: 4, kind: input, shape index: {}]
  %s5 = inlined_call_operand.vmem [shape: f32[1,32], index: 5, kind: input, shape index: {}]
  %s6 = inlined_call_operand.vmem [shape: bf16[400,32], index: 6, kind: output, shape index: {}]
  %s7 = sld [smem:[#allocation0]]
  $region34: #{deeper_conv_model.6} parent=0
    _
  %s9 = ssub.s32 1, %s7
  %s10 = scalar_select 0, %s9, %s7
  // Predicated region
  $region2: #{deeper_conv_model.6} parent=0 // pred_check
    _
  $region3: #{deeper_conv_model.6} parent=0 // pred_check_branch
    %12 = sbr.rel (0) target = $region5
  $region4: #{deeper_conv_model.6} parent=0 // pred_region
    _
  $region5: #{deeper_conv_model.6} parent=0 // pred_fallthru
    _
  // Predicated region
  $region6: #{deeper_conv_model.6} parent=0 // pred_check
    _
  $region7: #{deeper_conv_model.6} parent=0 // pred_check_branch
    %14 = sbr.rel (0) target = $region9
  $region8: #{deeper_conv_model.6} parent=0 // pred_region
    _
  $region9: #{deeper_conv_model.6} parent=0 // pred_fallthru
    _
  // Predicated region
  $region10: #{deeper_conv_model.6} parent=0 // pred_check
    _
  $region11: #{deeper_conv_model.6} parent=0 // pred_check_branch
    %16 = sbr.rel (0) target = $region13
  $region12: #{deeper_conv_model.6} parent=0 // pred_region
    _
  $region13: #{deeper_conv_model.6} parent=0 // pred_fallthru
    _
  // Predicated region
  $region14: #{deeper_conv_model.6} parent=0 // pred_check
    _
  $region15: #{deeper_conv_model.6} parent=0 // pred_check_branch
    %18 = sbr.rel (0) target = $region17
  $region16: #{deeper_conv_model.6} parent=0 // pred_region
    _
  $region17: #{deeper_conv_model.6} parent=0 // pred_fallthru
    _
  // Predicated region
  $region18: #{deeper_conv_model.6} parent=0 // pred_check
    _
  $region19: #{deeper_conv_model.6} parent=0 // pred_check_branch
    %20 = sbr.rel (0) target = $region21
  $region20: #{deeper_conv_model.6} parent=0 // pred_region
    _
  $region21: #{deeper_conv_model.6} parent=0 // pred_fallthru
    _
  // Predicated region
  $region22: #{deeper_conv_model.6} parent=0 // pred_check
    _
  $region23: #{deeper_conv_model.6} parent=0 // pred_check_branch
    %22 = sbr.rel (0) target = $region25
  $region24: #{deeper_conv_model.6} parent=0 // pred_region
    _
  $region25: #{deeper_conv_model.6} parent=0 // pred_fallthru
    _
  %v24 = vld [vmem:[%s4] sm:$0xf]
  %v25 = vld [vmem:[%s4 + $0x4] sm:$0xf]
  %v26 = vld [vmem:[%s4 + $0x8] sm:$0xf]
  %v27 = vld [vmem:[%s4 + $0xc] sm:$0xf]
  %v28 = vld [vmem:[%s4 + $0x10] sm:$0xf]
  %v29 = vld [vmem:[%s4 + $0x14] sm:$0xf]
  %v30 = vld [vmem:[%s4 + $0x18] sm:$0xf]
  %v31 = vld [vmem:[%s4 + $0x1c] sm:$0xf]
  %v32 = vld [vmem:[%s4 + $0x20] sm:$0xf]
  %v33 = vld [vmem:[%s4 + $0x24] sm:$0xf]
  %v34 = vld [vmem:[%s4 + $0x28] sm:$0xf]
  %v35 = vld [vmem:[%s4 + $0x2c] sm:$0xf]
  %v36 = vld [vmem:[%s4 + $0x30] sm:$0xf]
  %v37 = vld [vmem:[%s4 + $0x34] sm:$0xf]
  %v38 = vld [vmem:[%s4 + $0x38] sm:$0xf]
  %v39 = vld [vmem:[%s4 + $0x3c] sm:$0xf]
  %v40 = vld [vmem:[%s4 + $0x40] sm:$0xf]
  %v41 = vld [vmem:[%s4 + $0x44] sm:$0xf]
  %v42 = vld [vmem:[%s4 + $0x48] sm:$0xf]
  %v43 = vld [vmem:[%s4 + $0x4c] sm:$0xf]
  %v44 = vld [vmem:[%s4 + $0x50] sm:$0xf]
  %v45 = vld [vmem:[%s4 + $0x54] sm:$0xf]
  %v46 = vld [vmem:[%s4 + $0x58] sm:$0xf]
  %v47 = vld [vmem:[%s4 + $0x5c] sm:$0xf]
  %v48 = vld [vmem:[%s4 + $0x60] sm:$0xf]
  %v49 = vld [vmem:[%s4 + $0x64] sm:$0xf]
  %v50 = vld [vmem:[%s4 + $0x68] sm:$0xf]
  %v51 = vld [vmem:[%s4 + $0x6c] sm:$0xf]
  %v52 = vld [vmem:[%s4 + $0x70] sm:$0xf]
  %v53 = vld [vmem:[%s4 + $0x74] sm:$0xf]
  %v54 = vld [vmem:[%s4 + $0x78] sm:$0xf]
  %v55 = vld [vmem:[%s4 + $0x7c] sm:$0xf]
  %v56 = vld [vmem:[%s4 + $0x80] sm:$0xf]
  %v57 = vld [vmem:[%s4 + $0x84] sm:$0xf]
  %v58 = vld [vmem:[%s4 + $0x88] sm:$0xf]
  %v59 = vld [vmem:[%s4 + $0x8c] sm:$0xf]
  %v60 = vld [vmem:[%s4 + $0x90] sm:$0xf]
  %v61 = vld [vmem:[%s4 + $0x94] sm:$0xf]
  %v62 = vld [vmem:[%s4 + $0x98] sm:$0xf]
  %v63 = vld [vmem:[%s4 + $0x9c] sm:$0xf]
  %v64 = vld [vmem:[%s4 + $0xa0] sm:$0xf]
  %v65 = vld [vmem:[%s4 + $0xa4] sm:$0xf]
  %v66 = vld [vmem:[%s4 + $0xa8] sm:$0xf]
  %v67 = vld [vmem:[%s4 + $0xac] sm:$0xf]
  %v68 = vld [vmem:[%s4 + $0xb0] sm:$0xf]
  %v69 = vld [vmem:[%s4 + $0xb4] sm:$0xf]
  %v70 = vld [vmem:[%s4 + $0xb8] sm:$0xf]
  %v71 = vld [vmem:[%s4 + $0xbc] sm:$0xf]
  %v72 = vld [vmem:[%s4 + $0xc0] sm:$0xf]
  %v73 = vld [vmem:[%s4 + $0xc4] sm:$0xf]
  %v74 = vld [vmem:[%s4 + $0xc8] sm:$0xf]
  %v75 = vld [vmem:[%s4 + $0xcc] sm:$0xf]
  %v76 = vld [vmem:[%s4 + $0xd0] sm:$0xf]
  %v77 = vld [vmem:[%s4 + $0xd4] sm:$0xf]
  %v78 = vld [vmem:[%s4 + $0xd8] sm:$0xf]
  %v79 = vld [vmem:[%s4 + $0xdc] sm:$0xf]
  %v80 = vld [vmem:[%s4 + $0xe0] sm:$0xf]
  %v81 = vld [vmem:[%s4 + $0xe4] sm:$0xf]
  %v82 = vld [vmem:[%s4 + $0xe8] sm:$0xf]
  %v83 = vld [vmem:[%s4 + $0xec] sm:$0xf]
  %v84 = vld [vmem:[%s4 + $0xf0] sm:$0xf]
  %v85 = vld [vmem:[%s4 + $0xf4] sm:$0xf]
  %v86 = vld [vmem:[%s4 + $0xf8] sm:$0xf]
  %v87 = vld [vmem:[%s4 + $0xfc] sm:$0xf]
  %v88 = vld [vmem:[%s4 + $0x100] sm:$0xf]
  %v89 = vld [vmem:[%s4 + $0x104] sm:$0xf]
  %v90 = vld [vmem:[%s4 + $0x108] sm:$0xf]
  %v91 = vld [vmem:[%s4 + $0x10c] sm:$0xf]
  %v92 = vld [vmem:[%s4 + $0x110] sm:$0xf]
  %v93 = vld [vmem:[%s4 + $0x114] sm:$0xf]
  %v94 = vld [vmem:[%s4 + $0x118] sm:$0xf]
  %v95 = vld [vmem:[%s4 + $0x11c] sm:$0xf]
  %v96 = vld [vmem:[%s0] sm:$0xff]
  %v97 = vld [vmem:[%s0 + $0x8] sm:$0xff]
  %v98 = vld [vmem:[%s0 + $0x10] sm:$0xf]
  %v99 = vld [vmem:[%s0 + $0x14] sm:$0xff]
  %v100 = vld [vmem:[%s0 + $0x1c] sm:$0xff]
  %v101 = vld [vmem:[%s0 + $0x24] sm:$0xf]
  %v102 = vld [vmem:[%s0 + $0x28] sm:$0xff]
  %v103 = vld [vmem:[%s0 + $0x30] sm:$0xff]
  %v104 = vld [vmem:[%s0 + $0x38] sm:$0xf]
  %v105 = vld [vmem:[%s0 + $0x3c] sm:$0xff]
  %v106 = vld [vmem:[%s0 + $0x44] sm:$0xff]
  %v107 = vld [vmem:[%s0 + $0x4c] sm:$0xf]
  %v108 = vld [vmem:[%s0 + $0x50] sm:$0xff]
  %v109 = vld [vmem:[%s0 + $0x58] sm:$0xff]
  %v110 = vld [vmem:[%s0 + $0x60] sm:$0xf]
  %v111 = vld [vmem:[%s0 + $0x64] sm:$0xff]
  %v112 = vld [vmem:[%s0 + $0x6c] sm:$0xff]
  %v113 = vld [vmem:[%s0 + $0x74] sm:$0xf]
  %v114 = vld [vmem:[%s0 + $0x78] sm:$0xff]
  %v115 = vld [vmem:[%s0 + $0x80] sm:$0xff]
  %v116 = vld [vmem:[%s0 + $0x88] sm:$0xf]
  %v117 = vld [vmem:[%s0 + $0x8c] sm:$0xff]
  %v118 = vld [vmem:[%s0 + $0x94] sm:$0xff]
  %v119 = vld [vmem:[%s0 + $0x9c] sm:$0xf]
  %v120 = vld [vmem:[%s0 + $0xa0] sm:$0xff]
  %v121 = vld [vmem:[%s0 + $0xa8] sm:$0xff]
  %v122 = vld [vmem:[%s0 + $0xb0] sm:$0xf]
  %v123 = vld [vmem:[%s0 + $0xb4] sm:$0xff]
  %v124 = vld [vmem:[%s0 + $0xbc] sm:$0xff]
  %v125 = vld [vmem:[%s0 + $0xc4] sm:$0xf]
  %v126 = vld [vmem:[%s0 + $0xc8] sm:$0xff]
  %v127 = vld [vmem:[%s0 + $0xd0] sm:$0xff]
  %v128 = vld [vmem:[%s0 + $0xd8] sm:$0xf]
  %v129 = vld [vmem:[%s0 + $0xdc] sm:$0xff]
  %v130 = vld [vmem:[%s0 + $0xe4] sm:$0xff]
  %v131 = vld [vmem:[%s0 + $0xec] sm:$0xf]
  %v132 = vld [vmem:[%s0 + $0xf0] sm:$0xff]
  %v133 = vld [vmem:[%s0 + $0xf8] sm:$0xff]
  %v134 = vld [vmem:[%s0 + $0x100] sm:$0xf]
  %v135 = vld [vmem:[%s0 + $0x104] sm:$0xff]
  %v136 = vld [vmem:[%s0 + $0x10c] sm:$0xff]
  %v137 = vld [vmem:[%s0 + $0x114] sm:$0xf]
  %v138 = vld [vmem:[%s0 + $0x118] sm:$0xff]
  %v139 = vld [vmem:[%s0 + $0x120] sm:$0xff]
  %v140 = vld [vmem:[%s0 + $0x128] sm:$0xf]
  %v141 = vld [vmem:[%s0 + $0x12c] sm:$0xff]
  %v142 = vld [vmem:[%s0 + $0x134] sm:$0xff]
  %v143 = vld [vmem:[%s0 + $0x13c] sm:$0xf]
  %v144 = vld [vmem:[%s0 + $0x140] sm:$0xff]
  %v145 = vld [vmem:[%s0 + $0x148] sm:$0xff]
  %v146 = vld [vmem:[%s0 + $0x150] sm:$0xf]
  %v147 = vld [vmem:[%s0 + $0x154] sm:$0xff]
  %v148 = vld [vmem:[%s0 + $0x15c] sm:$0xff]
  %v149 = vld [vmem:[%s0 + $0x164] sm:$0xf]
  %v150 = vld [vmem:[%s0 + $0x168] sm:$0xff]
  %v151 = vld [vmem:[%s0 + $0x170] sm:$0xff]
  %v152 = vld [vmem:[%s0 + $0x178] sm:$0xf]
  %v153 = vld [vmem:[%s0 + $0x17c] sm:$0xff]
  %v154 = vld [vmem:[%s0 + $0x184] sm:$0xff]
  %v155 = vld [vmem:[%s0 + $0x18c] sm:$0xf]
  %v156 = vld [vmem:[%s0 + $0x190] sm:$0xff]
  %v157 = vld [vmem:[%s0 + $0x198] sm:$0xff]
  %v158 = vld [vmem:[%s0 + $0x1a0] sm:$0xf]
  %v159 = vld [vmem:[%s0 + $0x1a4] sm:$0xff]
  %v160 = vld [vmem:[%s0 + $0x1ac] sm:$0xff]
  %v161 = vld [vmem:[%s0 + $0x1b4] sm:$0xf]
  %v162 = vld [vmem:[%s0 + $0x1b8] sm:$0xff]
  %v163 = vld [vmem:[%s0 + $0x1c0] sm:$0xff]
  %v164 = vld [vmem:[%s0 + $0x1c8] sm:$0xf]
  %v165 = vld [vmem:[%s0 + $0x1cc] sm:$0xff]
  %v166 = vld [vmem:[%s0 + $0x1d4] sm:$0xff]
  %v167 = vld [vmem:[%s0 + $0x1dc] sm:$0xf]
  %v168 = vld [vmem:[%s0 + $0x1e0] sm:$0xff]
  %v169 = vld [vmem:[%s0 + $0x1e8] sm:$0xff]
  %v170 = vld [vmem:[%s0 + $0x1f0] sm:$0xf]
  %v171 = vld [vmem:[%s0 + $0x1f4] sm:$0xff]
  %v172 = vld [vmem:[%s0 + $0x1fc] sm:$0xff]
  %v173 = vld [vmem:[%s0 + $0x204] sm:$0xf]
  %v174 = vld [vmem:[%s0 + $0x208] sm:$0xff]
  %v175 = vld [vmem:[%s0 + $0x210] sm:$0xff]
  %v176 = vld [vmem:[%s0 + $0x218] sm:$0xf]
  %v177 = vld [vmem:[%s0 + $0x21c] sm:$0xff]
  %v178 = vld [vmem:[%s0 + $0x224] sm:$0xff]
  %v179 = vld [vmem:[%s0 + $0x22c] sm:$0xf]
  %v180 = vld [vmem:[%s0 + $0x230] sm:$0xff]
  %v181 = vld [vmem:[%s0 + $0x238] sm:$0xff]
  %v182 = vld [vmem:[%s0 + $0x240] sm:$0xf]
  %v183 = vld [vmem:[%s0 + $0x244] sm:$0xff]
  %v184 = vld [vmem:[%s0 + $0x24c] sm:$0xff]
  %v185 = vld [vmem:[%s0 + $0x254] sm:$0xf]
  %v186 = vld [vmem:[%s0 + $0x258] sm:$0xff]
  %v187 = vld [vmem:[%s0 + $0x260] sm:$0xff]
  %v188 = vld [vmem:[%s0 + $0x268] sm:$0xf]
  %v189 = vld [vmem:[%s0 + $0x26c] sm:$0xff]
  %v190 = vld [vmem:[%s0 + $0x274] sm:$0xff]
  %v191 = vld [vmem:[%s0 + $0x27c] sm:$0xf]
  %v192 = vld [vmem:[%s0 + $0x280] sm:$0xff]
  %v193 = vld [vmem:[%s0 + $0x288] sm:$0xff]
  %v194 = vld [vmem:[%s0 + $0x290] sm:$0xf]
  %v195 = vld [vmem:[%s0 + $0x294] sm:$0xff]
  %v196 = vld [vmem:[%s0 + $0x29c] sm:$0xff]
  %v197 = vld [vmem:[%s0 + $0x2a4] sm:$0xf]
  %v198 = vld [vmem:[%s0 + $0x2a8] sm:$0xff]
  %v199 = vld [vmem:[%s0 + $0x2b0] sm:$0xff]
  %v200 = vld [vmem:[%s0 + $0x2b8] sm:$0xf]
  %v201 = vld [vmem:[%s0 + $0x2bc] sm:$0xff]
  %v202 = vld [vmem:[%s0 + $0x2c4] sm:$0xff]
  %v203 = vld [vmem:[%s0 + $0x2cc] sm:$0xf]
  %v204 = vld [vmem:[%s0 + $0x2d0] sm:$0xff]
  %v205 = vld [vmem:[%s0 + $0x2d8] sm:$0xff]
  %v206 = vld [vmem:[%s0 + $0x2e0] sm:$0xf]
  %v207 = vld [vmem:[%s0 + $0x2e4] sm:$0xff]
  %v208 = vld [vmem:[%s0 + $0x2ec] sm:$0xff]
  %v209 = vld [vmem:[%s0 + $0x2f4] sm:$0xf]
  %v210 = vld [vmem:[%s0 + $0x2f8] sm:$0xff]
  %v211 = vld [vmem:[%s0 + $0x300] sm:$0xff]
  %v212 = vld [vmem:[%s0 + $0x308] sm:$0xf]
  %v213 = vld [vmem:[%s0 + $0x30c] sm:$0xff]
  %v214 = vld [vmem:[%s0 + $0x314] sm:$0xff]
  %v215 = vld [vmem:[%s0 + $0x31c] sm:$0xf]
  %v216 = vld [vmem:[%s0 + $0x320] sm:$0xff]
  %v217 = vld [vmem:[%s0 + $0x328] sm:$0xff]
  %v218 = vld [vmem:[%s0 + $0x330] sm:$0xf]
  %v219 = vld [vmem:[%s0 + $0x334] sm:$0xff]
  %v220 = vld [vmem:[%s0 + $0x33c] sm:$0xff]
  %v221 = vld [vmem:[%s0 + $0x344] sm:$0xf]
  %v222 = vld [vmem:[%s0 + $0x348] sm:$0xff]
  %v223 = vld [vmem:[%s0 + $0x350] sm:$0xff]
  %v224 = vld [vmem:[%s0 + $0x358] sm:$0xf]
  %v225 = vld [vmem:[%s0 + $0x35c] sm:$0xff]
  %v226 = vld [vmem:[%s0 + $0x364] sm:$0xff]
  %v227 = vld [vmem:[%s0 + $0x36c] sm:$0xf]
  %v228 = vld [vmem:[%s0 + $0x370] sm:$0xff]
  %v229 = vld [vmem:[%s0 + $0x378] sm:$0xff]
  %v230 = vld [vmem:[%s0 + $0x380] sm:$0xf]
  %v231 = vld [vmem:[%s0 + $0x384] sm:$0xff]
  %v232 = vld [vmem:[%s0 + $0x38c] sm:$0xff]
  %v233 = vld [vmem:[%s0 + $0x394] sm:$0xf]
  %v234 = vld [vmem:[%s0 + $0x398] sm:$0xff]
  %v235 = vld [vmem:[%s0 + $0x3a0] sm:$0xff]
  %v236 = vld [vmem:[%s0 + $0x3a8] sm:$0xf]
  %v237 = vld [vmem:[%s0 + $0x3ac] sm:$0xff]
  %v238 = vld [vmem:[%s0 + $0x3b4] sm:$0xff]
  %v239 = vld [vmem:[%s0 + $0x3bc] sm:$0xf]
  %v240 = vld [vmem:[%s0 + $0x3c0] sm:$0xff]
  %v241 = vld [vmem:[%s0 + $0x3c8] sm:$0xff]
  %v242 = vld [vmem:[%s0 + $0x3d0] sm:$0xf]
  %v243 = vld [vmem:[%s0 + $0x3d4] sm:$0xff]
  %v244 = vld [vmem:[%s0 + $0x3dc] sm:$0xff]
  %v245 = vld [vmem:[%s0 + $0x3e4] sm:$0xf]
  %v396 = vunpack.c.l.b16 %v96
  %v397 = vunpack.c.h.b16 %v96
  %v398 = vunpack.c.l.b16 %v97
  %v399 = vunpack.c.h.b16 %v97
  %v400 = vunpack.c.l.b16 %v98
  %v401 = vunpack.c.l.b16 %v99
  %v402 = vunpack.c.h.b16 %v99
  %v403 = vunpack.c.l.b16 %v100
  %v404 = vunpack.c.h.b16 %v100
  %v405 = vunpack.c.l.b16 %v101
  %v406 = vunpack.c.l.b16 %v102
  %v407 = vunpack.c.h.b16 %v102
  %v408 = vunpack.c.l.b16 %v103
  %v409 = vunpack.c.h.b16 %v103
  %v410 = vunpack.c.l.b16 %v104
  %v411 = vunpack.c.l.b16 %v105
  %v412 = vunpack.c.h.b16 %v105
  %v413 = vunpack.c.l.b16 %v106
  %v414 = vunpack.c.h.b16 %v106
  %v415 = vunpack.c.l.b16 %v107
  %v416 = vunpack.c.l.b16 %v108
  %v417 = vunpack.c.h.b16 %v108
  %v418 = vunpack.c.l.b16 %v109
  %v419 = vunpack.c.h.b16 %v109
  %v420 = vunpack.c.l.b16 %v110
  %v421 = vunpack.c.l.b16 %v111
  %v422 = vunpack.c.h.b16 %v111
  %v423 = vunpack.c.l.b16 %v112
  %v424 = vunpack.c.h.b16 %v112
  %v425 = vunpack.c.l.b16 %v113
  %v426 = vunpack.c.l.b16 %v114
  %v427 = vunpack.c.h.b16 %v114
  %v428 = vunpack.c.l.b16 %v115
  %v429 = vunpack.c.h.b16 %v115
  %v430 = vunpack.c.l.b16 %v116
  %v431 = vunpack.c.l.b16 %v117
  %v432 = vunpack.c.h.b16 %v117
  %v433 = vunpack.c.l.b16 %v118
  %v434 = vunpack.c.h.b16 %v118
  %v435 = vunpack.c.l.b16 %v119
  %v436 = vunpack.c.l.b16 %v120
  %v437 = vunpack.c.h.b16 %v120
  %v438 = vunpack.c.l.b16 %v121
  %v439 = vunpack.c.h.b16 %v121
  %v440 = vunpack.c.l.b16 %v122
  %v441 = vunpack.c.l.b16 %v123
  %v442 = vunpack.c.h.b16 %v123
  %v443 = vunpack.c.l.b16 %v124
  %v444 = vunpack.c.h.b16 %v124
  %v445 = vunpack.c.l.b16 %v125
  %v446 = vunpack.c.l.b16 %v126
  %v447 = vunpack.c.h.b16 %v126
  %v448 = vunpack.c.l.b16 %v127
  %v449 = vunpack.c.h.b16 %v127
  %v450 = vunpack.c.l.b16 %v128
  %v451 = vunpack.c.l.b16 %v129
  %v452 = vunpack.c.h.b16 %v129
  %v453 = vunpack.c.l.b16 %v130
  %v454 = vunpack.c.h.b16 %v130
  %v455 = vunpack.c.l.b16 %v131
  %v456 = vunpack.c.l.b16 %v132
  %v457 = vunpack.c.h.b16 %v132
  %v458 = vunpack.c.l.b16 %v133
  %v459 = vunpack.c.h.b16 %v133
  %v460 = vunpack.c.l.b16 %v134
  %v461 = vunpack.c.l.b16 %v135
  %v462 = vunpack.c.h.b16 %v135
  %v463 = vunpack.c.l.b16 %v136
  %v464 = vunpack.c.h.b16 %v136
  %v465 = vunpack.c.l.b16 %v137
  %v466 = vunpack.c.l.b16 %v138
  %v467 = vunpack.c.h.b16 %v138
  %v468 = vunpack.c.l.b16 %v139
  %v469 = vunpack.c.h.b16 %v139
  %v470 = vunpack.c.l.b16 %v140
  %v471 = vunpack.c.l.b16 %v141
  %v472 = vunpack.c.h.b16 %v141
  %v473 = vunpack.c.l.b16 %v142
  %v474 = vunpack.c.h.b16 %v142
  %v475 = vunpack.c.l.b16 %v143
  %v476 = vunpack.c.l.b16 %v144
  %v477 = vunpack.c.h.b16 %v144
  %v478 = vunpack.c.l.b16 %v145
  %v479 = vunpack.c.h.b16 %v145
  %v480 = vunpack.c.l.b16 %v146
  %v481 = vunpack.c.l.b16 %v147
  %v482 = vunpack.c.h.b16 %v147
  %v483 = vunpack.c.l.b16 %v148
  %v484 = vunpack.c.h.b16 %v148
  %v485 = vunpack.c.l.b16 %v149
  %v486 = vunpack.c.l.b16 %v150
  %v487 = vunpack.c.h.b16 %v150
  %v488 = vunpack.c.l.b16 %v151
  %v489 = vunpack.c.h.b16 %v151
  %v490 = vunpack.c.l.b16 %v152
  %v491 = vunpack.c.l.b16 %v153
  %v492 = vunpack.c.h.b16 %v153
  %v493 = vunpack.c.l.b16 %v154
  %v494 = vunpack.c.h.b16 %v154
  %v495 = vunpack.c.l.b16 %v155
  %v496 = vunpack.c.l.b16 %v156
  %v497 = vunpack.c.h.b16 %v156
  %v498 = vunpack.c.l.b16 %v157
  %v499 = vunpack.c.h.b16 %v157
  %v500 = vunpack.c.l.b16 %v158
  %v501 = vunpack.c.l.b16 %v159
  %v502 = vunpack.c.h.b16 %v159
  %v503 = vunpack.c.l.b16 %v160
  %v504 = vunpack.c.h.b16 %v160
  %v505 = vunpack.c.l.b16 %v161
  %v506 = vunpack.c.l.b16 %v162
  %v507 = vunpack.c.h.b16 %v162
  %v508 = vunpack.c.l.b16 %v163
  %v509 = vunpack.c.h.b16 %v163
  %v510 = vunpack.c.l.b16 %v164
  %v511 = vunpack.c.l.b16 %v165
  %v512 = vunpack.c.h.b16 %v165
  %v513 = vunpack.c.l.b16 %v166
  %v514 = vunpack.c.h.b16 %v166
  %v515 = vunpack.c.l.b16 %v167
  %v516 = vunpack.c.l.b16 %v168
  %v517 = vunpack.c.h.b16 %v168
  %v518 = vunpack.c.l.b16 %v169
  %v519 = vunpack.c.h.b16 %v169
  %v520 = vunpack.c.l.b16 %v170
  %v521 = vunpack.c.l.b16 %v171
  %v522 = vunpack.c.h.b16 %v171
  %v523 = vunpack.c.l.b16 %v172
  %v524 = vunpack.c.h.b16 %v172
  %v525 = vunpack.c.l.b16 %v173
  %v526 = vunpack.c.l.b16 %v174
  %v527 = vunpack.c.h.b16 %v174
  %v528 = vunpack.c.l.b16 %v175
  %v529 = vunpack.c.h.b16 %v175
  %v530 = vunpack.c.l.b16 %v176
  %v531 = vunpack.c.l.b16 %v177
  %v532 = vunpack.c.h.b16 %v177
  %v533 = vunpack.c.l.b16 %v178
  %v534 = vunpack.c.h.b16 %v178
  %v535 = vunpack.c.l.b16 %v179
  %v536 = vunpack.c.l.b16 %v180
  %v537 = vunpack.c.h.b16 %v180
  %v538 = vunpack.c.l.b16 %v181
  %v539 = vunpack.c.h.b16 %v181
  %v540 = vunpack.c.l.b16 %v182
  %v541 = vunpack.c.l.b16 %v183
  %v542 = vunpack.c.h.b16 %v183
  %v543 = vunpack.c.l.b16 %v184
  %v544 = vunpack.c.h.b16 %v184
  %v545 = vunpack.c.l.b16 %v185
  %v546 = vunpack.c.l.b16 %v186
  %v547 = vunpack.c.h.b16 %v186
  %v548 = vunpack.c.l.b16 %v187
  %v549 = vunpack.c.h.b16 %v187
  %v550 = vunpack.c.l.b16 %v188
  %v551 = vunpack.c.l.b16 %v189
  %v552 = vunpack.c.h.b16 %v189
  %v553 = vunpack.c.l.b16 %v190
  %v554 = vunpack.c.h.b16 %v190
  %v555 = vunpack.c.l.b16 %v191
  %v556 = vunpack.c.l.b16 %v192
  %v557 = vunpack.c.h.b16 %v192
  %v558 = vunpack.c.l.b16 %v193
  %v559 = vunpack.c.h.b16 %v193
  %v560 = vunpack.c.l.b16 %v194
  %v561 = vunpack.c.l.b16 %v195
  %v562 = vunpack.c.h.b16 %v195
  %v563 = vunpack.c.l.b16 %v196
  %v564 = vunpack.c.h.b16 %v196
  %v565 = vunpack.c.l.b16 %v197
  %v566 = vunpack.c.l.b16 %v198
  %v567 = vunpack.c.h.b16 %v198
  %v568 = vunpack.c.l.b16 %v199
  %v569 = vunpack.c.h.b16 %v199
  %v570 = vunpack.c.l.b16 %v200
  %v571 = vunpack.c.l.b16 %v201
  %v572 = vunpack.c.h.b16 %v201
  %v573 = vunpack.c.l.b16 %v202
  %v574 = vunpack.c.h.b16 %v202
  %v575 = vunpack.c.l.b16 %v203
  %v576 = vunpack.c.l.b16 %v204
  %v577 = vunpack.c.h.b16 %v204
  %v578 = vunpack.c.l.b16 %v205
  %v579 = vunpack.c.h.b16 %v205
  %v580 = vunpack.c.l.b16 %v206
  %v581 = vunpack.c.l.b16 %v207
  %v582 = vunpack.c.h.b16 %v207
  %v583 = vunpack.c.l.b16 %v208
  %v584 = vunpack.c.h.b16 %v208
  %v585 = vunpack.c.l.b16 %v209
  %v586 = vunpack.c.l.b16 %v210
  %v587 = vunpack.c.h.b16 %v210
  %v588 = vunpack.c.l.b16 %v211
  %v589 = vunpack.c.h.b16 %v211
  %v590 = vunpack.c.l.b16 %v212
  %v591 = vunpack.c.l.b16 %v213
  %v592 = vunpack.c.h.b16 %v213
  %v593 = vunpack.c.l.b16 %v214
  %v594 = vunpack.c.h.b16 %v214
  %v595 = vunpack.c.l.b16 %v215
  %v596 = vunpack.c.l.b16 %v216
  %v597 = vunpack.c.h.b16 %v216
  %v598 = vunpack.c.l.b16 %v217
  %v599 = vunpack.c.h.b16 %v217
  %v600 = vunpack.c.l.b16 %v218
  %v601 = vunpack.c.l.b16 %v219
  %v602 = vunpack.c.h.b16 %v219
  %v603 = vunpack.c.l.b16 %v220
  %v604 = vunpack.c.h.b16 %v220
  %v605 = vunpack.c.l.b16 %v221
  %v606 = vunpack.c.l.b16 %v222
  %v607 = vunpack.c.h.b16 %v222
  %v608 = vunpack.c.l.b16 %v223
  %v609 = vunpack.c.h.b16 %v223
  %v610 = vunpack.c.l.b16 %v224
  %v611 = vunpack.c.l.b16 %v225
  %v612 = vunpack.c.h.b16 %v225
  %v613 = vunpack.c.l.b16 %v226
  %v614 = vunpack.c.h.b16 %v226
  %v615 = vunpack.c.l.b16 %v227
  %v616 = vunpack.c.l.b16 %v228
  %v617 = vunpack.c.h.b16 %v228
  %v618 = vunpack.c.l.b16 %v229
  %v619 = vunpack.c.h.b16 %v229
  %v620 = vunpack.c.l.b16 %v230
  %v621 = vunpack.c.l.b16 %v231
  %v622 = vunpack.c.h.b16 %v231
  %v623 = vunpack.c.l.b16 %v232
  %v624 = vunpack.c.h.b16 %v232
  %v625 = vunpack.c.l.b16 %v233
  %v626 = vunpack.c.l.b16 %v234
  %v627 = vunpack.c.h.b16 %v234
  %v628 = vunpack.c.l.b16 %v235
  %v629 = vunpack.c.h.b16 %v235
  %v630 = vunpack.c.l.b16 %v236
  %v631 = vunpack.c.l.b16 %v237
  %v632 = vunpack.c.h.b16 %v237
  %v633 = vunpack.c.l.b16 %v238
  %v634 = vunpack.c.h.b16 %v238
  %v635 = vunpack.c.l.b16 %v239
  %v636 = vunpack.c.l.b16 %v240
  %v637 = vunpack.c.h.b16 %v240
  %v638 = vunpack.c.l.b16 %v241
  %v639 = vunpack.c.h.b16 %v241
  %v640 = vunpack.c.l.b16 %v242
  %v641 = vunpack.c.l.b16 %v243
  %v642 = vunpack.c.h.b16 %v243
  %v643 = vunpack.c.l.b16 %v244
  %v644 = vunpack.c.h.b16 %v244
  %v645 = vunpack.c.l.b16 %v245
  %v646 = vpack.c.b16 %v401, %v396
  %v647 = vpack.c.b16 %v402, %v397
  %v648 = vpack.c.b16 %v403, %v398
  %v649 = vpack.c.b16 %v404, %v399
  %v650 = vpack.c.b16 %v405, %v400
  %v651 = vpack.c.b16 %v411, %v406
  %v652 = vpack.c.b16 %v412, %v407
  %v653 = vpack.c.b16 %v413, %v408
  %v654 = vpack.c.b16 %v414, %v409
  %v655 = vpack.c.b16 %v415, %v410
  %v656 = vpack.c.b16 %v421, %v416
  %v657 = vpack.c.b16 %v422, %v417
  %v658 = vpack.c.b16 %v423, %v418
  %v659 = vpack.c.b16 %v424, %v419
  %v660 = vpack.c.b16 %v425, %v420
  %v661 = vpack.c.b16 %v431, %v426
  %v662 = vpack.c.b16 %v432, %v427
  %v663 = vpack.c.b16 %v433, %v428
  %v664 = vpack.c.b16 %v434, %v429
  %v665 = vpack.c.b16 %v435, %v430
  %v666 = vpack.c.b16 %v441, %v436
  %v667 = vpack.c.b16 %v442, %v437
  %v668 = vpack.c.b16 %v443, %v438
  %v669 = vpack.c.b16 %v444, %v439
  %v670 = vpack.c.b16 %v445, %v440
  %v671 = vpack.c.b16 %v451, %v446
  %v672 = vpack.c.b16 %v452, %v447
  %v673 = vpack.c.b16 %v453, %v448
  %v674 = vpack.c.b16 %v454, %v449
  %v675 = vpack.c.b16 %v455, %v450
  %v676 = vpack.c.b16 %v461, %v456
  %v677 = vpack.c.b16 %v462, %v457
  %v678 = vpack.c.b16 %v463, %v458
  %v679 = vpack.c.b16 %v464, %v459
  %v680 = vpack.c.b16 %v465, %v460
  %v681 = vpack.c.b16 %v471, %v466
  %v682 = vpack.c.b16 %v472, %v467
  %v683 = vpack.c.b16 %v473, %v468
  %v684 = vpack.c.b16 %v474, %v469
  %v685 = vpack.c.b16 %v475, %v470
  %v686 = vpack.c.b16 %v481, %v476
  %v687 = vpack.c.b16 %v482, %v477
  %v688 = vpack.c.b16 %v483, %v478
  %v689 = vpack.c.b16 %v484, %v479
  %v690 = vpack.c.b16 %v485, %v480
  %v691 = vpack.c.b16 %v491, %v486
  %v692 = vpack.c.b16 %v492, %v487
  %v693 = vpack.c.b16 %v493, %v488
  %v694 = vpack.c.b16 %v494, %v489
  %v695 = vpack.c.b16 %v495, %v490
  %v696 = vpack.c.b16 %v501, %v496
  %v697 = vpack.c.b16 %v502, %v497
  %v698 = vpack.c.b16 %v503, %v498
  %v699 = vpack.c.b16 %v504, %v499
  %v700 = vpack.c.b16 %v505, %v500
  %v701 = vpack.c.b16 %v511, %v506
  %v702 = vpack.c.b16 %v512, %v507
  %v703 = vpack.c.b16 %v513, %v508
  %v704 = vpack.c.b16 %v514, %v509
  %v705 = vpack.c.b16 %v515, %v510
  %v706 = vpack.c.b16 %v521, %v516
  %v707 = vpack.c.b16 %v522, %v517
  %v708 = vpack.c.b16 %v523, %v518
  %v709 = vpack.c.b16 %v524, %v519
  %v710 = vpack.c.b16 %v525, %v520
  %v711 = vpack.c.b16 %v531, %v526
  %v712 = vpack.c.b16 %v532, %v527
  %v713 = vpack.c.b16 %v533, %v528
  %v714 = vpack.c.b16 %v534, %v529
  %v715 = vpack.c.b16 %v535, %v530
  %v716 = vpack.c.b16 %v541, %v536
  %v717 = vpack.c.b16 %v542, %v537
  %v718 = vpack.c.b16 %v543, %v538
  %v719 = vpack.c.b16 %v544, %v539
  %v720 = vpack.c.b16 %v545, %v540
  %v721 = vpack.c.b16 %v551, %v546
  %v722 = vpack.c.b16 %v552, %v547
  %v723 = vpack.c.b16 %v553, %v548
  %v724 = vpack.c.b16 %v554, %v549
  %v725 = vpack.c.b16 %v555, %v550
  %v726 = vpack.c.b16 %v561, %v556
  %v727 = vpack.c.b16 %v562, %v557
  %v728 = vpack.c.b16 %v563, %v558
  %v729 = vpack.c.b16 %v564, %v559
  %v730 = vpack.c.b16 %v565, %v560
  %v731 = vpack.c.b16 %v571, %v566
  %v732 = vpack.c.b16 %v572, %v567
  %v733 = vpack.c.b16 %v573, %v568
  %v734 = vpack.c.b16 %v574, %v569
  %v735 = vpack.c.b16 %v575, %v570
  %v736 = vpack.c.b16 %v581, %v576
  %v737 = vpack.c.b16 %v582, %v577
  %v738 = vpack.c.b16 %v583, %v578
  %v739 = vpack.c.b16 %v584, %v579
  %v740 = vpack.c.b16 %v585, %v580
  %v741 = vpack.c.b16 %v591, %v586
  %v742 = vpack.c.b16 %v592, %v587
  %v743 = vpack.c.b16 %v593, %v588
  %v744 = vpack.c.b16 %v594, %v589
  %v745 = vpack.c.b16 %v595, %v590
  %v746 = vpack.c.b16 %v601, %v596
  %v747 = vpack.c.b16 %v602, %v597
  %v748 = vpack.c.b16 %v603, %v598
  %v749 = vpack.c.b16 %v604, %v599
  %v750 = vpack.c.b16 %v605, %v600
  %v751 = vpack.c.b16 %v611, %v606
  %v752 = vpack.c.b16 %v612, %v607
  %v753 = vpack.c.b16 %v613, %v608
  %v754 = vpack.c.b16 %v614, %v609
  %v755 = vpack.c.b16 %v615, %v610
  %v756 = vpack.c.b16 %v621, %v616
  %v757 = vpack.c.b16 %v622, %v617
  %v758 = vpack.c.b16 %v623, %v618
  %v759 = vpack.c.b16 %v624, %v619
  %v760 = vpack.c.b16 %v625, %v620
  %v761 = vpack.c.b16 %v631, %v626
  %v762 = vpack.c.b16 %v632, %v627
  %v763 = vpack.c.b16 %v633, %v628
  %v764 = vpack.c.b16 %v634, %v629
  %v765 = vpack.c.b16 %v635, %v630
  %v766 = vpack.c.b16 %v641, %v636
  %v767 = vpack.c.b16 %v642, %v637
  %v768 = vpack.c.b16 %v643, %v638
  %v769 = vpack.c.b16 %v644, %v639
  %v770 = vpack.c.b16 %v645, %v640
  %v943 = vunpack.c.l.b16 %v24
  %v944 = vunpack.c.l.b16 %v25
  %v945 = vunpack.c.l.b16 %v26
  %v946 = vunpack.c.l.b16 %v27
  %v947 = vunpack.c.l.b16 %v28
  %v948 = vunpack.c.l.b16 %v29
  %v949 = vunpack.c.l.b16 %v30
  %v950 = vunpack.c.l.b16 %v31
  %v951 = vunpack.c.l.b16 %v32
  %v952 = vunpack.c.l.b16 %v33
  %v953 = vunpack.c.l.b16 %v34
  %v954 = vunpack.c.l.b16 %v35
  %v955 = vunpack.c.l.b16 %v36
  %v956 = vunpack.c.l.b16 %v37
  %v957 = vunpack.c.l.b16 %v38
  %v958 = vunpack.c.l.b16 %v39
  %v959 = vunpack.c.l.b16 %v40
  %v960 = vunpack.c.l.b16 %v41
  %v961 = vunpack.c.l.b16 %v42
  %v962 = vunpack.c.l.b16 %v43
  %v963 = vunpack.c.l.b16 %v44
  %v964 = vunpack.c.l.b16 %v45
  %v965 = vunpack.c.l.b16 %v46
  %v966 = vunpack.c.l.b16 %v47
  %v967 = vunpack.c.l.b16 %v48
  %v968 = vunpack.c.l.b16 %v49
  %v969 = vunpack.c.l.b16 %v50
  %v970 = vunpack.c.l.b16 %v51
  %v971 = vunpack.c.l.b16 %v52
  %v972 = vunpack.c.l.b16 %v53
  %v973 = vunpack.c.l.b16 %v54
  %v974 = vunpack.c.l.b16 %v55
  %v975 = vunpack.c.l.b16 %v56
  %v976 = vunpack.c.l.b16 %v57
  %v977 = vunpack.c.l.b16 %v58
  %v978 = vunpack.c.l.b16 %v59
  %v979 = vunpack.c.l.b16 %v60
  %v980 = vunpack.c.l.b16 %v61
  %v981 = vunpack.c.l.b16 %v62
  %v982 = vunpack.c.l.b16 %v63
  %v983 = vunpack.c.l.b16 %v64
  %v984 = vunpack.c.l.b16 %v65
  %v985 = vunpack.c.l.b16 %v66
  %v986 = vunpack.c.l.b16 %v67
  %v987 = vunpack.c.l.b16 %v68
  %v988 = vunpack.c.l.b16 %v69
  %v989 = vunpack.c.l.b16 %v70
  %v990 = vunpack.c.l.b16 %v71
  %v991 = vunpack.c.l.b16 %v72
  %v992 = vunpack.c.l.b16 %v73
  %v993 = vunpack.c.l.b16 %v74
  %v994 = vunpack.c.l.b16 %v75
  %v995 = vunpack.c.l.b16 %v76
  %v996 = vunpack.c.l.b16 %v77
  %v997 = vunpack.c.l.b16 %v78
  %v998 = vunpack.c.l.b16 %v79
  %v999 = vunpack.c.l.b16 %v80
  %v1000 = vunpack.c.l.b16 %v81
  %v1001 = vunpack.c.l.b16 %v82
  %v1002 = vunpack.c.l.b16 %v83
  %v1003 = vunpack.c.l.b16 %v84
  %v1004 = vunpack.c.l.b16 %v85
  %v1005 = vunpack.c.l.b16 %v86
  %v1006 = vunpack.c.l.b16 %v87
  %v1007 = vunpack.c.l.b16 %v88
  %v1008 = vunpack.c.l.b16 %v89
  %v1009 = vunpack.c.l.b16 %v90
  %v1010 = vunpack.c.l.b16 %v91
  %v1011 = vunpack.c.l.b16 %v92
  %v1012 = vunpack.c.l.b16 %v93
  %v1013 = vunpack.c.l.b16 %v94
  %v1014 = vunpack.c.l.b16 %v95
  %v1015 = vpack.c.b16 %v944, %v943
  %v1016 = vpack.c.b16 %v946, %v945
  %v1017 = vpack.c.b16 %v948, %v947
  %v1018 = vpack.c.b16 %v950, %v949
  %v1019 = vpack.c.b16 %v952, %v951
  %v1020 = vpack.c.b16 %v954, %v953
  %v1021 = vpack.c.b16 %v956, %v955
  %v1022 = vpack.c.b16 %v958, %v957
  %v1023 = vpack.c.b16 %v960, %v959
  %v1024 = vpack.c.b16 %v962, %v961
  %v1025 = vpack.c.b16 %v964, %v963
  %v1026 = vpack.c.b16 %v966, %v965
  %v1027 = vpack.c.b16 %v968, %v967
  %v1028 = vpack.c.b16 %v970, %v969
  %v1029 = vpack.c.b16 %v972, %v971
  %v1030 = vpack.c.b16 %v974, %v973
  %v1031 = vpack.c.b16 %v976, %v975
  %v1032 = vpack.c.b16 %v978, %v977
  %v1033 = vpack.c.b16 %v980, %v979
  %v1034 = vpack.c.b16 %v982, %v981
  %v1035 = vpack.c.b16 %v984, %v983
  %v1036 = vpack.c.b16 %v986, %v985
  %v1037 = vpack.c.b16 %v988, %v987
  %v1038 = vpack.c.b16 %v990, %v989
  %v1039 = vpack.c.b16 %v992, %v991
  %v1040 = vpack.c.b16 %v994, %v993
  %v1041 = vpack.c.b16 %v996, %v995
  %v1042 = vpack.c.b16 %v998, %v997
  %v1043 = vpack.c.b16 %v1000, %v999
  %v1044 = vpack.c.b16 %v1002, %v1001
  %v1045 = vpack.c.b16 %v1004, %v1003
  %v1046 = vpack.c.b16 %v1006, %v1005
  %v1047 = vpack.c.b16 %v1008, %v1007
  %v1048 = vpack.c.b16 %v1010, %v1009
  %v1049 = vpack.c.b16 %v1012, %v1011
  %v1050 = vpack.c.b16 %v1014, %v1013
  %vm1087 = vcmask 523264
  %v1089 = vsel %vm1087, %v650, 0
  %v1092 = vsel %vm1087, %v655, 0
  %v1095 = vsel %vm1087, %v660, 0
  %v1098 = vsel %vm1087, %v665, 0
  %v1101 = vsel %vm1087, %v670, 0
  %v1104 = vsel %vm1087, %v675, 0
  %v1107 = vsel %vm1087, %v680, 0
  %v1110 = vsel %vm1087, %v685, 0
  %v1113 = vsel %vm1087, %v690, 0
  %v1116 = vsel %vm1087, %v695, 0
  %v1119 = vsel %vm1087, %v700, 0
  %v1122 = vsel %vm1087, %v705, 0
  %v1125 = vsel %vm1087, %v710, 0
  %v1128 = vsel %vm1087, %v715, 0
  %v1131 = vsel %vm1087, %v720, 0
  %v1134 = vsel %vm1087, %v725, 0
  %v1137 = vsel %vm1087, %v730, 0
  %v1140 = vsel %vm1087, %v735, 0
  %v1143 = vsel %vm1087, %v740, 0
  %v1146 = vsel %vm1087, %v745, 0
  %v1149 = vsel %vm1087, %v750, 0
  %v1152 = vsel %vm1087, %v755, 0
  %v1155 = vsel %vm1087, %v760, 0
  %v1158 = vsel %vm1087, %v765, 0
  %v1161 = vsel %vm1087, %v770, 0
  %1163 = vmatpush.bf16.msra.mxu0 %v1022
  %1164 = vmatpush.bf16.msra.mxu0 %v1021
  %1165 = vmatpush.bf16.msra.mxu0 %v1020
  %1166 = vmatpush.bf16.msra.mxu0 %v1019
  %1167 = vmatpush.bf16.msra.mxu0 %v1018
  %1168 = vmatpush.bf16.msra.mxu0 %v1017
  %1169 = vmatpush.bf16.msra.mxu0 %v1016
  %1170 = vmatpush.bf16.msra.mxu0 %v1015
  %1171 = vmatmul.bf16.gmra.mxu0 %v646
  %v1172 = vpop.f32.mrf.mxu0
  %v1173 = vadd.f32 0.0, %v1172
  %v1174 = vpop.f32.mrf.mxu0
  %v1175 = vadd.f32 0.0, %v1174
  %1176 = vmatmul.bf16.gmra.mxu0 %v651
  %v1177 = vpop.f32.mrf.mxu0
  %v1178 = vadd.f32 0.0, %v1177
  %v1179 = vpop.f32.mrf.mxu0
  %v1180 = vadd.f32 0.0, %v1179
  %1181 = vmatmul.bf16.gmra.mxu0 %v656
  %v1182 = vpop.f32.mrf.mxu0
  %v1183 = vadd.f32 0.0, %v1182
  %v1184 = vpop.f32.mrf.mxu0
  %v1185 = vadd.f32 0.0, %v1184
  %1186 = vmatmul.bf16.gmra.mxu0 %v661
  %v1187 = vpop.f32.mrf.mxu0
  %v1188 = vadd.f32 0.0, %v1187
  %v1189 = vpop.f32.mrf.mxu0
  %v1190 = vadd.f32 0.0, %v1189
  %1191 = vmatmul.bf16.gmra.mxu0 %v666
  %v1192 = vpop.f32.mrf.mxu0
  %v1193 = vadd.f32 0.0, %v1192
  %v1194 = vpop.f32.mrf.mxu0
  %v1195 = vadd.f32 0.0, %v1194
  %1196 = vmatmul.bf16.gmra.mxu0 %v671
  %v1197 = vpop.f32.mrf.mxu0
  %v1198 = vadd.f32 0.0, %v1197
  %v1199 = vpop.f32.mrf.mxu0
  %v1200 = vadd.f32 0.0, %v1199
  %1201 = vmatmul.bf16.gmra.mxu0 %v676
  %v1202 = vpop.f32.mrf.mxu0
  %v1203 = vadd.f32 0.0, %v1202
  %v1204 = vpop.f32.mrf.mxu0
  %v1205 = vadd.f32 0.0, %v1204
  %1206 = vmatmul.bf16.gmra.mxu0 %v681
  %v1207 = vpop.f32.mrf.mxu0
  %v1208 = vadd.f32 0.0, %v1207
  %v1209 = vpop.f32.mrf.mxu0
  %v1210 = vadd.f32 0.0, %v1209
  %1211 = vmatmul.bf16.gmra.mxu0 %v686
  %v1212 = vpop.f32.mrf.mxu0
  %v1213 = vadd.f32 0.0, %v1212
  %v1214 = vpop.f32.mrf.mxu0
  %v1215 = vadd.f32 0.0, %v1214
  %1216 = vmatmul.bf16.gmra.mxu0 %v691
  %v1217 = vpop.f32.mrf.mxu0
  %v1218 = vadd.f32 0.0, %v1217
  %v1219 = vpop.f32.mrf.mxu0
  %v1220 = vadd.f32 0.0, %v1219
  %1221 = vmatmul.bf16.gmra.mxu0 %v696
  %v1222 = vpop.f32.mrf.mxu0
  %v1223 = vadd.f32 0.0, %v1222
  %v1224 = vpop.f32.mrf.mxu0
  %v1225 = vadd.f32 0.0, %v1224
  %1226 = vmatmul.bf16.gmra.mxu0 %v701
  %v1227 = vpop.f32.mrf.mxu0
  %v1228 = vadd.f32 0.0, %v1227
  %v1229 = vpop.f32.mrf.mxu0
  %v1230 = vadd.f32 0.0, %v1229
  %1231 = vmatmul.bf16.gmra.mxu0 %v706
  %v1232 = vpop.f32.mrf.mxu0
  %v1233 = vadd.f32 0.0, %v1232
  %v1234 = vpop.f32.mrf.mxu0
  %v1235 = vadd.f32 0.0, %v1234
  %1236 = vmatmul.bf16.gmra.mxu0 %v711
  %v1237 = vpop.f32.mrf.mxu0
  %v1238 = vadd.f32 0.0, %v1237
  %v1239 = vpop.f32.mrf.mxu0
  %v1240 = vadd.f32 0.0, %v1239
  %1241 = vmatmul.bf16.gmra.mxu0 %v716
  %v1242 = vpop.f32.mrf.mxu0
  %v1243 = vadd.f32 0.0, %v1242
  %v1244 = vpop.f32.mrf.mxu0
  %v1245 = vadd.f32 0.0, %v1244
  %1246 = vmatmul.bf16.gmra.mxu0 %v721
  %v1247 = vpop.f32.mrf.mxu0
  %v1248 = vadd.f32 0.0, %v1247
  %v1249 = vpop.f32.mrf.mxu0
  %v1250 = vadd.f32 0.0, %v1249
  %1251 = vmatmul.bf16.gmra.mxu0 %v726
  %v1252 = vpop.f32.mrf.mxu0
  %v1253 = vadd.f32 0.0, %v1252
  %v1254 = vpop.f32.mrf.mxu0
  %v1255 = vadd.f32 0.0, %v1254
  %1256 = vmatmul.bf16.gmra.mxu0 %v731
  %v1257 = vpop.f32.mrf.mxu0
  %v1258 = vadd.f32 0.0, %v1257
  %v1259 = vpop.f32.mrf.mxu0
  %v1260 = vadd.f32 0.0, %v1259
  %1261 = vmatmul.bf16.gmra.mxu0 %v736
  %v1262 = vpop.f32.mrf.mxu0
  %v1263 = vadd.f32 0.0, %v1262
  %v1264 = vpop.f32.mrf.mxu0
  %v1265 = vadd.f32 0.0, %v1264
  %1266 = vmatmul.bf16.gmra.mxu0 %v741
  %v1267 = vpop.f32.mrf.mxu0
  %v1268 = vadd.f32 0.0, %v1267
  %v1269 = vpop.f32.mrf.mxu0
  %v1270 = vadd.f32 0.0, %v1269
  %1271 = vmatmul.bf16.gmra.mxu0 %v746
  %v1272 = vpop.f32.mrf.mxu0
  %v1273 = vadd.f32 0.0, %v1272
  %v1274 = vpop.f32.mrf.mxu0
  %v1275 = vadd.f32 0.0, %v1274
  %1276 = vmatmul.bf16.gmra.mxu0 %v751
  %v1277 = vpop.f32.mrf.mxu0
  %v1278 = vadd.f32 0.0, %v1277
  %v1279 = vpop.f32.mrf.mxu0
  %v1280 = vadd.f32 0.0, %v1279
  %1281 = vmatmul.bf16.gmra.mxu0 %v756
  %v1282 = vpop.f32.mrf.mxu0
  %v1283 = vadd.f32 0.0, %v1282
  %v1284 = vpop.f32.mrf.mxu0
  %v1285 = vadd.f32 0.0, %v1284
  %1286 = vmatmul.bf16.gmra.mxu0 %v761
  %v1287 = vpop.f32.mrf.mxu0
  %v1288 = vadd.f32 0.0, %v1287
  %v1289 = vpop.f32.mrf.mxu0
  %v1290 = vadd.f32 0.0, %v1289
  %1291 = vmatmul.bf16.gmra.mxu0 %v766
  %v1292 = vpop.f32.mrf.mxu0
  %v1293 = vadd.f32 0.0, %v1292
  %v1294 = vpop.f32.mrf.mxu0
  %v1295 = vadd.f32 0.0, %v1294
  %1296 = vdwg.mxu0
  %1297 = vmatpush.bf16.msra.mxu0 %v1030
  %1298 = vmatpush.bf16.msra.mxu0 %v1029
  %1299 = vmatpush.bf16.msra.mxu0 %v1028
  %1300 = vmatpush.bf16.msra.mxu0 %v1027
  %1301 = vmatpush.bf16.msra.mxu0 %v1026
  %1302 = vmatpush.bf16.msra.mxu0 %v1025
  %1303 = vmatpush.bf16.msra.mxu0 %v1024
  %1304 = vmatpush.bf16.msra.mxu0 %v1023
  %1305 = vmatmul.bf16.gmra.mxu0 %v647
  %v1306 = vpop.f32.mrf.mxu0
  %v1307 = vadd.f32 %v1173, %v1306
  %v1308 = vpop.f32.mrf.mxu0
  %v1309 = vadd.f32 %v1175, %v1308
  %1310 = vmatmul.bf16.gmra.mxu0 %v652
  %v1311 = vpop.f32.mrf.mxu0
  %v1312 = vadd.f32 %v1178, %v1311
  %v1313 = vpop.f32.mrf.mxu0
  %v1314 = vadd.f32 %v1180, %v1313
  %1315 = vmatmul.bf16.gmra.mxu0 %v657
  %v1316 = vpop.f32.mrf.mxu0
  %v1317 = vadd.f32 %v1183, %v1316
  %v1318 = vpop.f32.mrf.mxu0
  %v1319 = vadd.f32 %v1185, %v1318
  %1320 = vmatmul.bf16.gmra.mxu0 %v662
  %v1321 = vpop.f32.mrf.mxu0
  %v1322 = vadd.f32 %v1188, %v1321
  %v1323 = vpop.f32.mrf.mxu0
  %v1324 = vadd.f32 %v1190, %v1323
  %1325 = vmatmul.bf16.gmra.mxu0 %v667
  %v1326 = vpop.f32.mrf.mxu0
  %v1327 = vadd.f32 %v1193, %v1326
  %v1328 = vpop.f32.mrf.mxu0
  %v1329 = vadd.f32 %v1195, %v1328
  %1330 = vmatmul.bf16.gmra.mxu0 %v672
  %v1331 = vpop.f32.mrf.mxu0
  %v1332 = vadd.f32 %v1198, %v1331
  %v1333 = vpop.f32.mrf.mxu0
  %v1334 = vadd.f32 %v1200, %v1333
  %1335 = vmatmul.bf16.gmra.mxu0 %v677
  %v1336 = vpop.f32.mrf.mxu0
  %v1337 = vadd.f32 %v1203, %v1336
  %v1338 = vpop.f32.mrf.mxu0
  %v1339 = vadd.f32 %v1205, %v1338
  %1340 = vmatmul.bf16.gmra.mxu0 %v682
  %v1341 = vpop.f32.mrf.mxu0
  %v1342 = vadd.f32 %v1208, %v1341
  %v1343 = vpop.f32.mrf.mxu0
  %v1344 = vadd.f32 %v1210, %v1343
  %1345 = vmatmul.bf16.gmra.mxu0 %v687
  %v1346 = vpop.f32.mrf.mxu0
  %v1347 = vadd.f32 %v1213, %v1346
  %v1348 = vpop.f32.mrf.mxu0
  %v1349 = vadd.f32 %v1215, %v1348
  %1350 = vmatmul.bf16.gmra.mxu0 %v692
  %v1351 = vpop.f32.mrf.mxu0
  %v1352 = vadd.f32 %v1218, %v1351
  %v1353 = vpop.f32.mrf.mxu0
  %v1354 = vadd.f32 %v1220, %v1353
  %1355 = vmatmul.bf16.gmra.mxu0 %v697
  %v1356 = vpop.f32.mrf.mxu0
  %v1357 = vadd.f32 %v1223, %v1356
  %v1358 = vpop.f32.mrf.mxu0
  %v1359 = vadd.f32 %v1225, %v1358
  %1360 = vmatmul.bf16.gmra.mxu0 %v702
  %v1361 = vpop.f32.mrf.mxu0
  %v1362 = vadd.f32 %v1228, %v1361
  %v1363 = vpop.f32.mrf.mxu0
  %v1364 = vadd.f32 %v1230, %v1363
  %1365 = vmatmul.bf16.gmra.mxu0 %v707
  %v1366 = vpop.f32.mrf.mxu0
  %v1367 = vadd.f32 %v1233, %v1366
  %v1368 = vpop.f32.mrf.mxu0
  %v1369 = vadd.f32 %v1235, %v1368
  %1370 = vmatmul.bf16.gmra.mxu0 %v712
  %v1371 = vpop.f32.mrf.mxu0
  %v1372 = vadd.f32 %v1238, %v1371
  %v1373 = vpop.f32.mrf.mxu0
  %v1374 = vadd.f32 %v1240, %v1373
  %1375 = vmatmul.bf16.gmra.mxu0 %v717
  %v1376 = vpop.f32.mrf.mxu0
  %v1377 = vadd.f32 %v1243, %v1376
  %v1378 = vpop.f32.mrf.mxu0
  %v1379 = vadd.f32 %v1245, %v1378
  %1380 = vmatmul.bf16.gmra.mxu0 %v722
  %v1381 = vpop.f32.mrf.mxu0
  %v1382 = vadd.f32 %v1248, %v1381
  %v1383 = vpop.f32.mrf.mxu0
  %v1384 = vadd.f32 %v1250, %v1383
  %1385 = vmatmul.bf16.gmra.mxu0 %v727
  %v1386 = vpop.f32.mrf.mxu0
  %v1387 = vadd.f32 %v1253, %v1386
  %v1388 = vpop.f32.mrf.mxu0
  %v1389 = vadd.f32 %v1255, %v1388
  %1390 = vmatmul.bf16.gmra.mxu0 %v732
  %v1391 = vpop.f32.mrf.mxu0
  %v1392 = vadd.f32 %v1258, %v1391
  %v1393 = vpop.f32.mrf.mxu0
  %v1394 = vadd.f32 %v1260, %v1393
  %1395 = vmatmul.bf16.gmra.mxu0 %v737
  %v1396 = vpop.f32.mrf.mxu0
  %v1397 = vadd.f32 %v1263, %v1396
  %v1398 = vpop.f32.mrf.mxu0
  %v1399 = vadd.f32 %v1265, %v1398
  %1400 = vmatmul.bf16.gmra.mxu0 %v742
  %v1401 = vpop.f32.mrf.mxu0
  %v1402 = vadd.f32 %v1268, %v1401
  %v1403 = vpop.f32.mrf.mxu0
  %v1404 = vadd.f32 %v1270, %v1403
  %1405 = vmatmul.bf16.gmra.mxu0 %v747
  %v1406 = vpop.f32.mrf.mxu0
  %v1407 = vadd.f32 %v1273, %v1406
  %v1408 = vpop.f32.mrf.mxu0
  %v1409 = vadd.f32 %v1275, %v1408
  %1410 = vmatmul.bf16.gmra.mxu0 %v752
  %v1411 = vpop.f32.mrf.mxu0
  %v1412 = vadd.f32 %v1278, %v1411
  %v1413 = vpop.f32.mrf.mxu0
  %v1414 = vadd.f32 %v1280, %v1413
  %1415 = vmatmul.bf16.gmra.mxu0 %v757
  %v1416 = vpop.f32.mrf.mxu0
  %v1417 = vadd.f32 %v1283, %v1416
  %v1418 = vpop.f32.mrf.mxu0
  %v1419 = vadd.f32 %v1285, %v1418
  %1420 = vmatmul.bf16.gmra.mxu0 %v762
  %v1421 = vpop.f32.mrf.mxu0
  %v1422 = vadd.f32 %v1288, %v1421
  %v1423 = vpop.f32.mrf.mxu0
  %v1424 = vadd.f32 %v1290, %v1423
  %1425 = vmatmul.bf16.gmra.mxu0 %v767
  %v1426 = vpop.f32.mrf.mxu0
  %v1427 = vadd.f32 %v1293, %v1426
  %v1428 = vpop.f32.mrf.mxu0
  %v1429 = vadd.f32 %v1295, %v1428
  %1430 = vdwg.mxu0
  %1431 = vmatpush.bf16.msra.mxu0 %v1038
  %1432 = vmatpush.bf16.msra.mxu0 %v1037
  %1433 = vmatpush.bf16.msra.mxu0 %v1036
  %1434 = vmatpush.bf16.msra.mxu0 %v1035
  %1435 = vmatpush.bf16.msra.mxu0 %v1034
  %1436 = vmatpush.bf16.msra.mxu0 %v1033
  %1437 = vmatpush.bf16.msra.mxu0 %v1032
  %1438 = vmatpush.bf16.msra.mxu0 %v1031
  %1439 = vmatmul.bf16.gmra.mxu0 %v648
  %v1440 = vpop.f32.mrf.mxu0
  %v1441 = vadd.f32 %v1307, %v1440
  %v1442 = vpop.f32.mrf.mxu0
  %v1443 = vadd.f32 %v1309, %v1442
  %1444 = vmatmul.bf16.gmra.mxu0 %v653
  %v1445 = vpop.f32.mrf.mxu0
  %v1446 = vadd.f32 %v1312, %v1445
  %v1447 = vpop.f32.mrf.mxu0
  %v1448 = vadd.f32 %v1314, %v1447
  %1449 = vmatmul.bf16.gmra.mxu0 %v658
  %v1450 = vpop.f32.mrf.mxu0
  %v1451 = vadd.f32 %v1317, %v1450
  %v1452 = vpop.f32.mrf.mxu0
  %v1453 = vadd.f32 %v1319, %v1452
  %1454 = vmatmul.bf16.gmra.mxu0 %v663
  %v1455 = vpop.f32.mrf.mxu0
  %v1456 = vadd.f32 %v1322, %v1455
  %v1457 = vpop.f32.mrf.mxu0
  %v1458 = vadd.f32 %v1324, %v1457
  %1459 = vmatmul.bf16.gmra.mxu0 %v668
  %v1460 = vpop.f32.mrf.mxu0
  %v1461 = vadd.f32 %v1327, %v1460
  %v1462 = vpop.f32.mrf.mxu0
  %v1463 = vadd.f32 %v1329, %v1462
  %1464 = vmatmul.bf16.gmra.mxu0 %v673
  %v1465 = vpop.f32.mrf.mxu0
  %v1466 = vadd.f32 %v1332, %v1465
  %v1467 = vpop.f32.mrf.mxu0
  %v1468 = vadd.f32 %v1334, %v1467
  %1469 = vmatmul.bf16.gmra.mxu0 %v678
  %v1470 = vpop.f32.mrf.mxu0
  %v1471 = vadd.f32 %v1337, %v1470
  %v1472 = vpop.f32.mrf.mxu0
  %v1473 = vadd.f32 %v1339, %v1472
  %1474 = vmatmul.bf16.gmra.mxu0 %v683
  %v1475 = vpop.f32.mrf.mxu0
  %v1476 = vadd.f32 %v1342, %v1475
  %v1477 = vpop.f32.mrf.mxu0
  %v1478 = vadd.f32 %v1344, %v1477
  %1479 = vmatmul.bf16.gmra.mxu0 %v688
  %v1480 = vpop.f32.mrf.mxu0
  %v1481 = vadd.f32 %v1347, %v1480
  %v1482 = vpop.f32.mrf.mxu0
  %v1483 = vadd.f32 %v1349, %v1482
  %1484 = vmatmul.bf16.gmra.mxu0 %v693
  %v1485 = vpop.f32.mrf.mxu0
  %v1486 = vadd.f32 %v1352, %v1485
  %v1487 = vpop.f32.mrf.mxu0
  %v1488 = vadd.f32 %v1354, %v1487
  %1489 = vmatmul.bf16.gmra.mxu0 %v698
  %v1490 = vpop.f32.mrf.mxu0
  %v1491 = vadd.f32 %v1357, %v1490
  %v1492 = vpop.f32.mrf.mxu0
  %v1493 = vadd.f32 %v1359, %v1492
  %1494 = vmatmul.bf16.gmra.mxu0 %v703
  %v1495 = vpop.f32.mrf.mxu0
  %v1496 = vadd.f32 %v1362, %v1495
  %v1497 = vpop.f32.mrf.mxu0
  %v1498 = vadd.f32 %v1364, %v1497
  %1499 = vmatmul.bf16.gmra.mxu0 %v708
  %v1500 = vpop.f32.mrf.mxu0
  %v1501 = vadd.f32 %v1367, %v1500
  %v1502 = vpop.f32.mrf.mxu0
  %v1503 = vadd.f32 %v1369, %v1502
  %1504 = vmatmul.bf16.gmra.mxu0 %v713
  %v1505 = vpop.f32.mrf.mxu0
  %v1506 = vadd.f32 %v1372, %v1505
  %v1507 = vpop.f32.mrf.mxu0
  %v1508 = vadd.f32 %v1374, %v1507
  %1509 = vmatmul.bf16.gmra.mxu0 %v718
  %v1510 = vpop.f32.mrf.mxu0
  %v1511 = vadd.f32 %v1377, %v1510
  %v1512 = vpop.f32.mrf.mxu0
  %v1513 = vadd.f32 %v1379, %v1512
  %1514 = vmatmul.bf16.gmra.mxu0 %v723
  %v1515 = vpop.f32.mrf.mxu0
  %v1516 = vadd.f32 %v1382, %v1515
  %v1517 = vpop.f32.mrf.mxu0
  %v1518 = vadd.f32 %v1384, %v1517
  %1519 = vmatmul.bf16.gmra.mxu0 %v728
  %v1520 = vpop.f32.mrf.mxu0
  %v1521 = vadd.f32 %v1387, %v1520
  %v1522 = vpop.f32.mrf.mxu0
  %v1523 = vadd.f32 %v1389, %v1522
  %1524 = vmatmul.bf16.gmra.mxu0 %v733
  %v1525 = vpop.f32.mrf.mxu0
  %v1526 = vadd.f32 %v1392, %v1525
  %v1527 = vpop.f32.mrf.mxu0
  %v1528 = vadd.f32 %v1394, %v1527
  %1529 = vmatmul.bf16.gmra.mxu0 %v738
  %v1530 = vpop.f32.mrf.mxu0
  %v1531 = vadd.f32 %v1397, %v1530
  %v1532 = vpop.f32.mrf.mxu0
  %v1533 = vadd.f32 %v1399, %v1532
  %1534 = vmatmul.bf16.gmra.mxu0 %v743
  %v1535 = vpop.f32.mrf.mxu0
  %v1536 = vadd.f32 %v1402, %v1535
  %v1537 = vpop.f32.mrf.mxu0
  %v1538 = vadd.f32 %v1404, %v1537
  %1539 = vmatmul.bf16.gmra.mxu0 %v748
  %v1540 = vpop.f32.mrf.mxu0
  %v1541 = vadd.f32 %v1407, %v1540
  %v1542 = vpop.f32.mrf.mxu0
  %v1543 = vadd.f32 %v1409, %v1542
  %1544 = vmatmul.bf16.gmra.mxu0 %v753
  %v1545 = vpop.f32.mrf.mxu0
  %v1546 = vadd.f32 %v1412, %v1545
  %v1547 = vpop.f32.mrf.mxu0
  %v1548 = vadd.f32 %v1414, %v1547
  %1549 = vmatmul.bf16.gmra.mxu0 %v758
  %v1550 = vpop.f32.mrf.mxu0
  %v1551 = vadd.f32 %v1417, %v1550
  %v1552 = vpop.f32.mrf.mxu0
  %v1553 = vadd.f32 %v1419, %v1552
  %1554 = vmatmul.bf16.gmra.mxu0 %v763
  %v1555 = vpop.f32.mrf.mxu0
  %v1556 = vadd.f32 %v1422, %v1555
  %v1557 = vpop.f32.mrf.mxu0
  %v1558 = vadd.f32 %v1424, %v1557
  %1559 = vmatmul.bf16.gmra.mxu0 %v768
  %v1560 = vpop.f32.mrf.mxu0
  %v1561 = vadd.f32 %v1427, %v1560
  %v1562 = vpop.f32.mrf.mxu0
  %v1563 = vadd.f32 %v1429, %v1562
  %1564 = vdwg.mxu0
  %1565 = vmatpush.bf16.msra.mxu0 %v1046
  %1566 = vmatpush.bf16.msra.mxu0 %v1045
  %1567 = vmatpush.bf16.msra.mxu0 %v1044
  %1568 = vmatpush.bf16.msra.mxu0 %v1043
  %1569 = vmatpush.bf16.msra.mxu0 %v1042
  %1570 = vmatpush.bf16.msra.mxu0 %v1041
  %1571 = vmatpush.bf16.msra.mxu0 %v1040
  %1572 = vmatpush.bf16.msra.mxu0 %v1039
  %1573 = vmatmul.bf16.gmra.mxu0 %v649
  %v1574 = vpop.f32.mrf.mxu0
  %v1575 = vadd.f32 %v1441, %v1574
  %v1576 = vpop.f32.mrf.mxu0
  %v1577 = vadd.f32 %v1443, %v1576
  %1578 = vmatmul.bf16.gmra.mxu0 %v654
  %v1579 = vpop.f32.mrf.mxu0
  %v1580 = vadd.f32 %v1446, %v1579
  %v1581 = vpop.f32.mrf.mxu0
  %v1582 = vadd.f32 %v1448, %v1581
  %1583 = vmatmul.bf16.gmra.mxu0 %v659
  %v1584 = vpop.f32.mrf.mxu0
  %v1585 = vadd.f32 %v1451, %v1584
  %v1586 = vpop.f32.mrf.mxu0
  %v1587 = vadd.f32 %v1453, %v1586
  %1588 = vmatmul.bf16.gmra.mxu0 %v664
  %v1589 = vpop.f32.mrf.mxu0
  %v1590 = vadd.f32 %v1456, %v1589
  %v1591 = vpop.f32.mrf.mxu0
  %v1592 = vadd.f32 %v1458, %v1591
  %1593 = vmatmul.bf16.gmra.mxu0 %v669
  %v1594 = vpop.f32.mrf.mxu0
  %v1595 = vadd.f32 %v1461, %v1594
  %v1596 = vpop.f32.mrf.mxu0
  %v1597 = vadd.f32 %v1463, %v1596
  %1598 = vmatmul.bf16.gmra.mxu0 %v674
  %v1599 = vpop.f32.mrf.mxu0
  %v1600 = vadd.f32 %v1466, %v1599
  %v1601 = vpop.f32.mrf.mxu0
  %v1602 = vadd.f32 %v1468, %v1601
  %1603 = vmatmul.bf16.gmra.mxu0 %v679
  %v1604 = vpop.f32.mrf.mxu0
  %v1605 = vadd.f32 %v1471, %v1604
  %v1606 = vpop.f32.mrf.mxu0
  %v1607 = vadd.f32 %v1473, %v1606
  %1608 = vmatmul.bf16.gmra.mxu0 %v684
  %v1609 = vpop.f32.mrf.mxu0
  %v1610 = vadd.f32 %v1476, %v1609
  %v1611 = vpop.f32.mrf.mxu0
  %v1612 = vadd.f32 %v1478, %v1611
  %1613 = vmatmul.bf16.gmra.mxu0 %v689
  %v1614 = vpop.f32.mrf.mxu0
  %v1615 = vadd.f32 %v1481, %v1614
  %v1616 = vpop.f32.mrf.mxu0
  %v1617 = vadd.f32 %v1483, %v1616
  %1618 = vmatmul.bf16.gmra.mxu0 %v694
  %v1619 = vpop.f32.mrf.mxu0
  %v1620 = vadd.f32 %v1486, %v1619
  %v1621 = vpop.f32.mrf.mxu0
  %v1622 = vadd.f32 %v1488, %v1621
  %1623 = vmatmul.bf16.gmra.mxu0 %v699
  %v1624 = vpop.f32.mrf.mxu0
  %v1625 = vadd.f32 %v1491, %v1624
  %v1626 = vpop.f32.mrf.mxu0
  %v1627 = vadd.f32 %v1493, %v1626
  %1628 = vmatmul.bf16.gmra.mxu0 %v704
  %v1629 = vpop.f32.mrf.mxu0
  %v1630 = vadd.f32 %v1496, %v1629
  %v1631 = vpop.f32.mrf.mxu0
  %v1632 = vadd.f32 %v1498, %v1631
  %1633 = vmatmul.bf16.gmra.mxu0 %v709
  %v1634 = vpop.f32.mrf.mxu0
  %v1635 = vadd.f32 %v1501, %v1634
  %v1636 = vpop.f32.mrf.mxu0
  %v1637 = vadd.f32 %v1503, %v1636
  %1638 = vmatmul.bf16.gmra.mxu0 %v714
  %v1639 = vpop.f32.mrf.mxu0
  %v1640 = vadd.f32 %v1506, %v1639
  %v1641 = vpop.f32.mrf.mxu0
  %v1642 = vadd.f32 %v1508, %v1641
  %1643 = vmatmul.bf16.gmra.mxu0 %v719
  %v1644 = vpop.f32.mrf.mxu0
  %v1645 = vadd.f32 %v1511, %v1644
  %v1646 = vpop.f32.mrf.mxu0
  %v1647 = vadd.f32 %v1513, %v1646
  %1648 = vmatmul.bf16.gmra.mxu0 %v724
  %v1649 = vpop.f32.mrf.mxu0
  %v1650 = vadd.f32 %v1516, %v1649
  %v1651 = vpop.f32.mrf.mxu0
  %v1652 = vadd.f32 %v1518, %v1651
  %1653 = vmatmul.bf16.gmra.mxu0 %v729
  %v1654 = vpop.f32.mrf.mxu0
  %v1655 = vadd.f32 %v1521, %v1654
  %v1656 = vpop.f32.mrf.mxu0
  %v1657 = vadd.f32 %v1523, %v1656
  %1658 = vmatmul.bf16.gmra.mxu0 %v734
  %v1659 = vpop.f32.mrf.mxu0
  %v1660 = vadd.f32 %v1526, %v1659
  %v1661 = vpop.f32.mrf.mxu0
  %v1662 = vadd.f32 %v1528, %v1661
  %1663 = vmatmul.bf16.gmra.mxu0 %v739
  %v1664 = vpop.f32.mrf.mxu0
  %v1665 = vadd.f32 %v1531, %v1664
  %v1666 = vpop.f32.mrf.mxu0
  %v1667 = vadd.f32 %v1533, %v1666
  %1668 = vmatmul.bf16.gmra.mxu0 %v744
  %v1669 = vpop.f32.mrf.mxu0
  %v1670 = vadd.f32 %v1536, %v1669
  %v1671 = vpop.f32.mrf.mxu0
  %v1672 = vadd.f32 %v1538, %v1671
  %1673 = vmatmul.bf16.gmra.mxu0 %v749
  %v1674 = vpop.f32.mrf.mxu0
  %v1675 = vadd.f32 %v1541, %v1674
  %v1676 = vpop.f32.mrf.mxu0
  %v1677 = vadd.f32 %v1543, %v1676
  %1678 = vmatmul.bf16.gmra.mxu0 %v754
  %v1679 = vpop.f32.mrf.mxu0
  %v1680 = vadd.f32 %v1546, %v1679
  %v1681 = vpop.f32.mrf.mxu0
  %v1682 = vadd.f32 %v1548, %v1681
  %1683 = vmatmul.bf16.gmra.mxu0 %v759
  %v1684 = vpop.f32.mrf.mxu0
  %v1685 = vadd.f32 %v1551, %v1684
  %v1686 = vpop.f32.mrf.mxu0
  %v1687 = vadd.f32 %v1553, %v1686
  %1688 = vmatmul.bf16.gmra.mxu0 %v764
  %v1689 = vpop.f32.mrf.mxu0
  %v1690 = vadd.f32 %v1556, %v1689
  %v1691 = vpop.f32.mrf.mxu0
  %v1692 = vadd.f32 %v1558, %v1691
  %1693 = vmatmul.bf16.gmra.mxu0 %v769
  %v1694 = vpop.f32.mrf.mxu0
  %v1695 = vadd.f32 %v1561, %v1694
  %v1696 = vpop.f32.mrf.mxu0
  %v1697 = vadd.f32 %v1563, %v1696
  %1698 = vdwg.mxu0
  %1699 = vmatpush.bf16.msra.mxu0 0
  %1700 = vmatpush.bf16.msra.mxu0 0
  %1701 = vmatpush.bf16.msra.mxu0 0
  %1702 = vmatpush.bf16.msra.mxu0 0
  %1703 = vmatpush.bf16.msra.mxu0 %v1050
  %1704 = vmatpush.bf16.msra.mxu0 %v1049
  %1705 = vmatpush.bf16.msra.mxu0 %v1048
  %1706 = vmatpush.bf16.msra.mxu0 %v1047
  %1707 = vmatmul.bf16.gmra.mxu0 %v1089
  %v1708 = vpop.f32.mrf.mxu0
  %v1709 = vadd.f32 %v1575, %v1708
  %v1710 = vpop.f32.mrf.mxu0
  %v1711 = vadd.f32 %v1577, %v1710
  %1712 = vmatmul.bf16.gmra.mxu0 %v1092
  %v1713 = vpop.f32.mrf.mxu0
  %v1714 = vadd.f32 %v1580, %v1713
  %v1715 = vpop.f32.mrf.mxu0
  %v1716 = vadd.f32 %v1582, %v1715
  %1717 = vmatmul.bf16.gmra.mxu0 %v1095
  %v1718 = vpop.f32.mrf.mxu0
  %v1719 = vadd.f32 %v1585, %v1718
  %v1720 = vpop.f32.mrf.mxu0
  %v1721 = vadd.f32 %v1587, %v1720
  %1722 = vmatmul.bf16.gmra.mxu0 %v1098
  %v1723 = vpop.f32.mrf.mxu0
  %v1724 = vadd.f32 %v1590, %v1723
  %v1725 = vpop.f32.mrf.mxu0
  %v1726 = vadd.f32 %v1592, %v1725
  %1727 = vmatmul.bf16.gmra.mxu0 %v1101
  %v1728 = vpop.f32.mrf.mxu0
  %v1729 = vadd.f32 %v1595, %v1728
  %v1730 = vpop.f32.mrf.mxu0
  %v1731 = vadd.f32 %v1597, %v1730
  %1732 = vmatmul.bf16.gmra.mxu0 %v1104
  %v1733 = vpop.f32.mrf.mxu0
  %v1734 = vadd.f32 %v1600, %v1733
  %v1735 = vpop.f32.mrf.mxu0
  %v1736 = vadd.f32 %v1602, %v1735
  %1737 = vmatmul.bf16.gmra.mxu0 %v1107
  %v1738 = vpop.f32.mrf.mxu0
  %v1739 = vadd.f32 %v1605, %v1738
  %v1740 = vpop.f32.mrf.mxu0
  %v1741 = vadd.f32 %v1607, %v1740
  %1742 = vmatmul.bf16.gmra.mxu0 %v1110
  %v1743 = vpop.f32.mrf.mxu0
  %v1744 = vadd.f32 %v1610, %v1743
  %v1745 = vpop.f32.mrf.mxu0
  %v1746 = vadd.f32 %v1612, %v1745
  %1747 = vmatmul.bf16.gmra.mxu0 %v1113
  %v1748 = vpop.f32.mrf.mxu0
  %v1749 = vadd.f32 %v1615, %v1748
  %v1750 = vpop.f32.mrf.mxu0
  %v1751 = vadd.f32 %v1617, %v1750
  %1752 = vmatmul.bf16.gmra.mxu0 %v1116
  %v1753 = vpop.f32.mrf.mxu0
  %v1754 = vadd.f32 %v1620, %v1753
  %v1755 = vpop.f32.mrf.mxu0
  %v1756 = vadd.f32 %v1622, %v1755
  %1757 = vmatmul.bf16.gmra.mxu0 %v1119
  %v1758 = vpop.f32.mrf.mxu0
  %v1759 = vadd.f32 %v1625, %v1758
  %v1760 = vpop.f32.mrf.mxu0
  %v1761 = vadd.f32 %v1627, %v1760
  %1762 = vmatmul.bf16.gmra.mxu0 %v1122
  %v1763 = vpop.f32.mrf.mxu0
  %v1764 = vadd.f32 %v1630, %v1763
  %v1765 = vpop.f32.mrf.mxu0
  %v1766 = vadd.f32 %v1632, %v1765
  %1767 = vmatmul.bf16.gmra.mxu0 %v1125
  %v1768 = vpop.f32.mrf.mxu0
  %v1769 = vadd.f32 %v1635, %v1768
  %v1770 = vpop.f32.mrf.mxu0
  %v1771 = vadd.f32 %v1637, %v1770
  %1772 = vmatmul.bf16.gmra.mxu0 %v1128
  %v1773 = vpop.f32.mrf.mxu0
  %v1774 = vadd.f32 %v1640, %v1773
  %v1775 = vpop.f32.mrf.mxu0
  %v1776 = vadd.f32 %v1642, %v1775
  %1777 = vmatmul.bf16.gmra.mxu0 %v1131
  %v1778 = vpop.f32.mrf.mxu0
  %v1779 = vadd.f32 %v1645, %v1778
  %v1780 = vpop.f32.mrf.mxu0
  %v1781 = vadd.f32 %v1647, %v1780
  %1782 = vmatmul.bf16.gmra.mxu0 %v1134
  %v1783 = vpop.f32.mrf.mxu0
  %v1784 = vadd.f32 %v1650, %v1783
  %v1785 = vpop.f32.mrf.mxu0
  %v1786 = vadd.f32 %v1652, %v1785
  %1787 = vmatmul.bf16.gmra.mxu0 %v1137
  %v1788 = vpop.f32.mrf.mxu0
  %v1789 = vadd.f32 %v1655, %v1788
  %v1790 = vpop.f32.mrf.mxu0
  %v1791 = vadd.f32 %v1657, %v1790
  %1792 = vmatmul.bf16.gmra.mxu0 %v1140
  %v1793 = vpop.f32.mrf.mxu0
  %v1794 = vadd.f32 %v1660, %v1793
  %v1795 = vpop.f32.mrf.mxu0
  %v1796 = vadd.f32 %v1662, %v1795
  %1797 = vmatmul.bf16.gmra.mxu0 %v1143
  %v1798 = vpop.f32.mrf.mxu0
  %v1799 = vadd.f32 %v1665, %v1798
  %v1800 = vpop.f32.mrf.mxu0
  %v1801 = vadd.f32 %v1667, %v1800
  %1802 = vmatmul.bf16.gmra.mxu0 %v1146
  %v1803 = vpop.f32.mrf.mxu0
  %v1804 = vadd.f32 %v1670, %v1803
  %v1805 = vpop.f32.mrf.mxu0
  %v1806 = vadd.f32 %v1672, %v1805
  %1807 = vmatmul.bf16.gmra.mxu0 %v1149
  %v1808 = vpop.f32.mrf.mxu0
  %v1809 = vadd.f32 %v1675, %v1808
  %v1810 = vpop.f32.mrf.mxu0
  %v1811 = vadd.f32 %v1677, %v1810
  %1812 = vmatmul.bf16.gmra.mxu0 %v1152
  %v1813 = vpop.f32.mrf.mxu0
  %v1814 = vadd.f32 %v1680, %v1813
  %v1815 = vpop.f32.mrf.mxu0
  %v1816 = vadd.f32 %v1682, %v1815
  %1817 = vmatmul.bf16.gmra.mxu0 %v1155
  %v1818 = vpop.f32.mrf.mxu0
  %v1819 = vadd.f32 %v1685, %v1818
  %v1820 = vpop.f32.mrf.mxu0
  %v1821 = vadd.f32 %v1687, %v1820
  %1822 = vmatmul.bf16.gmra.mxu0 %v1158
  %v1823 = vpop.f32.mrf.mxu0
  %v1824 = vadd.f32 %v1690, %v1823
  %v1825 = vpop.f32.mrf.mxu0
  %v1826 = vadd.f32 %v1692, %v1825
  %1827 = vmatmul.bf16.gmra.mxu0 %v1161
  %v1828 = vpop.f32.mrf.mxu0
  %v1829 = vadd.f32 %v1695, %v1828
  %v1830 = vpop.f32.mrf.mxu0
  %v1831 = vadd.f32 %v1697, %v1830
  %1832 = vdwg.mxu0
  %v1833 = vld [vmem:[%s1] sm:$0xff]
  %v1834 = vld [vmem:[%s1 + $0x8] sm:$0xff]
  %v1835 = vld [vmem:[%s1 + $0x10] sm:$0xf]
  %v1836 = vld [vmem:[%s1 + $0x14] sm:$0xff]
  %v1837 = vld [vmem:[%s1 + $0x1c] sm:$0xff]
  %v1838 = vld [vmem:[%s1 + $0x24] sm:$0xf]
  %v1839 = vld [vmem:[%s1 + $0x28] sm:$0xff]
  %v1840 = vld [vmem:[%s1 + $0x30] sm:$0xff]
  %v1841 = vld [vmem:[%s1 + $0x38] sm:$0xf]
  %v1842 = vld [vmem:[%s1 + $0x3c] sm:$0xff]
  %v1843 = vld [vmem:[%s1 + $0x44] sm:$0xff]
  %v1844 = vld [vmem:[%s1 + $0x4c] sm:$0xf]
  %v1845 = vld [vmem:[%s1 + $0x50] sm:$0xff]
  %v1846 = vld [vmem:[%s1 + $0x58] sm:$0xff]
  %v1847 = vld [vmem:[%s1 + $0x60] sm:$0xf]
  %v1848 = vld [vmem:[%s1 + $0x64] sm:$0xff]
  %v1849 = vld [vmem:[%s1 + $0x6c] sm:$0xff]
  %v1850 = vld [vmem:[%s1 + $0x74] sm:$0xf]
  %v1851 = vld [vmem:[%s1 + $0x78] sm:$0xff]
  %v1852 = vld [vmem:[%s1 + $0x80] sm:$0xff]
  %v1853 = vld [vmem:[%s1 + $0x88] sm:$0xf]
  %v1854 = vld [vmem:[%s1 + $0x8c] sm:$0xff]
  %v1855 = vld [vmem:[%s1 + $0x94] sm:$0xff]
  %v1856 = vld [vmem:[%s1 + $0x9c] sm:$0xf]
  %v1857 = vld [vmem:[%s1 + $0xa0] sm:$0xff]
  %v1858 = vld [vmem:[%s1 + $0xa8] sm:$0xff]
  %v1859 = vld [vmem:[%s1 + $0xb0] sm:$0xf]
  %v1860 = vld [vmem:[%s1 + $0xb4] sm:$0xff]
  %v1861 = vld [vmem:[%s1 + $0xbc] sm:$0xff]
  %v1862 = vld [vmem:[%s1 + $0xc4] sm:$0xf]
  %v1863 = vld [vmem:[%s1 + $0xc8] sm:$0xff]
  %v1864 = vld [vmem:[%s1 + $0xd0] sm:$0xff]
  %v1865 = vld [vmem:[%s1 + $0xd8] sm:$0xf]
  %v1866 = vld [vmem:[%s1 + $0xdc] sm:$0xff]
  %v1867 = vld [vmem:[%s1 + $0xe4] sm:$0xff]
  %v1868 = vld [vmem:[%s1 + $0xec] sm:$0xf]
  %v1869 = vld [vmem:[%s1 + $0xf0] sm:$0xff]
  %v1870 = vld [vmem:[%s1 + $0xf8] sm:$0xff]
  %v1871 = vld [vmem:[%s1 + $0x100] sm:$0xf]
  %v1872 = vld [vmem:[%s1 + $0x104] sm:$0xff]
  %v1873 = vld [vmem:[%s1 + $0x10c] sm:$0xff]
  %v1874 = vld [vmem:[%s1 + $0x114] sm:$0xf]
  %v1875 = vld [vmem:[%s1 + $0x118] sm:$0xff]
  %v1876 = vld [vmem:[%s1 + $0x120] sm:$0xff]
  %v1877 = vld [vmem:[%s1 + $0x128] sm:$0xf]
  %v1878 = vld [vmem:[%s1 + $0x12c] sm:$0xff]
  %v1879 = vld [vmem:[%s1 + $0x134] sm:$0xff]
  %v1880 = vld [vmem:[%s1 + $0x13c] sm:$0xf]
  %v1881 = vld [vmem:[%s1 + $0x140] sm:$0xff]
  %v1882 = vld [vmem:[%s1 + $0x148] sm:$0xff]
  %v1883 = vld [vmem:[%s1 + $0x150] sm:$0xf]
  %v1884 = vld [vmem:[%s1 + $0x154] sm:$0xff]
  %v1885 = vld [vmem:[%s1 + $0x15c] sm:$0xff]
  %v1886 = vld [vmem:[%s1 + $0x164] sm:$0xf]
  %v1887 = vld [vmem:[%s1 + $0x168] sm:$0xff]
  %v1888 = vld [vmem:[%s1 + $0x170] sm:$0xff]
  %v1889 = vld [vmem:[%s1 + $0x178] sm:$0xf]
  %v1890 = vld [vmem:[%s1 + $0x17c] sm:$0xff]
  %v1891 = vld [vmem:[%s1 + $0x184] sm:$0xff]
  %v1892 = vld [vmem:[%s1 + $0x18c] sm:$0xf]
  %v1893 = vld [vmem:[%s1 + $0x190] sm:$0xff]
  %v1894 = vld [vmem:[%s1 + $0x198] sm:$0xff]
  %v1895 = vld [vmem:[%s1 + $0x1a0] sm:$0xf]
  %v1896 = vld [vmem:[%s1 + $0x1a4] sm:$0xff]
  %v1897 = vld [vmem:[%s1 + $0x1ac] sm:$0xff]
  %v1898 = vld [vmem:[%s1 + $0x1b4] sm:$0xf]
  %v1899 = vld [vmem:[%s1 + $0x1b8] sm:$0xff]
  %v1900 = vld [vmem:[%s1 + $0x1c0] sm:$0xff]
  %v1901 = vld [vmem:[%s1 + $0x1c8] sm:$0xf]
  %v1902 = vld [vmem:[%s1 + $0x1cc] sm:$0xff]
  %v1903 = vld [vmem:[%s1 + $0x1d4] sm:$0xff]
  %v1904 = vld [vmem:[%s1 + $0x1dc] sm:$0xf]
  %v1905 = vld [vmem:[%s1 + $0x1e0] sm:$0xff]
  %v1906 = vld [vmem:[%s1 + $0x1e8] sm:$0xff]
  %v1907 = vld [vmem:[%s1 + $0x1f0] sm:$0xf]
  %v1908 = vld [vmem:[%s1 + $0x1f4] sm:$0xff]
  %v1909 = vld [vmem:[%s1 + $0x1fc] sm:$0xff]
  %v1910 = vld [vmem:[%s1 + $0x204] sm:$0xf]
  %v1911 = vld [vmem:[%s1 + $0x208] sm:$0xff]
  %v1912 = vld [vmem:[%s1 + $0x210] sm:$0xff]
  %v1913 = vld [vmem:[%s1 + $0x218] sm:$0xf]
  %v1914 = vld [vmem:[%s1 + $0x21c] sm:$0xff]
  %v1915 = vld [vmem:[%s1 + $0x224] sm:$0xff]
  %v1916 = vld [vmem:[%s1 + $0x22c] sm:$0xf]
  %v1917 = vld [vmem:[%s1 + $0x230] sm:$0xff]
  %v1918 = vld [vmem:[%s1 + $0x238] sm:$0xff]
  %v1919 = vld [vmem:[%s1 + $0x240] sm:$0xf]
  %v1920 = vld [vmem:[%s1 + $0x244] sm:$0xff]
  %v1921 = vld [vmem:[%s1 + $0x24c] sm:$0xff]
  %v1922 = vld [vmem:[%s1 + $0x254] sm:$0xf]
  %v1923 = vld [vmem:[%s1 + $0x258] sm:$0xff]
  %v1924 = vld [vmem:[%s1 + $0x260] sm:$0xff]
  %v1925 = vld [vmem:[%s1 + $0x268] sm:$0xf]
  %v1926 = vld [vmem:[%s1 + $0x26c] sm:$0xff]
  %v1927 = vld [vmem:[%s1 + $0x274] sm:$0xff]
  %v1928 = vld [vmem:[%s1 + $0x27c] sm:$0xf]
  %v1929 = vld [vmem:[%s1 + $0x280] sm:$0xff]
  %v1930 = vld [vmem:[%s1 + $0x288] sm:$0xff]
  %v1931 = vld [vmem:[%s1 + $0x290] sm:$0xf]
  %v1932 = vld [vmem:[%s1 + $0x294] sm:$0xff]
  %v1933 = vld [vmem:[%s1 + $0x29c] sm:$0xff]
  %v1934 = vld [vmem:[%s1 + $0x2a4] sm:$0xf]
  %v1935 = vld [vmem:[%s1 + $0x2a8] sm:$0xff]
  %v1936 = vld [vmem:[%s1 + $0x2b0] sm:$0xff]
  %v1937 = vld [vmem:[%s1 + $0x2b8] sm:$0xf]
  %v1938 = vld [vmem:[%s1 + $0x2bc] sm:$0xff]
  %v1939 = vld [vmem:[%s1 + $0x2c4] sm:$0xff]
  %v1940 = vld [vmem:[%s1 + $0x2cc] sm:$0xf]
  %v1941 = vld [vmem:[%s1 + $0x2d0] sm:$0xff]
  %v1942 = vld [vmem:[%s1 + $0x2d8] sm:$0xff]
  %v1943 = vld [vmem:[%s1 + $0x2e0] sm:$0xf]
  %v1944 = vld [vmem:[%s1 + $0x2e4] sm:$0xff]
  %v1945 = vld [vmem:[%s1 + $0x2ec] sm:$0xff]
  %v1946 = vld [vmem:[%s1 + $0x2f4] sm:$0xf]
  %v1947 = vld [vmem:[%s1 + $0x2f8] sm:$0xff]
  %v1948 = vld [vmem:[%s1 + $0x300] sm:$0xff]
  %v1949 = vld [vmem:[%s1 + $0x308] sm:$0xf]
  %v1950 = vld [vmem:[%s1 + $0x30c] sm:$0xff]
  %v1951 = vld [vmem:[%s1 + $0x314] sm:$0xff]
  %v1952 = vld [vmem:[%s1 + $0x31c] sm:$0xf]
  %v1953 = vld [vmem:[%s1 + $0x320] sm:$0xff]
  %v1954 = vld [vmem:[%s1 + $0x328] sm:$0xff]
  %v1955 = vld [vmem:[%s1 + $0x330] sm:$0xf]
  %v1956 = vld [vmem:[%s1 + $0x334] sm:$0xff]
  %v1957 = vld [vmem:[%s1 + $0x33c] sm:$0xff]
  %v1958 = vld [vmem:[%s1 + $0x344] sm:$0xf]
  %v1959 = vld [vmem:[%s1 + $0x348] sm:$0xff]
  %v1960 = vld [vmem:[%s1 + $0x350] sm:$0xff]
  %v1961 = vld [vmem:[%s1 + $0x358] sm:$0xf]
  %v1962 = vld [vmem:[%s1 + $0x35c] sm:$0xff]
  %v1963 = vld [vmem:[%s1 + $0x364] sm:$0xff]
  %v1964 = vld [vmem:[%s1 + $0x36c] sm:$0xf]
  %v1965 = vld [vmem:[%s1 + $0x370] sm:$0xff]
  %v1966 = vld [vmem:[%s1 + $0x378] sm:$0xff]
  %v1967 = vld [vmem:[%s1 + $0x380] sm:$0xf]
  %v1968 = vld [vmem:[%s1 + $0x384] sm:$0xff]
  %v1969 = vld [vmem:[%s1 + $0x38c] sm:$0xff]
  %v1970 = vld [vmem:[%s1 + $0x394] sm:$0xf]
  %v1971 = vld [vmem:[%s1 + $0x398] sm:$0xff]
  %v1972 = vld [vmem:[%s1 + $0x3a0] sm:$0xff]
  %v1973 = vld [vmem:[%s1 + $0x3a8] sm:$0xf]
  %v1974 = vld [vmem:[%s1 + $0x3ac] sm:$0xff]
  %v1975 = vld [vmem:[%s1 + $0x3b4] sm:$0xff]
  %v1976 = vld [vmem:[%s1 + $0x3bc] sm:$0xf]
  %v1977 = vld [vmem:[%s1 + $0x3c0] sm:$0xff]
  %v1978 = vld [vmem:[%s1 + $0x3c8] sm:$0xff]
  %v1979 = vld [vmem:[%s1 + $0x3d0] sm:$0xf]
  %v1980 = vld [vmem:[%s1 + $0x3d4] sm:$0xff]
  %v1981 = vld [vmem:[%s1 + $0x3dc] sm:$0xff]
  %v1982 = vld [vmem:[%s1 + $0x3e4] sm:$0xf]
  %v2133 = vunpack.c.l.b16 %v1833
  %v2134 = vunpack.c.h.b16 %v1833
  %v2135 = vunpack.c.l.b16 %v1834
  %v2136 = vunpack.c.h.b16 %v1834
  %v2137 = vunpack.c.l.b16 %v1835
  %v2138 = vunpack.c.l.b16 %v1836
  %v2139 = vunpack.c.h.b16 %v1836
  %v2140 = vunpack.c.l.b16 %v1837
  %v2141 = vunpack.c.h.b16 %v1837
  %v2142 = vunpack.c.l.b16 %v1838
  %v2143 = vunpack.c.l.b16 %v1839
  %v2144 = vunpack.c.h.b16 %v1839
  %v2145 = vunpack.c.l.b16 %v1840
  %v2146 = vunpack.c.h.b16 %v1840
  %v2147 = vunpack.c.l.b16 %v1841
  %v2148 = vunpack.c.l.b16 %v1842
  %v2149 = vunpack.c.h.b16 %v1842
  %v2150 = vunpack.c.l.b16 %v1843
  %v2151 = vunpack.c.h.b16 %v1843
  %v2152 = vunpack.c.l.b16 %v1844
  %v2153 = vunpack.c.l.b16 %v1845
  %v2154 = vunpack.c.h.b16 %v1845
  %v2155 = vunpack.c.l.b16 %v1846
  %v2156 = vunpack.c.h.b16 %v1846
  %v2157 = vunpack.c.l.b16 %v1847
  %v2158 = vunpack.c.l.b16 %v1848
  %v2159 = vunpack.c.h.b16 %v1848
  %v2160 = vunpack.c.l.b16 %v1849
  %v2161 = vunpack.c.h.b16 %v1849
  %v2162 = vunpack.c.l.b16 %v1850
  %v2163 = vunpack.c.l.b16 %v1851
  %v2164 = vunpack.c.h.b16 %v1851
  %v2165 = vunpack.c.l.b16 %v1852
  %v2166 = vunpack.c.h.b16 %v1852
  %v2167 = vunpack.c.l.b16 %v1853
  %v2168 = vunpack.c.l.b16 %v1854
  %v2169 = vunpack.c.h.b16 %v1854
  %v2170 = vunpack.c.l.b16 %v1855
  %v2171 = vunpack.c.h.b16 %v1855
  %v2172 = vunpack.c.l.b16 %v1856
  %v2173 = vunpack.c.l.b16 %v1857
  %v2174 = vunpack.c.h.b16 %v1857
  %v2175 = vunpack.c.l.b16 %v1858
  %v2176 = vunpack.c.h.b16 %v1858
  %v2177 = vunpack.c.l.b16 %v1859
  %v2178 = vunpack.c.l.b16 %v1860
  %v2179 = vunpack.c.h.b16 %v1860
  %v2180 = vunpack.c.l.b16 %v1861
  %v2181 = vunpack.c.h.b16 %v1861
  %v2182 = vunpack.c.l.b16 %v1862
  %v2183 = vunpack.c.l.b16 %v1863
  %v2184 = vunpack.c.h.b16 %v1863
  %v2185 = vunpack.c.l.b16 %v1864
  %v2186 = vunpack.c.h.b16 %v1864
  %v2187 = vunpack.c.l.b16 %v1865
  %v2188 = vunpack.c.l.b16 %v1866
  %v2189 = vunpack.c.h.b16 %v1866
  %v2190 = vunpack.c.l.b16 %v1867
  %v2191 = vunpack.c.h.b16 %v1867
  %v2192 = vunpack.c.l.b16 %v1868
  %v2193 = vunpack.c.l.b16 %v1869
  %v2194 = vunpack.c.h.b16 %v1869
  %v2195 = vunpack.c.l.b16 %v1870
  %v2196 = vunpack.c.h.b16 %v1870
  %v2197 = vunpack.c.l.b16 %v1871
  %v2198 = vunpack.c.l.b16 %v1872
  %v2199 = vunpack.c.h.b16 %v1872
  %v2200 = vunpack.c.l.b16 %v1873
  %v2201 = vunpack.c.h.b16 %v1873
  %v2202 = vunpack.c.l.b16 %v1874
  %v2203 = vunpack.c.l.b16 %v1875
  %v2204 = vunpack.c.h.b16 %v1875
  %v2205 = vunpack.c.l.b16 %v1876
  %v2206 = vunpack.c.h.b16 %v1876
  %v2207 = vunpack.c.l.b16 %v1877
  %v2208 = vunpack.c.l.b16 %v1878
  %v2209 = vunpack.c.h.b16 %v1878
  %v2210 = vunpack.c.l.b16 %v1879
  %v2211 = vunpack.c.h.b16 %v1879
  %v2212 = vunpack.c.l.b16 %v1880
  %v2213 = vunpack.c.l.b16 %v1881
  %v2214 = vunpack.c.h.b16 %v1881
  %v2215 = vunpack.c.l.b16 %v1882
  %v2216 = vunpack.c.h.b16 %v1882
  %v2217 = vunpack.c.l.b16 %v1883
  %v2218 = vunpack.c.l.b16 %v1884
  %v2219 = vunpack.c.h.b16 %v1884
  %v2220 = vunpack.c.l.b16 %v1885
  %v2221 = vunpack.c.h.b16 %v1885
  %v2222 = vunpack.c.l.b16 %v1886
  %v2223 = vunpack.c.l.b16 %v1887
  %v2224 = vunpack.c.h.b16 %v1887
  %v2225 = vunpack.c.l.b16 %v1888
  %v2226 = vunpack.c.h.b16 %v1888
  %v2227 = vunpack.c.l.b16 %v1889
  %v2228 = vunpack.c.l.b16 %v1890
  %v2229 = vunpack.c.h.b16 %v1890
  %v2230 = vunpack.c.l.b16 %v1891
  %v2231 = vunpack.c.h.b16 %v1891
  %v2232 = vunpack.c.l.b16 %v1892
  %v2233 = vunpack.c.l.b16 %v1893
  %v2234 = vunpack.c.h.b16 %v1893
  %v2235 = vunpack.c.l.b16 %v1894
  %v2236 = vunpack.c.h.b16 %v1894
  %v2237 = vunpack.c.l.b16 %v1895
  %v2238 = vunpack.c.l.b16 %v1896
  %v2239 = vunpack.c.h.b16 %v1896
  %v2240 = vunpack.c.l.b16 %v1897
  %v2241 = vunpack.c.h.b16 %v1897
  %v2242 = vunpack.c.l.b16 %v1898
  %v2243 = vunpack.c.l.b16 %v1899
  %v2244 = vunpack.c.h.b16 %v1899
  %v2245 = vunpack.c.l.b16 %v1900
  %v2246 = vunpack.c.h.b16 %v1900
  %v2247 = vunpack.c.l.b16 %v1901
  %v2248 = vunpack.c.l.b16 %v1902
  %v2249 = vunpack.c.h.b16 %v1902
  %v2250 = vunpack.c.l.b16 %v1903
  %v2251 = vunpack.c.h.b16 %v1903
  %v2252 = vunpack.c.l.b16 %v1904
  %v2253 = vunpack.c.l.b16 %v1905
  %v2254 = vunpack.c.h.b16 %v1905
  %v2255 = vunpack.c.l.b16 %v1906
  %v2256 = vunpack.c.h.b16 %v1906
  %v2257 = vunpack.c.l.b16 %v1907
  %v2258 = vunpack.c.l.b16 %v1908
  %v2259 = vunpack.c.h.b16 %v1908
  %v2260 = vunpack.c.l.b16 %v1909
  %v2261 = vunpack.c.h.b16 %v1909
  %v2262 = vunpack.c.l.b16 %v1910
  %v2263 = vunpack.c.l.b16 %v1911
  %v2264 = vunpack.c.h.b16 %v1911
  %v2265 = vunpack.c.l.b16 %v1912
  %v2266 = vunpack.c.h.b16 %v1912
  %v2267 = vunpack.c.l.b16 %v1913
  %v2268 = vunpack.c.l.b16 %v1914
  %v2269 = vunpack.c.h.b16 %v1914
  %v2270 = vunpack.c.l.b16 %v1915
  %v2271 = vunpack.c.h.b16 %v1915
  %v2272 = vunpack.c.l.b16 %v1916
  %v2273 = vunpack.c.l.b16 %v1917
  %v2274 = vunpack.c.h.b16 %v1917
  %v2275 = vunpack.c.l.b16 %v1918
  %v2276 = vunpack.c.h.b16 %v1918
  %v2277 = vunpack.c.l.b16 %v1919
  %v2278 = vunpack.c.l.b16 %v1920
  %v2279 = vunpack.c.h.b16 %v1920
  %v2280 = vunpack.c.l.b16 %v1921
  %v2281 = vunpack.c.h.b16 %v1921
  %v2282 = vunpack.c.l.b16 %v1922
  %v2283 = vunpack.c.l.b16 %v1923
  %v2284 = vunpack.c.h.b16 %v1923
  %v2285 = vunpack.c.l.b16 %v1924
  %v2286 = vunpack.c.h.b16 %v1924
  %v2287 = vunpack.c.l.b16 %v1925
  %v2288 = vunpack.c.l.b16 %v1926
  %v2289 = vunpack.c.h.b16 %v1926
  %v2290 = vunpack.c.l.b16 %v1927
  %v2291 = vunpack.c.h.b16 %v1927
  %v2292 = vunpack.c.l.b16 %v1928
  %v2293 = vunpack.c.l.b16 %v1929
  %v2294 = vunpack.c.h.b16 %v1929
  %v2295 = vunpack.c.l.b16 %v1930
  %v2296 = vunpack.c.h.b16 %v1930
  %v2297 = vunpack.c.l.b16 %v1931
  %v2298 = vunpack.c.l.b16 %v1932
  %v2299 = vunpack.c.h.b16 %v1932
  %v2300 = vunpack.c.l.b16 %v1933
  %v2301 = vunpack.c.h.b16 %v1933
  %v2302 = vunpack.c.l.b16 %v1934
  %v2303 = vunpack.c.l.b16 %v1935
  %v2304 = vunpack.c.h.b16 %v1935
  %v2305 = vunpack.c.l.b16 %v1936
  %v2306 = vunpack.c.h.b16 %v1936
  %v2307 = vunpack.c.l.b16 %v1937
  %v2308 = vunpack.c.l.b16 %v1938
  %v2309 = vunpack.c.h.b16 %v1938
  %v2310 = vunpack.c.l.b16 %v1939
  %v2311 = vunpack.c.h.b16 %v1939
  %v2312 = vunpack.c.l.b16 %v1940
  %v2313 = vunpack.c.l.b16 %v1941
  %v2314 = vunpack.c.h.b16 %v1941
  %v2315 = vunpack.c.l.b16 %v1942
  %v2316 = vunpack.c.h.b16 %v1942
  %v2317 = vunpack.c.l.b16 %v1943
  %v2318 = vunpack.c.l.b16 %v1944
  %v2319 = vunpack.c.h.b16 %v1944
  %v2320 = vunpack.c.l.b16 %v1945
  %v2321 = vunpack.c.h.b16 %v1945
  %v2322 = vunpack.c.l.b16 %v1946
  %v2323 = vunpack.c.l.b16 %v1947
  %v2324 = vunpack.c.h.b16 %v1947
  %v2325 = vunpack.c.l.b16 %v1948
  %v2326 = vunpack.c.h.b16 %v1948
  %v2327 = vunpack.c.l.b16 %v1949
  %v2328 = vunpack.c.l.b16 %v1950
  %v2329 = vunpack.c.h.b16 %v1950
  %v2330 = vunpack.c.l.b16 %v1951
  %v2331 = vunpack.c.h.b16 %v1951
  %v2332 = vunpack.c.l.b16 %v1952
  %v2333 = vunpack.c.l.b16 %v1953
  %v2334 = vunpack.c.h.b16 %v1953
  %v2335 = vunpack.c.l.b16 %v1954
  %v2336 = vunpack.c.h.b16 %v1954
  %v2337 = vunpack.c.l.b16 %v1955
  %v2338 = vunpack.c.l.b16 %v1956
  %v2339 = vunpack.c.h.b16 %v1956
  %v2340 = vunpack.c.l.b16 %v1957
  %v2341 = vunpack.c.h.b16 %v1957
  %v2342 = vunpack.c.l.b16 %v1958
  %v2343 = vunpack.c.l.b16 %v1959
  %v2344 = vunpack.c.h.b16 %v1959
  %v2345 = vunpack.c.l.b16 %v1960
  %v2346 = vunpack.c.h.b16 %v1960
  %v2347 = vunpack.c.l.b16 %v1961
  %v2348 = vunpack.c.l.b16 %v1962
  %v2349 = vunpack.c.h.b16 %v1962
  %v2350 = vunpack.c.l.b16 %v1963
  %v2351 = vunpack.c.h.b16 %v1963
  %v2352 = vunpack.c.l.b16 %v1964
  %v2353 = vunpack.c.l.b16 %v1965
  %v2354 = vunpack.c.h.b16 %v1965
  %v2355 = vunpack.c.l.b16 %v1966
  %v2356 = vunpack.c.h.b16 %v1966
  %v2357 = vunpack.c.l.b16 %v1967
  %v2358 = vunpack.c.l.b16 %v1968
  %v2359 = vunpack.c.h.b16 %v1968
  %v2360 = vunpack.c.l.b16 %v1969
  %v2361 = vunpack.c.h.b16 %v1969
  %v2362 = vunpack.c.l.b16 %v1970
  %v2363 = vunpack.c.l.b16 %v1971
  %v2364 = vunpack.c.h.b16 %v1971
  %v2365 = vunpack.c.l.b16 %v1972
  %v2366 = vunpack.c.h.b16 %v1972
  %v2367 = vunpack.c.l.b16 %v1973
  %v2368 = vunpack.c.l.b16 %v1974
  %v2369 = vunpack.c.h.b16 %v1974
  %v2370 = vunpack.c.l.b16 %v1975
  %v2371 = vunpack.c.h.b16 %v1975
  %v2372 = vunpack.c.l.b16 %v1976
  %v2373 = vunpack.c.l.b16 %v1977
  %v2374 = vunpack.c.h.b16 %v1977
  %v2375 = vunpack.c.l.b16 %v1978
  %v2376 = vunpack.c.h.b16 %v1978
  %v2377 = vunpack.c.l.b16 %v1979
  %v2378 = vunpack.c.l.b16 %v1980
  %v2379 = vunpack.c.h.b16 %v1980
  %v2380 = vunpack.c.l.b16 %v1981
  %v2381 = vunpack.c.h.b16 %v1981
  %v2382 = vunpack.c.l.b16 %v1982
  %v2383 = vpack.c.b16 %v2138, %v2133
  %v2384 = vpack.c.b16 %v2139, %v2134
  %v2385 = vpack.c.b16 %v2140, %v2135
  %v2386 = vpack.c.b16 %v2141, %v2136
  %v2387 = vpack.c.b16 %v2142, %v2137
  %v2388 = vpack.c.b16 %v2148, %v2143
  %v2389 = vpack.c.b16 %v2149, %v2144
  %v2390 = vpack.c.b16 %v2150, %v2145
  %v2391 = vpack.c.b16 %v2151, %v2146
  %v2392 = vpack.c.b16 %v2152, %v2147
  %v2393 = vpack.c.b16 %v2158, %v2153
  %v2394 = vpack.c.b16 %v2159, %v2154
  %v2395 = vpack.c.b16 %v2160, %v2155
  %v2396 = vpack.c.b16 %v2161, %v2156
  %v2397 = vpack.c.b16 %v2162, %v2157
  %v2398 = vpack.c.b16 %v2168, %v2163
  %v2399 = vpack.c.b16 %v2169, %v2164
  %v2400 = vpack.c.b16 %v2170, %v2165
  %v2401 = vpack.c.b16 %v2171, %v2166
  %v2402 = vpack.c.b16 %v2172, %v2167
  %v2403 = vpack.c.b16 %v2178, %v2173
  %v2404 = vpack.c.b16 %v2179, %v2174
  %v2405 = vpack.c.b16 %v2180, %v2175
  %v2406 = vpack.c.b16 %v2181, %v2176
  %v2407 = vpack.c.b16 %v2182, %v2177
  %v2408 = vpack.c.b16 %v2188, %v2183
  %v2409 = vpack.c.b16 %v2189, %v2184
  %v2410 = vpack.c.b16 %v2190, %v2185
  %v2411 = vpack.c.b16 %v2191, %v2186
  %v2412 = vpack.c.b16 %v2192, %v2187
  %v2413 = vpack.c.b16 %v2198, %v2193
  %v2414 = vpack.c.b16 %v2199, %v2194
  %v2415 = vpack.c.b16 %v2200, %v2195
  %v2416 = vpack.c.b16 %v2201, %v2196
  %v2417 = vpack.c.b16 %v2202, %v2197
  %v2418 = vpack.c.b16 %v2208, %v2203
  %v2419 = vpack.c.b16 %v2209, %v2204
  %v2420 = vpack.c.b16 %v2210, %v2205
  %v2421 = vpack.c.b16 %v2211, %v2206
  %v2422 = vpack.c.b16 %v2212, %v2207
  %v2423 = vpack.c.b16 %v2218, %v2213
  %v2424 = vpack.c.b16 %v2219, %v2214
  %v2425 = vpack.c.b16 %v2220, %v2215
  %v2426 = vpack.c.b16 %v2221, %v2216
  %v2427 = vpack.c.b16 %v2222, %v2217
  %v2428 = vpack.c.b16 %v2228, %v2223
  %v2429 = vpack.c.b16 %v2229, %v2224
  %v2430 = vpack.c.b16 %v2230, %v2225
  %v2431 = vpack.c.b16 %v2231, %v2226
  %v2432 = vpack.c.b16 %v2232, %v2227
  %v2433 = vpack.c.b16 %v2238, %v2233
  %v2434 = vpack.c.b16 %v2239, %v2234
  %v2435 = vpack.c.b16 %v2240, %v2235
  %v2436 = vpack.c.b16 %v2241, %v2236
  %v2437 = vpack.c.b16 %v2242, %v2237
  %v2438 = vpack.c.b16 %v2248, %v2243
  %v2439 = vpack.c.b16 %v2249, %v2244
  %v2440 = vpack.c.b16 %v2250, %v2245
  %v2441 = vpack.c.b16 %v2251, %v2246
  %v2442 = vpack.c.b16 %v2252, %v2247
  %v2443 = vpack.c.b16 %v2258, %v2253
  %v2444 = vpack.c.b16 %v2259, %v2254
  %v2445 = vpack.c.b16 %v2260, %v2255
  %v2446 = vpack.c.b16 %v2261, %v2256
  %v2447 = vpack.c.b16 %v2262, %v2257
  %v2448 = vpack.c.b16 %v2268, %v2263
  %v2449 = vpack.c.b16 %v2269, %v2264
  %v2450 = vpack.c.b16 %v2270, %v2265
  %v2451 = vpack.c.b16 %v2271, %v2266
  %v2452 = vpack.c.b16 %v2272, %v2267
  %v2453 = vpack.c.b16 %v2278, %v2273
  %v2454 = vpack.c.b16 %v2279, %v2274
  %v2455 = vpack.c.b16 %v2280, %v2275
  %v2456 = vpack.c.b16 %v2281, %v2276
  %v2457 = vpack.c.b16 %v2282, %v2277
  %v2458 = vpack.c.b16 %v2288, %v2283
  %v2459 = vpack.c.b16 %v2289, %v2284
  %v2460 = vpack.c.b16 %v2290, %v2285
  %v2461 = vpack.c.b16 %v2291, %v2286
  %v2462 = vpack.c.b16 %v2292, %v2287
  %v2463 = vpack.c.b16 %v2298, %v2293
  %v2464 = vpack.c.b16 %v2299, %v2294
  %v2465 = vpack.c.b16 %v2300, %v2295
  %v2466 = vpack.c.b16 %v2301, %v2296
  %v2467 = vpack.c.b16 %v2302, %v2297
  %v2468 = vpack.c.b16 %v2308, %v2303
  %v2469 = vpack.c.b16 %v2309, %v2304
  %v2470 = vpack.c.b16 %v2310, %v2305
  %v2471 = vpack.c.b16 %v2311, %v2306
  %v2472 = vpack.c.b16 %v2312, %v2307
  %v2473 = vpack.c.b16 %v2318, %v2313
  %v2474 = vpack.c.b16 %v2319, %v2314
  %v2475 = vpack.c.b16 %v2320, %v2315
  %v2476 = vpack.c.b16 %v2321, %v2316
  %v2477 = vpack.c.b16 %v2322, %v2317
  %v2478 = vpack.c.b16 %v2328, %v2323
  %v2479 = vpack.c.b16 %v2329, %v2324
  %v2480 = vpack.c.b16 %v2330, %v2325
  %v2481 = vpack.c.b16 %v2331, %v2326
  %v2482 = vpack.c.b16 %v2332, %v2327
  %v2483 = vpack.c.b16 %v2338, %v2333
  %v2484 = vpack.c.b16 %v2339, %v2334
  %v2485 = vpack.c.b16 %v2340, %v2335
  %v2486 = vpack.c.b16 %v2341, %v2336
  %v2487 = vpack.c.b16 %v2342, %v2337
  %v2488 = vpack.c.b16 %v2348, %v2343
  %v2489 = vpack.c.b16 %v2349, %v2344
  %v2490 = vpack.c.b16 %v2350, %v2345
  %v2491 = vpack.c.b16 %v2351, %v2346
  %v2492 = vpack.c.b16 %v2352, %v2347
  %v2493 = vpack.c.b16 %v2358, %v2353
  %v2494 = vpack.c.b16 %v2359, %v2354
  %v2495 = vpack.c.b16 %v2360, %v2355
  %v2496 = vpack.c.b16 %v2361, %v2356
  %v2497 = vpack.c.b16 %v2362, %v2357
  %v2498 = vpack.c.b16 %v2368, %v2363
  %v2499 = vpack.c.b16 %v2369, %v2364
  %v2500 = vpack.c.b16 %v2370, %v2365
  %v2501 = vpack.c.b16 %v2371, %v2366
  %v2502 = vpack.c.b16 %v2372, %v2367
  %v2503 = vpack.c.b16 %v2378, %v2373
  %v2504 = vpack.c.b16 %v2379, %v2374
  %v2505 = vpack.c.b16 %v2380, %v2375
  %v2506 = vpack.c.b16 %v2381, %v2376
  %v2507 = vpack.c.b16 %v2382, %v2377
  %v2609 = vsel %vm1087, %v2387, 0
  %v2612 = vsel %vm1087, %v2392, 0
  %v2615 = vsel %vm1087, %v2397, 0
  %v2618 = vsel %vm1087, %v2402, 0
  %v2621 = vsel %vm1087, %v2407, 0
  %v2624 = vsel %vm1087, %v2412, 0
  %v2627 = vsel %vm1087, %v2417, 0
  %v2630 = vsel %vm1087, %v2422, 0
  %v2633 = vsel %vm1087, %v2427, 0
  %v2636 = vsel %vm1087, %v2432, 0
  %v2639 = vsel %vm1087, %v2437, 0
  %v2642 = vsel %vm1087, %v2442, 0
  %v2645 = vsel %vm1087, %v2447, 0
  %v2648 = vsel %vm1087, %v2452, 0
  %v2651 = vsel %vm1087, %v2457, 0
  %v2654 = vsel %vm1087, %v2462, 0
  %v2657 = vsel %vm1087, %v2467, 0
  %v2660 = vsel %vm1087, %v2472, 0
  %v2663 = vsel %vm1087, %v2477, 0
  %v2666 = vsel %vm1087, %v2482, 0
  %v2669 = vsel %vm1087, %v2487, 0
  %v2672 = vsel %vm1087, %v2492, 0
  %v2675 = vsel %vm1087, %v2497, 0
  %v2678 = vsel %vm1087, %v2502, 0
  %v2681 = vsel %vm1087, %v2507, 0
  %2683 = vmatpush.bf16.msra.mxu0 %v1022
  %2684 = vmatpush.bf16.msra.mxu0 %v1021
  %2685 = vmatpush.bf16.msra.mxu0 %v1020
  %2686 = vmatpush.bf16.msra.mxu0 %v1019
  %2687 = vmatpush.bf16.msra.mxu0 %v1018
  %2688 = vmatpush.bf16.msra.mxu0 %v1017
  %2689 = vmatpush.bf16.msra.mxu0 %v1016
  %2690 = vmatpush.bf16.msra.mxu0 %v1015
  %2691 = vmatmul.bf16.gmra.mxu0 %v2383
  %v2692 = vpop.f32.mrf.mxu0
  %v2693 = vadd.f32 0.0, %v2692
  %v2694 = vpop.f32.mrf.mxu0
  %v2695 = vadd.f32 0.0, %v2694
  %2696 = vmatmul.bf16.gmra.mxu0 %v2388
  %v2697 = vpop.f32.mrf.mxu0
  %v2698 = vadd.f32 0.0, %v2697
  %v2699 = vpop.f32.mrf.mxu0
  %v2700 = vadd.f32 0.0, %v2699
  %2701 = vmatmul.bf16.gmra.mxu0 %v2393
  %v2702 = vpop.f32.mrf.mxu0
  %v2703 = vadd.f32 0.0, %v2702
  %v2704 = vpop.f32.mrf.mxu0
  %v2705 = vadd.f32 0.0, %v2704
  %2706 = vmatmul.bf16.gmra.mxu0 %v2398
  %v2707 = vpop.f32.mrf.mxu0
  %v2708 = vadd.f32 0.0, %v2707
  %v2709 = vpop.f32.mrf.mxu0
  %v2710 = vadd.f32 0.0, %v2709
  %2711 = vmatmul.bf16.gmra.mxu0 %v2403
  %v2712 = vpop.f32.mrf.mxu0
  %v2713 = vadd.f32 0.0, %v2712
  %v2714 = vpop.f32.mrf.mxu0
  %v2715 = vadd.f32 0.0, %v2714
  %2716 = vmatmul.bf16.gmra.mxu0 %v2408
  %v2717 = vpop.f32.mrf.mxu0
  %v2718 = vadd.f32 0.0, %v2717
  %v2719 = vpop.f32.mrf.mxu0
  %v2720 = vadd.f32 0.0, %v2719
  %2721 = vmatmul.bf16.gmra.mxu0 %v2413
  %v2722 = vpop.f32.mrf.mxu0
  %v2723 = vadd.f32 0.0, %v2722
  %v2724 = vpop.f32.mrf.mxu0
  %v2725 = vadd.f32 0.0, %v2724
  %2726 = vmatmul.bf16.gmra.mxu0 %v2418
  %v2727 = vpop.f32.mrf.mxu0
  %v2728 = vadd.f32 0.0, %v2727
  %v2729 = vpop.f32.mrf.mxu0
  %v2730 = vadd.f32 0.0, %v2729
  %2731 = vmatmul.bf16.gmra.mxu0 %v2423
  %v2732 = vpop.f32.mrf.mxu0
  %v2733 = vadd.f32 0.0, %v2732
  %v2734 = vpop.f32.mrf.mxu0
  %v2735 = vadd.f32 0.0, %v2734
  %2736 = vmatmul.bf16.gmra.mxu0 %v2428
  %v2737 = vpop.f32.mrf.mxu0
  %v2738 = vadd.f32 0.0, %v2737
  %v2739 = vpop.f32.mrf.mxu0
  %v2740 = vadd.f32 0.0, %v2739
  %2741 = vmatmul.bf16.gmra.mxu0 %v2433
  %v2742 = vpop.f32.mrf.mxu0
  %v2743 = vadd.f32 0.0, %v2742
  %v2744 = vpop.f32.mrf.mxu0
  %v2745 = vadd.f32 0.0, %v2744
  %2746 = vmatmul.bf16.gmra.mxu0 %v2438
  %v2747 = vpop.f32.mrf.mxu0
  %v2748 = vadd.f32 0.0, %v2747
  %v2749 = vpop.f32.mrf.mxu0
  %v2750 = vadd.f32 0.0, %v2749
  %2751 = vmatmul.bf16.gmra.mxu0 %v2443
  %v2752 = vpop.f32.mrf.mxu0
  %v2753 = vadd.f32 0.0, %v2752
  %v2754 = vpop.f32.mrf.mxu0
  %v2755 = vadd.f32 0.0, %v2754
  %2756 = vmatmul.bf16.gmra.mxu0 %v2448
  %v2757 = vpop.f32.mrf.mxu0
  %v2758 = vadd.f32 0.0, %v2757
  %v2759 = vpop.f32.mrf.mxu0
  %v2760 = vadd.f32 0.0, %v2759
  %2761 = vmatmul.bf16.gmra.mxu0 %v2453
  %v2762 = vpop.f32.mrf.mxu0
  %v2763 = vadd.f32 0.0, %v2762
  %v2764 = vpop.f32.mrf.mxu0
  %v2765 = vadd.f32 0.0, %v2764
  %2766 = vmatmul.bf16.gmra.mxu0 %v2458
  %v2767 = vpop.f32.mrf.mxu0
  %v2768 = vadd.f32 0.0, %v2767
  %v2769 = vpop.f32.mrf.mxu0
  %v2770 = vadd.f32 0.0, %v2769
  %2771 = vmatmul.bf16.gmra.mxu0 %v2463
  %v2772 = vpop.f32.mrf.mxu0
  %v2773 = vadd.f32 0.0, %v2772
  %v2774 = vpop.f32.mrf.mxu0
  %v2775 = vadd.f32 0.0, %v2774
  %2776 = vmatmul.bf16.gmra.mxu0 %v2468
  %v2777 = vpop.f32.mrf.mxu0
  %v2778 = vadd.f32 0.0, %v2777
  %v2779 = vpop.f32.mrf.mxu0
  %v2780 = vadd.f32 0.0, %v2779
  %2781 = vmatmul.bf16.gmra.mxu0 %v2473
  %v2782 = vpop.f32.mrf.mxu0
  %v2783 = vadd.f32 0.0, %v2782
  %v2784 = vpop.f32.mrf.mxu0
  %v2785 = vadd.f32 0.0, %v2784
  %2786 = vmatmul.bf16.gmra.mxu0 %v2478
  %v2787 = vpop.f32.mrf.mxu0
  %v2788 = vadd.f32 0.0, %v2787
  %v2789 = vpop.f32.mrf.mxu0
  %v2790 = vadd.f32 0.0, %v2789
  %2791 = vmatmul.bf16.gmra.mxu0 %v2483
  %v2792 = vpop.f32.mrf.mxu0
  %v2793 = vadd.f32 0.0, %v2792
  %v2794 = vpop.f32.mrf.mxu0
  %v2795 = vadd.f32 0.0, %v2794
  %2796 = vmatmul.bf16.gmra.mxu0 %v2488
  %v2797 = vpop.f32.mrf.mxu0
  %v2798 = vadd.f32 0.0, %v2797
  %v2799 = vpop.f32.mrf.mxu0
  %v2800 = vadd.f32 0.0, %v2799
  %2801 = vmatmul.bf16.gmra.mxu0 %v2493
  %v2802 = vpop.f32.mrf.mxu0
  %v2803 = vadd.f32 0.0, %v2802
  %v2804 = vpop.f32.mrf.mxu0
  %v2805 = vadd.f32 0.0, %v2804
  %2806 = vmatmul.bf16.gmra.mxu0 %v2498
  %v2807 = vpop.f32.mrf.mxu0
  %v2808 = vadd.f32 0.0, %v2807
  %v2809 = vpop.f32.mrf.mxu0
  %v2810 = vadd.f32 0.0, %v2809
  %2811 = vmatmul.bf16.gmra.mxu0 %v2503
  %v2812 = vpop.f32.mrf.mxu0
  %v2813 = vadd.f32 0.0, %v2812
  %v2814 = vpop.f32.mrf.mxu0
  %v2815 = vadd.f32 0.0, %v2814
  %2816 = vdwg.mxu0
  %2817 = vmatpush.bf16.msra.mxu0 %v1030
  %2818 = vmatpush.bf16.msra.mxu0 %v1029
  %2819 = vmatpush.bf16.msra.mxu0 %v1028
  %2820 = vmatpush.bf16.msra.mxu0 %v1027
  %2821 = vmatpush.bf16.msra.mxu0 %v1026
  %2822 = vmatpush.bf16.msra.mxu0 %v1025
  %2823 = vmatpush.bf16.msra.mxu0 %v1024
  %2824 = vmatpush.bf16.msra.mxu0 %v1023
  %2825 = vmatmul.bf16.gmra.mxu0 %v2384
  %v2826 = vpop.f32.mrf.mxu0
  %v2827 = vadd.f32 %v2693, %v2826
  %v2828 = vpop.f32.mrf.mxu0
  %v2829 = vadd.f32 %v2695, %v2828
  %2830 = vmatmul.bf16.gmra.mxu0 %v2389
  %v2831 = vpop.f32.mrf.mxu0
  %v2832 = vadd.f32 %v2698, %v2831
  %v2833 = vpop.f32.mrf.mxu0
  %v2834 = vadd.f32 %v2700, %v2833
  %2835 = vmatmul.bf16.gmra.mxu0 %v2394
  %v2836 = vpop.f32.mrf.mxu0
  %v2837 = vadd.f32 %v2703, %v2836
  %v2838 = vpop.f32.mrf.mxu0
  %v2839 = vadd.f32 %v2705, %v2838
  %2840 = vmatmul.bf16.gmra.mxu0 %v2399
  %v2841 = vpop.f32.mrf.mxu0
  %v2842 = vadd.f32 %v2708, %v2841
  %v2843 = vpop.f32.mrf.mxu0
  %v2844 = vadd.f32 %v2710, %v2843
  %2845 = vmatmul.bf16.gmra.mxu0 %v2404
  %v2846 = vpop.f32.mrf.mxu0
  %v2847 = vadd.f32 %v2713, %v2846
  %v2848 = vpop.f32.mrf.mxu0
  %v2849 = vadd.f32 %v2715, %v2848
  %2850 = vmatmul.bf16.gmra.mxu0 %v2409
  %v2851 = vpop.f32.mrf.mxu0
  %v2852 = vadd.f32 %v2718, %v2851
  %v2853 = vpop.f32.mrf.mxu0
  %v2854 = vadd.f32 %v2720, %v2853
  %2855 = vmatmul.bf16.gmra.mxu0 %v2414
  %v2856 = vpop.f32.mrf.mxu0
  %v2857 = vadd.f32 %v2723, %v2856
  %v2858 = vpop.f32.mrf.mxu0
  %v2859 = vadd.f32 %v2725, %v2858
  %2860 = vmatmul.bf16.gmra.mxu0 %v2419
  %v2861 = vpop.f32.mrf.mxu0
  %v2862 = vadd.f32 %v2728, %v2861
  %v2863 = vpop.f32.mrf.mxu0
  %v2864 = vadd.f32 %v2730, %v2863
  %2865 = vmatmul.bf16.gmra.mxu0 %v2424
  %v2866 = vpop.f32.mrf.mxu0
  %v2867 = vadd.f32 %v2733, %v2866
  %v2868 = vpop.f32.mrf.mxu0
  %v2869 = vadd.f32 %v2735, %v2868
  %2870 = vmatmul.bf16.gmra.mxu0 %v2429
  %v2871 = vpop.f32.mrf.mxu0
  %v2872 = vadd.f32 %v2738, %v2871
  %v2873 = vpop.f32.mrf.mxu0
  %v2874 = vadd.f32 %v2740, %v2873
  %2875 = vmatmul.bf16.gmra.mxu0 %v2434
  %v2876 = vpop.f32.mrf.mxu0
  %v2877 = vadd.f32 %v2743, %v2876
  %v2878 = vpop.f32.mrf.mxu0
  %v2879 = vadd.f32 %v2745, %v2878
  %2880 = vmatmul.bf16.gmra.mxu0 %v2439
  %v2881 = vpop.f32.mrf.mxu0
  %v2882 = vadd.f32 %v2748, %v2881
  %v2883 = vpop.f32.mrf.mxu0
  %v2884 = vadd.f32 %v2750, %v2883
  %2885 = vmatmul.bf16.gmra.mxu0 %v2444
  %v2886 = vpop.f32.mrf.mxu0
  %v2887 = vadd.f32 %v2753, %v2886
  %v2888 = vpop.f32.mrf.mxu0
  %v2889 = vadd.f32 %v2755, %v2888
  %2890 = vmatmul.bf16.gmra.mxu0 %v2449
  %v2891 = vpop.f32.mrf.mxu0
  %v2892 = vadd.f32 %v2758, %v2891
  %v2893 = vpop.f32.mrf.mxu0
  %v2894 = vadd.f32 %v2760, %v2893
  %2895 = vmatmul.bf16.gmra.mxu0 %v2454
  %v2896 = vpop.f32.mrf.mxu0
  %v2897 = vadd.f32 %v2763, %v2896
  %v2898 = vpop.f32.mrf.mxu0
  %v2899 = vadd.f32 %v2765, %v2898
  %2900 = vmatmul.bf16.gmra.mxu0 %v2459
  %v2901 = vpop.f32.mrf.mxu0
  %v2902 = vadd.f32 %v2768, %v2901
  %v2903 = vpop.f32.mrf.mxu0
  %v2904 = vadd.f32 %v2770, %v2903
  %2905 = vmatmul.bf16.gmra.mxu0 %v2464
  %v2906 = vpop.f32.mrf.mxu0
  %v2907 = vadd.f32 %v2773, %v2906
  %v2908 = vpop.f32.mrf.mxu0
  %v2909 = vadd.f32 %v2775, %v2908
  %2910 = vmatmul.bf16.gmra.mxu0 %v2469
  %v2911 = vpop.f32.mrf.mxu0
  %v2912 = vadd.f32 %v2778, %v2911
  %v2913 = vpop.f32.mrf.mxu0
  %v2914 = vadd.f32 %v2780, %v2913
  %2915 = vmatmul.bf16.gmra.mxu0 %v2474
  %v2916 = vpop.f32.mrf.mxu0
  %v2917 = vadd.f32 %v2783, %v2916
  %v2918 = vpop.f32.mrf.mxu0
  %v2919 = vadd.f32 %v2785, %v2918
  %2920 = vmatmul.bf16.gmra.mxu0 %v2479
  %v2921 = vpop.f32.mrf.mxu0
  %v2922 = vadd.f32 %v2788, %v2921
  %v2923 = vpop.f32.mrf.mxu0
  %v2924 = vadd.f32 %v2790, %v2923
  %2925 = vmatmul.bf16.gmra.mxu0 %v2484
  %v2926 = vpop.f32.mrf.mxu0
  %v2927 = vadd.f32 %v2793, %v2926
  %v2928 = vpop.f32.mrf.mxu0
  %v2929 = vadd.f32 %v2795, %v2928
  %2930 = vmatmul.bf16.gmra.mxu0 %v2489
  %v2931 = vpop.f32.mrf.mxu0
  %v2932 = vadd.f32 %v2798, %v2931
  %v2933 = vpop.f32.mrf.mxu0
  %v2934 = vadd.f32 %v2800, %v2933
  %2935 = vmatmul.bf16.gmra.mxu0 %v2494
  %v2936 = vpop.f32.mrf.mxu0
  %v2937 = vadd.f32 %v2803, %v2936
  %v2938 = vpop.f32.mrf.mxu0
  %v2939 = vadd.f32 %v2805, %v2938
  %2940 = vmatmul.bf16.gmra.mxu0 %v2499
  %v2941 = vpop.f32.mrf.mxu0
  %v2942 = vadd.f32 %v2808, %v2941
  %v2943 = vpop.f32.mrf.mxu0
  %v2944 = vadd.f32 %v2810, %v2943
  %2945 = vmatmul.bf16.gmra.mxu0 %v2504
  %v2946 = vpop.f32.mrf.mxu0
  %v2947 = vadd.f32 %v2813, %v2946
  %v2948 = vpop.f32.mrf.mxu0
  %v2949 = vadd.f32 %v2815, %v2948
  %2950 = vdwg.mxu0
  %2951 = vmatpush.bf16.msra.mxu0 %v1038
  %2952 = vmatpush.bf16.msra.mxu0 %v1037
  %2953 = vmatpush.bf16.msra.mxu0 %v1036
  %2954 = vmatpush.bf16.msra.mxu0 %v1035
  %2955 = vmatpush.bf16.msra.mxu0 %v1034
  %2956 = vmatpush.bf16.msra.mxu0 %v1033
  %2957 = vmatpush.bf16.msra.mxu0 %v1032
  %2958 = vmatpush.bf16.msra.mxu0 %v1031
  %2959 = vmatmul.bf16.gmra.mxu0 %v2385
  %v2960 = vpop.f32.mrf.mxu0
  %v2961 = vadd.f32 %v2827, %v2960
  %v2962 = vpop.f32.mrf.mxu0
  %v2963 = vadd.f32 %v2829, %v2962
  %2964 = vmatmul.bf16.gmra.mxu0 %v2390
  %v2965 = vpop.f32.mrf.mxu0
  %v2966 = vadd.f32 %v2832, %v2965
  %v2967 = vpop.f32.mrf.mxu0
  %v2968 = vadd.f32 %v2834, %v2967
  %2969 = vmatmul.bf16.gmra.mxu0 %v2395
  %v2970 = vpop.f32.mrf.mxu0
  %v2971 = vadd.f32 %v2837, %v2970
  %v2972 = vpop.f32.mrf.mxu0
  %v2973 = vadd.f32 %v2839, %v2972
  %2974 = vmatmul.bf16.gmra.mxu0 %v2400
  %v2975 = vpop.f32.mrf.mxu0
  %v2976 = vadd.f32 %v2842, %v2975
  %v2977 = vpop.f32.mrf.mxu0
  %v2978 = vadd.f32 %v2844, %v2977
  %2979 = vmatmul.bf16.gmra.mxu0 %v2405
  %v2980 = vpop.f32.mrf.mxu0
  %v2981 = vadd.f32 %v2847, %v2980
  %v2982 = vpop.f32.mrf.mxu0
  %v2983 = vadd.f32 %v2849, %v2982
  %2984 = vmatmul.bf16.gmra.mxu0 %v2410
  %v2985 = vpop.f32.mrf.mxu0
  %v2986 = vadd.f32 %v2852, %v2985
  %v2987 = vpop.f32.mrf.mxu0
  %v2988 = vadd.f32 %v2854, %v2987
  %2989 = vmatmul.bf16.gmra.mxu0 %v2415
  %v2990 = vpop.f32.mrf.mxu0
  %v2991 = vadd.f32 %v2857, %v2990
  %v2992 = vpop.f32.mrf.mxu0
  %v2993 = vadd.f32 %v2859, %v2992
  %2994 = vmatmul.bf16.gmra.mxu0 %v2420
  %v2995 = vpop.f32.mrf.mxu0
  %v2996 = vadd.f32 %v2862, %v2995
  %v2997 = vpop.f32.mrf.mxu0
  %v2998 = vadd.f32 %v2864, %v2997
  %2999 = vmatmul.bf16.gmra.mxu0 %v2425
  %v3000 = vpop.f32.mrf.mxu0
  %v3001 = vadd.f32 %v2867, %v3000
  %v3002 = vpop.f32.mrf.mxu0
  %v3003 = vadd.f32 %v2869, %v3002
  %3004 = vmatmul.bf16.gmra.mxu0 %v2430
  %v3005 = vpop.f32.mrf.mxu0
  %v3006 = vadd.f32 %v2872, %v3005
  %v3007 = vpop.f32.mrf.mxu0
  %v3008 = vadd.f32 %v2874, %v3007
  %3009 = vmatmul.bf16.gmra.mxu0 %v2435
  %v3010 = vpop.f32.mrf.mxu0
  %v3011 = vadd.f32 %v2877, %v3010
  %v3012 = vpop.f32.mrf.mxu0
  %v3013 = vadd.f32 %v2879, %v3012
  %3014 = vmatmul.bf16.gmra.mxu0 %v2440
  %v3015 = vpop.f32.mrf.mxu0
  %v3016 = vadd.f32 %v2882, %v3015
  %v3017 = vpop.f32.mrf.mxu0
  %v3018 = vadd.f32 %v2884, %v3017
  %3019 = vmatmul.bf16.gmra.mxu0 %v2445
  %v3020 = vpop.f32.mrf.mxu0
  %v3021 = vadd.f32 %v2887, %v3020
  %v3022 = vpop.f32.mrf.mxu0
  %v3023 = vadd.f32 %v2889, %v3022
  %3024 = vmatmul.bf16.gmra.mxu0 %v2450
  %v3025 = vpop.f32.mrf.mxu0
  %v3026 = vadd.f32 %v2892, %v3025
  %v3027 = vpop.f32.mrf.mxu0
  %v3028 = vadd.f32 %v2894, %v3027
  %3029 = vmatmul.bf16.gmra.mxu0 %v2455
  %v3030 = vpop.f32.mrf.mxu0
  %v3031 = vadd.f32 %v2897, %v3030
  %v3032 = vpop.f32.mrf.mxu0
  %v3033 = vadd.f32 %v2899, %v3032
  %3034 = vmatmul.bf16.gmra.mxu0 %v2460
  %v3035 = vpop.f32.mrf.mxu0
  %v3036 = vadd.f32 %v2902, %v3035
  %v3037 = vpop.f32.mrf.mxu0
  %v3038 = vadd.f32 %v2904, %v3037
  %3039 = vmatmul.bf16.gmra.mxu0 %v2465
  %v3040 = vpop.f32.mrf.mxu0
  %v3041 = vadd.f32 %v2907, %v3040
  %v3042 = vpop.f32.mrf.mxu0
  %v3043 = vadd.f32 %v2909, %v3042
  %3044 = vmatmul.bf16.gmra.mxu0 %v2470
  %v3045 = vpop.f32.mrf.mxu0
  %v3046 = vadd.f32 %v2912, %v3045
  %v3047 = vpop.f32.mrf.mxu0
  %v3048 = vadd.f32 %v2914, %v3047
  %3049 = vmatmul.bf16.gmra.mxu0 %v2475
  %v3050 = vpop.f32.mrf.mxu0
  %v3051 = vadd.f32 %v2917, %v3050
  %v3052 = vpop.f32.mrf.mxu0
  %v3053 = vadd.f32 %v2919, %v3052
  %3054 = vmatmul.bf16.gmra.mxu0 %v2480
  %v3055 = vpop.f32.mrf.mxu0
  %v3056 = vadd.f32 %v2922, %v3055
  %v3057 = vpop.f32.mrf.mxu0
  %v3058 = vadd.f32 %v2924, %v3057
  %3059 = vmatmul.bf16.gmra.mxu0 %v2485
  %v3060 = vpop.f32.mrf.mxu0
  %v3061 = vadd.f32 %v2927, %v3060
  %v3062 = vpop.f32.mrf.mxu0
  %v3063 = vadd.f32 %v2929, %v3062
  %3064 = vmatmul.bf16.gmra.mxu0 %v2490
  %v3065 = vpop.f32.mrf.mxu0
  %v3066 = vadd.f32 %v2932, %v3065
  %v3067 = vpop.f32.mrf.mxu0
  %v3068 = vadd.f32 %v2934, %v3067
  %3069 = vmatmul.bf16.gmra.mxu0 %v2495
  %v3070 = vpop.f32.mrf.mxu0
  %v3071 = vadd.f32 %v2937, %v3070
  %v3072 = vpop.f32.mrf.mxu0
  %v3073 = vadd.f32 %v2939, %v3072
  %3074 = vmatmul.bf16.gmra.mxu0 %v2500
  %v3075 = vpop.f32.mrf.mxu0
  %v3076 = vadd.f32 %v2942, %v3075
  %v3077 = vpop.f32.mrf.mxu0
  %v3078 = vadd.f32 %v2944, %v3077
  %3079 = vmatmul.bf16.gmra.mxu0 %v2505
  %v3080 = vpop.f32.mrf.mxu0
  %v3081 = vadd.f32 %v2947, %v3080
  %v3082 = vpop.f32.mrf.mxu0
  %v3083 = vadd.f32 %v2949, %v3082
  %3084 = vdwg.mxu0
  %3085 = vmatpush.bf16.msra.mxu0 %v1046
  %3086 = vmatpush.bf16.msra.mxu0 %v1045
  %3087 = vmatpush.bf16.msra.mxu0 %v1044
  %3088 = vmatpush.bf16.msra.mxu0 %v1043
  %3089 = vmatpush.bf16.msra.mxu0 %v1042
  %3090 = vmatpush.bf16.msra.mxu0 %v1041
  %3091 = vmatpush.bf16.msra.mxu0 %v1040
  %3092 = vmatpush.bf16.msra.mxu0 %v1039
  %3093 = vmatmul.bf16.gmra.mxu0 %v2386
  %v3094 = vpop.f32.mrf.mxu0
  %v3095 = vadd.f32 %v2961, %v3094
  %v3096 = vpop.f32.mrf.mxu0
  %v3097 = vadd.f32 %v2963, %v3096
  %3098 = vmatmul.bf16.gmra.mxu0 %v2391
  %v3099 = vpop.f32.mrf.mxu0
  %v3100 = vadd.f32 %v2966, %v3099
  %v3101 = vpop.f32.mrf.mxu0
  %v3102 = vadd.f32 %v2968, %v3101
  %3103 = vmatmul.bf16.gmra.mxu0 %v2396
  %v3104 = vpop.f32.mrf.mxu0
  %v3105 = vadd.f32 %v2971, %v3104
  %v3106 = vpop.f32.mrf.mxu0
  %v3107 = vadd.f32 %v2973, %v3106
  %3108 = vmatmul.bf16.gmra.mxu0 %v2401
  %v3109 = vpop.f32.mrf.mxu0
  %v3110 = vadd.f32 %v2976, %v3109
  %v3111 = vpop.f32.mrf.mxu0
  %v3112 = vadd.f32 %v2978, %v3111
  %3113 = vmatmul.bf16.gmra.mxu0 %v2406
  %v3114 = vpop.f32.mrf.mxu0
  %v3115 = vadd.f32 %v2981, %v3114
  %v3116 = vpop.f32.mrf.mxu0
  %v3117 = vadd.f32 %v2983, %v3116
  %3118 = vmatmul.bf16.gmra.mxu0 %v2411
  %v3119 = vpop.f32.mrf.mxu0
  %v3120 = vadd.f32 %v2986, %v3119
  %v3121 = vpop.f32.mrf.mxu0
  %v3122 = vadd.f32 %v2988, %v3121
  %3123 = vmatmul.bf16.gmra.mxu0 %v2416
  %v3124 = vpop.f32.mrf.mxu0
  %v3125 = vadd.f32 %v2991, %v3124
  %v3126 = vpop.f32.mrf.mxu0
  %v3127 = vadd.f32 %v2993, %v3126
  %3128 = vmatmul.bf16.gmra.mxu0 %v2421
  %v3129 = vpop.f32.mrf.mxu0
  %v3130 = vadd.f32 %v2996, %v3129
  %v3131 = vpop.f32.mrf.mxu0
  %v3132 = vadd.f32 %v2998, %v3131
  %3133 = vmatmul.bf16.gmra.mxu0 %v2426
  %v3134 = vpop.f32.mrf.mxu0
  %v3135 = vadd.f32 %v3001, %v3134
  %v3136 = vpop.f32.mrf.mxu0
  %v3137 = vadd.f32 %v3003, %v3136
  %3138 = vmatmul.bf16.gmra.mxu0 %v2431
  %v3139 = vpop.f32.mrf.mxu0
  %v3140 = vadd.f32 %v3006, %v3139
  %v3141 = vpop.f32.mrf.mxu0
  %v3142 = vadd.f32 %v3008, %v3141
  %3143 = vmatmul.bf16.gmra.mxu0 %v2436
  %v3144 = vpop.f32.mrf.mxu0
  %v3145 = vadd.f32 %v3011, %v3144
  %v3146 = vpop.f32.mrf.mxu0
  %v3147 = vadd.f32 %v3013, %v3146
  %3148 = vmatmul.bf16.gmra.mxu0 %v2441
  %v3149 = vpop.f32.mrf.mxu0
  %v3150 = vadd.f32 %v3016, %v3149
  %v3151 = vpop.f32.mrf.mxu0
  %v3152 = vadd.f32 %v3018, %v3151
  %3153 = vmatmul.bf16.gmra.mxu0 %v2446
  %v3154 = vpop.f32.mrf.mxu0
  %v3155 = vadd.f32 %v3021, %v3154
  %v3156 = vpop.f32.mrf.mxu0
  %v3157 = vadd.f32 %v3023, %v3156
  %3158 = vmatmul.bf16.gmra.mxu0 %v2451
  %v3159 = vpop.f32.mrf.mxu0
  %v3160 = vadd.f32 %v3026, %v3159
  %v3161 = vpop.f32.mrf.mxu0
  %v3162 = vadd.f32 %v3028, %v3161
  %3163 = vmatmul.bf16.gmra.mxu0 %v2456
  %v3164 = vpop.f32.mrf.mxu0
  %v3165 = vadd.f32 %v3031, %v3164
  %v3166 = vpop.f32.mrf.mxu0
  %v3167 = vadd.f32 %v3033, %v3166
  %3168 = vmatmul.bf16.gmra.mxu0 %v2461
  %v3169 = vpop.f32.mrf.mxu0
  %v3170 = vadd.f32 %v3036, %v3169
  %v3171 = vpop.f32.mrf.mxu0
  %v3172 = vadd.f32 %v3038, %v3171
  %3173 = vmatmul.bf16.gmra.mxu0 %v2466
  %v3174 = vpop.f32.mrf.mxu0
  %v3175 = vadd.f32 %v3041, %v3174
  %v3176 = vpop.f32.mrf.mxu0
  %v3177 = vadd.f32 %v3043, %v3176
  %3178 = vmatmul.bf16.gmra.mxu0 %v2471
  %v3179 = vpop.f32.mrf.mxu0
  %v3180 = vadd.f32 %v3046, %v3179
  %v3181 = vpop.f32.mrf.mxu0
  %v3182 = vadd.f32 %v3048, %v3181
  %3183 = vmatmul.bf16.gmra.mxu0 %v2476
  %v3184 = vpop.f32.mrf.mxu0
  %v3185 = vadd.f32 %v3051, %v3184
  %v3186 = vpop.f32.mrf.mxu0
  %v3187 = vadd.f32 %v3053, %v3186
  %3188 = vmatmul.bf16.gmra.mxu0 %v2481
  %v3189 = vpop.f32.mrf.mxu0
  %v3190 = vadd.f32 %v3056, %v3189
  %v3191 = vpop.f32.mrf.mxu0
  %v3192 = vadd.f32 %v3058, %v3191
  %3193 = vmatmul.bf16.gmra.mxu0 %v2486
  %v3194 = vpop.f32.mrf.mxu0
  %v3195 = vadd.f32 %v3061, %v3194
  %v3196 = vpop.f32.mrf.mxu0
  %v3197 = vadd.f32 %v3063, %v3196
  %3198 = vmatmul.bf16.gmra.mxu0 %v2491
  %v3199 = vpop.f32.mrf.mxu0
  %v3200 = vadd.f32 %v3066, %v3199
  %v3201 = vpop.f32.mrf.mxu0
  %v3202 = vadd.f32 %v3068, %v3201
  %3203 = vmatmul.bf16.gmra.mxu0 %v2496
  %v3204 = vpop.f32.mrf.mxu0
  %v3205 = vadd.f32 %v3071, %v3204
  %v3206 = vpop.f32.mrf.mxu0
  %v3207 = vadd.f32 %v3073, %v3206
  %3208 = vmatmul.bf16.gmra.mxu0 %v2501
  %v3209 = vpop.f32.mrf.mxu0
  %v3210 = vadd.f32 %v3076, %v3209
  %v3211 = vpop.f32.mrf.mxu0
  %v3212 = vadd.f32 %v3078, %v3211
  %3213 = vmatmul.bf16.gmra.mxu0 %v2506
  %v3214 = vpop.f32.mrf.mxu0
  %v3215 = vadd.f32 %v3081, %v3214
  %v3216 = vpop.f32.mrf.mxu0
  %v3217 = vadd.f32 %v3083, %v3216
  %3218 = vdwg.mxu0
  %3219 = vmatpush.bf16.msra.mxu0 0
  %3220 = vmatpush.bf16.msra.mxu0 0
  %3221 = vmatpush.bf16.msra.mxu0 0
  %3222 = vmatpush.bf16.msra.mxu0 0
  %3223 = vmatpush.bf16.msra.mxu0 %v1050
  %3224 = vmatpush.bf16.msra.mxu0 %v1049
  %3225 = vmatpush.bf16.msra.mxu0 %v1048
  %3226 = vmatpush.bf16.msra.mxu0 %v1047
  %3227 = vmatmul.bf16.gmra.mxu0 %v2609
  %v3228 = vpop.f32.mrf.mxu0
  %v3229 = vadd.f32 %v3095, %v3228
  %v3230 = vpop.f32.mrf.mxu0
  %v3231 = vadd.f32 %v3097, %v3230
  %3232 = vmatmul.bf16.gmra.mxu0 %v2612
  %v3233 = vpop.f32.mrf.mxu0
  %v3234 = vadd.f32 %v3100, %v3233
  %v3235 = vpop.f32.mrf.mxu0
  %v3236 = vadd.f32 %v3102, %v3235
  %3237 = vmatmul.bf16.gmra.mxu0 %v2615
  %v3238 = vpop.f32.mrf.mxu0
  %v3239 = vadd.f32 %v3105, %v3238
  %v3240 = vpop.f32.mrf.mxu0
  %v3241 = vadd.f32 %v3107, %v3240
  %3242 = vmatmul.bf16.gmra.mxu0 %v2618
  %v3243 = vpop.f32.mrf.mxu0
  %v3244 = vadd.f32 %v3110, %v3243
  %v3245 = vpop.f32.mrf.mxu0
  %v3246 = vadd.f32 %v3112, %v3245
  %3247 = vmatmul.bf16.gmra.mxu0 %v2621
  %v3248 = vpop.f32.mrf.mxu0
  %v3249 = vadd.f32 %v3115, %v3248
  %v3250 = vpop.f32.mrf.mxu0
  %v3251 = vadd.f32 %v3117, %v3250
  %3252 = vmatmul.bf16.gmra.mxu0 %v2624
  %v3253 = vpop.f32.mrf.mxu0
  %v3254 = vadd.f32 %v3120, %v3253
  %v3255 = vpop.f32.mrf.mxu0
  %v3256 = vadd.f32 %v3122, %v3255
  %3257 = vmatmul.bf16.gmra.mxu0 %v2627
  %v3258 = vpop.f32.mrf.mxu0
  %v3259 = vadd.f32 %v3125, %v3258
  %v3260 = vpop.f32.mrf.mxu0
  %v3261 = vadd.f32 %v3127, %v3260
  %3262 = vmatmul.bf16.gmra.mxu0 %v2630
  %v3263 = vpop.f32.mrf.mxu0
  %v3264 = vadd.f32 %v3130, %v3263
  %v3265 = vpop.f32.mrf.mxu0
  %v3266 = vadd.f32 %v3132, %v3265
  %3267 = vmatmul.bf16.gmra.mxu0 %v2633
  %v3268 = vpop.f32.mrf.mxu0
  %v3269 = vadd.f32 %v3135, %v3268
  %v3270 = vpop.f32.mrf.mxu0
  %v3271 = vadd.f32 %v3137, %v3270
  %3272 = vmatmul.bf16.gmra.mxu0 %v2636
  %v3273 = vpop.f32.mrf.mxu0
  %v3274 = vadd.f32 %v3140, %v3273
  %v3275 = vpop.f32.mrf.mxu0
  %v3276 = vadd.f32 %v3142, %v3275
  %3277 = vmatmul.bf16.gmra.mxu0 %v2639
  %v3278 = vpop.f32.mrf.mxu0
  %v3279 = vadd.f32 %v3145, %v3278
  %v3280 = vpop.f32.mrf.mxu0
  %v3281 = vadd.f32 %v3147, %v3280
  %3282 = vmatmul.bf16.gmra.mxu0 %v2642
  %v3283 = vpop.f32.mrf.mxu0
  %v3284 = vadd.f32 %v3150, %v3283
  %v3285 = vpop.f32.mrf.mxu0
  %v3286 = vadd.f32 %v3152, %v3285
  %3287 = vmatmul.bf16.gmra.mxu0 %v2645
  %v3288 = vpop.f32.mrf.mxu0
  %v3289 = vadd.f32 %v3155, %v3288
  %v3290 = vpop.f32.mrf.mxu0
  %v3291 = vadd.f32 %v3157, %v3290
  %3292 = vmatmul.bf16.gmra.mxu0 %v2648
  %v3293 = vpop.f32.mrf.mxu0
  %v3294 = vadd.f32 %v3160, %v3293
  %v3295 = vpop.f32.mrf.mxu0
  %v3296 = vadd.f32 %v3162, %v3295
  %3297 = vmatmul.bf16.gmra.mxu0 %v2651
  %v3298 = vpop.f32.mrf.mxu0
  %v3299 = vadd.f32 %v3165, %v3298
  %v3300 = vpop.f32.mrf.mxu0
  %v3301 = vadd.f32 %v3167, %v3300
  %3302 = vmatmul.bf16.gmra.mxu0 %v2654
  %v3303 = vpop.f32.mrf.mxu0
  %v3304 = vadd.f32 %v3170, %v3303
  %v3305 = vpop.f32.mrf.mxu0
  %v3306 = vadd.f32 %v3172, %v3305
  %3307 = vmatmul.bf16.gmra.mxu0 %v2657
  %v3308 = vpop.f32.mrf.mxu0
  %v3309 = vadd.f32 %v3175, %v3308
  %v3310 = vpop.f32.mrf.mxu0
  %v3311 = vadd.f32 %v3177, %v3310
  %3312 = vmatmul.bf16.gmra.mxu0 %v2660
  %v3313 = vpop.f32.mrf.mxu0
  %v3314 = vadd.f32 %v3180, %v3313
  %v3315 = vpop.f32.mrf.mxu0
  %v3316 = vadd.f32 %v3182, %v3315
  %3317 = vmatmul.bf16.gmra.mxu0 %v2663
  %v3318 = vpop.f32.mrf.mxu0
  %v3319 = vadd.f32 %v3185, %v3318
  %v3320 = vpop.f32.mrf.mxu0
  %v3321 = vadd.f32 %v3187, %v3320
  %3322 = vmatmul.bf16.gmra.mxu0 %v2666
  %v3323 = vpop.f32.mrf.mxu0
  %v3324 = vadd.f32 %v3190, %v3323
  %v3325 = vpop.f32.mrf.mxu0
  %v3326 = vadd.f32 %v3192, %v3325
  %3327 = vmatmul.bf16.gmra.mxu0 %v2669
  %v3328 = vpop.f32.mrf.mxu0
  %v3329 = vadd.f32 %v3195, %v3328
  %v3330 = vpop.f32.mrf.mxu0
  %v3331 = vadd.f32 %v3197, %v3330
  %3332 = vmatmul.bf16.gmra.mxu0 %v2672
  %v3333 = vpop.f32.mrf.mxu0
  %v3334 = vadd.f32 %v3200, %v3333
  %v3335 = vpop.f32.mrf.mxu0
  %v3336 = vadd.f32 %v3202, %v3335
  %3337 = vmatmul.bf16.gmra.mxu0 %v2675
  %v3338 = vpop.f32.mrf.mxu0
  %v3339 = vadd.f32 %v3205, %v3338
  %v3340 = vpop.f32.mrf.mxu0
  %v3341 = vadd.f32 %v3207, %v3340
  %3342 = vmatmul.bf16.gmra.mxu0 %v2678
  %v3343 = vpop.f32.mrf.mxu0
  %v3344 = vadd.f32 %v3210, %v3343
  %v3345 = vpop.f32.mrf.mxu0
  %v3346 = vadd.f32 %v3212, %v3345
  %3347 = vmatmul.bf16.gmra.mxu0 %v2681
  %v3348 = vpop.f32.mrf.mxu0
  %v3349 = vadd.f32 %v3215, %v3348
  %v3350 = vpop.f32.mrf.mxu0
  %v3351 = vadd.f32 %v3217, %v3350
  %3352 = vdwg.mxu0
  %v3353 = vmax.f32 %v1709, %v3229
  %v3354 = vmax.f32 %v1711, %v3231
  %v3355 = vmax.f32 %v1714, %v3234
  %v3356 = vmax.f32 %v1716, %v3236
  %v3357 = vmax.f32 %v1719, %v3239
  %v3358 = vmax.f32 %v1721, %v3241
  %v3359 = vmax.f32 %v1724, %v3244
  %v3360 = vmax.f32 %v1726, %v3246
  %v3361 = vmax.f32 %v1729, %v3249
  %v3362 = vmax.f32 %v1731, %v3251
  %v3363 = vmax.f32 %v1734, %v3254
  %v3364 = vmax.f32 %v1736, %v3256
  %v3365 = vmax.f32 %v1739, %v3259
  %v3366 = vmax.f32 %v1741, %v3261
  %v3367 = vmax.f32 %v1744, %v3264
  %v3368 = vmax.f32 %v1746, %v3266
  %v3369 = vmax.f32 %v1749, %v3269
  %v3370 = vmax.f32 %v1751, %v3271
  %v3371 = vmax.f32 %v1754, %v3274
  %v3372 = vmax.f32 %v1756, %v3276
  %v3373 = vmax.f32 %v1759, %v3279
  %v3374 = vmax.f32 %v1761, %v3281
  %v3375 = vmax.f32 %v1764, %v3284
  %v3376 = vmax.f32 %v1766, %v3286
  %v3377 = vmax.f32 %v1769, %v3289
  %v3378 = vmax.f32 %v1771, %v3291
  %v3379 = vmax.f32 %v1774, %v3294
  %v3380 = vmax.f32 %v1776, %v3296
  %v3381 = vmax.f32 %v1779, %v3299
  %v3382 = vmax.f32 %v1781, %v3301
  %v3383 = vmax.f32 %v1784, %v3304
  %v3384 = vmax.f32 %v1786, %v3306
  %v3385 = vmax.f32 %v1789, %v3309
  %v3386 = vmax.f32 %v1791, %v3311
  %v3387 = vmax.f32 %v1794, %v3314
  %v3388 = vmax.f32 %v1796, %v3316
  %v3389 = vmax.f32 %v1799, %v3319
  %v3390 = vmax.f32 %v1801, %v3321
  %v3391 = vmax.f32 %v1804, %v3324
  %v3392 = vmax.f32 %v1806, %v3326
  %v3393 = vmax.f32 %v1809, %v3329
  %v3394 = vmax.f32 %v1811, %v3331
  %v3395 = vmax.f32 %v1814, %v3334
  %v3396 = vmax.f32 %v1816, %v3336
  %v3397 = vmax.f32 %v1819, %v3339
  %v3398 = vmax.f32 %v1821, %v3341
  %v3399 = vmax.f32 %v1824, %v3344
  %v3400 = vmax.f32 %v1826, %v3346
  %v3401 = vmax.f32 %v1829, %v3349
  %v3402 = vmax.f32 %v1831, %v3351
  %v3403 = vld [vmem:[%s2] sm:$0xff]
  %v3404 = vld [vmem:[%s2 + $0x8] sm:$0xff]
  %v3405 = vld [vmem:[%s2 + $0x10] sm:$0xf]
  %v3406 = vld [vmem:[%s2 + $0x14] sm:$0xff]
  %v3407 = vld [vmem:[%s2 + $0x1c] sm:$0xff]
  %v3408 = vld [vmem:[%s2 + $0x24] sm:$0xf]
  %v3409 = vld [vmem:[%s2 + $0x28] sm:$0xff]
  %v3410 = vld [vmem:[%s2 + $0x30] sm:$0xff]
  %v3411 = vld [vmem:[%s2 + $0x38] sm:$0xf]
  %v3412 = vld [vmem:[%s2 + $0x3c] sm:$0xff]
  %v3413 = vld [vmem:[%s2 + $0x44] sm:$0xff]
  %v3414 = vld [vmem:[%s2 + $0x4c] sm:$0xf]
  %v3415 = vld [vmem:[%s2 + $0x50] sm:$0xff]
  %v3416 = vld [vmem:[%s2 + $0x58] sm:$0xff]
  %v3417 = vld [vmem:[%s2 + $0x60] sm:$0xf]
  %v3418 = vld [vmem:[%s2 + $0x64] sm:$0xff]
  %v3419 = vld [vmem:[%s2 + $0x6c] sm:$0xff]
  %v3420 = vld [vmem:[%s2 + $0x74] sm:$0xf]
  %v3421 = vld [vmem:[%s2 + $0x78] sm:$0xff]
  %v3422 = vld [vmem:[%s2 + $0x80] sm:$0xff]
  %v3423 = vld [vmem:[%s2 + $0x88] sm:$0xf]
  %v3424 = vld [vmem:[%s2 + $0x8c] sm:$0xff]
  %v3425 = vld [vmem:[%s2 + $0x94] sm:$0xff]
  %v3426 = vld [vmem:[%s2 + $0x9c] sm:$0xf]
  %v3427 = vld [vmem:[%s2 + $0xa0] sm:$0xff]
  %v3428 = vld [vmem:[%s2 + $0xa8] sm:$0xff]
  %v3429 = vld [vmem:[%s2 + $0xb0] sm:$0xf]
  %v3430 = vld [vmem:[%s2 + $0xb4] sm:$0xff]
  %v3431 = vld [vmem:[%s2 + $0xbc] sm:$0xff]
  %v3432 = vld [vmem:[%s2 + $0xc4] sm:$0xf]
  %v3433 = vld [vmem:[%s2 + $0xc8] sm:$0xff]
  %v3434 = vld [vmem:[%s2 + $0xd0] sm:$0xff]
  %v3435 = vld [vmem:[%s2 + $0xd8] sm:$0xf]
  %v3436 = vld [vmem:[%s2 + $0xdc] sm:$0xff]
  %v3437 = vld [vmem:[%s2 + $0xe4] sm:$0xff]
  %v3438 = vld [vmem:[%s2 + $0xec] sm:$0xf]
  %v3439 = vld [vmem:[%s2 + $0xf0] sm:$0xff]
  %v3440 = vld [vmem:[%s2 + $0xf8] sm:$0xff]
  %v3441 = vld [vmem:[%s2 + $0x100] sm:$0xf]
  %v3442 = vld [vmem:[%s2 + $0x104] sm:$0xff]
  %v3443 = vld [vmem:[%s2 + $0x10c] sm:$0xff]
  %v3444 = vld [vmem:[%s2 + $0x114] sm:$0xf]
  %v3445 = vld [vmem:[%s2 + $0x118] sm:$0xff]
  %v3446 = vld [vmem:[%s2 + $0x120] sm:$0xff]
  %v3447 = vld [vmem:[%s2 + $0x128] sm:$0xf]
  %v3448 = vld [vmem:[%s2 + $0x12c] sm:$0xff]
  %v3449 = vld [vmem:[%s2 + $0x134] sm:$0xff]
  %v3450 = vld [vmem:[%s2 + $0x13c] sm:$0xf]
  %v3451 = vld [vmem:[%s2 + $0x140] sm:$0xff]
  %v3452 = vld [vmem:[%s2 + $0x148] sm:$0xff]
  %v3453 = vld [vmem:[%s2 + $0x150] sm:$0xf]
  %v3454 = vld [vmem:[%s2 + $0x154] sm:$0xff]
  %v3455 = vld [vmem:[%s2 + $0x15c] sm:$0xff]
  %v3456 = vld [vmem:[%s2 + $0x164] sm:$0xf]
  %v3457 = vld [vmem:[%s2 + $0x168] sm:$0xff]
  %v3458 = vld [vmem:[%s2 + $0x170] sm:$0xff]
  %v3459 = vld [vmem:[%s2 + $0x178] sm:$0xf]
  %v3460 = vld [vmem:[%s2 + $0x17c] sm:$0xff]
  %v3461 = vld [vmem:[%s2 + $0x184] sm:$0xff]
  %v3462 = vld [vmem:[%s2 + $0x18c] sm:$0xf]
  %v3463 = vld [vmem:[%s2 + $0x190] sm:$0xff]
  %v3464 = vld [vmem:[%s2 + $0x198] sm:$0xff]
  %v3465 = vld [vmem:[%s2 + $0x1a0] sm:$0xf]
  %v3466 = vld [vmem:[%s2 + $0x1a4] sm:$0xff]
  %v3467 = vld [vmem:[%s2 + $0x1ac] sm:$0xff]
  %v3468 = vld [vmem:[%s2 + $0x1b4] sm:$0xf]
  %v3469 = vld [vmem:[%s2 + $0x1b8] sm:$0xff]
  %v3470 = vld [vmem:[%s2 + $0x1c0] sm:$0xff]
  %v3471 = vld [vmem:[%s2 + $0x1c8] sm:$0xf]
  %v3472 = vld [vmem:[%s2 + $0x1cc] sm:$0xff]
  %v3473 = vld [vmem:[%s2 + $0x1d4] sm:$0xff]
  %v3474 = vld [vmem:[%s2 + $0x1dc] sm:$0xf]
  %v3475 = vld [vmem:[%s2 + $0x1e0] sm:$0xff]
  %v3476 = vld [vmem:[%s2 + $0x1e8] sm:$0xff]
  %v3477 = vld [vmem:[%s2 + $0x1f0] sm:$0xf]
  %v3478 = vld [vmem:[%s2 + $0x1f4] sm:$0xff]
  %v3479 = vld [vmem:[%s2 + $0x1fc] sm:$0xff]
  %v3480 = vld [vmem:[%s2 + $0x204] sm:$0xf]
  %v3481 = vld [vmem:[%s2 + $0x208] sm:$0xff]
  %v3482 = vld [vmem:[%s2 + $0x210] sm:$0xff]
  %v3483 = vld [vmem:[%s2 + $0x218] sm:$0xf]
  %v3484 = vld [vmem:[%s2 + $0x21c] sm:$0xff]
  %v3485 = vld [vmem:[%s2 + $0x224] sm:$0xff]
  %v3486 = vld [vmem:[%s2 + $0x22c] sm:$0xf]
  %v3487 = vld [vmem:[%s2 + $0x230] sm:$0xff]
  %v3488 = vld [vmem:[%s2 + $0x238] sm:$0xff]
  %v3489 = vld [vmem:[%s2 + $0x240] sm:$0xf]
  %v3490 = vld [vmem:[%s2 + $0x244] sm:$0xff]
  %v3491 = vld [vmem:[%s2 + $0x24c] sm:$0xff]
  %v3492 = vld [vmem:[%s2 + $0x254] sm:$0xf]
  %v3493 = vld [vmem:[%s2 + $0x258] sm:$0xff]
  %v3494 = vld [vmem:[%s2 + $0x260] sm:$0xff]
  %v3495 = vld [vmem:[%s2 + $0x268] sm:$0xf]
  %v3496 = vld [vmem:[%s2 + $0x26c] sm:$0xff]
  %v3497 = vld [vmem:[%s2 + $0x274] sm:$0xff]
  %v3498 = vld [vmem:[%s2 + $0x27c] sm:$0xf]
  %v3499 = vld [vmem:[%s2 + $0x280] sm:$0xff]
  %v3500 = vld [vmem:[%s2 + $0x288] sm:$0xff]
  %v3501 = vld [vmem:[%s2 + $0x290] sm:$0xf]
  %v3502 = vld [vmem:[%s2 + $0x294] sm:$0xff]
  %v3503 = vld [vmem:[%s2 + $0x29c] sm:$0xff]
  %v3504 = vld [vmem:[%s2 + $0x2a4] sm:$0xf]
  %v3505 = vld [vmem:[%s2 + $0x2a8] sm:$0xff]
  %v3506 = vld [vmem:[%s2 + $0x2b0] sm:$0xff]
  %v3507 = vld [vmem:[%s2 + $0x2b8] sm:$0xf]
  %v3508 = vld [vmem:[%s2 + $0x2bc] sm:$0xff]
  %v3509 = vld [vmem:[%s2 + $0x2c4] sm:$0xff]
  %v3510 = vld [vmem:[%s2 + $0x2cc] sm:$0xf]
  %v3511 = vld [vmem:[%s2 + $0x2d0] sm:$0xff]
  %v3512 = vld [vmem:[%s2 + $0x2d8] sm:$0xff]
  %v3513 = vld [vmem:[%s2 + $0x2e0] sm:$0xf]
  %v3514 = vld [vmem:[%s2 + $0x2e4] sm:$0xff]
  %v3515 = vld [vmem:[%s2 + $0x2ec] sm:$0xff]
  %v3516 = vld [vmem:[%s2 + $0x2f4] sm:$0xf]
  %v3517 = vld [vmem:[%s2 + $0x2f8] sm:$0xff]
  %v3518 = vld [vmem:[%s2 + $0x300] sm:$0xff]
  %v3519 = vld [vmem:[%s2 + $0x308] sm:$0xf]
  %v3520 = vld [vmem:[%s2 + $0x30c] sm:$0xff]
  %v3521 = vld [vmem:[%s2 + $0x314] sm:$0xff]
  %v3522 = vld [vmem:[%s2 + $0x31c] sm:$0xf]
  %v3523 = vld [vmem:[%s2 + $0x320] sm:$0xff]
  %v3524 = vld [vmem:[%s2 + $0x328] sm:$0xff]
  %v3525 = vld [vmem:[%s2 + $0x330] sm:$0xf]
  %v3526 = vld [vmem:[%s2 + $0x334] sm:$0xff]
  %v3527 = vld [vmem:[%s2 + $0x33c] sm:$0xff]
  %v3528 = vld [vmem:[%s2 + $0x344] sm:$0xf]
  %v3529 = vld [vmem:[%s2 + $0x348] sm:$0xff]
  %v3530 = vld [vmem:[%s2 + $0x350] sm:$0xff]
  %v3531 = vld [vmem:[%s2 + $0x358] sm:$0xf]
  %v3532 = vld [vmem:[%s2 + $0x35c] sm:$0xff]
  %v3533 = vld [vmem:[%s2 + $0x364] sm:$0xff]
  %v3534 = vld [vmem:[%s2 + $0x36c] sm:$0xf]
  %v3535 = vld [vmem:[%s2 + $0x370] sm:$0xff]
  %v3536 = vld [vmem:[%s2 + $0x378] sm:$0xff]
  %v3537 = vld [vmem:[%s2 + $0x380] sm:$0xf]
  %v3538 = vld [vmem:[%s2 + $0x384] sm:$0xff]
  %v3539 = vld [vmem:[%s2 + $0x38c] sm:$0xff]
  %v3540 = vld [vmem:[%s2 + $0x394] sm:$0xf]
  %v3541 = vld [vmem:[%s2 + $0x398] sm:$0xff]
  %v3542 = vld [vmem:[%s2 + $0x3a0] sm:$0xff]
  %v3543 = vld [vmem:[%s2 + $0x3a8] sm:$0xf]
  %v3544 = vld [vmem:[%s2 + $0x3ac] sm:$0xff]
  %v3545 = vld [vmem:[%s2 + $0x3b4] sm:$0xff]
  %v3546 = vld [vmem:[%s2 + $0x3bc] sm:$0xf]
  %v3547 = vld [vmem:[%s2 + $0x3c0] sm:$0xff]
  %v3548 = vld [vmem:[%s2 + $0x3c8] sm:$0xff]
  %v3549 = vld [vmem:[%s2 + $0x3d0] sm:$0xf]
  %v3550 = vld [vmem:[%s2 + $0x3d4] sm:$0xff]
  %v3551 = vld [vmem:[%s2 + $0x3dc] sm:$0xff]
  %v3552 = vld [vmem:[%s2 + $0x3e4] sm:$0xf]
  %v3703 = vunpack.c.l.b16 %v3403
  %v3704 = vunpack.c.h.b16 %v3403
  %v3705 = vunpack.c.l.b16 %v3404
  %v3706 = vunpack.c.h.b16 %v3404
  %v3707 = vunpack.c.l.b16 %v3405
  %v3708 = vunpack.c.l.b16 %v3406
  %v3709 = vunpack.c.h.b16 %v3406
  %v3710 = vunpack.c.l.b16 %v3407
  %v3711 = vunpack.c.h.b16 %v3407
  %v3712 = vunpack.c.l.b16 %v3408
  %v3713 = vunpack.c.l.b16 %v3409
  %v3714 = vunpack.c.h.b16 %v3409
  %v3715 = vunpack.c.l.b16 %v3410
  %v3716 = vunpack.c.h.b16 %v3410
  %v3717 = vunpack.c.l.b16 %v3411
  %v3718 = vunpack.c.l.b16 %v3412
  %v3719 = vunpack.c.h.b16 %v3412
  %v3720 = vunpack.c.l.b16 %v3413
  %v3721 = vunpack.c.h.b16 %v3413
  %v3722 = vunpack.c.l.b16 %v3414
  %v3723 = vunpack.c.l.b16 %v3415
  %v3724 = vunpack.c.h.b16 %v3415
  %v3725 = vunpack.c.l.b16 %v3416
  %v3726 = vunpack.c.h.b16 %v3416
  %v3727 = vunpack.c.l.b16 %v3417
  %v3728 = vunpack.c.l.b16 %v3418
  %v3729 = vunpack.c.h.b16 %v3418
  %v3730 = vunpack.c.l.b16 %v3419
  %v3731 = vunpack.c.h.b16 %v3419
  %v3732 = vunpack.c.l.b16 %v3420
  %v3733 = vunpack.c.l.b16 %v3421
  %v3734 = vunpack.c.h.b16 %v3421
  %v3735 = vunpack.c.l.b16 %v3422
  %v3736 = vunpack.c.h.b16 %v3422
  %v3737 = vunpack.c.l.b16 %v3423
  %v3738 = vunpack.c.l.b16 %v3424
  %v3739 = vunpack.c.h.b16 %v3424
  %v3740 = vunpack.c.l.b16 %v3425
  %v3741 = vunpack.c.h.b16 %v3425
  %v3742 = vunpack.c.l.b16 %v3426
  %v3743 = vunpack.c.l.b16 %v3427
  %v3744 = vunpack.c.h.b16 %v3427
  %v3745 = vunpack.c.l.b16 %v3428
  %v3746 = vunpack.c.h.b16 %v3428
  %v3747 = vunpack.c.l.b16 %v3429
  %v3748 = vunpack.c.l.b16 %v3430
  %v3749 = vunpack.c.h.b16 %v3430
  %v3750 = vunpack.c.l.b16 %v3431
  %v3751 = vunpack.c.h.b16 %v3431
  %v3752 = vunpack.c.l.b16 %v3432
  %v3753 = vunpack.c.l.b16 %v3433
  %v3754 = vunpack.c.h.b16 %v3433
  %v3755 = vunpack.c.l.b16 %v3434
  %v3756 = vunpack.c.h.b16 %v3434
  %v3757 = vunpack.c.l.b16 %v3435
  %v3758 = vunpack.c.l.b16 %v3436
  %v3759 = vunpack.c.h.b16 %v3436
  %v3760 = vunpack.c.l.b16 %v3437
  %v3761 = vunpack.c.h.b16 %v3437
  %v3762 = vunpack.c.l.b16 %v3438
  %v3763 = vunpack.c.l.b16 %v3439
  %v3764 = vunpack.c.h.b16 %v3439
  %v3765 = vunpack.c.l.b16 %v3440
  %v3766 = vunpack.c.h.b16 %v3440
  %v3767 = vunpack.c.l.b16 %v3441
  %v3768 = vunpack.c.l.b16 %v3442
  %v3769 = vunpack.c.h.b16 %v3442
  %v3770 = vunpack.c.l.b16 %v3443
  %v3771 = vunpack.c.h.b16 %v3443
  %v3772 = vunpack.c.l.b16 %v3444
  %v3773 = vunpack.c.l.b16 %v3445
  %v3774 = vunpack.c.h.b16 %v3445
  %v3775 = vunpack.c.l.b16 %v3446
  %v3776 = vunpack.c.h.b16 %v3446
  %v3777 = vunpack.c.l.b16 %v3447
  %v3778 = vunpack.c.l.b16 %v3448
  %v3779 = vunpack.c.h.b16 %v3448
  %v3780 = vunpack.c.l.b16 %v3449
  %v3781 = vunpack.c.h.b16 %v3449
  %v3782 = vunpack.c.l.b16 %v3450
  %v3783 = vunpack.c.l.b16 %v3451
  %v3784 = vunpack.c.h.b16 %v3451
  %v3785 = vunpack.c.l.b16 %v3452
  %v3786 = vunpack.c.h.b16 %v3452
  %v3787 = vunpack.c.l.b16 %v3453
  %v3788 = vunpack.c.l.b16 %v3454
  %v3789 = vunpack.c.h.b16 %v3454
  %v3790 = vunpack.c.l.b16 %v3455
  %v3791 = vunpack.c.h.b16 %v3455
  %v3792 = vunpack.c.l.b16 %v3456
  %v3793 = vunpack.c.l.b16 %v3457
  %v3794 = vunpack.c.h.b16 %v3457
  %v3795 = vunpack.c.l.b16 %v3458
  %v3796 = vunpack.c.h.b16 %v3458
  %v3797 = vunpack.c.l.b16 %v3459
  %v3798 = vunpack.c.l.b16 %v3460
  %v3799 = vunpack.c.h.b16 %v3460
  %v3800 = vunpack.c.l.b16 %v3461
  %v3801 = vunpack.c.h.b16 %v3461
  %v3802 = vunpack.c.l.b16 %v3462
  %v3803 = vunpack.c.l.b16 %v3463
  %v3804 = vunpack.c.h.b16 %v3463
  %v3805 = vunpack.c.l.b16 %v3464
  %v3806 = vunpack.c.h.b16 %v3464
  %v3807 = vunpack.c.l.b16 %v3465
  %v3808 = vunpack.c.l.b16 %v3466
  %v3809 = vunpack.c.h.b16 %v3466
  %v3810 = vunpack.c.l.b16 %v3467
  %v3811 = vunpack.c.h.b16 %v3467
  %v3812 = vunpack.c.l.b16 %v3468
  %v3813 = vunpack.c.l.b16 %v3469
  %v3814 = vunpack.c.h.b16 %v3469
  %v3815 = vunpack.c.l.b16 %v3470
  %v3816 = vunpack.c.h.b16 %v3470
  %v3817 = vunpack.c.l.b16 %v3471
  %v3818 = vunpack.c.l.b16 %v3472
  %v3819 = vunpack.c.h.b16 %v3472
  %v3820 = vunpack.c.l.b16 %v3473
  %v3821 = vunpack.c.h.b16 %v3473
  %v3822 = vunpack.c.l.b16 %v3474
  %v3823 = vunpack.c.l.b16 %v3475
  %v3824 = vunpack.c.h.b16 %v3475
  %v3825 = vunpack.c.l.b16 %v3476
  %v3826 = vunpack.c.h.b16 %v3476
  %v3827 = vunpack.c.l.b16 %v3477
  %v3828 = vunpack.c.l.b16 %v3478
  %v3829 = vunpack.c.h.b16 %v3478
  %v3830 = vunpack.c.l.b16 %v3479
  %v3831 = vunpack.c.h.b16 %v3479
  %v3832 = vunpack.c.l.b16 %v3480
  %v3833 = vunpack.c.l.b16 %v3481
  %v3834 = vunpack.c.h.b16 %v3481
  %v3835 = vunpack.c.l.b16 %v3482
  %v3836 = vunpack.c.h.b16 %v3482
  %v3837 = vunpack.c.l.b16 %v3483
  %v3838 = vunpack.c.l.b16 %v3484
  %v3839 = vunpack.c.h.b16 %v3484
  %v3840 = vunpack.c.l.b16 %v3485
  %v3841 = vunpack.c.h.b16 %v3485
  %v3842 = vunpack.c.l.b16 %v3486
  %v3843 = vunpack.c.l.b16 %v3487
  %v3844 = vunpack.c.h.b16 %v3487
  %v3845 = vunpack.c.l.b16 %v3488
  %v3846 = vunpack.c.h.b16 %v3488
  %v3847 = vunpack.c.l.b16 %v3489
  %v3848 = vunpack.c.l.b16 %v3490
  %v3849 = vunpack.c.h.b16 %v3490
  %v3850 = vunpack.c.l.b16 %v3491
  %v3851 = vunpack.c.h.b16 %v3491
  %v3852 = vunpack.c.l.b16 %v3492
  %v3853 = vunpack.c.l.b16 %v3493
  %v3854 = vunpack.c.h.b16 %v3493
  %v3855 = vunpack.c.l.b16 %v3494
  %v3856 = vunpack.c.h.b16 %v3494
  %v3857 = vunpack.c.l.b16 %v3495
  %v3858 = vunpack.c.l.b16 %v3496
  %v3859 = vunpack.c.h.b16 %v3496
  %v3860 = vunpack.c.l.b16 %v3497
  %v3861 = vunpack.c.h.b16 %v3497
  %v3862 = vunpack.c.l.b16 %v3498
  %v3863 = vunpack.c.l.b16 %v3499
  %v3864 = vunpack.c.h.b16 %v3499
  %v3865 = vunpack.c.l.b16 %v3500
  %v3866 = vunpack.c.h.b16 %v3500
  %v3867 = vunpack.c.l.b16 %v3501
  %v3868 = vunpack.c.l.b16 %v3502
  %v3869 = vunpack.c.h.b16 %v3502
  %v3870 = vunpack.c.l.b16 %v3503
  %v3871 = vunpack.c.h.b16 %v3503
  %v3872 = vunpack.c.l.b16 %v3504
  %v3873 = vunpack.c.l.b16 %v3505
  %v3874 = vunpack.c.h.b16 %v3505
  %v3875 = vunpack.c.l.b16 %v3506
  %v3876 = vunpack.c.h.b16 %v3506
  %v3877 = vunpack.c.l.b16 %v3507
  %v3878 = vunpack.c.l.b16 %v3508
  %v3879 = vunpack.c.h.b16 %v3508
  %v3880 = vunpack.c.l.b16 %v3509
  %v3881 = vunpack.c.h.b16 %v3509
  %v3882 = vunpack.c.l.b16 %v3510
  %v3883 = vunpack.c.l.b16 %v3511
  %v3884 = vunpack.c.h.b16 %v3511
  %v3885 = vunpack.c.l.b16 %v3512
  %v3886 = vunpack.c.h.b16 %v3512
  %v3887 = vunpack.c.l.b16 %v3513
  %v3888 = vunpack.c.l.b16 %v3514
  %v3889 = vunpack.c.h.b16 %v3514
  %v3890 = vunpack.c.l.b16 %v3515
  %v3891 = vunpack.c.h.b16 %v3515
  %v3892 = vunpack.c.l.b16 %v3516
  %v3893 = vunpack.c.l.b16 %v3517
  %v3894 = vunpack.c.h.b16 %v3517
  %v3895 = vunpack.c.l.b16 %v3518
  %v3896 = vunpack.c.h.b16 %v3518
  %v3897 = vunpack.c.l.b16 %v3519
  %v3898 = vunpack.c.l.b16 %v3520
  %v3899 = vunpack.c.h.b16 %v3520
  %v3900 = vunpack.c.l.b16 %v3521
  %v3901 = vunpack.c.h.b16 %v3521
  %v3902 = vunpack.c.l.b16 %v3522
  %v3903 = vunpack.c.l.b16 %v3523
  %v3904 = vunpack.c.h.b16 %v3523
  %v3905 = vunpack.c.l.b16 %v3524
  %v3906 = vunpack.c.h.b16 %v3524
  %v3907 = vunpack.c.l.b16 %v3525
  %v3908 = vunpack.c.l.b16 %v3526
  %v3909 = vunpack.c.h.b16 %v3526
  %v3910 = vunpack.c.l.b16 %v3527
  %v3911 = vunpack.c.h.b16 %v3527
  %v3912 = vunpack.c.l.b16 %v3528
  %v3913 = vunpack.c.l.b16 %v3529
  %v3914 = vunpack.c.h.b16 %v3529
  %v3915 = vunpack.c.l.b16 %v3530
  %v3916 = vunpack.c.h.b16 %v3530
  %v3917 = vunpack.c.l.b16 %v3531
  %v3918 = vunpack.c.l.b16 %v3532
  %v3919 = vunpack.c.h.b16 %v3532
  %v3920 = vunpack.c.l.b16 %v3533
  %v3921 = vunpack.c.h.b16 %v3533
  %v3922 = vunpack.c.l.b16 %v3534
  %v3923 = vunpack.c.l.b16 %v3535
  %v3924 = vunpack.c.h.b16 %v3535
  %v3925 = vunpack.c.l.b16 %v3536
  %v3926 = vunpack.c.h.b16 %v3536
  %v3927 = vunpack.c.l.b16 %v3537
  %v3928 = vunpack.c.l.b16 %v3538
  %v3929 = vunpack.c.h.b16 %v3538
  %v3930 = vunpack.c.l.b16 %v3539
  %v3931 = vunpack.c.h.b16 %v3539
  %v3932 = vunpack.c.l.b16 %v3540
  %v3933 = vunpack.c.l.b16 %v3541
  %v3934 = vunpack.c.h.b16 %v3541
  %v3935 = vunpack.c.l.b16 %v3542
  %v3936 = vunpack.c.h.b16 %v3542
  %v3937 = vunpack.c.l.b16 %v3543
  %v3938 = vunpack.c.l.b16 %v3544
  %v3939 = vunpack.c.h.b16 %v3544
  %v3940 = vunpack.c.l.b16 %v3545
  %v3941 = vunpack.c.h.b16 %v3545
  %v3942 = vunpack.c.l.b16 %v3546
  %v3943 = vunpack.c.l.b16 %v3547
  %v3944 = vunpack.c.h.b16 %v3547
  %v3945 = vunpack.c.l.b16 %v3548
  %v3946 = vunpack.c.h.b16 %v3548
  %v3947 = vunpack.c.l.b16 %v3549
  %v3948 = vunpack.c.l.b16 %v3550
  %v3949 = vunpack.c.h.b16 %v3550
  %v3950 = vunpack.c.l.b16 %v3551
  %v3951 = vunpack.c.h.b16 %v3551
  %v3952 = vunpack.c.l.b16 %v3552
  %v3953 = vpack.c.b16 %v3708, %v3703
  %v3954 = vpack.c.b16 %v3709, %v3704
  %v3955 = vpack.c.b16 %v3710, %v3705
  %v3956 = vpack.c.b16 %v3711, %v3706
  %v3957 = vpack.c.b16 %v3712, %v3707
  %v3958 = vpack.c.b16 %v3718, %v3713
  %v3959 = vpack.c.b16 %v3719, %v3714
  %v3960 = vpack.c.b16 %v3720, %v3715
  %v3961 = vpack.c.b16 %v3721, %v3716
  %v3962 = vpack.c.b16 %v3722, %v3717
  %v3963 = vpack.c.b16 %v3728, %v3723
  %v3964 = vpack.c.b16 %v3729, %v3724
  %v3965 = vpack.c.b16 %v3730, %v3725
  %v3966 = vpack.c.b16 %v3731, %v3726
  %v3967 = vpack.c.b16 %v3732, %v3727
  %v3968 = vpack.c.b16 %v3738, %v3733
  %v3969 = vpack.c.b16 %v3739, %v3734
  %v3970 = vpack.c.b16 %v3740, %v3735
  %v3971 = vpack.c.b16 %v3741, %v3736
  %v3972 = vpack.c.b16 %v3742, %v3737
  %v3973 = vpack.c.b16 %v3748, %v3743
  %v3974 = vpack.c.b16 %v3749, %v3744
  %v3975 = vpack.c.b16 %v3750, %v3745
  %v3976 = vpack.c.b16 %v3751, %v3746
  %v3977 = vpack.c.b16 %v3752, %v3747
  %v3978 = vpack.c.b16 %v3758, %v3753
  %v3979 = vpack.c.b16 %v3759, %v3754
  %v3980 = vpack.c.b16 %v3760, %v3755
  %v3981 = vpack.c.b16 %v3761, %v3756
  %v3982 = vpack.c.b16 %v3762, %v3757
  %v3983 = vpack.c.b16 %v3768, %v3763
  %v3984 = vpack.c.b16 %v3769, %v3764
  %v3985 = vpack.c.b16 %v3770, %v3765
  %v3986 = vpack.c.b16 %v3771, %v3766
  %v3987 = vpack.c.b16 %v3772, %v3767
  %v3988 = vpack.c.b16 %v3778, %v3773
  %v3989 = vpack.c.b16 %v3779, %v3774
  %v3990 = vpack.c.b16 %v3780, %v3775
  %v3991 = vpack.c.b16 %v3781, %v3776
  %v3992 = vpack.c.b16 %v3782, %v3777
  %v3993 = vpack.c.b16 %v3788, %v3783
  %v3994 = vpack.c.b16 %v3789, %v3784
  %v3995 = vpack.c.b16 %v3790, %v3785
  %v3996 = vpack.c.b16 %v3791, %v3786
  %v3997 = vpack.c.b16 %v3792, %v3787
  %v3998 = vpack.c.b16 %v3798, %v3793
  %v3999 = vpack.c.b16 %v3799, %v3794
  %v4000 = vpack.c.b16 %v3800, %v3795
  %v4001 = vpack.c.b16 %v3801, %v3796
  %v4002 = vpack.c.b16 %v3802, %v3797
  %v4003 = vpack.c.b16 %v3808, %v3803
  %v4004 = vpack.c.b16 %v3809, %v3804
  %v4005 = vpack.c.b16 %v3810, %v3805
  %v4006 = vpack.c.b16 %v3811, %v3806
  %v4007 = vpack.c.b16 %v3812, %v3807
  %v4008 = vpack.c.b16 %v3818, %v3813
  %v4009 = vpack.c.b16 %v3819, %v3814
  %v4010 = vpack.c.b16 %v3820, %v3815
  %v4011 = vpack.c.b16 %v3821, %v3816
  %v4012 = vpack.c.b16 %v3822, %v3817
  %v4013 = vpack.c.b16 %v3828, %v3823
  %v4014 = vpack.c.b16 %v3829, %v3824
  %v4015 = vpack.c.b16 %v3830, %v3825
  %v4016 = vpack.c.b16 %v3831, %v3826
  %v4017 = vpack.c.b16 %v3832, %v3827
  %v4018 = vpack.c.b16 %v3838, %v3833
  %v4019 = vpack.c.b16 %v3839, %v3834
  %v4020 = vpack.c.b16 %v3840, %v3835
  %v4021 = vpack.c.b16 %v3841, %v3836
  %v4022 = vpack.c.b16 %v3842, %v3837
  %v4023 = vpack.c.b16 %v3848, %v3843
  %v4024 = vpack.c.b16 %v3849, %v3844
  %v4025 = vpack.c.b16 %v3850, %v3845
  %v4026 = vpack.c.b16 %v3851, %v3846
  %v4027 = vpack.c.b16 %v3852, %v3847
  %v4028 = vpack.c.b16 %v3858, %v3853
  %v4029 = vpack.c.b16 %v3859, %v3854
  %v4030 = vpack.c.b16 %v3860, %v3855
  %v4031 = vpack.c.b16 %v3861, %v3856
  %v4032 = vpack.c.b16 %v3862, %v3857
  %v4033 = vpack.c.b16 %v3868, %v3863
  %v4034 = vpack.c.b16 %v3869, %v3864
  %v4035 = vpack.c.b16 %v3870, %v3865
  %v4036 = vpack.c.b16 %v3871, %v3866
  %v4037 = vpack.c.b16 %v3872, %v3867
  %v4038 = vpack.c.b16 %v3878, %v3873
  %v4039 = vpack.c.b16 %v3879, %v3874
  %v4040 = vpack.c.b16 %v3880, %v3875
  %v4041 = vpack.c.b16 %v3881, %v3876
  %v4042 = vpack.c.b16 %v3882, %v3877
  %v4043 = vpack.c.b16 %v3888, %v3883
  %v4044 = vpack.c.b16 %v3889, %v3884
  %v4045 = vpack.c.b16 %v3890, %v3885
  %v4046 = vpack.c.b16 %v3891, %v3886
  %v4047 = vpack.c.b16 %v3892, %v3887
  %v4048 = vpack.c.b16 %v3898, %v3893
  %v4049 = vpack.c.b16 %v3899, %v3894
  %v4050 = vpack.c.b16 %v3900, %v3895
  %v4051 = vpack.c.b16 %v3901, %v3896
  %v4052 = vpack.c.b16 %v3902, %v3897
  %v4053 = vpack.c.b16 %v3908, %v3903
  %v4054 = vpack.c.b16 %v3909, %v3904
  %v4055 = vpack.c.b16 %v3910, %v3905
  %v4056 = vpack.c.b16 %v3911, %v3906
  %v4057 = vpack.c.b16 %v3912, %v3907
  %v4058 = vpack.c.b16 %v3918, %v3913
  %v4059 = vpack.c.b16 %v3919, %v3914
  %v4060 = vpack.c.b16 %v3920, %v3915
  %v4061 = vpack.c.b16 %v3921, %v3916
  %v4062 = vpack.c.b16 %v3922, %v3917
  %v4063 = vpack.c.b16 %v3928, %v3923
  %v4064 = vpack.c.b16 %v3929, %v3924
  %v4065 = vpack.c.b16 %v3930, %v3925
  %v4066 = vpack.c.b16 %v3931, %v3926
  %v4067 = vpack.c.b16 %v3932, %v3927
  %v4068 = vpack.c.b16 %v3938, %v3933
  %v4069 = vpack.c.b16 %v3939, %v3934
  %v4070 = vpack.c.b16 %v3940, %v3935
  %v4071 = vpack.c.b16 %v3941, %v3936
  %v4072 = vpack.c.b16 %v3942, %v3937
  %v4073 = vpack.c.b16 %v3948, %v3943
  %v4074 = vpack.c.b16 %v3949, %v3944
  %v4075 = vpack.c.b16 %v3950, %v3945
  %v4076 = vpack.c.b16 %v3951, %v3946
  %v4077 = vpack.c.b16 %v3952, %v3947
  %v4179 = vsel %vm1087, %v3957, 0
  %v4182 = vsel %vm1087, %v3962, 0
  %v4185 = vsel %vm1087, %v3967, 0
  %v4188 = vsel %vm1087, %v3972, 0
  %v4191 = vsel %vm1087, %v3977, 0
  %v4194 = vsel %vm1087, %v3982, 0
  %v4197 = vsel %vm1087, %v3987, 0
  %v4200 = vsel %vm1087, %v3992, 0
  %v4203 = vsel %vm1087, %v3997, 0
  %v4206 = vsel %vm1087, %v4002, 0
  %v4209 = vsel %vm1087, %v4007, 0
  %v4212 = vsel %vm1087, %v4012, 0
  %v4215 = vsel %vm1087, %v4017, 0
  %v4218 = vsel %vm1087, %v4022, 0
  %v4221 = vsel %vm1087, %v4027, 0
  %v4224 = vsel %vm1087, %v4032, 0
  %v4227 = vsel %vm1087, %v4037, 0
  %v4230 = vsel %vm1087, %v4042, 0
  %v4233 = vsel %vm1087, %v4047, 0
  %v4236 = vsel %vm1087, %v4052, 0
  %v4239 = vsel %vm1087, %v4057, 0
  %v4242 = vsel %vm1087, %v4062, 0
  %v4245 = vsel %vm1087, %v4067, 0
  %v4248 = vsel %vm1087, %v4072, 0
  %v4251 = vsel %vm1087, %v4077, 0
  %4253 = vmatpush.bf16.msra.mxu0 %v1022
  %4254 = vmatpush.bf16.msra.mxu0 %v1021
  %4255 = vmatpush.bf16.msra.mxu0 %v1020
  %4256 = vmatpush.bf16.msra.mxu0 %v1019
  %4257 = vmatpush.bf16.msra.mxu0 %v1018
  %4258 = vmatpush.bf16.msra.mxu0 %v1017
  %4259 = vmatpush.bf16.msra.mxu0 %v1016
  %4260 = vmatpush.bf16.msra.mxu0 %v1015
  %4261 = vmatmul.bf16.gmra.mxu0 %v3953
  %v4262 = vpop.f32.mrf.mxu0
  %v4263 = vadd.f32 0.0, %v4262
  %v4264 = vpop.f32.mrf.mxu0
  %v4265 = vadd.f32 0.0, %v4264
  %4266 = vmatmul.bf16.gmra.mxu0 %v3958
  %v4267 = vpop.f32.mrf.mxu0
  %v4268 = vadd.f32 0.0, %v4267
  %v4269 = vpop.f32.mrf.mxu0
  %v4270 = vadd.f32 0.0, %v4269
  %4271 = vmatmul.bf16.gmra.mxu0 %v3963
  %v4272 = vpop.f32.mrf.mxu0
  %v4273 = vadd.f32 0.0, %v4272
  %v4274 = vpop.f32.mrf.mxu0
  %v4275 = vadd.f32 0.0, %v4274
  %4276 = vmatmul.bf16.gmra.mxu0 %v3968
  %v4277 = vpop.f32.mrf.mxu0
  %v4278 = vadd.f32 0.0, %v4277
  %v4279 = vpop.f32.mrf.mxu0
  %v4280 = vadd.f32 0.0, %v4279
  %4281 = vmatmul.bf16.gmra.mxu0 %v3973
  %v4282 = vpop.f32.mrf.mxu0
  %v4283 = vadd.f32 0.0, %v4282
  %v4284 = vpop.f32.mrf.mxu0
  %v4285 = vadd.f32 0.0, %v4284
  %4286 = vmatmul.bf16.gmra.mxu0 %v3978
  %v4287 = vpop.f32.mrf.mxu0
  %v4288 = vadd.f32 0.0, %v4287
  %v4289 = vpop.f32.mrf.mxu0
  %v4290 = vadd.f32 0.0, %v4289
  %4291 = vmatmul.bf16.gmra.mxu0 %v3983
  %v4292 = vpop.f32.mrf.mxu0
  %v4293 = vadd.f32 0.0, %v4292
  %v4294 = vpop.f32.mrf.mxu0
  %v4295 = vadd.f32 0.0, %v4294
  %4296 = vmatmul.bf16.gmra.mxu0 %v3988
  %v4297 = vpop.f32.mrf.mxu0
  %v4298 = vadd.f32 0.0, %v4297
  %v4299 = vpop.f32.mrf.mxu0
  %v4300 = vadd.f32 0.0, %v4299
  %4301 = vmatmul.bf16.gmra.mxu0 %v3993
  %v4302 = vpop.f32.mrf.mxu0
  %v4303 = vadd.f32 0.0, %v4302
  %v4304 = vpop.f32.mrf.mxu0
  %v4305 = vadd.f32 0.0, %v4304
  %4306 = vmatmul.bf16.gmra.mxu0 %v3998
  %v4307 = vpop.f32.mrf.mxu0
  %v4308 = vadd.f32 0.0, %v4307
  %v4309 = vpop.f32.mrf.mxu0
  %v4310 = vadd.f32 0.0, %v4309
  %4311 = vmatmul.bf16.gmra.mxu0 %v4003
  %v4312 = vpop.f32.mrf.mxu0
  %v4313 = vadd.f32 0.0, %v4312
  %v4314 = vpop.f32.mrf.mxu0
  %v4315 = vadd.f32 0.0, %v4314
  %4316 = vmatmul.bf16.gmra.mxu0 %v4008
  %v4317 = vpop.f32.mrf.mxu0
  %v4318 = vadd.f32 0.0, %v4317
  %v4319 = vpop.f32.mrf.mxu0
  %v4320 = vadd.f32 0.0, %v4319
  %4321 = vmatmul.bf16.gmra.mxu0 %v4013
  %v4322 = vpop.f32.mrf.mxu0
  %v4323 = vadd.f32 0.0, %v4322
  %v4324 = vpop.f32.mrf.mxu0
  %v4325 = vadd.f32 0.0, %v4324
  %4326 = vmatmul.bf16.gmra.mxu0 %v4018
  %v4327 = vpop.f32.mrf.mxu0
  %v4328 = vadd.f32 0.0, %v4327
  %v4329 = vpop.f32.mrf.mxu0
  %v4330 = vadd.f32 0.0, %v4329
  %4331 = vmatmul.bf16.gmra.mxu0 %v4023
  %v4332 = vpop.f32.mrf.mxu0
  %v4333 = vadd.f32 0.0, %v4332
  %v4334 = vpop.f32.mrf.mxu0
  %v4335 = vadd.f32 0.0, %v4334
  %4336 = vmatmul.bf16.gmra.mxu0 %v4028
  %v4337 = vpop.f32.mrf.mxu0
  %v4338 = vadd.f32 0.0, %v4337
  %v4339 = vpop.f32.mrf.mxu0
  %v4340 = vadd.f32 0.0, %v4339
  %4341 = vmatmul.bf16.gmra.mxu0 %v4033
  %v4342 = vpop.f32.mrf.mxu0
  %v4343 = vadd.f32 0.0, %v4342
  %v4344 = vpop.f32.mrf.mxu0
  %v4345 = vadd.f32 0.0, %v4344
  %4346 = vmatmul.bf16.gmra.mxu0 %v4038
  %v4347 = vpop.f32.mrf.mxu0
  %v4348 = vadd.f32 0.0, %v4347
  %v4349 = vpop.f32.mrf.mxu0
  %v4350 = vadd.f32 0.0, %v4349
  %4351 = vmatmul.bf16.gmra.mxu0 %v4043
  %v4352 = vpop.f32.mrf.mxu0
  %v4353 = vadd.f32 0.0, %v4352
  %v4354 = vpop.f32.mrf.mxu0
  %v4355 = vadd.f32 0.0, %v4354
  %4356 = vmatmul.bf16.gmra.mxu0 %v4048
  %v4357 = vpop.f32.mrf.mxu0
  %v4358 = vadd.f32 0.0, %v4357
  %v4359 = vpop.f32.mrf.mxu0
  %v4360 = vadd.f32 0.0, %v4359
  %4361 = vmatmul.bf16.gmra.mxu0 %v4053
  %v4362 = vpop.f32.mrf.mxu0
  %v4363 = vadd.f32 0.0, %v4362
  %v4364 = vpop.f32.mrf.mxu0
  %v4365 = vadd.f32 0.0, %v4364
  %4366 = vmatmul.bf16.gmra.mxu0 %v4058
  %v4367 = vpop.f32.mrf.mxu0
  %v4368 = vadd.f32 0.0, %v4367
  %v4369 = vpop.f32.mrf.mxu0
  %v4370 = vadd.f32 0.0, %v4369
  %4371 = vmatmul.bf16.gmra.mxu0 %v4063
  %v4372 = vpop.f32.mrf.mxu0
  %v4373 = vadd.f32 0.0, %v4372
  %v4374 = vpop.f32.mrf.mxu0
  %v4375 = vadd.f32 0.0, %v4374
  %4376 = vmatmul.bf16.gmra.mxu0 %v4068
  %v4377 = vpop.f32.mrf.mxu0
  %v4378 = vadd.f32 0.0, %v4377
  %v4379 = vpop.f32.mrf.mxu0
  %v4380 = vadd.f32 0.0, %v4379
  %4381 = vmatmul.bf16.gmra.mxu0 %v4073
  %v4382 = vpop.f32.mrf.mxu0
  %v4383 = vadd.f32 0.0, %v4382
  %v4384 = vpop.f32.mrf.mxu0
  %v4385 = vadd.f32 0.0, %v4384
  %4386 = vdwg.mxu0
  %4387 = vmatpush.bf16.msra.mxu0 %v1030
  %4388 = vmatpush.bf16.msra.mxu0 %v1029
  %4389 = vmatpush.bf16.msra.mxu0 %v1028
  %4390 = vmatpush.bf16.msra.mxu0 %v1027
  %4391 = vmatpush.bf16.msra.mxu0 %v1026
  %4392 = vmatpush.bf16.msra.mxu0 %v1025
  %4393 = vmatpush.bf16.msra.mxu0 %v1024
  %4394 = vmatpush.bf16.msra.mxu0 %v1023
  %4395 = vmatmul.bf16.gmra.mxu0 %v3954
  %v4396 = vpop.f32.mrf.mxu0
  %v4397 = vadd.f32 %v4263, %v4396
  %v4398 = vpop.f32.mrf.mxu0
  %v4399 = vadd.f32 %v4265, %v4398
  %4400 = vmatmul.bf16.gmra.mxu0 %v3959
  %v4401 = vpop.f32.mrf.mxu0
  %v4402 = vadd.f32 %v4268, %v4401
  %v4403 = vpop.f32.mrf.mxu0
  %v4404 = vadd.f32 %v4270, %v4403
  %4405 = vmatmul.bf16.gmra.mxu0 %v3964
  %v4406 = vpop.f32.mrf.mxu0
  %v4407 = vadd.f32 %v4273, %v4406
  %v4408 = vpop.f32.mrf.mxu0
  %v4409 = vadd.f32 %v4275, %v4408
  %4410 = vmatmul.bf16.gmra.mxu0 %v3969
  %v4411 = vpop.f32.mrf.mxu0
  %v4412 = vadd.f32 %v4278, %v4411
  %v4413 = vpop.f32.mrf.mxu0
  %v4414 = vadd.f32 %v4280, %v4413
  %4415 = vmatmul.bf16.gmra.mxu0 %v3974
  %v4416 = vpop.f32.mrf.mxu0
  %v4417 = vadd.f32 %v4283, %v4416
  %v4418 = vpop.f32.mrf.mxu0
  %v4419 = vadd.f32 %v4285, %v4418
  %4420 = vmatmul.bf16.gmra.mxu0 %v3979
  %v4421 = vpop.f32.mrf.mxu0
  %v4422 = vadd.f32 %v4288, %v4421
  %v4423 = vpop.f32.mrf.mxu0
  %v4424 = vadd.f32 %v4290, %v4423
  %4425 = vmatmul.bf16.gmra.mxu0 %v3984
  %v4426 = vpop.f32.mrf.mxu0
  %v4427 = vadd.f32 %v4293, %v4426
  %v4428 = vpop.f32.mrf.mxu0
  %v4429 = vadd.f32 %v4295, %v4428
  %4430 = vmatmul.bf16.gmra.mxu0 %v3989
  %v4431 = vpop.f32.mrf.mxu0
  %v4432 = vadd.f32 %v4298, %v4431
  %v4433 = vpop.f32.mrf.mxu0
  %v4434 = vadd.f32 %v4300, %v4433
  %4435 = vmatmul.bf16.gmra.mxu0 %v3994
  %v4436 = vpop.f32.mrf.mxu0
  %v4437 = vadd.f32 %v4303, %v4436
  %v4438 = vpop.f32.mrf.mxu0
  %v4439 = vadd.f32 %v4305, %v4438
  %4440 = vmatmul.bf16.gmra.mxu0 %v3999
  %v4441 = vpop.f32.mrf.mxu0
  %v4442 = vadd.f32 %v4308, %v4441
  %v4443 = vpop.f32.mrf.mxu0
  %v4444 = vadd.f32 %v4310, %v4443
  %4445 = vmatmul.bf16.gmra.mxu0 %v4004
  %v4446 = vpop.f32.mrf.mxu0
  %v4447 = vadd.f32 %v4313, %v4446
  %v4448 = vpop.f32.mrf.mxu0
  %v4449 = vadd.f32 %v4315, %v4448
  %4450 = vmatmul.bf16.gmra.mxu0 %v4009
  %v4451 = vpop.f32.mrf.mxu0
  %v4452 = vadd.f32 %v4318, %v4451
  %v4453 = vpop.f32.mrf.mxu0
  %v4454 = vadd.f32 %v4320, %v4453
  %4455 = vmatmul.bf16.gmra.mxu0 %v4014
  %v4456 = vpop.f32.mrf.mxu0
  %v4457 = vadd.f32 %v4323, %v4456
  %v4458 = vpop.f32.mrf.mxu0
  %v4459 = vadd.f32 %v4325, %v4458
  %4460 = vmatmul.bf16.gmra.mxu0 %v4019
  %v4461 = vpop.f32.mrf.mxu0
  %v4462 = vadd.f32 %v4328, %v4461
  %v4463 = vpop.f32.mrf.mxu0
  %v4464 = vadd.f32 %v4330, %v4463
  %4465 = vmatmul.bf16.gmra.mxu0 %v4024
  %v4466 = vpop.f32.mrf.mxu0
  %v4467 = vadd.f32 %v4333, %v4466
  %v4468 = vpop.f32.mrf.mxu0
  %v4469 = vadd.f32 %v4335, %v4468
  %4470 = vmatmul.bf16.gmra.mxu0 %v4029
  %v4471 = vpop.f32.mrf.mxu0
  %v4472 = vadd.f32 %v4338, %v4471
  %v4473 = vpop.f32.mrf.mxu0
  %v4474 = vadd.f32 %v4340, %v4473
  %4475 = vmatmul.bf16.gmra.mxu0 %v4034
  %v4476 = vpop.f32.mrf.mxu0
  %v4477 = vadd.f32 %v4343, %v4476
  %v4478 = vpop.f32.mrf.mxu0
  %v4479 = vadd.f32 %v4345, %v4478
  %4480 = vmatmul.bf16.gmra.mxu0 %v4039
  %v4481 = vpop.f32.mrf.mxu0
  %v4482 = vadd.f32 %v4348, %v4481
  %v4483 = vpop.f32.mrf.mxu0
  %v4484 = vadd.f32 %v4350, %v4483
  %4485 = vmatmul.bf16.gmra.mxu0 %v4044
  %v4486 = vpop.f32.mrf.mxu0
  %v4487 = vadd.f32 %v4353, %v4486
  %v4488 = vpop.f32.mrf.mxu0
  %v4489 = vadd.f32 %v4355, %v4488
  %4490 = vmatmul.bf16.gmra.mxu0 %v4049
  %v4491 = vpop.f32.mrf.mxu0
  %v4492 = vadd.f32 %v4358, %v4491
  %v4493 = vpop.f32.mrf.mxu0
  %v4494 = vadd.f32 %v4360, %v4493
  %4495 = vmatmul.bf16.gmra.mxu0 %v4054
  %v4496 = vpop.f32.mrf.mxu0
  %v4497 = vadd.f32 %v4363, %v4496
  %v4498 = vpop.f32.mrf.mxu0
  %v4499 = vadd.f32 %v4365, %v4498
  %4500 = vmatmul.bf16.gmra.mxu0 %v4059
  %v4501 = vpop.f32.mrf.mxu0
  %v4502 = vadd.f32 %v4368, %v4501
  %v4503 = vpop.f32.mrf.mxu0
  %v4504 = vadd.f32 %v4370, %v4503
  %4505 = vmatmul.bf16.gmra.mxu0 %v4064
  %v4506 = vpop.f32.mrf.mxu0
  %v4507 = vadd.f32 %v4373, %v4506
  %v4508 = vpop.f32.mrf.mxu0
  %v4509 = vadd.f32 %v4375, %v4508
  %4510 = vmatmul.bf16.gmra.mxu0 %v4069
  %v4511 = vpop.f32.mrf.mxu0
  %v4512 = vadd.f32 %v4378, %v4511
  %v4513 = vpop.f32.mrf.mxu0
  %v4514 = vadd.f32 %v4380, %v4513
  %4515 = vmatmul.bf16.gmra.mxu0 %v4074
  %v4516 = vpop.f32.mrf.mxu0
  %v4517 = vadd.f32 %v4383, %v4516
  %v4518 = vpop.f32.mrf.mxu0
  %v4519 = vadd.f32 %v4385, %v4518
  %4520 = vdwg.mxu0
  %4521 = vmatpush.bf16.msra.mxu0 %v1038
  %4522 = vmatpush.bf16.msra.mxu0 %v1037
  %4523 = vmatpush.bf16.msra.mxu0 %v1036
  %4524 = vmatpush.bf16.msra.mxu0 %v1035
  %4525 = vmatpush.bf16.msra.mxu0 %v1034
  %4526 = vmatpush.bf16.msra.mxu0 %v1033
  %4527 = vmatpush.bf16.msra.mxu0 %v1032
  %4528 = vmatpush.bf16.msra.mxu0 %v1031
  %4529 = vmatmul.bf16.gmra.mxu0 %v3955
  %v4530 = vpop.f32.mrf.mxu0
  %v4531 = vadd.f32 %v4397, %v4530
  %v4532 = vpop.f32.mrf.mxu0
  %v4533 = vadd.f32 %v4399, %v4532
  %4534 = vmatmul.bf16.gmra.mxu0 %v3960
  %v4535 = vpop.f32.mrf.mxu0
  %v4536 = vadd.f32 %v4402, %v4535
  %v4537 = vpop.f32.mrf.mxu0
  %v4538 = vadd.f32 %v4404, %v4537
  %4539 = vmatmul.bf16.gmra.mxu0 %v3965
  %v4540 = vpop.f32.mrf.mxu0
  %v4541 = vadd.f32 %v4407, %v4540
  %v4542 = vpop.f32.mrf.mxu0
  %v4543 = vadd.f32 %v4409, %v4542
  %4544 = vmatmul.bf16.gmra.mxu0 %v3970
  %v4545 = vpop.f32.mrf.mxu0
  %v4546 = vadd.f32 %v4412, %v4545
  %v4547 = vpop.f32.mrf.mxu0
  %v4548 = vadd.f32 %v4414, %v4547
  %4549 = vmatmul.bf16.gmra.mxu0 %v3975
  %v4550 = vpop.f32.mrf.mxu0
  %v4551 = vadd.f32 %v4417, %v4550
  %v4552 = vpop.f32.mrf.mxu0
  %v4553 = vadd.f32 %v4419, %v4552
  %4554 = vmatmul.bf16.gmra.mxu0 %v3980
  %v4555 = vpop.f32.mrf.mxu0
  %v4556 = vadd.f32 %v4422, %v4555
  %v4557 = vpop.f32.mrf.mxu0
  %v4558 = vadd.f32 %v4424, %v4557
  %4559 = vmatmul.bf16.gmra.mxu0 %v3985
  %v4560 = vpop.f32.mrf.mxu0
  %v4561 = vadd.f32 %v4427, %v4560
  %v4562 = vpop.f32.mrf.mxu0
  %v4563 = vadd.f32 %v4429, %v4562
  %4564 = vmatmul.bf16.gmra.mxu0 %v3990
  %v4565 = vpop.f32.mrf.mxu0
  %v4566 = vadd.f32 %v4432, %v4565
  %v4567 = vpop.f32.mrf.mxu0
  %v4568 = vadd.f32 %v4434, %v4567
  %4569 = vmatmul.bf16.gmra.mxu0 %v3995
  %v4570 = vpop.f32.mrf.mxu0
  %v4571 = vadd.f32 %v4437, %v4570
  %v4572 = vpop.f32.mrf.mxu0
  %v4573 = vadd.f32 %v4439, %v4572
  %4574 = vmatmul.bf16.gmra.mxu0 %v4000
  %v4575 = vpop.f32.mrf.mxu0
  %v4576 = vadd.f32 %v4442, %v4575
  %v4577 = vpop.f32.mrf.mxu0
  %v4578 = vadd.f32 %v4444, %v4577
  %4579 = vmatmul.bf16.gmra.mxu0 %v4005
  %v4580 = vpop.f32.mrf.mxu0
  %v4581 = vadd.f32 %v4447, %v4580
  %v4582 = vpop.f32.mrf.mxu0
  %v4583 = vadd.f32 %v4449, %v4582
  %4584 = vmatmul.bf16.gmra.mxu0 %v4010
  %v4585 = vpop.f32.mrf.mxu0
  %v4586 = vadd.f32 %v4452, %v4585
  %v4587 = vpop.f32.mrf.mxu0
  %v4588 = vadd.f32 %v4454, %v4587
  %4589 = vmatmul.bf16.gmra.mxu0 %v4015
  %v4590 = vpop.f32.mrf.mxu0
  %v4591 = vadd.f32 %v4457, %v4590
  %v4592 = vpop.f32.mrf.mxu0
  %v4593 = vadd.f32 %v4459, %v4592
  %4594 = vmatmul.bf16.gmra.mxu0 %v4020
  %v4595 = vpop.f32.mrf.mxu0
  %v4596 = vadd.f32 %v4462, %v4595
  %v4597 = vpop.f32.mrf.mxu0
  %v4598 = vadd.f32 %v4464, %v4597
  %4599 = vmatmul.bf16.gmra.mxu0 %v4025
  %v4600 = vpop.f32.mrf.mxu0
  %v4601 = vadd.f32 %v4467, %v4600
  %v4602 = vpop.f32.mrf.mxu0
  %v4603 = vadd.f32 %v4469, %v4602
  %4604 = vmatmul.bf16.gmra.mxu0 %v4030
  %v4605 = vpop.f32.mrf.mxu0
  %v4606 = vadd.f32 %v4472, %v4605
  %v4607 = vpop.f32.mrf.mxu0
  %v4608 = vadd.f32 %v4474, %v4607
  %4609 = vmatmul.bf16.gmra.mxu0 %v4035
  %v4610 = vpop.f32.mrf.mxu0
  %v4611 = vadd.f32 %v4477, %v4610
  %v4612 = vpop.f32.mrf.mxu0
  %v4613 = vadd.f32 %v4479, %v4612
  %4614 = vmatmul.bf16.gmra.mxu0 %v4040
  %v4615 = vpop.f32.mrf.mxu0
  %v4616 = vadd.f32 %v4482, %v4615
  %v4617 = vpop.f32.mrf.mxu0
  %v4618 = vadd.f32 %v4484, %v4617
  %4619 = vmatmul.bf16.gmra.mxu0 %v4045
  %v4620 = vpop.f32.mrf.mxu0
  %v4621 = vadd.f32 %v4487, %v4620
  %v4622 = vpop.f32.mrf.mxu0
  %v4623 = vadd.f32 %v4489, %v4622
  %4624 = vmatmul.bf16.gmra.mxu0 %v4050
  %v4625 = vpop.f32.mrf.mxu0
  %v4626 = vadd.f32 %v4492, %v4625
  %v4627 = vpop.f32.mrf.mxu0
  %v4628 = vadd.f32 %v4494, %v4627
  %4629 = vmatmul.bf16.gmra.mxu0 %v4055
  %v4630 = vpop.f32.mrf.mxu0
  %v4631 = vadd.f32 %v4497, %v4630
  %v4632 = vpop.f32.mrf.mxu0
  %v4633 = vadd.f32 %v4499, %v4632
  %4634 = vmatmul.bf16.gmra.mxu0 %v4060
  %v4635 = vpop.f32.mrf.mxu0
  %v4636 = vadd.f32 %v4502, %v4635
  %v4637 = vpop.f32.mrf.mxu0
  %v4638 = vadd.f32 %v4504, %v4637
  %4639 = vmatmul.bf16.gmra.mxu0 %v4065
  %v4640 = vpop.f32.mrf.mxu0
  %v4641 = vadd.f32 %v4507, %v4640
  %v4642 = vpop.f32.mrf.mxu0
  %v4643 = vadd.f32 %v4509, %v4642
  %4644 = vmatmul.bf16.gmra.mxu0 %v4070
  %v4645 = vpop.f32.mrf.mxu0
  %v4646 = vadd.f32 %v4512, %v4645
  %v4647 = vpop.f32.mrf.mxu0
  %v4648 = vadd.f32 %v4514, %v4647
  %4649 = vmatmul.bf16.gmra.mxu0 %v4075
  %v4650 = vpop.f32.mrf.mxu0
  %v4651 = vadd.f32 %v4517, %v4650
  %v4652 = vpop.f32.mrf.mxu0
  %v4653 = vadd.f32 %v4519, %v4652
  %4654 = vdwg.mxu0
  %4655 = vmatpush.bf16.msra.mxu0 %v1046
  %4656 = vmatpush.bf16.msra.mxu0 %v1045
  %4657 = vmatpush.bf16.msra.mxu0 %v1044
  %4658 = vmatpush.bf16.msra.mxu0 %v1043
  %4659 = vmatpush.bf16.msra.mxu0 %v1042
  %4660 = vmatpush.bf16.msra.mxu0 %v1041
  %4661 = vmatpush.bf16.msra.mxu0 %v1040
  %4662 = vmatpush.bf16.msra.mxu0 %v1039
  %4663 = vmatmul.bf16.gmra.mxu0 %v3956
  %v4664 = vpop.f32.mrf.mxu0
  %v4665 = vadd.f32 %v4531, %v4664
  %v4666 = vpop.f32.mrf.mxu0
  %v4667 = vadd.f32 %v4533, %v4666
  %4668 = vmatmul.bf16.gmra.mxu0 %v3961
  %v4669 = vpop.f32.mrf.mxu0
  %v4670 = vadd.f32 %v4536, %v4669
  %v4671 = vpop.f32.mrf.mxu0
  %v4672 = vadd.f32 %v4538, %v4671
  %4673 = vmatmul.bf16.gmra.mxu0 %v3966
  %v4674 = vpop.f32.mrf.mxu0
  %v4675 = vadd.f32 %v4541, %v4674
  %v4676 = vpop.f32.mrf.mxu0
  %v4677 = vadd.f32 %v4543, %v4676
  %4678 = vmatmul.bf16.gmra.mxu0 %v3971
  %v4679 = vpop.f32.mrf.mxu0
  %v4680 = vadd.f32 %v4546, %v4679
  %v4681 = vpop.f32.mrf.mxu0
  %v4682 = vadd.f32 %v4548, %v4681
  %4683 = vmatmul.bf16.gmra.mxu0 %v3976
  %v4684 = vpop.f32.mrf.mxu0
  %v4685 = vadd.f32 %v4551, %v4684
  %v4686 = vpop.f32.mrf.mxu0
  %v4687 = vadd.f32 %v4553, %v4686
  %4688 = vmatmul.bf16.gmra.mxu0 %v3981
  %v4689 = vpop.f32.mrf.mxu0
  %v4690 = vadd.f32 %v4556, %v4689
  %v4691 = vpop.f32.mrf.mxu0
  %v4692 = vadd.f32 %v4558, %v4691
  %4693 = vmatmul.bf16.gmra.mxu0 %v3986
  %v4694 = vpop.f32.mrf.mxu0
  %v4695 = vadd.f32 %v4561, %v4694
  %v4696 = vpop.f32.mrf.mxu0
  %v4697 = vadd.f32 %v4563, %v4696
  %4698 = vmatmul.bf16.gmra.mxu0 %v3991
  %v4699 = vpop.f32.mrf.mxu0
  %v4700 = vadd.f32 %v4566, %v4699
  %v4701 = vpop.f32.mrf.mxu0
  %v4702 = vadd.f32 %v4568, %v4701
  %4703 = vmatmul.bf16.gmra.mxu0 %v3996
  %v4704 = vpop.f32.mrf.mxu0
  %v4705 = vadd.f32 %v4571, %v4704
  %v4706 = vpop.f32.mrf.mxu0
  %v4707 = vadd.f32 %v4573, %v4706
  %4708 = vmatmul.bf16.gmra.mxu0 %v4001
  %v4709 = vpop.f32.mrf.mxu0
  %v4710 = vadd.f32 %v4576, %v4709
  %v4711 = vpop.f32.mrf.mxu0
  %v4712 = vadd.f32 %v4578, %v4711
  %4713 = vmatmul.bf16.gmra.mxu0 %v4006
  %v4714 = vpop.f32.mrf.mxu0
  %v4715 = vadd.f32 %v4581, %v4714
  %v4716 = vpop.f32.mrf.mxu0
  %v4717 = vadd.f32 %v4583, %v4716
  %4718 = vmatmul.bf16.gmra.mxu0 %v4011
  %v4719 = vpop.f32.mrf.mxu0
  %v4720 = vadd.f32 %v4586, %v4719
  %v4721 = vpop.f32.mrf.mxu0
  %v4722 = vadd.f32 %v4588, %v4721
  %4723 = vmatmul.bf16.gmra.mxu0 %v4016
  %v4724 = vpop.f32.mrf.mxu0
  %v4725 = vadd.f32 %v4591, %v4724
  %v4726 = vpop.f32.mrf.mxu0
  %v4727 = vadd.f32 %v4593, %v4726
  %4728 = vmatmul.bf16.gmra.mxu0 %v4021
  %v4729 = vpop.f32.mrf.mxu0
  %v4730 = vadd.f32 %v4596, %v4729
  %v4731 = vpop.f32.mrf.mxu0
  %v4732 = vadd.f32 %v4598, %v4731
  %4733 = vmatmul.bf16.gmra.mxu0 %v4026
  %v4734 = vpop.f32.mrf.mxu0
  %v4735 = vadd.f32 %v4601, %v4734
  %v4736 = vpop.f32.mrf.mxu0
  %v4737 = vadd.f32 %v4603, %v4736
  %4738 = vmatmul.bf16.gmra.mxu0 %v4031
  %v4739 = vpop.f32.mrf.mxu0
  %v4740 = vadd.f32 %v4606, %v4739
  %v4741 = vpop.f32.mrf.mxu0
  %v4742 = vadd.f32 %v4608, %v4741
  %4743 = vmatmul.bf16.gmra.mxu0 %v4036
  %v4744 = vpop.f32.mrf.mxu0
  %v4745 = vadd.f32 %v4611, %v4744
  %v4746 = vpop.f32.mrf.mxu0
  %v4747 = vadd.f32 %v4613, %v4746
  %4748 = vmatmul.bf16.gmra.mxu0 %v4041
  %v4749 = vpop.f32.mrf.mxu0
  %v4750 = vadd.f32 %v4616, %v4749
  %v4751 = vpop.f32.mrf.mxu0
  %v4752 = vadd.f32 %v4618, %v4751
  %4753 = vmatmul.bf16.gmra.mxu0 %v4046
  %v4754 = vpop.f32.mrf.mxu0
  %v4755 = vadd.f32 %v4621, %v4754
  %v4756 = vpop.f32.mrf.mxu0
  %v4757 = vadd.f32 %v4623, %v4756
  %4758 = vmatmul.bf16.gmra.mxu0 %v4051
  %v4759 = vpop.f32.mrf.mxu0
  %v4760 = vadd.f32 %v4626, %v4759
  %v4761 = vpop.f32.mrf.mxu0
  %v4762 = vadd.f32 %v4628, %v4761
  %4763 = vmatmul.bf16.gmra.mxu0 %v4056
  %v4764 = vpop.f32.mrf.mxu0
  %v4765 = vadd.f32 %v4631, %v4764
  %v4766 = vpop.f32.mrf.mxu0
  %v4767 = vadd.f32 %v4633, %v4766
  %4768 = vmatmul.bf16.gmra.mxu0 %v4061
  %v4769 = vpop.f32.mrf.mxu0
  %v4770 = vadd.f32 %v4636, %v4769
  %v4771 = vpop.f32.mrf.mxu0
  %v4772 = vadd.f32 %v4638, %v4771
  %4773 = vmatmul.bf16.gmra.mxu0 %v4066
  %v4774 = vpop.f32.mrf.mxu0
  %v4775 = vadd.f32 %v4641, %v4774
  %v4776 = vpop.f32.mrf.mxu0
  %v4777 = vadd.f32 %v4643, %v4776
  %4778 = vmatmul.bf16.gmra.mxu0 %v4071
  %v4779 = vpop.f32.mrf.mxu0
  %v4780 = vadd.f32 %v4646, %v4779
  %v4781 = vpop.f32.mrf.mxu0
  %v4782 = vadd.f32 %v4648, %v4781
  %4783 = vmatmul.bf16.gmra.mxu0 %v4076
  %v4784 = vpop.f32.mrf.mxu0
  %v4785 = vadd.f32 %v4651, %v4784
  %v4786 = vpop.f32.mrf.mxu0
  %v4787 = vadd.f32 %v4653, %v4786
  %4788 = vdwg.mxu0
  %4789 = vmatpush.bf16.msra.mxu0 0
  %4790 = vmatpush.bf16.msra.mxu0 0
  %4791 = vmatpush.bf16.msra.mxu0 0
  %4792 = vmatpush.bf16.msra.mxu0 0
  %4793 = vmatpush.bf16.msra.mxu0 %v1050
  %4794 = vmatpush.bf16.msra.mxu0 %v1049
  %4795 = vmatpush.bf16.msra.mxu0 %v1048
  %4796 = vmatpush.bf16.msra.mxu0 %v1047
  %4797 = vmatmul.bf16.gmra.mxu0 %v4179
  %v4798 = vpop.f32.mrf.mxu0
  %v4799 = vadd.f32 %v4665, %v4798
  %v4800 = vpop.f32.mrf.mxu0
  %v4801 = vadd.f32 %v4667, %v4800
  %4802 = vmatmul.bf16.gmra.mxu0 %v4182
  %v4803 = vpop.f32.mrf.mxu0
  %v4804 = vadd.f32 %v4670, %v4803
  %v4805 = vpop.f32.mrf.mxu0
  %v4806 = vadd.f32 %v4672, %v4805
  %4807 = vmatmul.bf16.gmra.mxu0 %v4185
  %v4808 = vpop.f32.mrf.mxu0
  %v4809 = vadd.f32 %v4675, %v4808
  %v4810 = vpop.f32.mrf.mxu0
  %v4811 = vadd.f32 %v4677, %v4810
  %4812 = vmatmul.bf16.gmra.mxu0 %v4188
  %v4813 = vpop.f32.mrf.mxu0
  %v4814 = vadd.f32 %v4680, %v4813
  %v4815 = vpop.f32.mrf.mxu0
  %v4816 = vadd.f32 %v4682, %v4815
  %4817 = vmatmul.bf16.gmra.mxu0 %v4191
  %v4818 = vpop.f32.mrf.mxu0
  %v4819 = vadd.f32 %v4685, %v4818
  %v4820 = vpop.f32.mrf.mxu0
  %v4821 = vadd.f32 %v4687, %v4820
  %4822 = vmatmul.bf16.gmra.mxu0 %v4194
  %v4823 = vpop.f32.mrf.mxu0
  %v4824 = vadd.f32 %v4690, %v4823
  %v4825 = vpop.f32.mrf.mxu0
  %v4826 = vadd.f32 %v4692, %v4825
  %4827 = vmatmul.bf16.gmra.mxu0 %v4197
  %v4828 = vpop.f32.mrf.mxu0
  %v4829 = vadd.f32 %v4695, %v4828
  %v4830 = vpop.f32.mrf.mxu0
  %v4831 = vadd.f32 %v4697, %v4830
  %4832 = vmatmul.bf16.gmra.mxu0 %v4200
  %v4833 = vpop.f32.mrf.mxu0
  %v4834 = vadd.f32 %v4700, %v4833
  %v4835 = vpop.f32.mrf.mxu0
  %v4836 = vadd.f32 %v4702, %v4835
  %4837 = vmatmul.bf16.gmra.mxu0 %v4203
  %v4838 = vpop.f32.mrf.mxu0
  %v4839 = vadd.f32 %v4705, %v4838
  %v4840 = vpop.f32.mrf.mxu0
  %v4841 = vadd.f32 %v4707, %v4840
  %4842 = vmatmul.bf16.gmra.mxu0 %v4206
  %v4843 = vpop.f32.mrf.mxu0
  %v4844 = vadd.f32 %v4710, %v4843
  %v4845 = vpop.f32.mrf.mxu0
  %v4846 = vadd.f32 %v4712, %v4845
  %4847 = vmatmul.bf16.gmra.mxu0 %v4209
  %v4848 = vpop.f32.mrf.mxu0
  %v4849 = vadd.f32 %v4715, %v4848
  %v4850 = vpop.f32.mrf.mxu0
  %v4851 = vadd.f32 %v4717, %v4850
  %4852 = vmatmul.bf16.gmra.mxu0 %v4212
  %v4853 = vpop.f32.mrf.mxu0
  %v4854 = vadd.f32 %v4720, %v4853
  %v4855 = vpop.f32.mrf.mxu0
  %v4856 = vadd.f32 %v4722, %v4855
  %4857 = vmatmul.bf16.gmra.mxu0 %v4215
  %v4858 = vpop.f32.mrf.mxu0
  %v4859 = vadd.f32 %v4725, %v4858
  %v4860 = vpop.f32.mrf.mxu0
  %v4861 = vadd.f32 %v4727, %v4860
  %4862 = vmatmul.bf16.gmra.mxu0 %v4218
  %v4863 = vpop.f32.mrf.mxu0
  %v4864 = vadd.f32 %v4730, %v4863
  %v4865 = vpop.f32.mrf.mxu0
  %v4866 = vadd.f32 %v4732, %v4865
  %4867 = vmatmul.bf16.gmra.mxu0 %v4221
  %v4868 = vpop.f32.mrf.mxu0
  %v4869 = vadd.f32 %v4735, %v4868
  %v4870 = vpop.f32.mrf.mxu0
  %v4871 = vadd.f32 %v4737, %v4870
  %4872 = vmatmul.bf16.gmra.mxu0 %v4224
  %v4873 = vpop.f32.mrf.mxu0
  %v4874 = vadd.f32 %v4740, %v4873
  %v4875 = vpop.f32.mrf.mxu0
  %v4876 = vadd.f32 %v4742, %v4875
  %4877 = vmatmul.bf16.gmra.mxu0 %v4227
  %v4878 = vpop.f32.mrf.mxu0
  %v4879 = vadd.f32 %v4745, %v4878
  %v4880 = vpop.f32.mrf.mxu0
  %v4881 = vadd.f32 %v4747, %v4880
  %4882 = vmatmul.bf16.gmra.mxu0 %v4230
  %v4883 = vpop.f32.mrf.mxu0
  %v4884 = vadd.f32 %v4750, %v4883
  %v4885 = vpop.f32.mrf.mxu0
  %v4886 = vadd.f32 %v4752, %v4885
  %4887 = vmatmul.bf16.gmra.mxu0 %v4233
  %v4888 = vpop.f32.mrf.mxu0
  %v4889 = vadd.f32 %v4755, %v4888
  %v4890 = vpop.f32.mrf.mxu0
  %v4891 = vadd.f32 %v4757, %v4890
  %4892 = vmatmul.bf16.gmra.mxu0 %v4236
  %v4893 = vpop.f32.mrf.mxu0
  %v4894 = vadd.f32 %v4760, %v4893
  %v4895 = vpop.f32.mrf.mxu0
  %v4896 = vadd.f32 %v4762, %v4895
  %4897 = vmatmul.bf16.gmra.mxu0 %v4239
  %v4898 = vpop.f32.mrf.mxu0
  %v4899 = vadd.f32 %v4765, %v4898
  %v4900 = vpop.f32.mrf.mxu0
  %v4901 = vadd.f32 %v4767, %v4900
  %4902 = vmatmul.bf16.gmra.mxu0 %v4242
  %v4903 = vpop.f32.mrf.mxu0
  %v4904 = vadd.f32 %v4770, %v4903
  %v4905 = vpop.f32.mrf.mxu0
  %v4906 = vadd.f32 %v4772, %v4905
  %4907 = vmatmul.bf16.gmra.mxu0 %v4245
  %v4908 = vpop.f32.mrf.mxu0
  %v4909 = vadd.f32 %v4775, %v4908
  %v4910 = vpop.f32.mrf.mxu0
  %v4911 = vadd.f32 %v4777, %v4910
  %4912 = vmatmul.bf16.gmra.mxu0 %v4248
  %v4913 = vpop.f32.mrf.mxu0
  %v4914 = vadd.f32 %v4780, %v4913
  %v4915 = vpop.f32.mrf.mxu0
  %v4916 = vadd.f32 %v4782, %v4915
  %4917 = vmatmul.bf16.gmra.mxu0 %v4251
  %v4918 = vpop.f32.mrf.mxu0
  %v4919 = vadd.f32 %v4785, %v4918
  %v4920 = vpop.f32.mrf.mxu0
  %v4921 = vadd.f32 %v4787, %v4920
  %4922 = vdwg.mxu0
  %v4923 = vmax.f32 %v3353, %v4799
  %v4924 = vmax.f32 %v3354, %v4801
  %v4925 = vmax.f32 %v3355, %v4804
  %v4926 = vmax.f32 %v3356, %v4806
  %v4927 = vmax.f32 %v3357, %v4809
  %v4928 = vmax.f32 %v3358, %v4811
  %v4929 = vmax.f32 %v3359, %v4814
  %v4930 = vmax.f32 %v3360, %v4816
  %v4931 = vmax.f32 %v3361, %v4819
  %v4932 = vmax.f32 %v3362, %v4821
  %v4933 = vmax.f32 %v3363, %v4824
  %v4934 = vmax.f32 %v3364, %v4826
  %v4935 = vmax.f32 %v3365, %v4829
  %v4936 = vmax.f32 %v3366, %v4831
  %v4937 = vmax.f32 %v3367, %v4834
  %v4938 = vmax.f32 %v3368, %v4836
  %v4939 = vmax.f32 %v3369, %v4839
  %v4940 = vmax.f32 %v3370, %v4841
  %v4941 = vmax.f32 %v3371, %v4844
  %v4942 = vmax.f32 %v3372, %v4846
  %v4943 = vmax.f32 %v3373, %v4849
  %v4944 = vmax.f32 %v3374, %v4851
  %v4945 = vmax.f32 %v3375, %v4854
  %v4946 = vmax.f32 %v3376, %v4856
  %v4947 = vmax.f32 %v3377, %v4859
  %v4948 = vmax.f32 %v3378, %v4861
  %v4949 = vmax.f32 %v3379, %v4864
  %v4950 = vmax.f32 %v3380, %v4866
  %v4951 = vmax.f32 %v3381, %v4869
  %v4952 = vmax.f32 %v3382, %v4871
  %v4953 = vmax.f32 %v3383, %v4874
  %v4954 = vmax.f32 %v3384, %v4876
  %v4955 = vmax.f32 %v3385, %v4879
  %v4956 = vmax.f32 %v3386, %v4881
  %v4957 = vmax.f32 %v3387, %v4884
  %v4958 = vmax.f32 %v3388, %v4886
  %v4959 = vmax.f32 %v3389, %v4889
  %v4960 = vmax.f32 %v3390, %v4891
  %v4961 = vmax.f32 %v3391, %v4894
  %v4962 = vmax.f32 %v3392, %v4896
  %v4963 = vmax.f32 %v3393, %v4899
  %v4964 = vmax.f32 %v3394, %v4901
  %v4965 = vmax.f32 %v3395, %v4904
  %v4966 = vmax.f32 %v3396, %v4906
  %v4967 = vmax.f32 %v3397, %v4909
  %v4968 = vmax.f32 %v3398, %v4911
  %v4969 = vmax.f32 %v3399, %v4914
  %v4970 = vmax.f32 %v3400, %v4916
  %v4971 = vmax.f32 %v3401, %v4919
  %v4972 = vmax.f32 %v3402, %v4921
  %v4973 = vld [vmem:[%s3] sm:$0xff]
  %v4974 = vld [vmem:[%s3 + $0x8] sm:$0xff]
  %v4975 = vld [vmem:[%s3 + $0x10] sm:$0xf]
  %v4976 = vld [vmem:[%s3 + $0x14] sm:$0xff]
  %v4977 = vld [vmem:[%s3 + $0x1c] sm:$0xff]
  %v4978 = vld [vmem:[%s3 + $0x24] sm:$0xf]
  %v4979 = vld [vmem:[%s3 + $0x28] sm:$0xff]
  %v4980 = vld [vmem:[%s3 + $0x30] sm:$0xff]
  %v4981 = vld [vmem:[%s3 + $0x38] sm:$0xf]
  %v4982 = vld [vmem:[%s3 + $0x3c] sm:$0xff]
  %v4983 = vld [vmem:[%s3 + $0x44] sm:$0xff]
  %v4984 = vld [vmem:[%s3 + $0x4c] sm:$0xf]
  %v4985 = vld [vmem:[%s3 + $0x50] sm:$0xff]
  %v4986 = vld [vmem:[%s3 + $0x58] sm:$0xff]
  %v4987 = vld [vmem:[%s3 + $0x60] sm:$0xf]
  %v4988 = vld [vmem:[%s3 + $0x64] sm:$0xff]
  %v4989 = vld [vmem:[%s3 + $0x6c] sm:$0xff]
  %v4990 = vld [vmem:[%s3 + $0x74] sm:$0xf]
  %v4991 = vld [vmem:[%s3 + $0x78] sm:$0xff]
  %v4992 = vld [vmem:[%s3 + $0x80] sm:$0xff]
  %v4993 = vld [vmem:[%s3 + $0x88] sm:$0xf]
  %v4994 = vld [vmem:[%s3 + $0x8c] sm:$0xff]
  %v4995 = vld [vmem:[%s3 + $0x94] sm:$0xff]
  %v4996 = vld [vmem:[%s3 + $0x9c] sm:$0xf]
  %v4997 = vld [vmem:[%s3 + $0xa0] sm:$0xff]
  %v4998 = vld [vmem:[%s3 + $0xa8] sm:$0xff]
  %v4999 = vld [vmem:[%s3 + $0xb0] sm:$0xf]
  %v5000 = vld [vmem:[%s3 + $0xb4] sm:$0xff]
  %v5001 = vld [vmem:[%s3 + $0xbc] sm:$0xff]
  %v5002 = vld [vmem:[%s3 + $0xc4] sm:$0xf]
  %v5003 = vld [vmem:[%s3 + $0xc8] sm:$0xff]
  %v5004 = vld [vmem:[%s3 + $0xd0] sm:$0xff]
  %v5005 = vld [vmem:[%s3 + $0xd8] sm:$0xf]
  %v5006 = vld [vmem:[%s3 + $0xdc] sm:$0xff]
  %v5007 = vld [vmem:[%s3 + $0xe4] sm:$0xff]
  %v5008 = vld [vmem:[%s3 + $0xec] sm:$0xf]
  %v5009 = vld [vmem:[%s3 + $0xf0] sm:$0xff]
  %v5010 = vld [vmem:[%s3 + $0xf8] sm:$0xff]
  %v5011 = vld [vmem:[%s3 + $0x100] sm:$0xf]
  %v5012 = vld [vmem:[%s3 + $0x104] sm:$0xff]
  %v5013 = vld [vmem:[%s3 + $0x10c] sm:$0xff]
  %v5014 = vld [vmem:[%s3 + $0x114] sm:$0xf]
  %v5015 = vld [vmem:[%s3 + $0x118] sm:$0xff]
  %v5016 = vld [vmem:[%s3 + $0x120] sm:$0xff]
  %v5017 = vld [vmem:[%s3 + $0x128] sm:$0xf]
  %v5018 = vld [vmem:[%s3 + $0x12c] sm:$0xff]
  %v5019 = vld [vmem:[%s3 + $0x134] sm:$0xff]
  %v5020 = vld [vmem:[%s3 + $0x13c] sm:$0xf]
  %v5021 = vld [vmem:[%s3 + $0x140] sm:$0xff]
  %v5022 = vld [vmem:[%s3 + $0x148] sm:$0xff]
  %v5023 = vld [vmem:[%s3 + $0x150] sm:$0xf]
  %v5024 = vld [vmem:[%s3 + $0x154] sm:$0xff]
  %v5025 = vld [vmem:[%s3 + $0x15c] sm:$0xff]
  %v5026 = vld [vmem:[%s3 + $0x164] sm:$0xf]
  %v5027 = vld [vmem:[%s3 + $0x168] sm:$0xff]
  %v5028 = vld [vmem:[%s3 + $0x170] sm:$0xff]
  %v5029 = vld [vmem:[%s3 + $0x178] sm:$0xf]
  %v5030 = vld [vmem:[%s3 + $0x17c] sm:$0xff]
  %v5031 = vld [vmem:[%s3 + $0x184] sm:$0xff]
  %v5032 = vld [vmem:[%s3 + $0x18c] sm:$0xf]
  %v5033 = vld [vmem:[%s3 + $0x190] sm:$0xff]
  %v5034 = vld [vmem:[%s3 + $0x198] sm:$0xff]
  %v5035 = vld [vmem:[%s3 + $0x1a0] sm:$0xf]
  %v5036 = vld [vmem:[%s3 + $0x1a4] sm:$0xff]
  %v5037 = vld [vmem:[%s3 + $0x1ac] sm:$0xff]
  %v5038 = vld [vmem:[%s3 + $0x1b4] sm:$0xf]
  %v5039 = vld [vmem:[%s3 + $0x1b8] sm:$0xff]
  %v5040 = vld [vmem:[%s3 + $0x1c0] sm:$0xff]
  %v5041 = vld [vmem:[%s3 + $0x1c8] sm:$0xf]
  %v5042 = vld [vmem:[%s3 + $0x1cc] sm:$0xff]
  %v5043 = vld [vmem:[%s3 + $0x1d4] sm:$0xff]
  %v5044 = vld [vmem:[%s3 + $0x1dc] sm:$0xf]
  %v5045 = vld [vmem:[%s3 + $0x1e0] sm:$0xff]
  %v5046 = vld [vmem:[%s3 + $0x1e8] sm:$0xff]
  %v5047 = vld [vmem:[%s3 + $0x1f0] sm:$0xf]
  %v5048 = vld [vmem:[%s3 + $0x1f4] sm:$0xff]
  %v5049 = vld [vmem:[%s3 + $0x1fc] sm:$0xff]
  %v5050 = vld [vmem:[%s3 + $0x204] sm:$0xf]
  %v5051 = vld [vmem:[%s3 + $0x208] sm:$0xff]
  %v5052 = vld [vmem:[%s3 + $0x210] sm:$0xff]
  %v5053 = vld [vmem:[%s3 + $0x218] sm:$0xf]
  %v5054 = vld [vmem:[%s3 + $0x21c] sm:$0xff]
  %v5055 = vld [vmem:[%s3 + $0x224] sm:$0xff]
  %v5056 = vld [vmem:[%s3 + $0x22c] sm:$0xf]
  %v5057 = vld [vmem:[%s3 + $0x230] sm:$0xff]
  %v5058 = vld [vmem:[%s3 + $0x238] sm:$0xff]
  %v5059 = vld [vmem:[%s3 + $0x240] sm:$0xf]
  %v5060 = vld [vmem:[%s3 + $0x244] sm:$0xff]
  %v5061 = vld [vmem:[%s3 + $0x24c] sm:$0xff]
  %v5062 = vld [vmem:[%s3 + $0x254] sm:$0xf]
  %v5063 = vld [vmem:[%s3 + $0x258] sm:$0xff]
  %v5064 = vld [vmem:[%s3 + $0x260] sm:$0xff]
  %v5065 = vld [vmem:[%s3 + $0x268] sm:$0xf]
  %v5066 = vld [vmem:[%s3 + $0x26c] sm:$0xff]
  %v5067 = vld [vmem:[%s3 + $0x274] sm:$0xff]
  %v5068 = vld [vmem:[%s3 + $0x27c] sm:$0xf]
  %v5069 = vld [vmem:[%s3 + $0x280] sm:$0xff]
  %v5070 = vld [vmem:[%s3 + $0x288] sm:$0xff]
  %v5071 = vld [vmem:[%s3 + $0x290] sm:$0xf]
  %v5072 = vld [vmem:[%s3 + $0x294] sm:$0xff]
  %v5073 = vld [vmem:[%s3 + $0x29c] sm:$0xff]
  %v5074 = vld [vmem:[%s3 + $0x2a4] sm:$0xf]
  %v5075 = vld [vmem:[%s3 + $0x2a8] sm:$0xff]
  %v5076 = vld [vmem:[%s3 + $0x2b0] sm:$0xff]
  %v5077 = vld [vmem:[%s3 + $0x2b8] sm:$0xf]
  %v5078 = vld [vmem:[%s3 + $0x2bc] sm:$0xff]
  %v5079 = vld [vmem:[%s3 + $0x2c4] sm:$0xff]
  %v5080 = vld [vmem:[%s3 + $0x2cc] sm:$0xf]
  %v5081 = vld [vmem:[%s3 + $0x2d0] sm:$0xff]
  %v5082 = vld [vmem:[%s3 + $0x2d8] sm:$0xff]
  %v5083 = vld [vmem:[%s3 + $0x2e0] sm:$0xf]
  %v5084 = vld [vmem:[%s3 + $0x2e4] sm:$0xff]
  %v5085 = vld [vmem:[%s3 + $0x2ec] sm:$0xff]
  %v5086 = vld [vmem:[%s3 + $0x2f4] sm:$0xf]
  %v5087 = vld [vmem:[%s3 + $0x2f8] sm:$0xff]
  %v5088 = vld [vmem:[%s3 + $0x300] sm:$0xff]
  %v5089 = vld [vmem:[%s3 + $0x308] sm:$0xf]
  %v5090 = vld [vmem:[%s3 + $0x30c] sm:$0xff]
  %v5091 = vld [vmem:[%s3 + $0x314] sm:$0xff]
  %v5092 = vld [vmem:[%s3 + $0x31c] sm:$0xf]
  %v5093 = vld [vmem:[%s3 + $0x320] sm:$0xff]
  %v5094 = vld [vmem:[%s3 + $0x328] sm:$0xff]
  %v5095 = vld [vmem:[%s3 + $0x330] sm:$0xf]
  %v5096 = vld [vmem:[%s3 + $0x334] sm:$0xff]
  %v5097 = vld [vmem:[%s3 + $0x33c] sm:$0xff]
  %v5098 = vld [vmem:[%s3 + $0x344] sm:$0xf]
  %v5099 = vld [vmem:[%s3 + $0x348] sm:$0xff]
  %v5100 = vld [vmem:[%s3 + $0x350] sm:$0xff]
  %v5101 = vld [vmem:[%s3 + $0x358] sm:$0xf]
  %v5102 = vld [vmem:[%s3 + $0x35c] sm:$0xff]
  %v5103 = vld [vmem:[%s3 + $0x364] sm:$0xff]
  %v5104 = vld [vmem:[%s3 + $0x36c] sm:$0xf]
  %v5105 = vld [vmem:[%s3 + $0x370] sm:$0xff]
  %v5106 = vld [vmem:[%s3 + $0x378] sm:$0xff]
  %v5107 = vld [vmem:[%s3 + $0x380] sm:$0xf]
  %v5108 = vld [vmem:[%s3 + $0x384] sm:$0xff]
  %v5109 = vld [vmem:[%s3 + $0x38c] sm:$0xff]
  %v5110 = vld [vmem:[%s3 + $0x394] sm:$0xf]
  %v5111 = vld [vmem:[%s3 + $0x398] sm:$0xff]
  %v5112 = vld [vmem:[%s3 + $0x3a0] sm:$0xff]
  %v5113 = vld [vmem:[%s3 + $0x3a8] sm:$0xf]
  %v5114 = vld [vmem:[%s3 + $0x3ac] sm:$0xff]
  %v5115 = vld [vmem:[%s3 + $0x3b4] sm:$0xff]
  %v5116 = vld [vmem:[%s3 + $0x3bc] sm:$0xf]
  %v5117 = vld [vmem:[%s3 + $0x3c0] sm:$0xff]
  %v5118 = vld [vmem:[%s3 + $0x3c8] sm:$0xff]
  %v5119 = vld [vmem:[%s3 + $0x3d0] sm:$0xf]
  %v5120 = vld [vmem:[%s3 + $0x3d4] sm:$0xff]
  %v5121 = vld [vmem:[%s3 + $0x3dc] sm:$0xff]
  %v5122 = vld [vmem:[%s3 + $0x3e4] sm:$0xf]
  %v5273 = vunpack.c.l.b16 %v4973
  %v5274 = vunpack.c.h.b16 %v4973
  %v5275 = vunpack.c.l.b16 %v4974
  %v5276 = vunpack.c.h.b16 %v4974
  %v5277 = vunpack.c.l.b16 %v4975
  %v5278 = vunpack.c.l.b16 %v4976
  %v5279 = vunpack.c.h.b16 %v4976
  %v5280 = vunpack.c.l.b16 %v4977
  %v5281 = vunpack.c.h.b16 %v4977
  %v5282 = vunpack.c.l.b16 %v4978
  %v5283 = vunpack.c.l.b16 %v4979
  %v5284 = vunpack.c.h.b16 %v4979
  %v5285 = vunpack.c.l.b16 %v4980
  %v5286 = vunpack.c.h.b16 %v4980
  %v5287 = vunpack.c.l.b16 %v4981
  %v5288 = vunpack.c.l.b16 %v4982
  %v5289 = vunpack.c.h.b16 %v4982
  %v5290 = vunpack.c.l.b16 %v4983
  %v5291 = vunpack.c.h.b16 %v4983
  %v5292 = vunpack.c.l.b16 %v4984
  %v5293 = vunpack.c.l.b16 %v4985
  %v5294 = vunpack.c.h.b16 %v4985
  %v5295 = vunpack.c.l.b16 %v4986
  %v5296 = vunpack.c.h.b16 %v4986
  %v5297 = vunpack.c.l.b16 %v4987
  %v5298 = vunpack.c.l.b16 %v4988
  %v5299 = vunpack.c.h.b16 %v4988
  %v5300 = vunpack.c.l.b16 %v4989
  %v5301 = vunpack.c.h.b16 %v4989
  %v5302 = vunpack.c.l.b16 %v4990
  %v5303 = vunpack.c.l.b16 %v4991
  %v5304 = vunpack.c.h.b16 %v4991
  %v5305 = vunpack.c.l.b16 %v4992
  %v5306 = vunpack.c.h.b16 %v4992
  %v5307 = vunpack.c.l.b16 %v4993
  %v5308 = vunpack.c.l.b16 %v4994
  %v5309 = vunpack.c.h.b16 %v4994
  %v5310 = vunpack.c.l.b16 %v4995
  %v5311 = vunpack.c.h.b16 %v4995
  %v5312 = vunpack.c.l.b16 %v4996
  %v5313 = vunpack.c.l.b16 %v4997
  %v5314 = vunpack.c.h.b16 %v4997
  %v5315 = vunpack.c.l.b16 %v4998
  %v5316 = vunpack.c.h.b16 %v4998
  %v5317 = vunpack.c.l.b16 %v4999
  %v5318 = vunpack.c.l.b16 %v5000
  %v5319 = vunpack.c.h.b16 %v5000
  %v5320 = vunpack.c.l.b16 %v5001
  %v5321 = vunpack.c.h.b16 %v5001
  %v5322 = vunpack.c.l.b16 %v5002
  %v5323 = vunpack.c.l.b16 %v5003
  %v5324 = vunpack.c.h.b16 %v5003
  %v5325 = vunpack.c.l.b16 %v5004
  %v5326 = vunpack.c.h.b16 %v5004
  %v5327 = vunpack.c.l.b16 %v5005
  %v5328 = vunpack.c.l.b16 %v5006
  %v5329 = vunpack.c.h.b16 %v5006
  %v5330 = vunpack.c.l.b16 %v5007
  %v5331 = vunpack.c.h.b16 %v5007
  %v5332 = vunpack.c.l.b16 %v5008
  %v5333 = vunpack.c.l.b16 %v5009
  %v5334 = vunpack.c.h.b16 %v5009
  %v5335 = vunpack.c.l.b16 %v5010
  %v5336 = vunpack.c.h.b16 %v5010
  %v5337 = vunpack.c.l.b16 %v5011
  %v5338 = vunpack.c.l.b16 %v5012
  %v5339 = vunpack.c.h.b16 %v5012
  %v5340 = vunpack.c.l.b16 %v5013
  %v5341 = vunpack.c.h.b16 %v5013
  %v5342 = vunpack.c.l.b16 %v5014
  %v5343 = vunpack.c.l.b16 %v5015
  %v5344 = vunpack.c.h.b16 %v5015
  %v5345 = vunpack.c.l.b16 %v5016
  %v5346 = vunpack.c.h.b16 %v5016
  %v5347 = vunpack.c.l.b16 %v5017
  %v5348 = vunpack.c.l.b16 %v5018
  %v5349 = vunpack.c.h.b16 %v5018
  %v5350 = vunpack.c.l.b16 %v5019
  %v5351 = vunpack.c.h.b16 %v5019
  %v5352 = vunpack.c.l.b16 %v5020
  %v5353 = vunpack.c.l.b16 %v5021
  %v5354 = vunpack.c.h.b16 %v5021
  %v5355 = vunpack.c.l.b16 %v5022
  %v5356 = vunpack.c.h.b16 %v5022
  %v5357 = vunpack.c.l.b16 %v5023
  %v5358 = vunpack.c.l.b16 %v5024
  %v5359 = vunpack.c.h.b16 %v5024
  %v5360 = vunpack.c.l.b16 %v5025
  %v5361 = vunpack.c.h.b16 %v5025
  %v5362 = vunpack.c.l.b16 %v5026
  %v5363 = vunpack.c.l.b16 %v5027
  %v5364 = vunpack.c.h.b16 %v5027
  %v5365 = vunpack.c.l.b16 %v5028
  %v5366 = vunpack.c.h.b16 %v5028
  %v5367 = vunpack.c.l.b16 %v5029
  %v5368 = vunpack.c.l.b16 %v5030
  %v5369 = vunpack.c.h.b16 %v5030
  %v5370 = vunpack.c.l.b16 %v5031
  %v5371 = vunpack.c.h.b16 %v5031
  %v5372 = vunpack.c.l.b16 %v5032
  %v5373 = vunpack.c.l.b16 %v5033
  %v5374 = vunpack.c.h.b16 %v5033
  %v5375 = vunpack.c.l.b16 %v5034
  %v5376 = vunpack.c.h.b16 %v5034
  %v5377 = vunpack.c.l.b16 %v5035
  %v5378 = vunpack.c.l.b16 %v5036
  %v5379 = vunpack.c.h.b16 %v5036
  %v5380 = vunpack.c.l.b16 %v5037
  %v5381 = vunpack.c.h.b16 %v5037
  %v5382 = vunpack.c.l.b16 %v5038
  %v5383 = vunpack.c.l.b16 %v5039
  %v5384 = vunpack.c.h.b16 %v5039
  %v5385 = vunpack.c.l.b16 %v5040
  %v5386 = vunpack.c.h.b16 %v5040
  %v5387 = vunpack.c.l.b16 %v5041
  %v5388 = vunpack.c.l.b16 %v5042
  %v5389 = vunpack.c.h.b16 %v5042
  %v5390 = vunpack.c.l.b16 %v5043
  %v5391 = vunpack.c.h.b16 %v5043
  %v5392 = vunpack.c.l.b16 %v5044
  %v5393 = vunpack.c.l.b16 %v5045
  %v5394 = vunpack.c.h.b16 %v5045
  %v5395 = vunpack.c.l.b16 %v5046
  %v5396 = vunpack.c.h.b16 %v5046
  %v5397 = vunpack.c.l.b16 %v5047
  %v5398 = vunpack.c.l.b16 %v5048
  %v5399 = vunpack.c.h.b16 %v5048
  %v5400 = vunpack.c.l.b16 %v5049
  %v5401 = vunpack.c.h.b16 %v5049
  %v5402 = vunpack.c.l.b16 %v5050
  %v5403 = vunpack.c.l.b16 %v5051
  %v5404 = vunpack.c.h.b16 %v5051
  %v5405 = vunpack.c.l.b16 %v5052
  %v5406 = vunpack.c.h.b16 %v5052
  %v5407 = vunpack.c.l.b16 %v5053
  %v5408 = vunpack.c.l.b16 %v5054
  %v5409 = vunpack.c.h.b16 %v5054
  %v5410 = vunpack.c.l.b16 %v5055
  %v5411 = vunpack.c.h.b16 %v5055
  %v5412 = vunpack.c.l.b16 %v5056
  %v5413 = vunpack.c.l.b16 %v5057
  %v5414 = vunpack.c.h.b16 %v5057
  %v5415 = vunpack.c.l.b16 %v5058
  %v5416 = vunpack.c.h.b16 %v5058
  %v5417 = vunpack.c.l.b16 %v5059
  %v5418 = vunpack.c.l.b16 %v5060
  %v5419 = vunpack.c.h.b16 %v5060
  %v5420 = vunpack.c.l.b16 %v5061
  %v5421 = vunpack.c.h.b16 %v5061
  %v5422 = vunpack.c.l.b16 %v5062
  %v5423 = vunpack.c.l.b16 %v5063
  %v5424 = vunpack.c.h.b16 %v5063
  %v5425 = vunpack.c.l.b16 %v5064
  %v5426 = vunpack.c.h.b16 %v5064
  %v5427 = vunpack.c.l.b16 %v5065
  %v5428 = vunpack.c.l.b16 %v5066
  %v5429 = vunpack.c.h.b16 %v5066
  %v5430 = vunpack.c.l.b16 %v5067
  %v5431 = vunpack.c.h.b16 %v5067
  %v5432 = vunpack.c.l.b16 %v5068
  %v5433 = vunpack.c.l.b16 %v5069
  %v5434 = vunpack.c.h.b16 %v5069
  %v5435 = vunpack.c.l.b16 %v5070
  %v5436 = vunpack.c.h.b16 %v5070
  %v5437 = vunpack.c.l.b16 %v5071
  %v5438 = vunpack.c.l.b16 %v5072
  %v5439 = vunpack.c.h.b16 %v5072
  %v5440 = vunpack.c.l.b16 %v5073
  %v5441 = vunpack.c.h.b16 %v5073
  %v5442 = vunpack.c.l.b16 %v5074
  %v5443 = vunpack.c.l.b16 %v5075
  %v5444 = vunpack.c.h.b16 %v5075
  %v5445 = vunpack.c.l.b16 %v5076
  %v5446 = vunpack.c.h.b16 %v5076
  %v5447 = vunpack.c.l.b16 %v5077
  %v5448 = vunpack.c.l.b16 %v5078
  %v5449 = vunpack.c.h.b16 %v5078
  %v5450 = vunpack.c.l.b16 %v5079
  %v5451 = vunpack.c.h.b16 %v5079
  %v5452 = vunpack.c.l.b16 %v5080
  %v5453 = vunpack.c.l.b16 %v5081
  %v5454 = vunpack.c.h.b16 %v5081
  %v5455 = vunpack.c.l.b16 %v5082
  %v5456 = vunpack.c.h.b16 %v5082
  %v5457 = vunpack.c.l.b16 %v5083
  %v5458 = vunpack.c.l.b16 %v5084
  %v5459 = vunpack.c.h.b16 %v5084
  %v5460 = vunpack.c.l.b16 %v5085
  %v5461 = vunpack.c.h.b16 %v5085
  %v5462 = vunpack.c.l.b16 %v5086
  %v5463 = vunpack.c.l.b16 %v5087
  %v5464 = vunpack.c.h.b16 %v5087
  %v5465 = vunpack.c.l.b16 %v5088
  %v5466 = vunpack.c.h.b16 %v5088
  %v5467 = vunpack.c.l.b16 %v5089
  %v5468 = vunpack.c.l.b16 %v5090
  %v5469 = vunpack.c.h.b16 %v5090
  %v5470 = vunpack.c.l.b16 %v5091
  %v5471 = vunpack.c.h.b16 %v5091
  %v5472 = vunpack.c.l.b16 %v5092
  %v5473 = vunpack.c.l.b16 %v5093
  %v5474 = vunpack.c.h.b16 %v5093
  %v5475 = vunpack.c.l.b16 %v5094
  %v5476 = vunpack.c.h.b16 %v5094
  %v5477 = vunpack.c.l.b16 %v5095
  %v5478 = vunpack.c.l.b16 %v5096
  %v5479 = vunpack.c.h.b16 %v5096
  %v5480 = vunpack.c.l.b16 %v5097
  %v5481 = vunpack.c.h.b16 %v5097
  %v5482 = vunpack.c.l.b16 %v5098
  %v5483 = vunpack.c.l.b16 %v5099
  %v5484 = vunpack.c.h.b16 %v5099
  %v5485 = vunpack.c.l.b16 %v5100
  %v5486 = vunpack.c.h.b16 %v5100
  %v5487 = vunpack.c.l.b16 %v5101
  %v5488 = vunpack.c.l.b16 %v5102
  %v5489 = vunpack.c.h.b16 %v5102
  %v5490 = vunpack.c.l.b16 %v5103
  %v5491 = vunpack.c.h.b16 %v5103
  %v5492 = vunpack.c.l.b16 %v5104
  %v5493 = vunpack.c.l.b16 %v5105
  %v5494 = vunpack.c.h.b16 %v5105
  %v5495 = vunpack.c.l.b16 %v5106
  %v5496 = vunpack.c.h.b16 %v5106
  %v5497 = vunpack.c.l.b16 %v5107
  %v5498 = vunpack.c.l.b16 %v5108
  %v5499 = vunpack.c.h.b16 %v5108
  %v5500 = vunpack.c.l.b16 %v5109
  %v5501 = vunpack.c.h.b16 %v5109
  %v5502 = vunpack.c.l.b16 %v5110
  %v5503 = vunpack.c.l.b16 %v5111
  %v5504 = vunpack.c.h.b16 %v5111
  %v5505 = vunpack.c.l.b16 %v5112
  %v5506 = vunpack.c.h.b16 %v5112
  %v5507 = vunpack.c.l.b16 %v5113
  %v5508 = vunpack.c.l.b16 %v5114
  %v5509 = vunpack.c.h.b16 %v5114
  %v5510 = vunpack.c.l.b16 %v5115
  %v5511 = vunpack.c.h.b16 %v5115
  %v5512 = vunpack.c.l.b16 %v5116
  %v5513 = vunpack.c.l.b16 %v5117
  %v5514 = vunpack.c.h.b16 %v5117
  %v5515 = vunpack.c.l.b16 %v5118
  %v5516 = vunpack.c.h.b16 %v5118
  %v5517 = vunpack.c.l.b16 %v5119
  %v5518 = vunpack.c.l.b16 %v5120
  %v5519 = vunpack.c.h.b16 %v5120
  %v5520 = vunpack.c.l.b16 %v5121
  %v5521 = vunpack.c.h.b16 %v5121
  %v5522 = vunpack.c.l.b16 %v5122
  %v5523 = vpack.c.b16 %v5278, %v5273
  %v5524 = vpack.c.b16 %v5279, %v5274
  %v5525 = vpack.c.b16 %v5280, %v5275
  %v5526 = vpack.c.b16 %v5281, %v5276
  %v5527 = vpack.c.b16 %v5282, %v5277
  %v5528 = vpack.c.b16 %v5288, %v5283
  %v5529 = vpack.c.b16 %v5289, %v5284
  %v5530 = vpack.c.b16 %v5290, %v5285
  %v5531 = vpack.c.b16 %v5291, %v5286
  %v5532 = vpack.c.b16 %v5292, %v5287
  %v5533 = vpack.c.b16 %v5298, %v5293
  %v5534 = vpack.c.b16 %v5299, %v5294
  %v5535 = vpack.c.b16 %v5300, %v5295
  %v5536 = vpack.c.b16 %v5301, %v5296
  %v5537 = vpack.c.b16 %v5302, %v5297
  %v5538 = vpack.c.b16 %v5308, %v5303
  %v5539 = vpack.c.b16 %v5309, %v5304
  %v5540 = vpack.c.b16 %v5310, %v5305
  %v5541 = vpack.c.b16 %v5311, %v5306
  %v5542 = vpack.c.b16 %v5312, %v5307
  %v5543 = vpack.c.b16 %v5318, %v5313
  %v5544 = vpack.c.b16 %v5319, %v5314
  %v5545 = vpack.c.b16 %v5320, %v5315
  %v5546 = vpack.c.b16 %v5321, %v5316
  %v5547 = vpack.c.b16 %v5322, %v5317
  %v5548 = vpack.c.b16 %v5328, %v5323
  %v5549 = vpack.c.b16 %v5329, %v5324
  %v5550 = vpack.c.b16 %v5330, %v5325
  %v5551 = vpack.c.b16 %v5331, %v5326
  %v5552 = vpack.c.b16 %v5332, %v5327
  %v5553 = vpack.c.b16 %v5338, %v5333
  %v5554 = vpack.c.b16 %v5339, %v5334
  %v5555 = vpack.c.b16 %v5340, %v5335
  %v5556 = vpack.c.b16 %v5341, %v5336
  %v5557 = vpack.c.b16 %v5342, %v5337
  %v5558 = vpack.c.b16 %v5348, %v5343
  %v5559 = vpack.c.b16 %v5349, %v5344
  %v5560 = vpack.c.b16 %v5350, %v5345
  %v5561 = vpack.c.b16 %v5351, %v5346
  %v5562 = vpack.c.b16 %v5352, %v5347
  %v5563 = vpack.c.b16 %v5358, %v5353
  %v5564 = vpack.c.b16 %v5359, %v5354
  %v5565 = vpack.c.b16 %v5360, %v5355
  %v5566 = vpack.c.b16 %v5361, %v5356
  %v5567 = vpack.c.b16 %v5362, %v5357
  %v5568 = vpack.c.b16 %v5368, %v5363
  %v5569 = vpack.c.b16 %v5369, %v5364
  %v5570 = vpack.c.b16 %v5370, %v5365
  %v5571 = vpack.c.b16 %v5371, %v5366
  %v5572 = vpack.c.b16 %v5372, %v5367
  %v5573 = vpack.c.b16 %v5378, %v5373
  %v5574 = vpack.c.b16 %v5379, %v5374
  %v5575 = vpack.c.b16 %v5380, %v5375
  %v5576 = vpack.c.b16 %v5381, %v5376
  %v5577 = vpack.c.b16 %v5382, %v5377
  %v5578 = vpack.c.b16 %v5388, %v5383
  %v5579 = vpack.c.b16 %v5389, %v5384
  %v5580 = vpack.c.b16 %v5390, %v5385
  %v5581 = vpack.c.b16 %v5391, %v5386
  %v5582 = vpack.c.b16 %v5392, %v5387
  %v5583 = vpack.c.b16 %v5398, %v5393
  %v5584 = vpack.c.b16 %v5399, %v5394
  %v5585 = vpack.c.b16 %v5400, %v5395
  %v5586 = vpack.c.b16 %v5401, %v5396
  %v5587 = vpack.c.b16 %v5402, %v5397
  %v5588 = vpack.c.b16 %v5408, %v5403
  %v5589 = vpack.c.b16 %v5409, %v5404
  %v5590 = vpack.c.b16 %v5410, %v5405
  %v5591 = vpack.c.b16 %v5411, %v5406
  %v5592 = vpack.c.b16 %v5412, %v5407
  %v5593 = vpack.c.b16 %v5418, %v5413
  %v5594 = vpack.c.b16 %v5419, %v5414
  %v5595 = vpack.c.b16 %v5420, %v5415
  %v5596 = vpack.c.b16 %v5421, %v5416
  %v5597 = vpack.c.b16 %v5422, %v5417
  %v5598 = vpack.c.b16 %v5428, %v5423
  %v5599 = vpack.c.b16 %v5429, %v5424
  %v5600 = vpack.c.b16 %v5430, %v5425
  %v5601 = vpack.c.b16 %v5431, %v5426
  %v5602 = vpack.c.b16 %v5432, %v5427
  %v5603 = vpack.c.b16 %v5438, %v5433
  %v5604 = vpack.c.b16 %v5439, %v5434
  %v5605 = vpack.c.b16 %v5440, %v5435
  %v5606 = vpack.c.b16 %v5441, %v5436
  %v5607 = vpack.c.b16 %v5442, %v5437
  %v5608 = vpack.c.b16 %v5448, %v5443
  %v5609 = vpack.c.b16 %v5449, %v5444
  %v5610 = vpack.c.b16 %v5450, %v5445
  %v5611 = vpack.c.b16 %v5451, %v5446
  %v5612 = vpack.c.b16 %v5452, %v5447
  %v5613 = vpack.c.b16 %v5458, %v5453
  %v5614 = vpack.c.b16 %v5459, %v5454
  %v5615 = vpack.c.b16 %v5460, %v5455
  %v5616 = vpack.c.b16 %v5461, %v5456
  %v5617 = vpack.c.b16 %v5462, %v5457
  %v5618 = vpack.c.b16 %v5468, %v5463
  %v5619 = vpack.c.b16 %v5469, %v5464
  %v5620 = vpack.c.b16 %v5470, %v5465
  %v5621 = vpack.c.b16 %v5471, %v5466
  %v5622 = vpack.c.b16 %v5472, %v5467
  %v5623 = vpack.c.b16 %v5478, %v5473
  %v5624 = vpack.c.b16 %v5479, %v5474
  %v5625 = vpack.c.b16 %v5480, %v5475
  %v5626 = vpack.c.b16 %v5481, %v5476
  %v5627 = vpack.c.b16 %v5482, %v5477
  %v5628 = vpack.c.b16 %v5488, %v5483
  %v5629 = vpack.c.b16 %v5489, %v5484
  %v5630 = vpack.c.b16 %v5490, %v5485
  %v5631 = vpack.c.b16 %v5491, %v5486
  %v5632 = vpack.c.b16 %v5492, %v5487
  %v5633 = vpack.c.b16 %v5498, %v5493
  %v5634 = vpack.c.b16 %v5499, %v5494
  %v5635 = vpack.c.b16 %v5500, %v5495
  %v5636 = vpack.c.b16 %v5501, %v5496
  %v5637 = vpack.c.b16 %v5502, %v5497
  %v5638 = vpack.c.b16 %v5508, %v5503
  %v5639 = vpack.c.b16 %v5509, %v5504
  %v5640 = vpack.c.b16 %v5510, %v5505
  %v5641 = vpack.c.b16 %v5511, %v5506
  %v5642 = vpack.c.b16 %v5512, %v5507
  %v5643 = vpack.c.b16 %v5518, %v5513
  %v5644 = vpack.c.b16 %v5519, %v5514
  %v5645 = vpack.c.b16 %v5520, %v5515
  %v5646 = vpack.c.b16 %v5521, %v5516
  %v5647 = vpack.c.b16 %v5522, %v5517
  %v5749 = vsel %vm1087, %v5527, 0
  %v5752 = vsel %vm1087, %v5532, 0
  %v5755 = vsel %vm1087, %v5537, 0
  %v5758 = vsel %vm1087, %v5542, 0
  %v5761 = vsel %vm1087, %v5547, 0
  %v5764 = vsel %vm1087, %v5552, 0
  %v5767 = vsel %vm1087, %v5557, 0
  %v5770 = vsel %vm1087, %v5562, 0
  %v5773 = vsel %vm1087, %v5567, 0
  %v5776 = vsel %vm1087, %v5572, 0
  %v5779 = vsel %vm1087, %v5577, 0
  %v5782 = vsel %vm1087, %v5582, 0
  %v5785 = vsel %vm1087, %v5587, 0
  %v5788 = vsel %vm1087, %v5592, 0
  %v5791 = vsel %vm1087, %v5597, 0
  %v5794 = vsel %vm1087, %v5602, 0
  %v5797 = vsel %vm1087, %v5607, 0
  %v5800 = vsel %vm1087, %v5612, 0
  %v5803 = vsel %vm1087, %v5617, 0
  %v5806 = vsel %vm1087, %v5622, 0
  %v5809 = vsel %vm1087, %v5627, 0
  %v5812 = vsel %vm1087, %v5632, 0
  %v5815 = vsel %vm1087, %v5637, 0
  %v5818 = vsel %vm1087, %v5642, 0
  %v5821 = vsel %vm1087, %v5647, 0
  %5823 = vmatpush.bf16.msra.mxu0 %v1022
  %5824 = vmatpush.bf16.msra.mxu0 %v1021
  %5825 = vmatpush.bf16.msra.mxu0 %v1020
  %5826 = vmatpush.bf16.msra.mxu0 %v1019
  %5827 = vmatpush.bf16.msra.mxu0 %v1018
  %5828 = vmatpush.bf16.msra.mxu0 %v1017
  %5829 = vmatpush.bf16.msra.mxu0 %v1016
  %5830 = vmatpush.bf16.msra.mxu0 %v1015
  %5831 = vmatmul.bf16.gmra.mxu0 %v5523
  %v5832 = vpop.f32.mrf.mxu0
  %v5833 = vadd.f32 0.0, %v5832
  %v5834 = vpop.f32.mrf.mxu0
  %v5835 = vadd.f32 0.0, %v5834
  %5836 = vmatmul.bf16.gmra.mxu0 %v5528
  %v5837 = vpop.f32.mrf.mxu0
  %v5838 = vadd.f32 0.0, %v5837
  %v5839 = vpop.f32.mrf.mxu0
  %v5840 = vadd.f32 0.0, %v5839
  %5841 = vmatmul.bf16.gmra.mxu0 %v5533
  %v5842 = vpop.f32.mrf.mxu0
  %v5843 = vadd.f32 0.0, %v5842
  %v5844 = vpop.f32.mrf.mxu0
  %v5845 = vadd.f32 0.0, %v5844
  %5846 = vmatmul.bf16.gmra.mxu0 %v5538
  %v5847 = vpop.f32.mrf.mxu0
  %v5848 = vadd.f32 0.0, %v5847
  %v5849 = vpop.f32.mrf.mxu0
  %v5850 = vadd.f32 0.0, %v5849
  %5851 = vmatmul.bf16.gmra.mxu0 %v5543
  %v5852 = vpop.f32.mrf.mxu0
  %v5853 = vadd.f32 0.0, %v5852
  %v5854 = vpop.f32.mrf.mxu0
  %v5855 = vadd.f32 0.0, %v5854
  %5856 = vmatmul.bf16.gmra.mxu0 %v5548
  %v5857 = vpop.f32.mrf.mxu0
  %v5858 = vadd.f32 0.0, %v5857
  %v5859 = vpop.f32.mrf.mxu0
  %v5860 = vadd.f32 0.0, %v5859
  %5861 = vmatmul.bf16.gmra.mxu0 %v5553
  %v5862 = vpop.f32.mrf.mxu0
  %v5863 = vadd.f32 0.0, %v5862
  %v5864 = vpop.f32.mrf.mxu0
  %v5865 = vadd.f32 0.0, %v5864
  %5866 = vmatmul.bf16.gmra.mxu0 %v5558
  %v5867 = vpop.f32.mrf.mxu0
  %v5868 = vadd.f32 0.0, %v5867
  %v5869 = vpop.f32.mrf.mxu0
  %v5870 = vadd.f32 0.0, %v5869
  %5871 = vmatmul.bf16.gmra.mxu0 %v5563
  %v5872 = vpop.f32.mrf.mxu0
  %v5873 = vadd.f32 0.0, %v5872
  %v5874 = vpop.f32.mrf.mxu0
  %v5875 = vadd.f32 0.0, %v5874
  %5876 = vmatmul.bf16.gmra.mxu0 %v5568
  %v5877 = vpop.f32.mrf.mxu0
  %v5878 = vadd.f32 0.0, %v5877
  %v5879 = vpop.f32.mrf.mxu0
  %v5880 = vadd.f32 0.0, %v5879
  %5881 = vmatmul.bf16.gmra.mxu0 %v5573
  %v5882 = vpop.f32.mrf.mxu0
  %v5883 = vadd.f32 0.0, %v5882
  %v5884 = vpop.f32.mrf.mxu0
  %v5885 = vadd.f32 0.0, %v5884
  %5886 = vmatmul.bf16.gmra.mxu0 %v5578
  %v5887 = vpop.f32.mrf.mxu0
  %v5888 = vadd.f32 0.0, %v5887
  %v5889 = vpop.f32.mrf.mxu0
  %v5890 = vadd.f32 0.0, %v5889
  %5891 = vmatmul.bf16.gmra.mxu0 %v5583
  %v5892 = vpop.f32.mrf.mxu0
  %v5893 = vadd.f32 0.0, %v5892
  %v5894 = vpop.f32.mrf.mxu0
  %v5895 = vadd.f32 0.0, %v5894
  %5896 = vmatmul.bf16.gmra.mxu0 %v5588
  %v5897 = vpop.f32.mrf.mxu0
  %v5898 = vadd.f32 0.0, %v5897
  %v5899 = vpop.f32.mrf.mxu0
  %v5900 = vadd.f32 0.0, %v5899
  %5901 = vmatmul.bf16.gmra.mxu0 %v5593
  %v5902 = vpop.f32.mrf.mxu0
  %v5903 = vadd.f32 0.0, %v5902
  %v5904 = vpop.f32.mrf.mxu0
  %v5905 = vadd.f32 0.0, %v5904
  %5906 = vmatmul.bf16.gmra.mxu0 %v5598
  %v5907 = vpop.f32.mrf.mxu0
  %v5908 = vadd.f32 0.0, %v5907
  %v5909 = vpop.f32.mrf.mxu0
  %v5910 = vadd.f32 0.0, %v5909
  %5911 = vmatmul.bf16.gmra.mxu0 %v5603
  %v5912 = vpop.f32.mrf.mxu0
  %v5913 = vadd.f32 0.0, %v5912
  %v5914 = vpop.f32.mrf.mxu0
  %v5915 = vadd.f32 0.0, %v5914
  %5916 = vmatmul.bf16.gmra.mxu0 %v5608
  %v5917 = vpop.f32.mrf.mxu0
  %v5918 = vadd.f32 0.0, %v5917
  %v5919 = vpop.f32.mrf.mxu0
  %v5920 = vadd.f32 0.0, %v5919
  %5921 = vmatmul.bf16.gmra.mxu0 %v5613
  %v5922 = vpop.f32.mrf.mxu0
  %v5923 = vadd.f32 0.0, %v5922
  %v5924 = vpop.f32.mrf.mxu0
  %v5925 = vadd.f32 0.0, %v5924
  %5926 = vmatmul.bf16.gmra.mxu0 %v5618
  %v5927 = vpop.f32.mrf.mxu0
  %v5928 = vadd.f32 0.0, %v5927
  %v5929 = vpop.f32.mrf.mxu0
  %v5930 = vadd.f32 0.0, %v5929
  %5931 = vmatmul.bf16.gmra.mxu0 %v5623
  %v5932 = vpop.f32.mrf.mxu0
  %v5933 = vadd.f32 0.0, %v5932
  %v5934 = vpop.f32.mrf.mxu0
  %v5935 = vadd.f32 0.0, %v5934
  %5936 = vmatmul.bf16.gmra.mxu0 %v5628
  %v5937 = vpop.f32.mrf.mxu0
  %v5938 = vadd.f32 0.0, %v5937
  %v5939 = vpop.f32.mrf.mxu0
  %v5940 = vadd.f32 0.0, %v5939
  %5941 = vmatmul.bf16.gmra.mxu0 %v5633
  %v5942 = vpop.f32.mrf.mxu0
  %v5943 = vadd.f32 0.0, %v5942
  %v5944 = vpop.f32.mrf.mxu0
  %v5945 = vadd.f32 0.0, %v5944
  %5946 = vmatmul.bf16.gmra.mxu0 %v5638
  %v5947 = vpop.f32.mrf.mxu0
  %v5948 = vadd.f32 0.0, %v5947
  %v5949 = vpop.f32.mrf.mxu0
  %v5950 = vadd.f32 0.0, %v5949
  %5951 = vmatmul.bf16.gmra.mxu0 %v5643
  %v5952 = vpop.f32.mrf.mxu0
  %v5953 = vadd.f32 0.0, %v5952
  %v5954 = vpop.f32.mrf.mxu0
  %v5955 = vadd.f32 0.0, %v5954
  %5956 = vdwg.mxu0
  %5957 = vmatpush.bf16.msra.mxu0 %v1030
  %5958 = vmatpush.bf16.msra.mxu0 %v1029
  %5959 = vmatpush.bf16.msra.mxu0 %v1028
  %5960 = vmatpush.bf16.msra.mxu0 %v1027
  %5961 = vmatpush.bf16.msra.mxu0 %v1026
  %5962 = vmatpush.bf16.msra.mxu0 %v1025
  %5963 = vmatpush.bf16.msra.mxu0 %v1024
  %5964 = vmatpush.bf16.msra.mxu0 %v1023
  %5965 = vmatmul.bf16.gmra.mxu0 %v5524
  %v5966 = vpop.f32.mrf.mxu0
  %v5967 = vadd.f32 %v5833, %v5966
  %v5968 = vpop.f32.mrf.mxu0
  %v5969 = vadd.f32 %v5835, %v5968
  %5970 = vmatmul.bf16.gmra.mxu0 %v5529
  %v5971 = vpop.f32.mrf.mxu0
  %v5972 = vadd.f32 %v5838, %v5971
  %v5973 = vpop.f32.mrf.mxu0
  %v5974 = vadd.f32 %v5840, %v5973
  %5975 = vmatmul.bf16.gmra.mxu0 %v5534
  %v5976 = vpop.f32.mrf.mxu0
  %v5977 = vadd.f32 %v5843, %v5976
  %v5978 = vpop.f32.mrf.mxu0
  %v5979 = vadd.f32 %v5845, %v5978
  %5980 = vmatmul.bf16.gmra.mxu0 %v5539
  %v5981 = vpop.f32.mrf.mxu0
  %v5982 = vadd.f32 %v5848, %v5981
  %v5983 = vpop.f32.mrf.mxu0
  %v5984 = vadd.f32 %v5850, %v5983
  %5985 = vmatmul.bf16.gmra.mxu0 %v5544
  %v5986 = vpop.f32.mrf.mxu0
  %v5987 = vadd.f32 %v5853, %v5986
  %v5988 = vpop.f32.mrf.mxu0
  %v5989 = vadd.f32 %v5855, %v5988
  %5990 = vmatmul.bf16.gmra.mxu0 %v5549
  %v5991 = vpop.f32.mrf.mxu0
  %v5992 = vadd.f32 %v5858, %v5991
  %v5993 = vpop.f32.mrf.mxu0
  %v5994 = vadd.f32 %v5860, %v5993
  %5995 = vmatmul.bf16.gmra.mxu0 %v5554
  %v5996 = vpop.f32.mrf.mxu0
  %v5997 = vadd.f32 %v5863, %v5996
  %v5998 = vpop.f32.mrf.mxu0
  %v5999 = vadd.f32 %v5865, %v5998
  %6000 = vmatmul.bf16.gmra.mxu0 %v5559
  %v6001 = vpop.f32.mrf.mxu0
  %v6002 = vadd.f32 %v5868, %v6001
  %v6003 = vpop.f32.mrf.mxu0
  %v6004 = vadd.f32 %v5870, %v6003
  %6005 = vmatmul.bf16.gmra.mxu0 %v5564
  %v6006 = vpop.f32.mrf.mxu0
  %v6007 = vadd.f32 %v5873, %v6006
  %v6008 = vpop.f32.mrf.mxu0
  %v6009 = vadd.f32 %v5875, %v6008
  %6010 = vmatmul.bf16.gmra.mxu0 %v5569
  %v6011 = vpop.f32.mrf.mxu0
  %v6012 = vadd.f32 %v5878, %v6011
  %v6013 = vpop.f32.mrf.mxu0
  %v6014 = vadd.f32 %v5880, %v6013
  %6015 = vmatmul.bf16.gmra.mxu0 %v5574
  %v6016 = vpop.f32.mrf.mxu0
  %v6017 = vadd.f32 %v5883, %v6016
  %v6018 = vpop.f32.mrf.mxu0
  %v6019 = vadd.f32 %v5885, %v6018
  %6020 = vmatmul.bf16.gmra.mxu0 %v5579
  %v6021 = vpop.f32.mrf.mxu0
  %v6022 = vadd.f32 %v5888, %v6021
  %v6023 = vpop.f32.mrf.mxu0
  %v6024 = vadd.f32 %v5890, %v6023
  %6025 = vmatmul.bf16.gmra.mxu0 %v5584
  %v6026 = vpop.f32.mrf.mxu0
  %v6027 = vadd.f32 %v5893, %v6026
  %v6028 = vpop.f32.mrf.mxu0
  %v6029 = vadd.f32 %v5895, %v6028
  %6030 = vmatmul.bf16.gmra.mxu0 %v5589
  %v6031 = vpop.f32.mrf.mxu0
  %v6032 = vadd.f32 %v5898, %v6031
  %v6033 = vpop.f32.mrf.mxu0
  %v6034 = vadd.f32 %v5900, %v6033
  %6035 = vmatmul.bf16.gmra.mxu0 %v5594
  %v6036 = vpop.f32.mrf.mxu0
  %v6037 = vadd.f32 %v5903, %v6036
  %v6038 = vpop.f32.mrf.mxu0
  %v6039 = vadd.f32 %v5905, %v6038
  %6040 = vmatmul.bf16.gmra.mxu0 %v5599
  %v6041 = vpop.f32.mrf.mxu0
  %v6042 = vadd.f32 %v5908, %v6041
  %v6043 = vpop.f32.mrf.mxu0
  %v6044 = vadd.f32 %v5910, %v6043
  %6045 = vmatmul.bf16.gmra.mxu0 %v5604
  %v6046 = vpop.f32.mrf.mxu0
  %v6047 = vadd.f32 %v5913, %v6046
  %v6048 = vpop.f32.mrf.mxu0
  %v6049 = vadd.f32 %v5915, %v6048
  %6050 = vmatmul.bf16.gmra.mxu0 %v5609
  %v6051 = vpop.f32.mrf.mxu0
  %v6052 = vadd.f32 %v5918, %v6051
  %v6053 = vpop.f32.mrf.mxu0
  %v6054 = vadd.f32 %v5920, %v6053
  %6055 = vmatmul.bf16.gmra.mxu0 %v5614
  %v6056 = vpop.f32.mrf.mxu0
  %v6057 = vadd.f32 %v5923, %v6056
  %v6058 = vpop.f32.mrf.mxu0
  %v6059 = vadd.f32 %v5925, %v6058
  %6060 = vmatmul.bf16.gmra.mxu0 %v5619
  %v6061 = vpop.f32.mrf.mxu0
  %v6062 = vadd.f32 %v5928, %v6061
  %v6063 = vpop.f32.mrf.mxu0
  %v6064 = vadd.f32 %v5930, %v6063
  %6065 = vmatmul.bf16.gmra.mxu0 %v5624
  %v6066 = vpop.f32.mrf.mxu0
  %v6067 = vadd.f32 %v5933, %v6066
  %v6068 = vpop.f32.mrf.mxu0
  %v6069 = vadd.f32 %v5935, %v6068
  %6070 = vmatmul.bf16.gmra.mxu0 %v5629
  %v6071 = vpop.f32.mrf.mxu0
  %v6072 = vadd.f32 %v5938, %v6071
  %v6073 = vpop.f32.mrf.mxu0
  %v6074 = vadd.f32 %v5940, %v6073
  %6075 = vmatmul.bf16.gmra.mxu0 %v5634
  %v6076 = vpop.f32.mrf.mxu0
  %v6077 = vadd.f32 %v5943, %v6076
  %v6078 = vpop.f32.mrf.mxu0
  %v6079 = vadd.f32 %v5945, %v6078
  %6080 = vmatmul.bf16.gmra.mxu0 %v5639
  %v6081 = vpop.f32.mrf.mxu0
  %v6082 = vadd.f32 %v5948, %v6081
  %v6083 = vpop.f32.mrf.mxu0
  %v6084 = vadd.f32 %v5950, %v6083
  %6085 = vmatmul.bf16.gmra.mxu0 %v5644
  %v6086 = vpop.f32.mrf.mxu0
  %v6087 = vadd.f32 %v5953, %v6086
  %v6088 = vpop.f32.mrf.mxu0
  %v6089 = vadd.f32 %v5955, %v6088
  %6090 = vdwg.mxu0
  %6091 = vmatpush.bf16.msra.mxu0 %v1038
  %6092 = vmatpush.bf16.msra.mxu0 %v1037
  %6093 = vmatpush.bf16.msra.mxu0 %v1036
  %6094 = vmatpush.bf16.msra.mxu0 %v1035
  %6095 = vmatpush.bf16.msra.mxu0 %v1034
  %6096 = vmatpush.bf16.msra.mxu0 %v1033
  %6097 = vmatpush.bf16.msra.mxu0 %v1032
  %6098 = vmatpush.bf16.msra.mxu0 %v1031
  %6099 = vmatmul.bf16.gmra.mxu0 %v5525
  %v6100 = vpop.f32.mrf.mxu0
  %v6101 = vadd.f32 %v5967, %v6100
  %v6102 = vpop.f32.mrf.mxu0
  %v6103 = vadd.f32 %v5969, %v6102
  %6104 = vmatmul.bf16.gmra.mxu0 %v5530
  %v6105 = vpop.f32.mrf.mxu0
  %v6106 = vadd.f32 %v5972, %v6105
  %v6107 = vpop.f32.mrf.mxu0
  %v6108 = vadd.f32 %v5974, %v6107
  %6109 = vmatmul.bf16.gmra.mxu0 %v5535
  %v6110 = vpop.f32.mrf.mxu0
  %v6111 = vadd.f32 %v5977, %v6110
  %v6112 = vpop.f32.mrf.mxu0
  %v6113 = vadd.f32 %v5979, %v6112
  %6114 = vmatmul.bf16.gmra.mxu0 %v5540
  %v6115 = vpop.f32.mrf.mxu0
  %v6116 = vadd.f32 %v5982, %v6115
  %v6117 = vpop.f32.mrf.mxu0
  %v6118 = vadd.f32 %v5984, %v6117
  %6119 = vmatmul.bf16.gmra.mxu0 %v5545
  %v6120 = vpop.f32.mrf.mxu0
  %v6121 = vadd.f32 %v5987, %v6120
  %v6122 = vpop.f32.mrf.mxu0
  %v6123 = vadd.f32 %v5989, %v6122
  %6124 = vmatmul.bf16.gmra.mxu0 %v5550
  %v6125 = vpop.f32.mrf.mxu0
  %v6126 = vadd.f32 %v5992, %v6125
  %v6127 = vpop.f32.mrf.mxu0
  %v6128 = vadd.f32 %v5994, %v6127
  %6129 = vmatmul.bf16.gmra.mxu0 %v5555
  %v6130 = vpop.f32.mrf.mxu0
  %v6131 = vadd.f32 %v5997, %v6130
  %v6132 = vpop.f32.mrf.mxu0
  %v6133 = vadd.f32 %v5999, %v6132
  %6134 = vmatmul.bf16.gmra.mxu0 %v5560
  %v6135 = vpop.f32.mrf.mxu0
  %v6136 = vadd.f32 %v6002, %v6135
  %v6137 = vpop.f32.mrf.mxu0
  %v6138 = vadd.f32 %v6004, %v6137
  %6139 = vmatmul.bf16.gmra.mxu0 %v5565
  %v6140 = vpop.f32.mrf.mxu0
  %v6141 = vadd.f32 %v6007, %v6140
  %v6142 = vpop.f32.mrf.mxu0
  %v6143 = vadd.f32 %v6009, %v6142
  %6144 = vmatmul.bf16.gmra.mxu0 %v5570
  %v6145 = vpop.f32.mrf.mxu0
  %v6146 = vadd.f32 %v6012, %v6145
  %v6147 = vpop.f32.mrf.mxu0
  %v6148 = vadd.f32 %v6014, %v6147
  %6149 = vmatmul.bf16.gmra.mxu0 %v5575
  %v6150 = vpop.f32.mrf.mxu0
  %v6151 = vadd.f32 %v6017, %v6150
  %v6152 = vpop.f32.mrf.mxu0
  %v6153 = vadd.f32 %v6019, %v6152
  %6154 = vmatmul.bf16.gmra.mxu0 %v5580
  %v6155 = vpop.f32.mrf.mxu0
  %v6156 = vadd.f32 %v6022, %v6155
  %v6157 = vpop.f32.mrf.mxu0
  %v6158 = vadd.f32 %v6024, %v6157
  %6159 = vmatmul.bf16.gmra.mxu0 %v5585
  %v6160 = vpop.f32.mrf.mxu0
  %v6161 = vadd.f32 %v6027, %v6160
  %v6162 = vpop.f32.mrf.mxu0
  %v6163 = vadd.f32 %v6029, %v6162
  %6164 = vmatmul.bf16.gmra.mxu0 %v5590
  %v6165 = vpop.f32.mrf.mxu0
  %v6166 = vadd.f32 %v6032, %v6165
  %v6167 = vpop.f32.mrf.mxu0
  %v6168 = vadd.f32 %v6034, %v6167
  %6169 = vmatmul.bf16.gmra.mxu0 %v5595
  %v6170 = vpop.f32.mrf.mxu0
  %v6171 = vadd.f32 %v6037, %v6170
  %v6172 = vpop.f32.mrf.mxu0
  %v6173 = vadd.f32 %v6039, %v6172
  %6174 = vmatmul.bf16.gmra.mxu0 %v5600
  %v6175 = vpop.f32.mrf.mxu0
  %v6176 = vadd.f32 %v6042, %v6175
  %v6177 = vpop.f32.mrf.mxu0
  %v6178 = vadd.f32 %v6044, %v6177
  %6179 = vmatmul.bf16.gmra.mxu0 %v5605
  %v6180 = vpop.f32.mrf.mxu0
  %v6181 = vadd.f32 %v6047, %v6180
  %v6182 = vpop.f32.mrf.mxu0
  %v6183 = vadd.f32 %v6049, %v6182
  %6184 = vmatmul.bf16.gmra.mxu0 %v5610
  %v6185 = vpop.f32.mrf.mxu0
  %v6186 = vadd.f32 %v6052, %v6185
  %v6187 = vpop.f32.mrf.mxu0
  %v6188 = vadd.f32 %v6054, %v6187
  %6189 = vmatmul.bf16.gmra.mxu0 %v5615
  %v6190 = vpop.f32.mrf.mxu0
  %v6191 = vadd.f32 %v6057, %v6190
  %v6192 = vpop.f32.mrf.mxu0
  %v6193 = vadd.f32 %v6059, %v6192
  %6194 = vmatmul.bf16.gmra.mxu0 %v5620
  %v6195 = vpop.f32.mrf.mxu0
  %v6196 = vadd.f32 %v6062, %v6195
  %v6197 = vpop.f32.mrf.mxu0
  %v6198 = vadd.f32 %v6064, %v6197
  %6199 = vmatmul.bf16.gmra.mxu0 %v5625
  %v6200 = vpop.f32.mrf.mxu0
  %v6201 = vadd.f32 %v6067, %v6200
  %v6202 = vpop.f32.mrf.mxu0
  %v6203 = vadd.f32 %v6069, %v6202
  %6204 = vmatmul.bf16.gmra.mxu0 %v5630
  %v6205 = vpop.f32.mrf.mxu0
  %v6206 = vadd.f32 %v6072, %v6205
  %v6207 = vpop.f32.mrf.mxu0
  %v6208 = vadd.f32 %v6074, %v6207
  %6209 = vmatmul.bf16.gmra.mxu0 %v5635
  %v6210 = vpop.f32.mrf.mxu0
  %v6211 = vadd.f32 %v6077, %v6210
  %v6212 = vpop.f32.mrf.mxu0
  %v6213 = vadd.f32 %v6079, %v6212
  %6214 = vmatmul.bf16.gmra.mxu0 %v5640
  %v6215 = vpop.f32.mrf.mxu0
  %v6216 = vadd.f32 %v6082, %v6215
  %v6217 = vpop.f32.mrf.mxu0
  %v6218 = vadd.f32 %v6084, %v6217
  %6219 = vmatmul.bf16.gmra.mxu0 %v5645
  %v6220 = vpop.f32.mrf.mxu0
  %v6221 = vadd.f32 %v6087, %v6220
  %v6222 = vpop.f32.mrf.mxu0
  %v6223 = vadd.f32 %v6089, %v6222
  %6224 = vdwg.mxu0
  %6225 = vmatpush.bf16.msra.mxu0 %v1046
  %6226 = vmatpush.bf16.msra.mxu0 %v1045
  %6227 = vmatpush.bf16.msra.mxu0 %v1044
  %6228 = vmatpush.bf16.msra.mxu0 %v1043
  %6229 = vmatpush.bf16.msra.mxu0 %v1042
  %6230 = vmatpush.bf16.msra.mxu0 %v1041
  %6231 = vmatpush.bf16.msra.mxu0 %v1040
  %6232 = vmatpush.bf16.msra.mxu0 %v1039
  %6233 = vmatmul.bf16.gmra.mxu0 %v5526
  %v6234 = vpop.f32.mrf.mxu0
  %v6235 = vadd.f32 %v6101, %v6234
  %v6236 = vpop.f32.mrf.mxu0
  %v6237 = vadd.f32 %v6103, %v6236
  %6238 = vmatmul.bf16.gmra.mxu0 %v5531
  %v6239 = vpop.f32.mrf.mxu0
  %v6240 = vadd.f32 %v6106, %v6239
  %v6241 = vpop.f32.mrf.mxu0
  %v6242 = vadd.f32 %v6108, %v6241
  %6243 = vmatmul.bf16.gmra.mxu0 %v5536
  %v6244 = vpop.f32.mrf.mxu0
  %v6245 = vadd.f32 %v6111, %v6244
  %v6246 = vpop.f32.mrf.mxu0
  %v6247 = vadd.f32 %v6113, %v6246
  %6248 = vmatmul.bf16.gmra.mxu0 %v5541
  %v6249 = vpop.f32.mrf.mxu0
  %v6250 = vadd.f32 %v6116, %v6249
  %v6251 = vpop.f32.mrf.mxu0
  %v6252 = vadd.f32 %v6118, %v6251
  %6253 = vmatmul.bf16.gmra.mxu0 %v5546
  %v6254 = vpop.f32.mrf.mxu0
  %v6255 = vadd.f32 %v6121, %v6254
  %v6256 = vpop.f32.mrf.mxu0
  %v6257 = vadd.f32 %v6123, %v6256
  %6258 = vmatmul.bf16.gmra.mxu0 %v5551
  %v6259 = vpop.f32.mrf.mxu0
  %v6260 = vadd.f32 %v6126, %v6259
  %v6261 = vpop.f32.mrf.mxu0
  %v6262 = vadd.f32 %v6128, %v6261
  %6263 = vmatmul.bf16.gmra.mxu0 %v5556
  %v6264 = vpop.f32.mrf.mxu0
  %v6265 = vadd.f32 %v6131, %v6264
  %v6266 = vpop.f32.mrf.mxu0
  %v6267 = vadd.f32 %v6133, %v6266
  %6268 = vmatmul.bf16.gmra.mxu0 %v5561
  %v6269 = vpop.f32.mrf.mxu0
  %v6270 = vadd.f32 %v6136, %v6269
  %v6271 = vpop.f32.mrf.mxu0
  %v6272 = vadd.f32 %v6138, %v6271
  %6273 = vmatmul.bf16.gmra.mxu0 %v5566
  %v6274 = vpop.f32.mrf.mxu0
  %v6275 = vadd.f32 %v6141, %v6274
  %v6276 = vpop.f32.mrf.mxu0
  %v6277 = vadd.f32 %v6143, %v6276
  %6278 = vmatmul.bf16.gmra.mxu0 %v5571
  %v6279 = vpop.f32.mrf.mxu0
  %v6280 = vadd.f32 %v6146, %v6279
  %v6281 = vpop.f32.mrf.mxu0
  %v6282 = vadd.f32 %v6148, %v6281
  %6283 = vmatmul.bf16.gmra.mxu0 %v5576
  %v6284 = vpop.f32.mrf.mxu0
  %v6285 = vadd.f32 %v6151, %v6284
  %v6286 = vpop.f32.mrf.mxu0
  %v6287 = vadd.f32 %v6153, %v6286
  %6288 = vmatmul.bf16.gmra.mxu0 %v5581
  %v6289 = vpop.f32.mrf.mxu0
  %v6290 = vadd.f32 %v6156, %v6289
  %v6291 = vpop.f32.mrf.mxu0
  %v6292 = vadd.f32 %v6158, %v6291
  %6293 = vmatmul.bf16.gmra.mxu0 %v5586
  %v6294 = vpop.f32.mrf.mxu0
  %v6295 = vadd.f32 %v6161, %v6294
  %v6296 = vpop.f32.mrf.mxu0
  %v6297 = vadd.f32 %v6163, %v6296
  %6298 = vmatmul.bf16.gmra.mxu0 %v5591
  %v6299 = vpop.f32.mrf.mxu0
  %v6300 = vadd.f32 %v6166, %v6299
  %v6301 = vpop.f32.mrf.mxu0
  %v6302 = vadd.f32 %v6168, %v6301
  %6303 = vmatmul.bf16.gmra.mxu0 %v5596
  %v6304 = vpop.f32.mrf.mxu0
  %v6305 = vadd.f32 %v6171, %v6304
  %v6306 = vpop.f32.mrf.mxu0
  %v6307 = vadd.f32 %v6173, %v6306
  %6308 = vmatmul.bf16.gmra.mxu0 %v5601
  %v6309 = vpop.f32.mrf.mxu0
  %v6310 = vadd.f32 %v6176, %v6309
  %v6311 = vpop.f32.mrf.mxu0
  %v6312 = vadd.f32 %v6178, %v6311
  %6313 = vmatmul.bf16.gmra.mxu0 %v5606
  %v6314 = vpop.f32.mrf.mxu0
  %v6315 = vadd.f32 %v6181, %v6314
  %v6316 = vpop.f32.mrf.mxu0
  %v6317 = vadd.f32 %v6183, %v6316
  %6318 = vmatmul.bf16.gmra.mxu0 %v5611
  %v6319 = vpop.f32.mrf.mxu0
  %v6320 = vadd.f32 %v6186, %v6319
  %v6321 = vpop.f32.mrf.mxu0
  %v6322 = vadd.f32 %v6188, %v6321
  %6323 = vmatmul.bf16.gmra.mxu0 %v5616
  %v6324 = vpop.f32.mrf.mxu0
  %v6325 = vadd.f32 %v6191, %v6324
  %v6326 = vpop.f32.mrf.mxu0
  %v6327 = vadd.f32 %v6193, %v6326
  %6328 = vmatmul.bf16.gmra.mxu0 %v5621
  %v6329 = vpop.f32.mrf.mxu0
  %v6330 = vadd.f32 %v6196, %v6329
  %v6331 = vpop.f32.mrf.mxu0
  %v6332 = vadd.f32 %v6198, %v6331
  %6333 = vmatmul.bf16.gmra.mxu0 %v5626
  %v6334 = vpop.f32.mrf.mxu0
  %v6335 = vadd.f32 %v6201, %v6334
  %v6336 = vpop.f32.mrf.mxu0
  %v6337 = vadd.f32 %v6203, %v6336
  %6338 = vmatmul.bf16.gmra.mxu0 %v5631
  %v6339 = vpop.f32.mrf.mxu0
  %v6340 = vadd.f32 %v6206, %v6339
  %v6341 = vpop.f32.mrf.mxu0
  %v6342 = vadd.f32 %v6208, %v6341
  %6343 = vmatmul.bf16.gmra.mxu0 %v5636
  %v6344 = vpop.f32.mrf.mxu0
  %v6345 = vadd.f32 %v6211, %v6344
  %v6346 = vpop.f32.mrf.mxu0
  %v6347 = vadd.f32 %v6213, %v6346
  %6348 = vmatmul.bf16.gmra.mxu0 %v5641
  %v6349 = vpop.f32.mrf.mxu0
  %v6350 = vadd.f32 %v6216, %v6349
  %v6351 = vpop.f32.mrf.mxu0
  %v6352 = vadd.f32 %v6218, %v6351
  %6353 = vmatmul.bf16.gmra.mxu0 %v5646
  %v6354 = vpop.f32.mrf.mxu0
  %v6355 = vadd.f32 %v6221, %v6354
  %v6356 = vpop.f32.mrf.mxu0
  %v6357 = vadd.f32 %v6223, %v6356
  %6358 = vdwg.mxu0
  %6359 = vmatpush.bf16.msra.mxu0 0
  %6360 = vmatpush.bf16.msra.mxu0 0
  %6361 = vmatpush.bf16.msra.mxu0 0
  %6362 = vmatpush.bf16.msra.mxu0 0
  %6363 = vmatpush.bf16.msra.mxu0 %v1050
  %6364 = vmatpush.bf16.msra.mxu0 %v1049
  %6365 = vmatpush.bf16.msra.mxu0 %v1048
  %6366 = vmatpush.bf16.msra.mxu0 %v1047
  %6367 = vmatmul.bf16.gmra.mxu0 %v5749
  %v6368 = vpop.f32.mrf.mxu0
  %v6369 = vadd.f32 %v6235, %v6368
  %v6370 = vpop.f32.mrf.mxu0
  %v6371 = vadd.f32 %v6237, %v6370
  %6372 = vmatmul.bf16.gmra.mxu0 %v5752
  %v6373 = vpop.f32.mrf.mxu0
  %v6374 = vadd.f32 %v6240, %v6373
  %v6375 = vpop.f32.mrf.mxu0
  %v6376 = vadd.f32 %v6242, %v6375
  %6377 = vmatmul.bf16.gmra.mxu0 %v5755
  %v6378 = vpop.f32.mrf.mxu0
  %v6379 = vadd.f32 %v6245, %v6378
  %v6380 = vpop.f32.mrf.mxu0
  %v6381 = vadd.f32 %v6247, %v6380
  %6382 = vmatmul.bf16.gmra.mxu0 %v5758
  %v6383 = vpop.f32.mrf.mxu0
  %v6384 = vadd.f32 %v6250, %v6383
  %v6385 = vpop.f32.mrf.mxu0
  %v6386 = vadd.f32 %v6252, %v6385
  %6387 = vmatmul.bf16.gmra.mxu0 %v5761
  %v6388 = vpop.f32.mrf.mxu0
  %v6389 = vadd.f32 %v6255, %v6388
  %v6390 = vpop.f32.mrf.mxu0
  %v6391 = vadd.f32 %v6257, %v6390
  %6392 = vmatmul.bf16.gmra.mxu0 %v5764
  %v6393 = vpop.f32.mrf.mxu0
  %v6394 = vadd.f32 %v6260, %v6393
  %v6395 = vpop.f32.mrf.mxu0
  %v6396 = vadd.f32 %v6262, %v6395
  %6397 = vmatmul.bf16.gmra.mxu0 %v5767
  %v6398 = vpop.f32.mrf.mxu0
  %v6399 = vadd.f32 %v6265, %v6398
  %v6400 = vpop.f32.mrf.mxu0
  %v6401 = vadd.f32 %v6267, %v6400
  %6402 = vmatmul.bf16.gmra.mxu0 %v5770
  %v6403 = vpop.f32.mrf.mxu0
  %v6404 = vadd.f32 %v6270, %v6403
  %v6405 = vpop.f32.mrf.mxu0
  %v6406 = vadd.f32 %v6272, %v6405
  %6407 = vmatmul.bf16.gmra.mxu0 %v5773
  %v6408 = vpop.f32.mrf.mxu0
  %v6409 = vadd.f32 %v6275, %v6408
  %v6410 = vpop.f32.mrf.mxu0
  %v6411 = vadd.f32 %v6277, %v6410
  %6412 = vmatmul.bf16.gmra.mxu0 %v5776
  %v6413 = vpop.f32.mrf.mxu0
  %v6414 = vadd.f32 %v6280, %v6413
  %v6415 = vpop.f32.mrf.mxu0
  %v6416 = vadd.f32 %v6282, %v6415
  %6417 = vmatmul.bf16.gmra.mxu0 %v5779
  %v6418 = vpop.f32.mrf.mxu0
  %v6419 = vadd.f32 %v6285, %v6418
  %v6420 = vpop.f32.mrf.mxu0
  %v6421 = vadd.f32 %v6287, %v6420
  %6422 = vmatmul.bf16.gmra.mxu0 %v5782
  %v6423 = vpop.f32.mrf.mxu0
  %v6424 = vadd.f32 %v6290, %v6423
  %v6425 = vpop.f32.mrf.mxu0
  %v6426 = vadd.f32 %v6292, %v6425
  %6427 = vmatmul.bf16.gmra.mxu0 %v5785
  %v6428 = vpop.f32.mrf.mxu0
  %v6429 = vadd.f32 %v6295, %v6428
  %v6430 = vpop.f32.mrf.mxu0
  %v6431 = vadd.f32 %v6297, %v6430
  %6432 = vmatmul.bf16.gmra.mxu0 %v5788
  %v6433 = vpop.f32.mrf.mxu0
  %v6434 = vadd.f32 %v6300, %v6433
  %v6435 = vpop.f32.mrf.mxu0
  %v6436 = vadd.f32 %v6302, %v6435
  %6437 = vmatmul.bf16.gmra.mxu0 %v5791
  %v6438 = vpop.f32.mrf.mxu0
  %v6439 = vadd.f32 %v6305, %v6438
  %v6440 = vpop.f32.mrf.mxu0
  %v6441 = vadd.f32 %v6307, %v6440
  %6442 = vmatmul.bf16.gmra.mxu0 %v5794
  %v6443 = vpop.f32.mrf.mxu0
  %v6444 = vadd.f32 %v6310, %v6443
  %v6445 = vpop.f32.mrf.mxu0
  %v6446 = vadd.f32 %v6312, %v6445
  %6447 = vmatmul.bf16.gmra.mxu0 %v5797
  %v6448 = vpop.f32.mrf.mxu0
  %v6449 = vadd.f32 %v6315, %v6448
  %v6450 = vpop.f32.mrf.mxu0
  %v6451 = vadd.f32 %v6317, %v6450
  %6452 = vmatmul.bf16.gmra.mxu0 %v5800
  %v6453 = vpop.f32.mrf.mxu0
  %v6454 = vadd.f32 %v6320, %v6453
  %v6455 = vpop.f32.mrf.mxu0
  %v6456 = vadd.f32 %v6322, %v6455
  %6457 = vmatmul.bf16.gmra.mxu0 %v5803
  %v6458 = vpop.f32.mrf.mxu0
  %v6459 = vadd.f32 %v6325, %v6458
  %v6460 = vpop.f32.mrf.mxu0
  %v6461 = vadd.f32 %v6327, %v6460
  %6462 = vmatmul.bf16.gmra.mxu0 %v5806
  %v6463 = vpop.f32.mrf.mxu0
  %v6464 = vadd.f32 %v6330, %v6463
  %v6465 = vpop.f32.mrf.mxu0
  %v6466 = vadd.f32 %v6332, %v6465
  %6467 = vmatmul.bf16.gmra.mxu0 %v5809
  %v6468 = vpop.f32.mrf.mxu0
  %v6469 = vadd.f32 %v6335, %v6468
  %v6470 = vpop.f32.mrf.mxu0
  %v6471 = vadd.f32 %v6337, %v6470
  %6472 = vmatmul.bf16.gmra.mxu0 %v5812
  %v6473 = vpop.f32.mrf.mxu0
  %v6474 = vadd.f32 %v6340, %v6473
  %v6475 = vpop.f32.mrf.mxu0
  %v6476 = vadd.f32 %v6342, %v6475
  %6477 = vmatmul.bf16.gmra.mxu0 %v5815
  %v6478 = vpop.f32.mrf.mxu0
  %v6479 = vadd.f32 %v6345, %v6478
  %v6480 = vpop.f32.mrf.mxu0
  %v6481 = vadd.f32 %v6347, %v6480
  %6482 = vmatmul.bf16.gmra.mxu0 %v5818
  %v6483 = vpop.f32.mrf.mxu0
  %v6484 = vadd.f32 %v6350, %v6483
  %v6485 = vpop.f32.mrf.mxu0
  %v6486 = vadd.f32 %v6352, %v6485
  %6487 = vmatmul.bf16.gmra.mxu0 %v5821
  %v6488 = vpop.f32.mrf.mxu0
  %v6489 = vadd.f32 %v6355, %v6488
  %v6490 = vpop.f32.mrf.mxu0
  %v6491 = vadd.f32 %v6357, %v6490
  %6492 = vdwg.mxu0
  %v6493 = vmax.f32 %v4923, %v6369
  %v6494 = vmax.f32 %v4924, %v6371
  %v6495 = vmax.f32 %v4925, %v6374
  %v6496 = vmax.f32 %v4926, %v6376
  %v6497 = vmax.f32 %v4927, %v6379
  %v6498 = vmax.f32 %v4928, %v6381
  %v6499 = vmax.f32 %v4929, %v6384
  %v6500 = vmax.f32 %v4930, %v6386
  %v6501 = vmax.f32 %v4931, %v6389
  %v6502 = vmax.f32 %v4932, %v6391
  %v6503 = vmax.f32 %v4933, %v6394
  %v6504 = vmax.f32 %v4934, %v6396
  %v6505 = vmax.f32 %v4935, %v6399
  %v6506 = vmax.f32 %v4936, %v6401
  %v6507 = vmax.f32 %v4937, %v6404
  %v6508 = vmax.f32 %v4938, %v6406
  %v6509 = vmax.f32 %v4939, %v6409
  %v6510 = vmax.f32 %v4940, %v6411
  %v6511 = vmax.f32 %v4941, %v6414
  %v6512 = vmax.f32 %v4942, %v6416
  %v6513 = vmax.f32 %v4943, %v6419
  %v6514 = vmax.f32 %v4944, %v6421
  %v6515 = vmax.f32 %v4945, %v6424
  %v6516 = vmax.f32 %v4946, %v6426
  %v6517 = vmax.f32 %v4947, %v6429
  %v6518 = vmax.f32 %v4948, %v6431
  %v6519 = vmax.f32 %v4949, %v6434
  %v6520 = vmax.f32 %v4950, %v6436
  %v6521 = vmax.f32 %v4951, %v6439
  %v6522 = vmax.f32 %v4952, %v6441
  %v6523 = vmax.f32 %v4953, %v6444
  %v6524 = vmax.f32 %v4954, %v6446
  %v6525 = vmax.f32 %v4955, %v6449
  %v6526 = vmax.f32 %v4956, %v6451
  %v6527 = vmax.f32 %v4957, %v6454
  %v6528 = vmax.f32 %v4958, %v6456
  %v6529 = vmax.f32 %v4959, %v6459
  %v6530 = vmax.f32 %v4960, %v6461
  %v6531 = vmax.f32 %v4961, %v6464
  %v6532 = vmax.f32 %v4962, %v6466
  %v6533 = vmax.f32 %v4963, %v6469
  %v6534 = vmax.f32 %v4964, %v6471
  %v6535 = vmax.f32 %v4965, %v6474
  %v6536 = vmax.f32 %v4966, %v6476
  %v6537 = vmax.f32 %v4967, %v6479
  %v6538 = vmax.f32 %v4968, %v6481
  %v6539 = vmax.f32 %v4969, %v6484
  %v6540 = vmax.f32 %v4970, %v6486
  %v6541 = vmax.f32 %v4971, %v6489
  %v6542 = vmax.f32 %v4972, %v6491
  %v6543 = vld [vmem:[%s5] sm:$0x1]
  %v6545 = vperm.slane %v6543, 0
  %v6547 = vadd.f32 %v6493, %v6545
  %v6548 = vadd.f32 %v6494, %v6545
  %v6549 = vadd.f32 %v6495, %v6545
  %v6550 = vadd.f32 %v6496, %v6545
  %v6551 = vadd.f32 %v6497, %v6545
  %v6552 = vadd.f32 %v6498, %v6545
  %v6553 = vadd.f32 %v6499, %v6545
  %v6554 = vadd.f32 %v6500, %v6545
  %v6555 = vadd.f32 %v6501, %v6545
  %v6556 = vadd.f32 %v6502, %v6545
  %v6557 = vadd.f32 %v6503, %v6545
  %v6558 = vadd.f32 %v6504, %v6545
  %v6559 = vadd.f32 %v6505, %v6545
  %v6560 = vadd.f32 %v6506, %v6545
  %v6561 = vadd.f32 %v6507, %v6545
  %v6562 = vadd.f32 %v6508, %v6545
  %v6563 = vadd.f32 %v6509, %v6545
  %v6564 = vadd.f32 %v6510, %v6545
  %v6565 = vadd.f32 %v6511, %v6545
  %v6566 = vadd.f32 %v6512, %v6545
  %v6567 = vadd.f32 %v6513, %v6545
  %v6568 = vadd.f32 %v6514, %v6545
  %v6569 = vadd.f32 %v6515, %v6545
  %v6570 = vadd.f32 %v6516, %v6545
  %v6571 = vadd.f32 %v6517, %v6545
  %v6572 = vadd.f32 %v6518, %v6545
  %v6573 = vadd.f32 %v6519, %v6545
  %v6574 = vadd.f32 %v6520, %v6545
  %v6575 = vadd.f32 %v6521, %v6545
  %v6576 = vadd.f32 %v6522, %v6545
  %v6577 = vadd.f32 %v6523, %v6545
  %v6578 = vadd.f32 %v6524, %v6545
  %v6579 = vadd.f32 %v6525, %v6545
  %v6580 = vadd.f32 %v6526, %v6545
  %v6581 = vadd.f32 %v6527, %v6545
  %v6582 = vadd.f32 %v6528, %v6545
  %v6583 = vadd.f32 %v6529, %v6545
  %v6584 = vadd.f32 %v6530, %v6545
  %v6585 = vadd.f32 %v6531, %v6545
  %v6586 = vadd.f32 %v6532, %v6545
  %v6587 = vadd.f32 %v6533, %v6545
  %v6588 = vadd.f32 %v6534, %v6545
  %v6589 = vadd.f32 %v6535, %v6545
  %v6590 = vadd.f32 %v6536, %v6545
  %v6591 = vadd.f32 %v6537, %v6545
  %v6592 = vadd.f32 %v6538, %v6545
  %v6593 = vadd.f32 %v6539, %v6545
  %v6594 = vadd.f32 %v6540, %v6545
  %v6595 = vadd.f32 %v6541, %v6545
  %v6596 = vadd.f32 %v6542, %v6545
  %vm6597 = vcmp.gt.f32.partialorder %v6547, 0.0
  %vm6598 = vcmp.gt.f32.partialorder %v6548, 0.0
  %vm6599 = vcmp.gt.f32.partialorder %v6549, 0.0
  %vm6600 = vcmp.gt.f32.partialorder %v6550, 0.0
  %vm6601 = vcmp.gt.f32.partialorder %v6551, 0.0
  %vm6602 = vcmp.gt.f32.partialorder %v6552, 0.0
  %vm6603 = vcmp.gt.f32.partialorder %v6553, 0.0
  %vm6604 = vcmp.gt.f32.partialorder %v6554, 0.0
  %vm6605 = vcmp.gt.f32.partialorder %v6555, 0.0
  %vm6606 = vcmp.gt.f32.partialorder %v6556, 0.0
  %vm6607 = vcmp.gt.f32.partialorder %v6557, 0.0
  %vm6608 = vcmp.gt.f32.partialorder %v6558, 0.0
  %vm6609 = vcmp.gt.f32.partialorder %v6559, 0.0
  %vm6610 = vcmp.gt.f32.partialorder %v6560, 0.0
  %vm6611 = vcmp.gt.f32.partialorder %v6561, 0.0
  %vm6612 = vcmp.gt.f32.partialorder %v6562, 0.0
  %vm6613 = vcmp.gt.f32.partialorder %v6563, 0.0
  %vm6614 = vcmp.gt.f32.partialorder %v6564, 0.0
  %vm6615 = vcmp.gt.f32.partialorder %v6565, 0.0
  %vm6616 = vcmp.gt.f32.partialorder %v6566, 0.0
  %vm6617 = vcmp.gt.f32.partialorder %v6567, 0.0
  %vm6618 = vcmp.gt.f32.partialorder %v6568, 0.0
  %vm6619 = vcmp.gt.f32.partialorder %v6569, 0.0
  %vm6620 = vcmp.gt.f32.partialorder %v6570, 0.0
  %vm6621 = vcmp.gt.f32.partialorder %v6571, 0.0
  %vm6622 = vcmp.gt.f32.partialorder %v6572, 0.0
  %vm6623 = vcmp.gt.f32.partialorder %v6573, 0.0
  %vm6624 = vcmp.gt.f32.partialorder %v6574, 0.0
  %vm6625 = vcmp.gt.f32.partialorder %v6575, 0.0
  %vm6626 = vcmp.gt.f32.partialorder %v6576, 0.0
  %vm6627 = vcmp.gt.f32.partialorder %v6577, 0.0
  %vm6628 = vcmp.gt.f32.partialorder %v6578, 0.0
  %vm6629 = vcmp.gt.f32.partialorder %v6579, 0.0
  %vm6630 = vcmp.gt.f32.partialorder %v6580, 0.0
  %vm6631 = vcmp.gt.f32.partialorder %v6581, 0.0
  %vm6632 = vcmp.gt.f32.partialorder %v6582, 0.0
  %vm6633 = vcmp.gt.f32.partialorder %v6583, 0.0
  %vm6634 = vcmp.gt.f32.partialorder %v6584, 0.0
  %vm6635 = vcmp.gt.f32.partialorder %v6585, 0.0
  %vm6636 = vcmp.gt.f32.partialorder %v6586, 0.0
  %vm6637 = vcmp.gt.f32.partialorder %v6587, 0.0
  %vm6638 = vcmp.gt.f32.partialorder %v6588, 0.0
  %vm6639 = vcmp.gt.f32.partialorder %v6589, 0.0
  %vm6640 = vcmp.gt.f32.partialorder %v6590, 0.0
  %vm6641 = vcmp.gt.f32.partialorder %v6591, 0.0
  %vm6642 = vcmp.gt.f32.partialorder %v6592, 0.0
  %vm6643 = vcmp.gt.f32.partialorder %v6593, 0.0
  %vm6644 = vcmp.gt.f32.partialorder %v6594, 0.0
  %vm6645 = vcmp.gt.f32.partialorder %v6595, 0.0
  %vm6646 = vcmp.gt.f32.partialorder %v6596, 0.0
  %v6647 = vmul.f32 %v6547, 0.01
  %v6648 = vmul.f32 %v6548, 0.01
  %v6649 = vmul.f32 %v6549, 0.01
  %v6650 = vmul.f32 %v6550, 0.01
  %v6651 = vmul.f32 %v6551, 0.01
  %v6652 = vmul.f32 %v6552, 0.01
  %v6653 = vmul.f32 %v6553, 0.01
  %v6654 = vmul.f32 %v6554, 0.01
  %v6655 = vmul.f32 %v6555, 0.01
  %v6656 = vmul.f32 %v6556, 0.01
  %v6657 = vmul.f32 %v6557, 0.01
  %v6658 = vmul.f32 %v6558, 0.01
  %v6659 = vmul.f32 %v6559, 0.01
  %v6660 = vmul.f32 %v6560, 0.01
  %v6661 = vmul.f32 %v6561, 0.01
  %v6662 = vmul.f32 %v6562, 0.01
  %v6663 = vmul.f32 %v6563, 0.01
  %v6664 = vmul.f32 %v6564, 0.01
  %v6665 = vmul.f32 %v6565, 0.01
  %v6666 = vmul.f32 %v6566, 0.01
  %v6667 = vmul.f32 %v6567, 0.01
  %v6668 = vmul.f32 %v6568, 0.01
  %v6669 = vmul.f32 %v6569, 0.01
  %v6670 = vmul.f32 %v6570, 0.01
  %v6671 = vmul.f32 %v6571, 0.01
  %v6672 = vmul.f32 %v6572, 0.01
  %v6673 = vmul.f32 %v6573, 0.01
  %v6674 = vmul.f32 %v6574, 0.01
  %v6675 = vmul.f32 %v6575, 0.01
  %v6676 = vmul.f32 %v6576, 0.01
  %v6677 = vmul.f32 %v6577, 0.01
  %v6678 = vmul.f32 %v6578, 0.01
  %v6679 = vmul.f32 %v6579, 0.01
  %v6680 = vmul.f32 %v6580, 0.01
  %v6681 = vmul.f32 %v6581, 0.01
  %v6682 = vmul.f32 %v6582, 0.01
  %v6683 = vmul.f32 %v6583, 0.01
  %v6684 = vmul.f32 %v6584, 0.01
  %v6685 = vmul.f32 %v6585, 0.01
  %v6686 = vmul.f32 %v6586, 0.01
  %v6687 = vmul.f32 %v6587, 0.01
  %v6688 = vmul.f32 %v6588, 0.01
  %v6689 = vmul.f32 %v6589, 0.01
  %v6690 = vmul.f32 %v6590, 0.01
  %v6691 = vmul.f32 %v6591, 0.01
  %v6692 = vmul.f32 %v6592, 0.01
  %v6693 = vmul.f32 %v6593, 0.01
  %v6694 = vmul.f32 %v6594, 0.01
  %v6695 = vmul.f32 %v6595, 0.01
  %v6696 = vmul.f32 %v6596, 0.01
  %v6697 = vsel %vm6597, %v6547, %v6647
  %v6698 = vsel %vm6598, %v6548, %v6648
  %v6699 = vsel %vm6599, %v6549, %v6649
  %v6700 = vsel %vm6600, %v6550, %v6650
  %v6701 = vsel %vm6601, %v6551, %v6651
  %v6702 = vsel %vm6602, %v6552, %v6652
  %v6703 = vsel %vm6603, %v6553, %v6653
  %v6704 = vsel %vm6604, %v6554, %v6654
  %v6705 = vsel %vm6605, %v6555, %v6655
  %v6706 = vsel %vm6606, %v6556, %v6656
  %v6707 = vsel %vm6607, %v6557, %v6657
  %v6708 = vsel %vm6608, %v6558, %v6658
  %v6709 = vsel %vm6609, %v6559, %v6659
  %v6710 = vsel %vm6610, %v6560, %v6660
  %v6711 = vsel %vm6611, %v6561, %v6661
  %v6712 = vsel %vm6612, %v6562, %v6662
  %v6713 = vsel %vm6613, %v6563, %v6663
  %v6714 = vsel %vm6614, %v6564, %v6664
  %v6715 = vsel %vm6615, %v6565, %v6665
  %v6716 = vsel %vm6616, %v6566, %v6666
  %v6717 = vsel %vm6617, %v6567, %v6667
  %v6718 = vsel %vm6618, %v6568, %v6668
  %v6719 = vsel %vm6619, %v6569, %v6669
  %v6720 = vsel %vm6620, %v6570, %v6670
  %v6721 = vsel %vm6621, %v6571, %v6671
  %v6722 = vsel %vm6622, %v6572, %v6672
  %v6723 = vsel %vm6623, %v6573, %v6673
  %v6724 = vsel %vm6624, %v6574, %v6674
  %v6725 = vsel %vm6625, %v6575, %v6675
  %v6726 = vsel %vm6626, %v6576, %v6676
  %v6727 = vsel %vm6627, %v6577, %v6677
  %v6728 = vsel %vm6628, %v6578, %v6678
  %v6729 = vsel %vm6629, %v6579, %v6679
  %v6730 = vsel %vm6630, %v6580, %v6680
  %v6731 = vsel %vm6631, %v6581, %v6681
  %v6732 = vsel %vm6632, %v6582, %v6682
  %v6733 = vsel %vm6633, %v6583, %v6683
  %v6734 = vsel %vm6634, %v6584, %v6684
  %v6735 = vsel %vm6635, %v6585, %v6685
  %v6736 = vsel %vm6636, %v6586, %v6686
  %v6737 = vsel %vm6637, %v6587, %v6687
  %v6738 = vsel %vm6638, %v6588, %v6688
  %v6739 = vsel %vm6639, %v6589, %v6689
  %v6740 = vsel %vm6640, %v6590, %v6690
  %v6741 = vsel %vm6641, %v6591, %v6691
  %v6742 = vsel %vm6642, %v6592, %v6692
  %v6743 = vsel %vm6643, %v6593, %v6693
  %v6744 = vsel %vm6644, %v6594, %v6694
  %v6745 = vsel %vm6645, %v6595, %v6695
  %v6746 = vsel %vm6646, %v6596, %v6696
  %v6747 = vpack.c.bf16 %v6697, %v6697
  %v6748 = vpack.c.bf16 %v6698, %v6698
  %v6749 = vpack.c.bf16 %v6699, %v6699
  %v6750 = vpack.c.bf16 %v6700, %v6700
  %v6751 = vpack.c.bf16 %v6701, %v6701
  %v6752 = vpack.c.bf16 %v6702, %v6702
  %v6753 = vpack.c.bf16 %v6703, %v6703
  %v6754 = vpack.c.bf16 %v6704, %v6704
  %v6755 = vpack.c.bf16 %v6705, %v6705
  %v6756 = vpack.c.bf16 %v6706, %v6706
  %v6757 = vpack.c.bf16 %v6707, %v6707
  %v6758 = vpack.c.bf16 %v6708, %v6708
  %v6759 = vpack.c.bf16 %v6709, %v6709
  %v6760 = vpack.c.bf16 %v6710, %v6710
  %v6761 = vpack.c.bf16 %v6711, %v6711
  %v6762 = vpack.c.bf16 %v6712, %v6712
  %v6763 = vpack.c.bf16 %v6713, %v6713
  %v6764 = vpack.c.bf16 %v6714, %v6714
  %v6765 = vpack.c.bf16 %v6715, %v6715
  %v6766 = vpack.c.bf16 %v6716, %v6716
  %v6767 = vpack.c.bf16 %v6717, %v6717
  %v6768 = vpack.c.bf16 %v6718, %v6718
  %v6769 = vpack.c.bf16 %v6719, %v6719
  %v6770 = vpack.c.bf16 %v6720, %v6720
  %v6771 = vpack.c.bf16 %v6721, %v6721
  %v6772 = vpack.c.bf16 %v6722, %v6722
  %v6773 = vpack.c.bf16 %v6723, %v6723
  %v6774 = vpack.c.bf16 %v6724, %v6724
  %v6775 = vpack.c.bf16 %v6725, %v6725
  %v6776 = vpack.c.bf16 %v6726, %v6726
  %v6777 = vpack.c.bf16 %v6727, %v6727
  %v6778 = vpack.c.bf16 %v6728, %v6728
  %v6779 = vpack.c.bf16 %v6729, %v6729
  %v6780 = vpack.c.bf16 %v6730, %v6730
  %v6781 = vpack.c.bf16 %v6731, %v6731
  %v6782 = vpack.c.bf16 %v6732, %v6732
  %v6783 = vpack.c.bf16 %v6733, %v6733
  %v6784 = vpack.c.bf16 %v6734, %v6734
  %v6785 = vpack.c.bf16 %v6735, %v6735
  %v6786 = vpack.c.bf16 %v6736, %v6736
  %v6787 = vpack.c.bf16 %v6737, %v6737
  %v6788 = vpack.c.bf16 %v6738, %v6738
  %v6789 = vpack.c.bf16 %v6739, %v6739
  %v6790 = vpack.c.bf16 %v6740, %v6740
  %v6791 = vpack.c.bf16 %v6741, %v6741
  %v6792 = vpack.c.bf16 %v6742, %v6742
  %v6793 = vpack.c.bf16 %v6743, %v6743
  %v6794 = vpack.c.bf16 %v6744, %v6744
  %v6795 = vpack.c.bf16 %v6745, %v6745
  %v6796 = vpack.c.bf16 %v6746, %v6746
  %vm6797 = vcmask 257024
  %6798 = vst.msk [vmem:[%s6] sm:$0xf] %vm6797, %v6747
  %6799 = vst.msk [vmem:[%s6 + $0x4] sm:$0xf] %vm6797, %v6748
  %6800 = vst.msk [vmem:[%s6 + $0x8] sm:$0xf] %vm6797, %v6749
  %6801 = vst.msk [vmem:[%s6 + $0xc] sm:$0xf] %vm6797, %v6750
  %6802 = vst.msk [vmem:[%s6 + $0x10] sm:$0xf] %vm6797, %v6751
  %6803 = vst.msk [vmem:[%s6 + $0x14] sm:$0xf] %vm6797, %v6752
  %6804 = vst.msk [vmem:[%s6 + $0x18] sm:$0xf] %vm6797, %v6753
  %6805 = vst.msk [vmem:[%s6 + $0x1c] sm:$0xf] %vm6797, %v6754
  %6806 = vst.msk [vmem:[%s6 + $0x20] sm:$0xf] %vm6797, %v6755
  %6807 = vst.msk [vmem:[%s6 + $0x24] sm:$0xf] %vm6797, %v6756
  %6808 = vst.msk [vmem:[%s6 + $0x28] sm:$0xf] %vm6797, %v6757
  %6809 = vst.msk [vmem:[%s6 + $0x2c] sm:$0xf] %vm6797, %v6758
  %6810 = vst.msk [vmem:[%s6 + $0x30] sm:$0xf] %vm6797, %v6759
  %6811 = vst.msk [vmem:[%s6 + $0x34] sm:$0xf] %vm6797, %v6760
  %6812 = vst.msk [vmem:[%s6 + $0x38] sm:$0xf] %vm6797, %v6761
  %6813 = vst.msk [vmem:[%s6 + $0x3c] sm:$0xf] %vm6797, %v6762
  %6814 = vst.msk [vmem:[%s6 + $0x40] sm:$0xf] %vm6797, %v6763
  %6815 = vst.msk [vmem:[%s6 + $0x44] sm:$0xf] %vm6797, %v6764
  %6816 = vst.msk [vmem:[%s6 + $0x48] sm:$0xf] %vm6797, %v6765
  %6817 = vst.msk [vmem:[%s6 + $0x4c] sm:$0xf] %vm6797, %v6766
  %6818 = vst.msk [vmem:[%s6 + $0x50] sm:$0xf] %vm6797, %v6767
  %6819 = vst.msk [vmem:[%s6 + $0x54] sm:$0xf] %vm6797, %v6768
  %6820 = vst.msk [vmem:[%s6 + $0x58] sm:$0xf] %vm6797, %v6769
  %6821 = vst.msk [vmem:[%s6 + $0x5c] sm:$0xf] %vm6797, %v6770
  %6822 = vst.msk [vmem:[%s6 + $0x60] sm:$0xf] %vm6797, %v6771
  %6823 = vst.msk [vmem:[%s6 + $0x64] sm:$0xf] %vm6797, %v6772
  %6824 = vst.msk [vmem:[%s6 + $0x68] sm:$0xf] %vm6797, %v6773
  %6825 = vst.msk [vmem:[%s6 + $0x6c] sm:$0xf] %vm6797, %v6774
  %6826 = vst.msk [vmem:[%s6 + $0x70] sm:$0xf] %vm6797, %v6775
  %6827 = vst.msk [vmem:[%s6 + $0x74] sm:$0xf] %vm6797, %v6776
  %6828 = vst.msk [vmem:[%s6 + $0x78] sm:$0xf] %vm6797, %v6777
  %6829 = vst.msk [vmem:[%s6 + $0x7c] sm:$0xf] %vm6797, %v6778
  %6830 = vst.msk [vmem:[%s6 + $0x80] sm:$0xf] %vm6797, %v6779
  %6831 = vst.msk [vmem:[%s6 + $0x84] sm:$0xf] %vm6797, %v6780
  %6832 = vst.msk [vmem:[%s6 + $0x88] sm:$0xf] %vm6797, %v6781
  %6833 = vst.msk [vmem:[%s6 + $0x8c] sm:$0xf] %vm6797, %v6782
  %6834 = vst.msk [vmem:[%s6 + $0x90] sm:$0xf] %vm6797, %v6783
  %6835 = vst.msk [vmem:[%s6 + $0x94] sm:$0xf] %vm6797, %v6784
  %6836 = vst.msk [vmem:[%s6 + $0x98] sm:$0xf] %vm6797, %v6785
  %6837 = vst.msk [vmem:[%s6 + $0x9c] sm:$0xf] %vm6797, %v6786
  %6838 = vst.msk [vmem:[%s6 + $0xa0] sm:$0xf] %vm6797, %v6787
  %6839 = vst.msk [vmem:[%s6 + $0xa4] sm:$0xf] %vm6797, %v6788
  %6840 = vst.msk [vmem:[%s6 + $0xa8] sm:$0xf] %vm6797, %v6789
  %6841 = vst.msk [vmem:[%s6 + $0xac] sm:$0xf] %vm6797, %v6790
  %6842 = vst.msk [vmem:[%s6 + $0xb0] sm:$0xf] %vm6797, %v6791
  %6843 = vst.msk [vmem:[%s6 + $0xb4] sm:$0xf] %vm6797, %v6792
  %6844 = vst.msk [vmem:[%s6 + $0xb8] sm:$0xf] %vm6797, %v6793
  %6845 = vst.msk [vmem:[%s6 + $0xbc] sm:$0xf] %vm6797, %v6794
  %6846 = vst.msk [vmem:[%s6 + $0xc0] sm:$0xf] %vm6797, %v6795
  %6847 = vst.msk [vmem:[%s6 + $0xc4] sm:$0xf] %vm6797, %v6796
  // Predicated region
  $region26: #{deeper_conv_model.6} parent=0 // pred_check
    _
  $region27: #{deeper_conv_model.6} parent=0 // pred_check_branch
    %6849 = sbr.rel (0) target = $region29
  $region28: #{deeper_conv_model.6} parent=0 // pred_region
    _
  $region29: #{deeper_conv_model.6} parent=0 // pred_fallthru
    _
  // Predicated region
  $region30: #{deeper_conv_model.6} parent=0 // pred_check
    _
  $region31: #{deeper_conv_model.6} parent=0 // pred_check_branch
    %6851 = sbr.rel (0) target = $region33
  $region32: #{deeper_conv_model.6} parent=0 // pred_region
    _
  $region33: #{deeper_conv_model.6} parent=0 // pred_fallthru
    _

// kernel: deeper_conv_model.8
$region0: #{deeper_conv_model.8}
  #allocation0 [shape = 'u32[]', space=smem, size = 0x4, offset = 0x4, fixed_abs, tag = 'smem constant byte address 0x4 - core index']
  #allocation1 [shape = 'u32[72,128]{1,0:T(1,128)}', space=vmem, size = 0x9000, scoped, tag = 'internal scratch']
  %s0 = inlined_call_operand.vmem [shape: bf16[112,288], index: 0, kind: input, shape index: {}]
  %s1 = inlined_call_operand.vmem [shape: bf16[112,288], index: 1, kind: input, shape index: {}]
  %s2 = inlined_call_operand.vmem [shape: bf16[112,288], index: 2, kind: input, shape index: {}]
  %s3 = inlined_call_operand.vmem [shape: bf16[112,288], index: 3, kind: input, shape index: {}]
  %s4 = inlined_call_operand.vmem [shape: bf16[288,16], index: 4, kind: input, shape index: {}]
  %s5 = inlined_call_operand.vmem [shape: f32[1,16], index: 5, kind: input, shape index: {}]
  %s6 = inlined_call_operand.vmem [shape: bf16[112,16], index: 6, kind: output, shape index: {}]
  %s7 = sld [smem:[#allocation0]]
  $region34: #{deeper_conv_model.8} parent=0
    _
  %s9 = ssub.s32 1, %s7
  %s10 = scalar_select 0, %s9, %s7
  // Predicated region
  $region2: #{deeper_conv_model.8} parent=0 // pred_check
    _
  $region3: #{deeper_conv_model.8} parent=0 // pred_check_branch
    %12 = sbr.rel (0) target = $region5
  $region4: #{deeper_conv_model.8} parent=0 // pred_region
    _
  $region5: #{deeper_conv_model.8} parent=0 // pred_fallthru
    _
  // Predicated region
  $region6: #{deeper_conv_model.8} parent=0 // pred_check
    _
  $region7: #{deeper_conv_model.8} parent=0 // pred_check_branch
    %14 = sbr.rel (0) target = $region9
  $region8: #{deeper_conv_model.8} parent=0 // pred_region
    _
  $region9: #{deeper_conv_model.8} parent=0 // pred_fallthru
    _
  // Predicated region
  $region10: #{deeper_conv_model.8} parent=0 // pred_check
    _
  $region11: #{deeper_conv_model.8} parent=0 // pred_check_branch
    %16 = sbr.rel (0) target = $region13
  $region12: #{deeper_conv_model.8} parent=0 // pred_region
    _
  $region13: #{deeper_conv_model.8} parent=0 // pred_fallthru
    _
  // Predicated region
  $region14: #{deeper_conv_model.8} parent=0 // pred_check
    _
  $region15: #{deeper_conv_model.8} parent=0 // pred_check_branch
    %18 = sbr.rel (0) target = $region17
  $region16: #{deeper_conv_model.8} parent=0 // pred_region
    _
  $region17: #{deeper_conv_model.8} parent=0 // pred_fallthru
    _
  // Predicated region
  $region18: #{deeper_conv_model.8} parent=0 // pred_check
    _
  $region19: #{deeper_conv_model.8} parent=0 // pred_check_branch
    %20 = sbr.rel (0) target = $region21
  $region20: #{deeper_conv_model.8} parent=0 // pred_region
    _
  $region21: #{deeper_conv_model.8} parent=0 // pred_fallthru
    _
  // Predicated region
  $region22: #{deeper_conv_model.8} parent=0 // pred_check
    _
  $region23: #{deeper_conv_model.8} parent=0 // pred_check_branch
    %22 = sbr.rel (0) target = $region25
  $region24: #{deeper_conv_model.8} parent=0 // pred_region
    _
  $region25: #{deeper_conv_model.8} parent=0 // pred_fallthru
    _
  %v24 = vld [vmem:[%s4] sm:$0xf]
  %v25 = vld [vmem:[%s4 + $0x4] sm:$0xf]
  %v26 = vld [vmem:[%s4 + $0x8] sm:$0xf]
  %v27 = vld [vmem:[%s4 + $0xc] sm:$0xf]
  %v28 = vld [vmem:[%s4 + $0x10] sm:$0xf]
  %v29 = vld [vmem:[%s4 + $0x14] sm:$0xf]
  %v30 = vld [vmem:[%s4 + $0x18] sm:$0xf]
  %v31 = vld [vmem:[%s4 + $0x1c] sm:$0xf]
  %v32 = vld [vmem:[%s4 + $0x20] sm:$0xf]
  %v33 = vld [vmem:[%s4 + $0x24] sm:$0xf]
  %v34 = vld [vmem:[%s4 + $0x28] sm:$0xf]
  %v35 = vld [vmem:[%s4 + $0x2c] sm:$0xf]
  %v36 = vld [vmem:[%s4 + $0x30] sm:$0xf]
  %v37 = vld [vmem:[%s4 + $0x34] sm:$0xf]
  %v38 = vld [vmem:[%s4 + $0x38] sm:$0xf]
  %v39 = vld [vmem:[%s4 + $0x3c] sm:$0xf]
  %v40 = vld [vmem:[%s4 + $0x40] sm:$0xf]
  %v41 = vld [vmem:[%s4 + $0x44] sm:$0xf]
  %v42 = vld [vmem:[%s4 + $0x48] sm:$0xf]
  %v43 = vld [vmem:[%s4 + $0x4c] sm:$0xf]
  %v44 = vld [vmem:[%s4 + $0x50] sm:$0xf]
  %v45 = vld [vmem:[%s4 + $0x54] sm:$0xf]
  %v46 = vld [vmem:[%s4 + $0x58] sm:$0xf]
  %v47 = vld [vmem:[%s4 + $0x5c] sm:$0xf]
  %v48 = vld [vmem:[%s4 + $0x60] sm:$0xf]
  %v49 = vld [vmem:[%s4 + $0x64] sm:$0xf]
  %v50 = vld [vmem:[%s4 + $0x68] sm:$0xf]
  %v51 = vld [vmem:[%s4 + $0x6c] sm:$0xf]
  %v52 = vld [vmem:[%s4 + $0x70] sm:$0xf]
  %v53 = vld [vmem:[%s4 + $0x74] sm:$0xf]
  %v54 = vld [vmem:[%s4 + $0x78] sm:$0xf]
  %v55 = vld [vmem:[%s4 + $0x7c] sm:$0xf]
  %v56 = vld [vmem:[%s4 + $0x80] sm:$0xf]
  %v57 = vld [vmem:[%s4 + $0x84] sm:$0xf]
  %v58 = vld [vmem:[%s4 + $0x88] sm:$0xf]
  %v59 = vld [vmem:[%s4 + $0x8c] sm:$0xf]
  %v60 = vld [vmem:[%s0] sm:$0xff]
  %v61 = vld [vmem:[%s0 + $0x8] sm:$0xf]
  %v62 = vld [vmem:[%s0 + $0xc] sm:$0xff]
  %v63 = vld [vmem:[%s0 + $0x14] sm:$0xf]
  %v64 = vld [vmem:[%s0 + $0x18] sm:$0xff]
  %v65 = vld [vmem:[%s0 + $0x20] sm:$0xf]
  %v66 = vld [vmem:[%s0 + $0x24] sm:$0xff]
  %v67 = vld [vmem:[%s0 + $0x2c] sm:$0xf]
  %v68 = vld [vmem:[%s0 + $0x30] sm:$0xff]
  %v69 = vld [vmem:[%s0 + $0x38] sm:$0xf]
  %v70 = vld [vmem:[%s0 + $0x3c] sm:$0xff]
  %v71 = vld [vmem:[%s0 + $0x44] sm:$0xf]
  %v72 = vld [vmem:[%s0 + $0x48] sm:$0xff]
  %v73 = vld [vmem:[%s0 + $0x50] sm:$0xf]
  %v74 = vld [vmem:[%s0 + $0x54] sm:$0xff]
  %v75 = vld [vmem:[%s0 + $0x5c] sm:$0xf]
  %v76 = vld [vmem:[%s0 + $0x60] sm:$0xff]
  %v77 = vld [vmem:[%s0 + $0x68] sm:$0xf]
  %v78 = vld [vmem:[%s0 + $0x6c] sm:$0xff]
  %v79 = vld [vmem:[%s0 + $0x74] sm:$0xf]
  %v80 = vld [vmem:[%s0 + $0x78] sm:$0xff]
  %v81 = vld [vmem:[%s0 + $0x80] sm:$0xf]
  %v82 = vld [vmem:[%s0 + $0x84] sm:$0xff]
  %v83 = vld [vmem:[%s0 + $0x8c] sm:$0xf]
  %v84 = vld [vmem:[%s0 + $0x90] sm:$0xff]
  %v85 = vld [vmem:[%s0 + $0x98] sm:$0xf]
  %v86 = vld [vmem:[%s0 + $0x9c] sm:$0xff]
  %v87 = vld [vmem:[%s0 + $0xa4] sm:$0xf]
  %v116 = vunpack.c.l.b16 %v60
  %v117 = vunpack.c.h.b16 %v60
  %v118 = vunpack.c.l.b16 %v61
  %v119 = vunpack.c.l.b16 %v62
  %v120 = vunpack.c.h.b16 %v62
  %v121 = vunpack.c.l.b16 %v63
  %v122 = vunpack.c.l.b16 %v64
  %v123 = vunpack.c.h.b16 %v64
  %v124 = vunpack.c.l.b16 %v65
  %v125 = vunpack.c.l.b16 %v66
  %v126 = vunpack.c.h.b16 %v66
  %v127 = vunpack.c.l.b16 %v67
  %v128 = vunpack.c.l.b16 %v68
  %v129 = vunpack.c.h.b16 %v68
  %v130 = vunpack.c.l.b16 %v69
  %v131 = vunpack.c.l.b16 %v70
  %v132 = vunpack.c.h.b16 %v70
  %v133 = vunpack.c.l.b16 %v71
  %v134 = vunpack.c.l.b16 %v72
  %v135 = vunpack.c.h.b16 %v72
  %v136 = vunpack.c.l.b16 %v73
  %v137 = vunpack.c.l.b16 %v74
  %v138 = vunpack.c.h.b16 %v74
  %v139 = vunpack.c.l.b16 %v75
  %v140 = vunpack.c.l.b16 %v76
  %v141 = vunpack.c.h.b16 %v76
  %v142 = vunpack.c.l.b16 %v77
  %v143 = vunpack.c.l.b16 %v78
  %v144 = vunpack.c.h.b16 %v78
  %v145 = vunpack.c.l.b16 %v79
  %v146 = vunpack.c.l.b16 %v80
  %v147 = vunpack.c.h.b16 %v80
  %v148 = vunpack.c.l.b16 %v81
  %v149 = vunpack.c.l.b16 %v82
  %v150 = vunpack.c.h.b16 %v82
  %v151 = vunpack.c.l.b16 %v83
  %v152 = vunpack.c.l.b16 %v84
  %v153 = vunpack.c.h.b16 %v84
  %v154 = vunpack.c.l.b16 %v85
  %v155 = vunpack.c.l.b16 %v86
  %v156 = vunpack.c.h.b16 %v86
  %v157 = vunpack.c.l.b16 %v87
  %v158 = vpack.c.b16 %v119, %v116
  %v159 = vpack.c.b16 %v120, %v117
  %v160 = vpack.c.b16 %v121, %v118
  %v161 = vpack.c.b16 %v125, %v122
  %v162 = vpack.c.b16 %v126, %v123
  %v163 = vpack.c.b16 %v127, %v124
  %v164 = vpack.c.b16 %v131, %v128
  %v165 = vpack.c.b16 %v132, %v129
  %v166 = vpack.c.b16 %v133, %v130
  %v167 = vpack.c.b16 %v137, %v134
  %v168 = vpack.c.b16 %v138, %v135
  %v169 = vpack.c.b16 %v139, %v136
  %v170 = vpack.c.b16 %v143, %v140
  %v171 = vpack.c.b16 %v144, %v141
  %v172 = vpack.c.b16 %v145, %v142
  %v173 = vpack.c.b16 %v149, %v146
  %v174 = vpack.c.b16 %v150, %v147
  %v175 = vpack.c.b16 %v151, %v148
  %v176 = vpack.c.b16 %v155, %v152
  %v177 = vpack.c.b16 %v156, %v153
  %v178 = vpack.c.b16 %v157, %v154
  %v229 = vunpack.c.l.b16 %v24
  %v230 = vunpack.c.l.b16 %v25
  %v231 = vunpack.c.l.b16 %v26
  %v232 = vunpack.c.l.b16 %v27
  %v233 = vunpack.c.l.b16 %v28
  %v234 = vunpack.c.l.b16 %v29
  %v235 = vunpack.c.l.b16 %v30
  %v236 = vunpack.c.l.b16 %v31
  %v237 = vunpack.c.l.b16 %v32
  %v238 = vunpack.c.l.b16 %v33
  %v239 = vunpack.c.l.b16 %v34
  %v240 = vunpack.c.l.b16 %v35
  %v241 = vunpack.c.l.b16 %v36
  %v242 = vunpack.c.l.b16 %v37
  %v243 = vunpack.c.l.b16 %v38
  %v244 = vunpack.c.l.b16 %v39
  %v245 = vunpack.c.l.b16 %v40
  %v246 = vunpack.c.l.b16 %v41
  %v247 = vunpack.c.l.b16 %v42
  %v248 = vunpack.c.l.b16 %v43
  %v249 = vunpack.c.l.b16 %v44
  %v250 = vunpack.c.l.b16 %v45
  %v251 = vunpack.c.l.b16 %v46
  %v252 = vunpack.c.l.b16 %v47
  %v253 = vunpack.c.l.b16 %v48
  %v254 = vunpack.c.l.b16 %v49
  %v255 = vunpack.c.l.b16 %v50
  %v256 = vunpack.c.l.b16 %v51
  %v257 = vunpack.c.l.b16 %v52
  %v258 = vunpack.c.l.b16 %v53
  %v259 = vunpack.c.l.b16 %v54
  %v260 = vunpack.c.l.b16 %v55
  %v261 = vunpack.c.l.b16 %v56
  %v262 = vunpack.c.l.b16 %v57
  %v263 = vunpack.c.l.b16 %v58
  %v264 = vunpack.c.l.b16 %v59
  %v265 = vpack.c.b16 %v230, %v229
  %v266 = vpack.c.b16 %v232, %v231
  %v267 = vpack.c.b16 %v234, %v233
  %v268 = vpack.c.b16 %v236, %v235
  %v269 = vpack.c.b16 %v238, %v237
  %v270 = vpack.c.b16 %v240, %v239
  %v271 = vpack.c.b16 %v242, %v241
  %v272 = vpack.c.b16 %v244, %v243
  %v273 = vpack.c.b16 %v246, %v245
  %v274 = vpack.c.b16 %v248, %v247
  %v275 = vpack.c.b16 %v250, %v249
  %v276 = vpack.c.b16 %v252, %v251
  %v277 = vpack.c.b16 %v254, %v253
  %v278 = vpack.c.b16 %v256, %v255
  %v279 = vpack.c.b16 %v258, %v257
  %v280 = vpack.c.b16 %v260, %v259
  %v281 = vpack.c.b16 %v262, %v261
  %v282 = vpack.c.b16 %v264, %v263
  %vm301 = vcmask 261120
  %v303 = vsel %vm301, %v160, 0
  %v306 = vsel %vm301, %v163, 0
  %v309 = vsel %vm301, %v166, 0
  %v312 = vsel %vm301, %v169, 0
  %v315 = vsel %vm301, %v172, 0
  %v318 = vsel %vm301, %v175, 0
  %v321 = vsel %vm301, %v178, 0
  %323 = vmatpush.bf16.msra.mxu0 %v272
  %324 = vmatpush.bf16.msra.mxu0 %v271
  %325 = vmatpush.bf16.msra.mxu0 %v270
  %326 = vmatpush.bf16.msra.mxu0 %v269
  %327 = vmatpush.bf16.msra.mxu0 %v268
  %328 = vmatpush.bf16.msra.mxu0 %v267
  %329 = vmatpush.bf16.msra.mxu0 %v266
  %330 = vmatpush.bf16.msra.mxu0 %v265
  %331 = vmatmul.bf16.gmra.mxu0 %v158
  %v332 = vpop.f32.mrf.mxu0
  %v333 = vadd.f32 0.0, %v332
  %v334 = vpop.f32.mrf.mxu0
  %v335 = vadd.f32 0.0, %v334
  %336 = vmatmul.bf16.gmra.mxu0 %v161
  %v337 = vpop.f32.mrf.mxu0
  %v338 = vadd.f32 0.0, %v337
  %v339 = vpop.f32.mrf.mxu0
  %v340 = vadd.f32 0.0, %v339
  %341 = vmatmul.bf16.gmra.mxu0 %v164
  %v342 = vpop.f32.mrf.mxu0
  %v343 = vadd.f32 0.0, %v342
  %v344 = vpop.f32.mrf.mxu0
  %v345 = vadd.f32 0.0, %v344
  %346 = vmatmul.bf16.gmra.mxu0 %v167
  %v347 = vpop.f32.mrf.mxu0
  %v348 = vadd.f32 0.0, %v347
  %v349 = vpop.f32.mrf.mxu0
  %v350 = vadd.f32 0.0, %v349
  %351 = vmatmul.bf16.gmra.mxu0 %v170
  %v352 = vpop.f32.mrf.mxu0
  %v353 = vadd.f32 0.0, %v352
  %v354 = vpop.f32.mrf.mxu0
  %v355 = vadd.f32 0.0, %v354
  %356 = vmatmul.bf16.gmra.mxu0 %v173
  %v357 = vpop.f32.mrf.mxu0
  %v358 = vadd.f32 0.0, %v357
  %v359 = vpop.f32.mrf.mxu0
  %v360 = vadd.f32 0.0, %v359
  %361 = vmatmul.bf16.gmra.mxu0 %v176
  %v362 = vpop.f32.mrf.mxu0
  %v363 = vadd.f32 0.0, %v362
  %v364 = vpop.f32.mrf.mxu0
  %v365 = vadd.f32 0.0, %v364
  %366 = vdwg.mxu0
  %367 = vmatpush.bf16.msra.mxu0 %v280
  %368 = vmatpush.bf16.msra.mxu0 %v279
  %369 = vmatpush.bf16.msra.mxu0 %v278
  %370 = vmatpush.bf16.msra.mxu0 %v277
  %371 = vmatpush.bf16.msra.mxu0 %v276
  %372 = vmatpush.bf16.msra.mxu0 %v275
  %373 = vmatpush.bf16.msra.mxu0 %v274
  %374 = vmatpush.bf16.msra.mxu0 %v273
  %375 = vmatmul.bf16.gmra.mxu0 %v159
  %v376 = vpop.f32.mrf.mxu0
  %v377 = vadd.f32 %v333, %v376
  %v378 = vpop.f32.mrf.mxu0
  %v379 = vadd.f32 %v335, %v378
  %380 = vmatmul.bf16.gmra.mxu0 %v162
  %v381 = vpop.f32.mrf.mxu0
  %v382 = vadd.f32 %v338, %v381
  %v383 = vpop.f32.mrf.mxu0
  %v384 = vadd.f32 %v340, %v383
  %385 = vmatmul.bf16.gmra.mxu0 %v165
  %v386 = vpop.f32.mrf.mxu0
  %v387 = vadd.f32 %v343, %v386
  %v388 = vpop.f32.mrf.mxu0
  %v389 = vadd.f32 %v345, %v388
  %390 = vmatmul.bf16.gmra.mxu0 %v168
  %v391 = vpop.f32.mrf.mxu0
  %v392 = vadd.f32 %v348, %v391
  %v393 = vpop.f32.mrf.mxu0
  %v394 = vadd.f32 %v350, %v393
  %395 = vmatmul.bf16.gmra.mxu0 %v171
  %v396 = vpop.f32.mrf.mxu0
  %v397 = vadd.f32 %v353, %v396
  %v398 = vpop.f32.mrf.mxu0
  %v399 = vadd.f32 %v355, %v398
  %400 = vmatmul.bf16.gmra.mxu0 %v174
  %v401 = vpop.f32.mrf.mxu0
  %v402 = vadd.f32 %v358, %v401
  %v403 = vpop.f32.mrf.mxu0
  %v404 = vadd.f32 %v360, %v403
  %405 = vmatmul.bf16.gmra.mxu0 %v177
  %v406 = vpop.f32.mrf.mxu0
  %v407 = vadd.f32 %v363, %v406
  %v408 = vpop.f32.mrf.mxu0
  %v409 = vadd.f32 %v365, %v408
  %410 = vdwg.mxu0
  %411 = vmatpush.bf16.msra.mxu0 0
  %412 = vmatpush.bf16.msra.mxu0 0
  %413 = vmatpush.bf16.msra.mxu0 0
  %414 = vmatpush.bf16.msra.mxu0 0
  %415 = vmatpush.bf16.msra.mxu0 0
  %416 = vmatpush.bf16.msra.mxu0 0
  %417 = vmatpush.bf16.msra.mxu0 %v282
  %418 = vmatpush.bf16.msra.mxu0 %v281
  %419 = vmatmul.bf16.gmra.mxu0 %v303
  %v420 = vpop.f32.mrf.mxu0
  %v421 = vadd.f32 %v377, %v420
  %v422 = vpop.f32.mrf.mxu0
  %v423 = vadd.f32 %v379, %v422
  %424 = vmatmul.bf16.gmra.mxu0 %v306
  %v425 = vpop.f32.mrf.mxu0
  %v426 = vadd.f32 %v382, %v425
  %v427 = vpop.f32.mrf.mxu0
  %v428 = vadd.f32 %v384, %v427
  %429 = vmatmul.bf16.gmra.mxu0 %v309
  %v430 = vpop.f32.mrf.mxu0
  %v431 = vadd.f32 %v387, %v430
  %v432 = vpop.f32.mrf.mxu0
  %v433 = vadd.f32 %v389, %v432
  %434 = vmatmul.bf16.gmra.mxu0 %v312
  %v435 = vpop.f32.mrf.mxu0
  %v436 = vadd.f32 %v392, %v435
  %v437 = vpop.f32.mrf.mxu0
  %v438 = vadd.f32 %v394, %v437
  %439 = vmatmul.bf16.gmra.mxu0 %v315
  %v440 = vpop.f32.mrf.mxu0
  %v441 = vadd.f32 %v397, %v440
  %v442 = vpop.f32.mrf.mxu0
  %v443 = vadd.f32 %v399, %v442
  %444 = vmatmul.bf16.gmra.mxu0 %v318
  %v445 = vpop.f32.mrf.mxu0
  %v446 = vadd.f32 %v402, %v445
  %v447 = vpop.f32.mrf.mxu0
  %v448 = vadd.f32 %v404, %v447
  %449 = vmatmul.bf16.gmra.mxu0 %v321
  %v450 = vpop.f32.mrf.mxu0
  %v451 = vadd.f32 %v407, %v450
  %v452 = vpop.f32.mrf.mxu0
  %v453 = vadd.f32 %v409, %v452
  %454 = vdwg.mxu0
  %v455 = vld [vmem:[%s1] sm:$0xff]
  %v456 = vld [vmem:[%s1 + $0x8] sm:$0xf]
  %v457 = vld [vmem:[%s1 + $0xc] sm:$0xff]
  %v458 = vld [vmem:[%s1 + $0x14] sm:$0xf]
  %v459 = vld [vmem:[%s1 + $0x18] sm:$0xff]
  %v460 = vld [vmem:[%s1 + $0x20] sm:$0xf]
  %v461 = vld [vmem:[%s1 + $0x24] sm:$0xff]
  %v462 = vld [vmem:[%s1 + $0x2c] sm:$0xf]
  %v463 = vld [vmem:[%s1 + $0x30] sm:$0xff]
  %v464 = vld [vmem:[%s1 + $0x38] sm:$0xf]
  %v465 = vld [vmem:[%s1 + $0x3c] sm:$0xff]
  %v466 = vld [vmem:[%s1 + $0x44] sm:$0xf]
  %v467 = vld [vmem:[%s1 + $0x48] sm:$0xff]
  %v468 = vld [vmem:[%s1 + $0x50] sm:$0xf]
  %v469 = vld [vmem:[%s1 + $0x54] sm:$0xff]
  %v470 = vld [vmem:[%s1 + $0x5c] sm:$0xf]
  %v471 = vld [vmem:[%s1 + $0x60] sm:$0xff]
  %v472 = vld [vmem:[%s1 + $0x68] sm:$0xf]
  %v473 = vld [vmem:[%s1 + $0x6c] sm:$0xff]
  %v474 = vld [vmem:[%s1 + $0x74] sm:$0xf]
  %v475 = vld [vmem:[%s1 + $0x78] sm:$0xff]
  %v476 = vld [vmem:[%s1 + $0x80] sm:$0xf]
  %v477 = vld [vmem:[%s1 + $0x84] sm:$0xff]
  %v478 = vld [vmem:[%s1 + $0x8c] sm:$0xf]
  %v479 = vld [vmem:[%s1 + $0x90] sm:$0xff]
  %v480 = vld [vmem:[%s1 + $0x98] sm:$0xf]
  %v481 = vld [vmem:[%s1 + $0x9c] sm:$0xff]
  %v482 = vld [vmem:[%s1 + $0xa4] sm:$0xf]
  %v511 = vunpack.c.l.b16 %v455
  %v512 = vunpack.c.h.b16 %v455
  %v513 = vunpack.c.l.b16 %v456
  %v514 = vunpack.c.l.b16 %v457
  %v515 = vunpack.c.h.b16 %v457
  %v516 = vunpack.c.l.b16 %v458
  %v517 = vunpack.c.l.b16 %v459
  %v518 = vunpack.c.h.b16 %v459
  %v519 = vunpack.c.l.b16 %v460
  %v520 = vunpack.c.l.b16 %v461
  %v521 = vunpack.c.h.b16 %v461
  %v522 = vunpack.c.l.b16 %v462
  %v523 = vunpack.c.l.b16 %v463
  %v524 = vunpack.c.h.b16 %v463
  %v525 = vunpack.c.l.b16 %v464
  %v526 = vunpack.c.l.b16 %v465
  %v527 = vunpack.c.h.b16 %v465
  %v528 = vunpack.c.l.b16 %v466
  %v529 = vunpack.c.l.b16 %v467
  %v530 = vunpack.c.h.b16 %v467
  %v531 = vunpack.c.l.b16 %v468
  %v532 = vunpack.c.l.b16 %v469
  %v533 = vunpack.c.h.b16 %v469
  %v534 = vunpack.c.l.b16 %v470
  %v535 = vunpack.c.l.b16 %v471
  %v536 = vunpack.c.h.b16 %v471
  %v537 = vunpack.c.l.b16 %v472
  %v538 = vunpack.c.l.b16 %v473
  %v539 = vunpack.c.h.b16 %v473
  %v540 = vunpack.c.l.b16 %v474
  %v541 = vunpack.c.l.b16 %v475
  %v542 = vunpack.c.h.b16 %v475
  %v543 = vunpack.c.l.b16 %v476
  %v544 = vunpack.c.l.b16 %v477
  %v545 = vunpack.c.h.b16 %v477
  %v546 = vunpack.c.l.b16 %v478
  %v547 = vunpack.c.l.b16 %v479
  %v548 = vunpack.c.h.b16 %v479
  %v549 = vunpack.c.l.b16 %v480
  %v550 = vunpack.c.l.b16 %v481
  %v551 = vunpack.c.h.b16 %v481
  %v552 = vunpack.c.l.b16 %v482
  %v553 = vpack.c.b16 %v514, %v511
  %v554 = vpack.c.b16 %v515, %v512
  %v555 = vpack.c.b16 %v516, %v513
  %v556 = vpack.c.b16 %v520, %v517
  %v557 = vpack.c.b16 %v521, %v518
  %v558 = vpack.c.b16 %v522, %v519
  %v559 = vpack.c.b16 %v526, %v523
  %v560 = vpack.c.b16 %v527, %v524
  %v561 = vpack.c.b16 %v528, %v525
  %v562 = vpack.c.b16 %v532, %v529
  %v563 = vpack.c.b16 %v533, %v530
  %v564 = vpack.c.b16 %v534, %v531
  %v565 = vpack.c.b16 %v538, %v535
  %v566 = vpack.c.b16 %v539, %v536
  %v567 = vpack.c.b16 %v540, %v537
  %v568 = vpack.c.b16 %v544, %v541
  %v569 = vpack.c.b16 %v545, %v542
  %v570 = vpack.c.b16 %v546, %v543
  %v571 = vpack.c.b16 %v550, %v547
  %v572 = vpack.c.b16 %v551, %v548
  %v573 = vpack.c.b16 %v552, %v549
  %v589 = vsel %vm301, %v555, 0
  %v592 = vsel %vm301, %v558, 0
  %v595 = vsel %vm301, %v561, 0
  %v598 = vsel %vm301, %v564, 0
  %v601 = vsel %vm301, %v567, 0
  %v604 = vsel %vm301, %v570, 0
  %v607 = vsel %vm301, %v573, 0
  %609 = vmatpush.bf16.msra.mxu0 %v272
  %610 = vmatpush.bf16.msra.mxu0 %v271
  %611 = vmatpush.bf16.msra.mxu0 %v270
  %612 = vmatpush.bf16.msra.mxu0 %v269
  %613 = vmatpush.bf16.msra.mxu0 %v268
  %614 = vmatpush.bf16.msra.mxu0 %v267
  %615 = vmatpush.bf16.msra.mxu0 %v266
  %616 = vmatpush.bf16.msra.mxu0 %v265
  %617 = vmatmul.bf16.gmra.mxu0 %v553
  %v618 = vpop.f32.mrf.mxu0
  %v619 = vadd.f32 0.0, %v618
  %v620 = vpop.f32.mrf.mxu0
  %v621 = vadd.f32 0.0, %v620
  %622 = vmatmul.bf16.gmra.mxu0 %v556
  %v623 = vpop.f32.mrf.mxu0
  %v624 = vadd.f32 0.0, %v623
  %v625 = vpop.f32.mrf.mxu0
  %v626 = vadd.f32 0.0, %v625
  %627 = vmatmul.bf16.gmra.mxu0 %v559
  %v628 = vpop.f32.mrf.mxu0
  %v629 = vadd.f32 0.0, %v628
  %v630 = vpop.f32.mrf.mxu0
  %v631 = vadd.f32 0.0, %v630
  %632 = vmatmul.bf16.gmra.mxu0 %v562
  %v633 = vpop.f32.mrf.mxu0
  %v634 = vadd.f32 0.0, %v633
  %v635 = vpop.f32.mrf.mxu0
  %v636 = vadd.f32 0.0, %v635
  %637 = vmatmul.bf16.gmra.mxu0 %v565
  %v638 = vpop.f32.mrf.mxu0
  %v639 = vadd.f32 0.0, %v638
  %v640 = vpop.f32.mrf.mxu0
  %v641 = vadd.f32 0.0, %v640
  %642 = vmatmul.bf16.gmra.mxu0 %v568
  %v643 = vpop.f32.mrf.mxu0
  %v644 = vadd.f32 0.0, %v643
  %v645 = vpop.f32.mrf.mxu0
  %v646 = vadd.f32 0.0, %v645
  %647 = vmatmul.bf16.gmra.mxu0 %v571
  %v648 = vpop.f32.mrf.mxu0
  %v649 = vadd.f32 0.0, %v648
  %v650 = vpop.f32.mrf.mxu0
  %v651 = vadd.f32 0.0, %v650
  %652 = vdwg.mxu0
  %653 = vmatpush.bf16.msra.mxu0 %v280
  %654 = vmatpush.bf16.msra.mxu0 %v279
  %655 = vmatpush.bf16.msra.mxu0 %v278
  %656 = vmatpush.bf16.msra.mxu0 %v277
  %657 = vmatpush.bf16.msra.mxu0 %v276
  %658 = vmatpush.bf16.msra.mxu0 %v275
  %659 = vmatpush.bf16.msra.mxu0 %v274
  %660 = vmatpush.bf16.msra.mxu0 %v273
  %661 = vmatmul.bf16.gmra.mxu0 %v554
  %v662 = vpop.f32.mrf.mxu0
  %v663 = vadd.f32 %v619, %v662
  %v664 = vpop.f32.mrf.mxu0
  %v665 = vadd.f32 %v621, %v664
  %666 = vmatmul.bf16.gmra.mxu0 %v557
  %v667 = vpop.f32.mrf.mxu0
  %v668 = vadd.f32 %v624, %v667
  %v669 = vpop.f32.mrf.mxu0
  %v670 = vadd.f32 %v626, %v669
  %671 = vmatmul.bf16.gmra.mxu0 %v560
  %v672 = vpop.f32.mrf.mxu0
  %v673 = vadd.f32 %v629, %v672
  %v674 = vpop.f32.mrf.mxu0
  %v675 = vadd.f32 %v631, %v674
  %676 = vmatmul.bf16.gmra.mxu0 %v563
  %v677 = vpop.f32.mrf.mxu0
  %v678 = vadd.f32 %v634, %v677
  %v679 = vpop.f32.mrf.mxu0
  %v680 = vadd.f32 %v636, %v679
  %681 = vmatmul.bf16.gmra.mxu0 %v566
  %v682 = vpop.f32.mrf.mxu0
  %v683 = vadd.f32 %v639, %v682
  %v684 = vpop.f32.mrf.mxu0
  %v685 = vadd.f32 %v641, %v684
  %686 = vmatmul.bf16.gmra.mxu0 %v569
  %v687 = vpop.f32.mrf.mxu0
  %v688 = vadd.f32 %v644, %v687
  %v689 = vpop.f32.mrf.mxu0
  %v690 = vadd.f32 %v646, %v689
  %691 = vmatmul.bf16.gmra.mxu0 %v572
  %v692 = vpop.f32.mrf.mxu0
  %v693 = vadd.f32 %v649, %v692
  %v694 = vpop.f32.mrf.mxu0
  %v695 = vadd.f32 %v651, %v694
  %696 = vdwg.mxu0
  %697 = vmatpush.bf16.msra.mxu0 0
  %698 = vmatpush.bf16.msra.mxu0 0
  %699 = vmatpush.bf16.msra.mxu0 0
  %700 = vmatpush.bf16.msra.mxu0 0
  %701 = vmatpush.bf16.msra.mxu0 0
  %702 = vmatpush.bf16.msra.mxu0 0
  %703 = vmatpush.bf16.msra.mxu0 %v282
  %704 = vmatpush.bf16.msra.mxu0 %v281
  %705 = vmatmul.bf16.gmra.mxu0 %v589
  %v706 = vpop.f32.mrf.mxu0
  %v707 = vadd.f32 %v663, %v706
  %v708 = vpop.f32.mrf.mxu0
  %v709 = vadd.f32 %v665, %v708
  %710 = vmatmul.bf16.gmra.mxu0 %v592
  %v711 = vpop.f32.mrf.mxu0
  %v712 = vadd.f32 %v668, %v711
  %v713 = vpop.f32.mrf.mxu0
  %v714 = vadd.f32 %v670, %v713
  %715 = vmatmul.bf16.gmra.mxu0 %v595
  %v716 = vpop.f32.mrf.mxu0
  %v717 = vadd.f32 %v673, %v716
  %v718 = vpop.f32.mrf.mxu0
  %v719 = vadd.f32 %v675, %v718
  %720 = vmatmul.bf16.gmra.mxu0 %v598
  %v721 = vpop.f32.mrf.mxu0
  %v722 = vadd.f32 %v678, %v721
  %v723 = vpop.f32.mrf.mxu0
  %v724 = vadd.f32 %v680, %v723
  %725 = vmatmul.bf16.gmra.mxu0 %v601
  %v726 = vpop.f32.mrf.mxu0
  %v727 = vadd.f32 %v683, %v726
  %v728 = vpop.f32.mrf.mxu0
  %v729 = vadd.f32 %v685, %v728
  %730 = vmatmul.bf16.gmra.mxu0 %v604
  %v731 = vpop.f32.mrf.mxu0
  %v732 = vadd.f32 %v688, %v731
  %v733 = vpop.f32.mrf.mxu0
  %v734 = vadd.f32 %v690, %v733
  %735 = vmatmul.bf16.gmra.mxu0 %v607
  %v736 = vpop.f32.mrf.mxu0
  %v737 = vadd.f32 %v693, %v736
  %v738 = vpop.f32.mrf.mxu0
  %v739 = vadd.f32 %v695, %v738
  %740 = vdwg.mxu0
  %v741 = vmax.f32 %v421, %v707
  %v742 = vmax.f32 %v423, %v709
  %v743 = vmax.f32 %v426, %v712
  %v744 = vmax.f32 %v428, %v714
  %v745 = vmax.f32 %v431, %v717
  %v746 = vmax.f32 %v433, %v719
  %v747 = vmax.f32 %v436, %v722
  %v748 = vmax.f32 %v438, %v724
  %v749 = vmax.f32 %v441, %v727
  %v750 = vmax.f32 %v443, %v729
  %v751 = vmax.f32 %v446, %v732
  %v752 = vmax.f32 %v448, %v734
  %v753 = vmax.f32 %v451, %v737
  %v754 = vmax.f32 %v453, %v739
  %v755 = vld [vmem:[%s2] sm:$0xff]
  %v756 = vld [vmem:[%s2 + $0x8] sm:$0xf]
  %v757 = vld [vmem:[%s2 + $0xc] sm:$0xff]
  %v758 = vld [vmem:[%s2 + $0x14] sm:$0xf]
  %v759 = vld [vmem:[%s2 + $0x18] sm:$0xff]
  %v760 = vld [vmem:[%s2 + $0x20] sm:$0xf]
  %v761 = vld [vmem:[%s2 + $0x24] sm:$0xff]
  %v762 = vld [vmem:[%s2 + $0x2c] sm:$0xf]
  %v763 = vld [vmem:[%s2 + $0x30] sm:$0xff]
  %v764 = vld [vmem:[%s2 + $0x38] sm:$0xf]
  %v765 = vld [vmem:[%s2 + $0x3c] sm:$0xff]
  %v766 = vld [vmem:[%s2 + $0x44] sm:$0xf]
  %v767 = vld [vmem:[%s2 + $0x48] sm:$0xff]
  %v768 = vld [vmem:[%s2 + $0x50] sm:$0xf]
  %v769 = vld [vmem:[%s2 + $0x54] sm:$0xff]
  %v770 = vld [vmem:[%s2 + $0x5c] sm:$0xf]
  %v771 = vld [vmem:[%s2 + $0x60] sm:$0xff]
  %v772 = vld [vmem:[%s2 + $0x68] sm:$0xf]
  %v773 = vld [vmem:[%s2 + $0x6c] sm:$0xff]
  %v774 = vld [vmem:[%s2 + $0x74] sm:$0xf]
  %v775 = vld [vmem:[%s2 + $0x78] sm:$0xff]
  %v776 = vld [vmem:[%s2 + $0x80] sm:$0xf]
  %v777 = vld [vmem:[%s2 + $0x84] sm:$0xff]
  %v778 = vld [vmem:[%s2 + $0x8c] sm:$0xf]
  %v779 = vld [vmem:[%s2 + $0x90] sm:$0xff]
  %v780 = vld [vmem:[%s2 + $0x98] sm:$0xf]
  %v781 = vld [vmem:[%s2 + $0x9c] sm:$0xff]
  %v782 = vld [vmem:[%s2 + $0xa4] sm:$0xf]
  %v811 = vunpack.c.l.b16 %v755
  %v812 = vunpack.c.h.b16 %v755
  %v813 = vunpack.c.l.b16 %v756
  %v814 = vunpack.c.l.b16 %v757
  %v815 = vunpack.c.h.b16 %v757
  %v816 = vunpack.c.l.b16 %v758
  %v817 = vunpack.c.l.b16 %v759
  %v818 = vunpack.c.h.b16 %v759
  %v819 = vunpack.c.l.b16 %v760
  %v820 = vunpack.c.l.b16 %v761
  %v821 = vunpack.c.h.b16 %v761
  %v822 = vunpack.c.l.b16 %v762
  %v823 = vunpack.c.l.b16 %v763
  %v824 = vunpack.c.h.b16 %v763
  %v825 = vunpack.c.l.b16 %v764
  %v826 = vunpack.c.l.b16 %v765
  %v827 = vunpack.c.h.b16 %v765
  %v828 = vunpack.c.l.b16 %v766
  %v829 = vunpack.c.l.b16 %v767
  %v830 = vunpack.c.h.b16 %v767
  %v831 = vunpack.c.l.b16 %v768
  %v832 = vunpack.c.l.b16 %v769
  %v833 = vunpack.c.h.b16 %v769
  %v834 = vunpack.c.l.b16 %v770
  %v835 = vunpack.c.l.b16 %v771
  %v836 = vunpack.c.h.b16 %v771
  %v837 = vunpack.c.l.b16 %v772
  %v838 = vunpack.c.l.b16 %v773
  %v839 = vunpack.c.h.b16 %v773
  %v840 = vunpack.c.l.b16 %v774
  %v841 = vunpack.c.l.b16 %v775
  %v842 = vunpack.c.h.b16 %v775
  %v843 = vunpack.c.l.b16 %v776
  %v844 = vunpack.c.l.b16 %v777
  %v845 = vunpack.c.h.b16 %v777
  %v846 = vunpack.c.l.b16 %v778
  %v847 = vunpack.c.l.b16 %v779
  %v848 = vunpack.c.h.b16 %v779
  %v849 = vunpack.c.l.b16 %v780
  %v850 = vunpack.c.l.b16 %v781
  %v851 = vunpack.c.h.b16 %v781
  %v852 = vunpack.c.l.b16 %v782
  %v853 = vpack.c.b16 %v814, %v811
  %v854 = vpack.c.b16 %v815, %v812
  %v855 = vpack.c.b16 %v816, %v813
  %v856 = vpack.c.b16 %v820, %v817
  %v857 = vpack.c.b16 %v821, %v818
  %v858 = vpack.c.b16 %v822, %v819
  %v859 = vpack.c.b16 %v826, %v823
  %v860 = vpack.c.b16 %v827, %v824
  %v861 = vpack.c.b16 %v828, %v825
  %v862 = vpack.c.b16 %v832, %v829
  %v863 = vpack.c.b16 %v833, %v830
  %v864 = vpack.c.b16 %v834, %v831
  %v865 = vpack.c.b16 %v838, %v835
  %v866 = vpack.c.b16 %v839, %v836
  %v867 = vpack.c.b16 %v840, %v837
  %v868 = vpack.c.b16 %v844, %v841
  %v869 = vpack.c.b16 %v845, %v842
  %v870 = vpack.c.b16 %v846, %v843
  %v871 = vpack.c.b16 %v850, %v847
  %v872 = vpack.c.b16 %v851, %v848
  %v873 = vpack.c.b16 %v852, %v849
  %v889 = vsel %vm301, %v855, 0
  %v892 = vsel %vm301, %v858, 0
  %v895 = vsel %vm301, %v861, 0
  %v898 = vsel %vm301, %v864, 0
  %v901 = vsel %vm301, %v867, 0
  %v904 = vsel %vm301, %v870, 0
  %v907 = vsel %vm301, %v873, 0
  %909 = vmatpush.bf16.msra.mxu0 %v272
  %910 = vmatpush.bf16.msra.mxu0 %v271
  %911 = vmatpush.bf16.msra.mxu0 %v270
  %912 = vmatpush.bf16.msra.mxu0 %v269
  %913 = vmatpush.bf16.msra.mxu0 %v268
  %914 = vmatpush.bf16.msra.mxu0 %v267
  %915 = vmatpush.bf16.msra.mxu0 %v266
  %916 = vmatpush.bf16.msra.mxu0 %v265
  %917 = vmatmul.bf16.gmra.mxu0 %v853
  %v918 = vpop.f32.mrf.mxu0
  %v919 = vadd.f32 0.0, %v918
  %v920 = vpop.f32.mrf.mxu0
  %v921 = vadd.f32 0.0, %v920
  %922 = vmatmul.bf16.gmra.mxu0 %v856
  %v923 = vpop.f32.mrf.mxu0
  %v924 = vadd.f32 0.0, %v923
  %v925 = vpop.f32.mrf.mxu0
  %v926 = vadd.f32 0.0, %v925
  %927 = vmatmul.bf16.gmra.mxu0 %v859
  %v928 = vpop.f32.mrf.mxu0
  %v929 = vadd.f32 0.0, %v928
  %v930 = vpop.f32.mrf.mxu0
  %v931 = vadd.f32 0.0, %v930
  %932 = vmatmul.bf16.gmra.mxu0 %v862
  %v933 = vpop.f32.mrf.mxu0
  %v934 = vadd.f32 0.0, %v933
  %v935 = vpop.f32.mrf.mxu0
  %v936 = vadd.f32 0.0, %v935
  %937 = vmatmul.bf16.gmra.mxu0 %v865
  %v938 = vpop.f32.mrf.mxu0
  %v939 = vadd.f32 0.0, %v938
  %v940 = vpop.f32.mrf.mxu0
  %v941 = vadd.f32 0.0, %v940
  %942 = vmatmul.bf16.gmra.mxu0 %v868
  %v943 = vpop.f32.mrf.mxu0
  %v944 = vadd.f32 0.0, %v943
  %v945 = vpop.f32.mrf.mxu0
  %v946 = vadd.f32 0.0, %v945
  %947 = vmatmul.bf16.gmra.mxu0 %v871
  %v948 = vpop.f32.mrf.mxu0
  %v949 = vadd.f32 0.0, %v948
  %v950 = vpop.f32.mrf.mxu0
  %v951 = vadd.f32 0.0, %v950
  %952 = vdwg.mxu0
  %953 = vmatpush.bf16.msra.mxu0 %v280
  %954 = vmatpush.bf16.msra.mxu0 %v279
  %955 = vmatpush.bf16.msra.mxu0 %v278
  %956 = vmatpush.bf16.msra.mxu0 %v277
  %957 = vmatpush.bf16.msra.mxu0 %v276
  %958 = vmatpush.bf16.msra.mxu0 %v275
  %959 = vmatpush.bf16.msra.mxu0 %v274
  %960 = vmatpush.bf16.msra.mxu0 %v273
  %961 = vmatmul.bf16.gmra.mxu0 %v854
  %v962 = vpop.f32.mrf.mxu0
  %v963 = vadd.f32 %v919, %v962
  %v964 = vpop.f32.mrf.mxu0
  %v965 = vadd.f32 %v921, %v964
  %966 = vmatmul.bf16.gmra.mxu0 %v857
  %v967 = vpop.f32.mrf.mxu0
  %v968 = vadd.f32 %v924, %v967
  %v969 = vpop.f32.mrf.mxu0
  %v970 = vadd.f32 %v926, %v969
  %971 = vmatmul.bf16.gmra.mxu0 %v860
  %v972 = vpop.f32.mrf.mxu0
  %v973 = vadd.f32 %v929, %v972
  %v974 = vpop.f32.mrf.mxu0
  %v975 = vadd.f32 %v931, %v974
  %976 = vmatmul.bf16.gmra.mxu0 %v863
  %v977 = vpop.f32.mrf.mxu0
  %v978 = vadd.f32 %v934, %v977
  %v979 = vpop.f32.mrf.mxu0
  %v980 = vadd.f32 %v936, %v979
  %981 = vmatmul.bf16.gmra.mxu0 %v866
  %v982 = vpop.f32.mrf.mxu0
  %v983 = vadd.f32 %v939, %v982
  %v984 = vpop.f32.mrf.mxu0
  %v985 = vadd.f32 %v941, %v984
  %986 = vmatmul.bf16.gmra.mxu0 %v869
  %v987 = vpop.f32.mrf.mxu0
  %v988 = vadd.f32 %v944, %v987
  %v989 = vpop.f32.mrf.mxu0
  %v990 = vadd.f32 %v946, %v989
  %991 = vmatmul.bf16.gmra.mxu0 %v872
  %v992 = vpop.f32.mrf.mxu0
  %v993 = vadd.f32 %v949, %v992
  %v994 = vpop.f32.mrf.mxu0
  %v995 = vadd.f32 %v951, %v994
  %996 = vdwg.mxu0
  %997 = vmatpush.bf16.msra.mxu0 0
  %998 = vmatpush.bf16.msra.mxu0 0
  %999 = vmatpush.bf16.msra.mxu0 0
  %1000 = vmatpush.bf16.msra.mxu0 0
  %1001 = vmatpush.bf16.msra.mxu0 0
  %1002 = vmatpush.bf16.msra.mxu0 0
  %1003 = vmatpush.bf16.msra.mxu0 %v282
  %1004 = vmatpush.bf16.msra.mxu0 %v281
  %1005 = vmatmul.bf16.gmra.mxu0 %v889
  %v1006 = vpop.f32.mrf.mxu0
  %v1007 = vadd.f32 %v963, %v1006
  %v1008 = vpop.f32.mrf.mxu0
  %v1009 = vadd.f32 %v965, %v1008
  %1010 = vmatmul.bf16.gmra.mxu0 %v892
  %v1011 = vpop.f32.mrf.mxu0
  %v1012 = vadd.f32 %v968, %v1011
  %v1013 = vpop.f32.mrf.mxu0
  %v1014 = vadd.f32 %v970, %v1013
  %1015 = vmatmul.bf16.gmra.mxu0 %v895
  %v1016 = vpop.f32.mrf.mxu0
  %v1017 = vadd.f32 %v973, %v1016
  %v1018 = vpop.f32.mrf.mxu0
  %v1019 = vadd.f32 %v975, %v1018
  %1020 = vmatmul.bf16.gmra.mxu0 %v898
  %v1021 = vpop.f32.mrf.mxu0
  %v1022 = vadd.f32 %v978, %v1021
  %v1023 = vpop.f32.mrf.mxu0
  %v1024 = vadd.f32 %v980, %v1023
  %1025 = vmatmul.bf16.gmra.mxu0 %v901
  %v1026 = vpop.f32.mrf.mxu0
  %v1027 = vadd.f32 %v983, %v1026
  %v1028 = vpop.f32.mrf.mxu0
  %v1029 = vadd.f32 %v985, %v1028
  %1030 = vmatmul.bf16.gmra.mxu0 %v904
  %v1031 = vpop.f32.mrf.mxu0
  %v1032 = vadd.f32 %v988, %v1031
  %v1033 = vpop.f32.mrf.mxu0
  %v1034 = vadd.f32 %v990, %v1033
  %1035 = vmatmul.bf16.gmra.mxu0 %v907
  %v1036 = vpop.f32.mrf.mxu0
  %v1037 = vadd.f32 %v993, %v1036
  %v1038 = vpop.f32.mrf.mxu0
  %v1039 = vadd.f32 %v995, %v1038
  %1040 = vdwg.mxu0
  %v1041 = vmax.f32 %v741, %v1007
  %v1042 = vmax.f32 %v742, %v1009
  %v1043 = vmax.f32 %v743, %v1012
  %v1044 = vmax.f32 %v744, %v1014
  %v1045 = vmax.f32 %v745, %v1017
  %v1046 = vmax.f32 %v746, %v1019
  %v1047 = vmax.f32 %v747, %v1022
  %v1048 = vmax.f32 %v748, %v1024
  %v1049 = vmax.f32 %v749, %v1027
  %v1050 = vmax.f32 %v750, %v1029
  %v1051 = vmax.f32 %v751, %v1032
  %v1052 = vmax.f32 %v752, %v1034
  %v1053 = vmax.f32 %v753, %v1037
  %v1054 = vmax.f32 %v754, %v1039
  %v1055 = vld [vmem:[%s3] sm:$0xff]
  %v1056 = vld [vmem:[%s3 + $0x8] sm:$0xf]
  %v1057 = vld [vmem:[%s3 + $0xc] sm:$0xff]
  %v1058 = vld [vmem:[%s3 + $0x14] sm:$0xf]
  %v1059 = vld [vmem:[%s3 + $0x18] sm:$0xff]
  %v1060 = vld [vmem:[%s3 + $0x20] sm:$0xf]
  %v1061 = vld [vmem:[%s3 + $0x24] sm:$0xff]
  %v1062 = vld [vmem:[%s3 + $0x2c] sm:$0xf]
  %v1063 = vld [vmem:[%s3 + $0x30] sm:$0xff]
  %v1064 = vld [vmem:[%s3 + $0x38] sm:$0xf]
  %v1065 = vld [vmem:[%s3 + $0x3c] sm:$0xff]
  %v1066 = vld [vmem:[%s3 + $0x44] sm:$0xf]
  %v1067 = vld [vmem:[%s3 + $0x48] sm:$0xff]
  %v1068 = vld [vmem:[%s3 + $0x50] sm:$0xf]
  %v1069 = vld [vmem:[%s3 + $0x54] sm:$0xff]
  %v1070 = vld [vmem:[%s3 + $0x5c] sm:$0xf]
  %v1071 = vld [vmem:[%s3 + $0x60] sm:$0xff]
  %v1072 = vld [vmem:[%s3 + $0x68] sm:$0xf]
  %v1073 = vld [vmem:[%s3 + $0x6c] sm:$0xff]
  %v1074 = vld [vmem:[%s3 + $0x74] sm:$0xf]
  %v1075 = vld [vmem:[%s3 + $0x78] sm:$0xff]
  %v1076 = vld [vmem:[%s3 + $0x80] sm:$0xf]
  %v1077 = vld [vmem:[%s3 + $0x84] sm:$0xff]
  %v1078 = vld [vmem:[%s3 + $0x8c] sm:$0xf]
  %v1079 = vld [vmem:[%s3 + $0x90] sm:$0xff]
  %v1080 = vld [vmem:[%s3 + $0x98] sm:$0xf]
  %v1081 = vld [vmem:[%s3 + $0x9c] sm:$0xff]
  %v1082 = vld [vmem:[%s3 + $0xa4] sm:$0xf]
  %v1111 = vunpack.c.l.b16 %v1055
  %v1112 = vunpack.c.h.b16 %v1055
  %v1113 = vunpack.c.l.b16 %v1056
  %v1114 = vunpack.c.l.b16 %v1057
  %v1115 = vunpack.c.h.b16 %v1057
  %v1116 = vunpack.c.l.b16 %v1058
  %v1117 = vunpack.c.l.b16 %v1059
  %v1118 = vunpack.c.h.b16 %v1059
  %v1119 = vunpack.c.l.b16 %v1060
  %v1120 = vunpack.c.l.b16 %v1061
  %v1121 = vunpack.c.h.b16 %v1061
  %v1122 = vunpack.c.l.b16 %v1062
  %v1123 = vunpack.c.l.b16 %v1063
  %v1124 = vunpack.c.h.b16 %v1063
  %v1125 = vunpack.c.l.b16 %v1064
  %v1126 = vunpack.c.l.b16 %v1065
  %v1127 = vunpack.c.h.b16 %v1065
  %v1128 = vunpack.c.l.b16 %v1066
  %v1129 = vunpack.c.l.b16 %v1067
  %v1130 = vunpack.c.h.b16 %v1067
  %v1131 = vunpack.c.l.b16 %v1068
  %v1132 = vunpack.c.l.b16 %v1069
  %v1133 = vunpack.c.h.b16 %v1069
  %v1134 = vunpack.c.l.b16 %v1070
  %v1135 = vunpack.c.l.b16 %v1071
  %v1136 = vunpack.c.h.b16 %v1071
  %v1137 = vunpack.c.l.b16 %v1072
  %v1138 = vunpack.c.l.b16 %v1073
  %v1139 = vunpack.c.h.b16 %v1073
  %v1140 = vunpack.c.l.b16 %v1074
  %v1141 = vunpack.c.l.b16 %v1075
  %v1142 = vunpack.c.h.b16 %v1075
  %v1143 = vunpack.c.l.b16 %v1076
  %v1144 = vunpack.c.l.b16 %v1077
  %v1145 = vunpack.c.h.b16 %v1077
  %v1146 = vunpack.c.l.b16 %v1078
  %v1147 = vunpack.c.l.b16 %v1079
  %v1148 = vunpack.c.h.b16 %v1079
  %v1149 = vunpack.c.l.b16 %v1080
  %v1150 = vunpack.c.l.b16 %v1081
  %v1151 = vunpack.c.h.b16 %v1081
  %v1152 = vunpack.c.l.b16 %v1082
  %v1153 = vpack.c.b16 %v1114, %v1111
  %v1154 = vpack.c.b16 %v1115, %v1112
  %v1155 = vpack.c.b16 %v1116, %v1113
  %v1156 = vpack.c.b16 %v1120, %v1117
  %v1157 = vpack.c.b16 %v1121, %v1118
  %v1158 = vpack.c.b16 %v1122, %v1119
  %v1159 = vpack.c.b16 %v1126, %v1123
  %v1160 = vpack.c.b16 %v1127, %v1124
  %v1161 = vpack.c.b16 %v1128, %v1125
  %v1162 = vpack.c.b16 %v1132, %v1129
  %v1163 = vpack.c.b16 %v1133, %v1130
  %v1164 = vpack.c.b16 %v1134, %v1131
  %v1165 = vpack.c.b16 %v1138, %v1135
  %v1166 = vpack.c.b16 %v1139, %v1136
  %v1167 = vpack.c.b16 %v1140, %v1137
  %v1168 = vpack.c.b16 %v1144, %v1141
  %v1169 = vpack.c.b16 %v1145, %v1142
  %v1170 = vpack.c.b16 %v1146, %v1143
  %v1171 = vpack.c.b16 %v1150, %v1147
  %v1172 = vpack.c.b16 %v1151, %v1148
  %v1173 = vpack.c.b16 %v1152, %v1149
  %v1189 = vsel %vm301, %v1155, 0
  %v1192 = vsel %vm301, %v1158, 0
  %v1195 = vsel %vm301, %v1161, 0
  %v1198 = vsel %vm301, %v1164, 0
  %v1201 = vsel %vm301, %v1167, 0
  %v1204 = vsel %vm301, %v1170, 0
  %v1207 = vsel %vm301, %v1173, 0
  %1209 = vmatpush.bf16.msra.mxu0 %v272
  %1210 = vmatpush.bf16.msra.mxu0 %v271
  %1211 = vmatpush.bf16.msra.mxu0 %v270
  %1212 = vmatpush.bf16.msra.mxu0 %v269
  %1213 = vmatpush.bf16.msra.mxu0 %v268
  %1214 = vmatpush.bf16.msra.mxu0 %v267
  %1215 = vmatpush.bf16.msra.mxu0 %v266
  %1216 = vmatpush.bf16.msra.mxu0 %v265
  %1217 = vmatmul.bf16.gmra.mxu0 %v1153
  %v1218 = vpop.f32.mrf.mxu0
  %v1219 = vadd.f32 0.0, %v1218
  %v1220 = vpop.f32.mrf.mxu0
  %v1221 = vadd.f32 0.0, %v1220
  %1222 = vmatmul.bf16.gmra.mxu0 %v1156
  %v1223 = vpop.f32.mrf.mxu0
  %v1224 = vadd.f32 0.0, %v1223
  %v1225 = vpop.f32.mrf.mxu0
  %v1226 = vadd.f32 0.0, %v1225
  %1227 = vmatmul.bf16.gmra.mxu0 %v1159
  %v1228 = vpop.f32.mrf.mxu0
  %v1229 = vadd.f32 0.0, %v1228
  %v1230 = vpop.f32.mrf.mxu0
  %v1231 = vadd.f32 0.0, %v1230
  %1232 = vmatmul.bf16.gmra.mxu0 %v1162
  %v1233 = vpop.f32.mrf.mxu0
  %v1234 = vadd.f32 0.0, %v1233
  %v1235 = vpop.f32.mrf.mxu0
  %v1236 = vadd.f32 0.0, %v1235
  %1237 = vmatmul.bf16.gmra.mxu0 %v1165
  %v1238 = vpop.f32.mrf.mxu0
  %v1239 = vadd.f32 0.0, %v1238
  %v1240 = vpop.f32.mrf.mxu0
  %v1241 = vadd.f32 0.0, %v1240
  %1242 = vmatmul.bf16.gmra.mxu0 %v1168
  %v1243 = vpop.f32.mrf.mxu0
  %v1244 = vadd.f32 0.0, %v1243
  %v1245 = vpop.f32.mrf.mxu0
  %v1246 = vadd.f32 0.0, %v1245
  %1247 = vmatmul.bf16.gmra.mxu0 %v1171
  %v1248 = vpop.f32.mrf.mxu0
  %v1249 = vadd.f32 0.0, %v1248
  %v1250 = vpop.f32.mrf.mxu0
  %v1251 = vadd.f32 0.0, %v1250
  %1252 = vdwg.mxu0
  %1253 = vmatpush.bf16.msra.mxu0 %v280
  %1254 = vmatpush.bf16.msra.mxu0 %v279
  %1255 = vmatpush.bf16.msra.mxu0 %v278
  %1256 = vmatpush.bf16.msra.mxu0 %v277
  %1257 = vmatpush.bf16.msra.mxu0 %v276
  %1258 = vmatpush.bf16.msra.mxu0 %v275
  %1259 = vmatpush.bf16.msra.mxu0 %v274
  %1260 = vmatpush.bf16.msra.mxu0 %v273
  %1261 = vmatmul.bf16.gmra.mxu0 %v1154
  %v1262 = vpop.f32.mrf.mxu0
  %v1263 = vadd.f32 %v1219, %v1262
  %v1264 = vpop.f32.mrf.mxu0
  %v1265 = vadd.f32 %v1221, %v1264
  %1266 = vmatmul.bf16.gmra.mxu0 %v1157
  %v1267 = vpop.f32.mrf.mxu0
  %v1268 = vadd.f32 %v1224, %v1267
  %v1269 = vpop.f32.mrf.mxu0
  %v1270 = vadd.f32 %v1226, %v1269
  %1271 = vmatmul.bf16.gmra.mxu0 %v1160
  %v1272 = vpop.f32.mrf.mxu0
  %v1273 = vadd.f32 %v1229, %v1272
  %v1274 = vpop.f32.mrf.mxu0
  %v1275 = vadd.f32 %v1231, %v1274
  %1276 = vmatmul.bf16.gmra.mxu0 %v1163
  %v1277 = vpop.f32.mrf.mxu0
  %v1278 = vadd.f32 %v1234, %v1277
  %v1279 = vpop.f32.mrf.mxu0
  %v1280 = vadd.f32 %v1236, %v1279
  %1281 = vmatmul.bf16.gmra.mxu0 %v1166
  %v1282 = vpop.f32.mrf.mxu0
  %v1283 = vadd.f32 %v1239, %v1282
  %v1284 = vpop.f32.mrf.mxu0
  %v1285 = vadd.f32 %v1241, %v1284
  %1286 = vmatmul.bf16.gmra.mxu0 %v1169
  %v1287 = vpop.f32.mrf.mxu0
  %v1288 = vadd.f32 %v1244, %v1287
  %v1289 = vpop.f32.mrf.mxu0
  %v1290 = vadd.f32 %v1246, %v1289
  %1291 = vmatmul.bf16.gmra.mxu0 %v1172
  %v1292 = vpop.f32.mrf.mxu0
  %v1293 = vadd.f32 %v1249, %v1292
  %v1294 = vpop.f32.mrf.mxu0
  %v1295 = vadd.f32 %v1251, %v1294
  %1296 = vdwg.mxu0
  %1297 = vmatpush.bf16.msra.mxu0 0
  %1298 = vmatpush.bf16.msra.mxu0 0
  %1299 = vmatpush.bf16.msra.mxu0 0
  %1300 = vmatpush.bf16.msra.mxu0 0
  %1301 = vmatpush.bf16.msra.mxu0 0
  %1302 = vmatpush.bf16.msra.mxu0 0
  %1303 = vmatpush.bf16.msra.mxu0 %v282
  %1304 = vmatpush.bf16.msra.mxu0 %v281
  %1305 = vmatmul.bf16.gmra.mxu0 %v1189
  %v1306 = vpop.f32.mrf.mxu0
  %v1307 = vadd.f32 %v1263, %v1306
  %v1308 = vpop.f32.mrf.mxu0
  %v1309 = vadd.f32 %v1265, %v1308
  %1310 = vmatmul.bf16.gmra.mxu0 %v1192
  %v1311 = vpop.f32.mrf.mxu0
  %v1312 = vadd.f32 %v1268, %v1311
  %v1313 = vpop.f32.mrf.mxu0
  %v1314 = vadd.f32 %v1270, %v1313
  %1315 = vmatmul.bf16.gmra.mxu0 %v1195
  %v1316 = vpop.f32.mrf.mxu0
  %v1317 = vadd.f32 %v1273, %v1316
  %v1318 = vpop.f32.mrf.mxu0
  %v1319 = vadd.f32 %v1275, %v1318
  %1320 = vmatmul.bf16.gmra.mxu0 %v1198
  %v1321 = vpop.f32.mrf.mxu0
  %v1322 = vadd.f32 %v1278, %v1321
  %v1323 = vpop.f32.mrf.mxu0
  %v1324 = vadd.f32 %v1280, %v1323
  %1325 = vmatmul.bf16.gmra.mxu0 %v1201
  %v1326 = vpop.f32.mrf.mxu0
  %v1327 = vadd.f32 %v1283, %v1326
  %v1328 = vpop.f32.mrf.mxu0
  %v1329 = vadd.f32 %v1285, %v1328
  %1330 = vmatmul.bf16.gmra.mxu0 %v1204
  %v1331 = vpop.f32.mrf.mxu0
  %v1332 = vadd.f32 %v1288, %v1331
  %v1333 = vpop.f32.mrf.mxu0
  %v1334 = vadd.f32 %v1290, %v1333
  %1335 = vmatmul.bf16.gmra.mxu0 %v1207
  %v1336 = vpop.f32.mrf.mxu0
  %v1337 = vadd.f32 %v1293, %v1336
  %v1338 = vpop.f32.mrf.mxu0
  %v1339 = vadd.f32 %v1295, %v1338
  %1340 = vdwg.mxu0
  %v1341 = vmax.f32 %v1041, %v1307
  %v1342 = vmax.f32 %v1042, %v1309
  %v1343 = vmax.f32 %v1043, %v1312
  %v1344 = vmax.f32 %v1044, %v1314
  %v1345 = vmax.f32 %v1045, %v1317
  %v1346 = vmax.f32 %v1046, %v1319
  %v1347 = vmax.f32 %v1047, %v1322
  %v1348 = vmax.f32 %v1048, %v1324
  %v1349 = vmax.f32 %v1049, %v1327
  %v1350 = vmax.f32 %v1050, %v1329
  %v1351 = vmax.f32 %v1051, %v1332
  %v1352 = vmax.f32 %v1052, %v1334
  %v1353 = vmax.f32 %v1053, %v1337
  %v1354 = vmax.f32 %v1054, %v1339
  %v1355 = vld [vmem:[%s5] sm:$0x1]
  %v1357 = vperm.slane %v1355, 0
  %v1359 = vadd.f32 %v1341, %v1357
  %v1360 = vadd.f32 %v1342, %v1357
  %v1361 = vadd.f32 %v1343, %v1357
  %v1362 = vadd.f32 %v1344, %v1357
  %v1363 = vadd.f32 %v1345, %v1357
  %v1364 = vadd.f32 %v1346, %v1357
  %v1365 = vadd.f32 %v1347, %v1357
  %v1366 = vadd.f32 %v1348, %v1357
  %v1367 = vadd.f32 %v1349, %v1357
  %v1368 = vadd.f32 %v1350, %v1357
  %v1369 = vadd.f32 %v1351, %v1357
  %v1370 = vadd.f32 %v1352, %v1357
  %v1371 = vadd.f32 %v1353, %v1357
  %v1372 = vadd.f32 %v1354, %v1357
  %vm1373 = vcmp.gt.f32.partialorder %v1359, 0.0
  %vm1374 = vcmp.gt.f32.partialorder %v1360, 0.0
  %vm1375 = vcmp.gt.f32.partialorder %v1361, 0.0
  %vm1376 = vcmp.gt.f32.partialorder %v1362, 0.0
  %vm1377 = vcmp.gt.f32.partialorder %v1363, 0.0
  %vm1378 = vcmp.gt.f32.partialorder %v1364, 0.0
  %vm1379 = vcmp.gt.f32.partialorder %v1365, 0.0
  %vm1380 = vcmp.gt.f32.partialorder %v1366, 0.0
  %vm1381 = vcmp.gt.f32.partialorder %v1367, 0.0
  %vm1382 = vcmp.gt.f32.partialorder %v1368, 0.0
  %vm1383 = vcmp.gt.f32.partialorder %v1369, 0.0
  %vm1384 = vcmp.gt.f32.partialorder %v1370, 0.0
  %vm1385 = vcmp.gt.f32.partialorder %v1371, 0.0
  %vm1386 = vcmp.gt.f32.partialorder %v1372, 0.0
  %v1387 = vmul.f32 %v1359, 0.01
  %v1388 = vmul.f32 %v1360, 0.01
  %v1389 = vmul.f32 %v1361, 0.01
  %v1390 = vmul.f32 %v1362, 0.01
  %v1391 = vmul.f32 %v1363, 0.01
  %v1392 = vmul.f32 %v1364, 0.01
  %v1393 = vmul.f32 %v1365, 0.01
  %v1394 = vmul.f32 %v1366, 0.01
  %v1395 = vmul.f32 %v1367, 0.01
  %v1396 = vmul.f32 %v1368, 0.01
  %v1397 = vmul.f32 %v1369, 0.01
  %v1398 = vmul.f32 %v1370, 0.01
  %v1399 = vmul.f32 %v1371, 0.01
  %v1400 = vmul.f32 %v1372, 0.01
  %v1401 = vsel %vm1373, %v1359, %v1387
  %v1402 = vsel %vm1374, %v1360, %v1388
  %v1403 = vsel %vm1375, %v1361, %v1389
  %v1404 = vsel %vm1376, %v1362, %v1390
  %v1405 = vsel %vm1377, %v1363, %v1391
  %v1406 = vsel %vm1378, %v1364, %v1392
  %v1407 = vsel %vm1379, %v1365, %v1393
  %v1408 = vsel %vm1380, %v1366, %v1394
  %v1409 = vsel %vm1381, %v1367, %v1395
  %v1410 = vsel %vm1382, %v1368, %v1396
  %v1411 = vsel %vm1383, %v1369, %v1397
  %v1412 = vsel %vm1384, %v1370, %v1398
  %v1413 = vsel %vm1385, %v1371, %v1399
  %v1414 = vsel %vm1386, %v1372, %v1400
  %v1415 = vpack.c.bf16 %v1401, %v1401
  %v1416 = vpack.c.bf16 %v1402, %v1402
  %v1417 = vpack.c.bf16 %v1403, %v1403
  %v1418 = vpack.c.bf16 %v1404, %v1404
  %v1419 = vpack.c.bf16 %v1405, %v1405
  %v1420 = vpack.c.bf16 %v1406, %v1406
  %v1421 = vpack.c.bf16 %v1407, %v1407
  %v1422 = vpack.c.bf16 %v1408, %v1408
  %v1423 = vpack.c.bf16 %v1409, %v1409
  %v1424 = vpack.c.bf16 %v1410, %v1410
  %v1425 = vpack.c.bf16 %v1411, %v1411
  %v1426 = vpack.c.bf16 %v1412, %v1412
  %v1427 = vpack.c.bf16 %v1413, %v1413
  %v1428 = vpack.c.bf16 %v1414, %v1414
  %vm1429 = vcmask 125952
  %1430 = vst.msk [vmem:[%s6] sm:$0xf] %vm1429, %v1415
  %1431 = vst.msk [vmem:[%s6 + $0x4] sm:$0xf] %vm1429, %v1416
  %1432 = vst.msk [vmem:[%s6 + $0x8] sm:$0xf] %vm1429, %v1417
  %1433 = vst.msk [vmem:[%s6 + $0xc] sm:$0xf] %vm1429, %v1418
  %1434 = vst.msk [vmem:[%s6 + $0x10] sm:$0xf] %vm1429, %v1419
  %1435 = vst.msk [vmem:[%s6 + $0x14] sm:$0xf] %vm1429, %v1420
  %1436 = vst.msk [vmem:[%s6 + $0x18] sm:$0xf] %vm1429, %v1421
  %1437 = vst.msk [vmem:[%s6 + $0x1c] sm:$0xf] %vm1429, %v1422
  %1438 = vst.msk [vmem:[%s6 + $0x20] sm:$0xf] %vm1429, %v1423
  %1439 = vst.msk [vmem:[%s6 + $0x24] sm:$0xf] %vm1429, %v1424
  %1440 = vst.msk [vmem:[%s6 + $0x28] sm:$0xf] %vm1429, %v1425
  %1441 = vst.msk [vmem:[%s6 + $0x2c] sm:$0xf] %vm1429, %v1426
  %1442 = vst.msk [vmem:[%s6 + $0x30] sm:$0xf] %vm1429, %v1427
  %1443 = vst.msk [vmem:[%s6 + $0x34] sm:$0xf] %vm1429, %v1428
  // Predicated region
  $region26: #{deeper_conv_model.8} parent=0 // pred_check
    _
  $region27: #{deeper_conv_model.8} parent=0 // pred_check_branch
    %1445 = sbr.rel (0) target = $region29
  $region28: #{deeper_conv_model.8} parent=0 // pred_region
    _
  $region29: #{deeper_conv_model.8} parent=0 // pred_fallthru
    _
  // Predicated region
  $region30: #{deeper_conv_model.8} parent=0 // pred_check
    _
  $region31: #{deeper_conv_model.8} parent=0 // pred_check_branch
    %1447 = sbr.rel (0) target = $region33
  $region32: #{deeper_conv_model.8} parent=0 // pred_region
    _
  $region33: #{deeper_conv_model.8} parent=0 // pred_fallthru
    _

// kernel: deeper_conv_model.9
$region0: #{deeper_conv_model.9}
  #allocation0 [shape = 'u32[]', space=smem, size = 0x4, offset = 0x4, fixed_abs, tag = 'smem constant byte address 0x4 - core index']
  #allocation1 [shape = 'u32[72,128]{1,0:T(1,128)}', space=vmem, size = 0x9000, scoped, tag = 'internal scratch']
  %s0 = inlined_call_operand.vmem [shape: bf16[16,7056], index: 0, kind: input, shape index: {}]
  %s1 = inlined_call_operand.vmem [shape: bf16[7056,10], index: 1, kind: input, shape index: {}]
  %s2 = inlined_call_operand.vmem [shape: f32[1,10], index: 2, kind: input, shape index: {}]
  %s3 = inlined_call_operand.vmem [shape: f32[16,10], index: 3, kind: output, shape index: {}]
  %s4 = sld [smem:[#allocation0]]
  $region22: #{deeper_conv_model.9} parent=0
    _
  %s6 = ssub.s32 1, %s4
  %s7 = scalar_select 0, %s6, %s4
  // Predicated region
  $region2: #{deeper_conv_model.9} parent=0 // pred_check
    _
  $region3: #{deeper_conv_model.9} parent=0 // pred_check_branch
    %9 = sbr.rel (0) target = $region5
  $region4: #{deeper_conv_model.9} parent=0 // pred_region
    _
  $region5: #{deeper_conv_model.9} parent=0 // pred_fallthru
    _
  // Predicated region
  $region6: #{deeper_conv_model.9} parent=0 // pred_check
    _
  $region7: #{deeper_conv_model.9} parent=0 // pred_check_branch
    %11 = sbr.rel (0) target = $region9
  $region8: #{deeper_conv_model.9} parent=0 // pred_region
    _
  $region9: #{deeper_conv_model.9} parent=0 // pred_fallthru
    _
  // Predicated region
  $region10: #{deeper_conv_model.9} parent=0 // pred_check
    _
  $region11: #{deeper_conv_model.9} parent=0 // pred_check_branch
    %13 = sbr.rel (0) target = $region13
  $region12: #{deeper_conv_model.9} parent=0 // pred_region
    _
  $region13: #{deeper_conv_model.9} parent=0 // pred_fallthru
    _
  %v15 = vld [vmem:[%s0] sm:$0xff]
  %v16 = vld [vmem:[%s0 + $0x8] sm:$0xff]
  %v17 = vld [vmem:[%s0 + $0x10] sm:$0xff]
  %v18 = vld [vmem:[%s0 + $0x18] sm:$0xff]
  %v19 = vld [vmem:[%s0 + $0x20] sm:$0xff]
  %v20 = vld [vmem:[%s0 + $0x28] sm:$0xff]
  %v21 = vld [vmem:[%s0 + $0x30] sm:$0xff]
  %v22 = vld [vmem:[%s0 + $0x38] sm:$0xff]
  %v23 = vld [vmem:[%s0 + $0x40] sm:$0xff]
  %v24 = vld [vmem:[%s0 + $0x48] sm:$0xff]
  %v25 = vld [vmem:[%s0 + $0x50] sm:$0xff]
  %v26 = vld [vmem:[%s0 + $0x58] sm:$0xff]
  %v27 = vld [vmem:[%s0 + $0x60] sm:$0xff]
  %v28 = vld [vmem:[%s0 + $0x68] sm:$0xff]
  %v29 = vld [vmem:[%s0 + $0x70] sm:$0xff]
  %v30 = vld [vmem:[%s0 + $0x78] sm:$0xff]
  %v31 = vld [vmem:[%s0 + $0x80] sm:$0xff]
  %v32 = vld [vmem:[%s0 + $0x88] sm:$0xff]
  %v33 = vld [vmem:[%s0 + $0x90] sm:$0xff]
  %v34 = vld [vmem:[%s0 + $0x98] sm:$0xff]
  %v35 = vld [vmem:[%s0 + $0xa0] sm:$0xff]
  %v36 = vld [vmem:[%s0 + $0xa8] sm:$0xff]
  %v37 = vld [vmem:[%s0 + $0xb0] sm:$0xff]
  %v38 = vld [vmem:[%s0 + $0xb8] sm:$0xff]
  %v39 = vld [vmem:[%s0 + $0xc0] sm:$0xff]
  %v40 = vld [vmem:[%s0 + $0xc8] sm:$0xff]
  %v41 = vld [vmem:[%s0 + $0xd0] sm:$0xff]
  %v42 = vld [vmem:[%s0 + $0xd8] sm:$0xff]
  %v43 = vld [vmem:[%s0 + $0xe0] sm:$0xff]
  %v44 = vld [vmem:[%s0 + $0xe8] sm:$0xff]
  %v45 = vld [vmem:[%s0 + $0xf0] sm:$0xff]
  %v46 = vld [vmem:[%s0 + $0xf8] sm:$0xff]
  %v47 = vld [vmem:[%s0 + $0x100] sm:$0xff]
  %v48 = vld [vmem:[%s0 + $0x108] sm:$0xff]
  %v49 = vld [vmem:[%s0 + $0x110] sm:$0xff]
  %v50 = vld [vmem:[%s0 + $0x118] sm:$0xff]
  %v51 = vld [vmem:[%s0 + $0x120] sm:$0xff]
  %v52 = vld [vmem:[%s0 + $0x128] sm:$0xff]
  %v53 = vld [vmem:[%s0 + $0x130] sm:$0xff]
  %v54 = vld [vmem:[%s0 + $0x138] sm:$0xff]
  %v55 = vld [vmem:[%s0 + $0x140] sm:$0xff]
  %v56 = vld [vmem:[%s0 + $0x148] sm:$0xff]
  %v57 = vld [vmem:[%s0 + $0x150] sm:$0xff]
  %v58 = vld [vmem:[%s0 + $0x158] sm:$0xff]
  %v59 = vld [vmem:[%s0 + $0x160] sm:$0xff]
  %v60 = vld [vmem:[%s0 + $0x168] sm:$0xff]
  %v61 = vld [vmem:[%s0 + $0x170] sm:$0xff]
  %v62 = vld [vmem:[%s0 + $0x178] sm:$0xff]
  %v63 = vld [vmem:[%s0 + $0x180] sm:$0xff]
  %v64 = vld [vmem:[%s0 + $0x188] sm:$0xff]
  %v65 = vld [vmem:[%s0 + $0x190] sm:$0xff]
  %v66 = vld [vmem:[%s0 + $0x198] sm:$0xff]
  %v67 = vld [vmem:[%s0 + $0x1a0] sm:$0xff]
  %v68 = vld [vmem:[%s0 + $0x1a8] sm:$0xff]
  %v69 = vld [vmem:[%s0 + $0x1b0] sm:$0xff]
  %v70 = vld [vmem:[%s0 + $0x1b8] sm:$0xff]
  %v71 = vld [vmem:[%s1] sm:$0xf]
  %v72 = vld [vmem:[%s1 + $0x4] sm:$0xf]
  %v73 = vld [vmem:[%s1 + $0x8] sm:$0xf]
  %v74 = vld [vmem:[%s1 + $0xc] sm:$0xf]
  %v75 = vld [vmem:[%s1 + $0x10] sm:$0xf]
  %v76 = vld [vmem:[%s1 + $0x14] sm:$0xf]
  %v77 = vld [vmem:[%s1 + $0x18] sm:$0xf]
  %v78 = vld [vmem:[%s1 + $0x1c] sm:$0xf]
  %v79 = vld [vmem:[%s1 + $0x20] sm:$0xf]
  %v80 = vld [vmem:[%s1 + $0x24] sm:$0xf]
  %v81 = vld [vmem:[%s1 + $0x28] sm:$0xf]
  %v82 = vld [vmem:[%s1 + $0x2c] sm:$0xf]
  %v83 = vld [vmem:[%s1 + $0x30] sm:$0xf]
  %v84 = vld [vmem:[%s1 + $0x34] sm:$0xf]
  %v85 = vld [vmem:[%s1 + $0x38] sm:$0xf]
  %v86 = vld [vmem:[%s1 + $0x3c] sm:$0xf]
  %v87 = vld [vmem:[%s1 + $0x40] sm:$0xf]
  %v88 = vld [vmem:[%s1 + $0x44] sm:$0xf]
  %v89 = vld [vmem:[%s1 + $0x48] sm:$0xf]
  %v90 = vld [vmem:[%s1 + $0x4c] sm:$0xf]
  %v91 = vld [vmem:[%s1 + $0x50] sm:$0xf]
  %v92 = vld [vmem:[%s1 + $0x54] sm:$0xf]
  %v93 = vld [vmem:[%s1 + $0x58] sm:$0xf]
  %v94 = vld [vmem:[%s1 + $0x5c] sm:$0xf]
  %v95 = vld [vmem:[%s1 + $0x60] sm:$0xf]
  %v96 = vld [vmem:[%s1 + $0x64] sm:$0xf]
  %v97 = vld [vmem:[%s1 + $0x68] sm:$0xf]
  %v98 = vld [vmem:[%s1 + $0x6c] sm:$0xf]
  %v99 = vld [vmem:[%s1 + $0x70] sm:$0xf]
  %v100 = vld [vmem:[%s1 + $0x74] sm:$0xf]
  %v101 = vld [vmem:[%s1 + $0x78] sm:$0xf]
  %v102 = vld [vmem:[%s1 + $0x7c] sm:$0xf]
  %v103 = vld [vmem:[%s1 + $0x80] sm:$0xf]
  %v104 = vld [vmem:[%s1 + $0x84] sm:$0xf]
  %v105 = vld [vmem:[%s1 + $0x88] sm:$0xf]
  %v106 = vld [vmem:[%s1 + $0x8c] sm:$0xf]
  %v107 = vld [vmem:[%s1 + $0x90] sm:$0xf]
  %v108 = vld [vmem:[%s1 + $0x94] sm:$0xf]
  %v109 = vld [vmem:[%s1 + $0x98] sm:$0xf]
  %v110 = vld [vmem:[%s1 + $0x9c] sm:$0xf]
  %v111 = vld [vmem:[%s1 + $0xa0] sm:$0xf]
  %v112 = vld [vmem:[%s1 + $0xa4] sm:$0xf]
  %v113 = vld [vmem:[%s1 + $0xa8] sm:$0xf]
  %v114 = vld [vmem:[%s1 + $0xac] sm:$0xf]
  %v115 = vld [vmem:[%s1 + $0xb0] sm:$0xf]
  %v116 = vld [vmem:[%s1 + $0xb4] sm:$0xf]
  %v117 = vld [vmem:[%s1 + $0xb8] sm:$0xf]
  %v118 = vld [vmem:[%s1 + $0xbc] sm:$0xf]
  %v119 = vld [vmem:[%s1 + $0xc0] sm:$0xf]
  %v120 = vld [vmem:[%s1 + $0xc4] sm:$0xf]
  %v121 = vld [vmem:[%s1 + $0xc8] sm:$0xf]
  %v122 = vld [vmem:[%s1 + $0xcc] sm:$0xf]
  %v123 = vld [vmem:[%s1 + $0xd0] sm:$0xf]
  %v124 = vld [vmem:[%s1 + $0xd4] sm:$0xf]
  %v125 = vld [vmem:[%s1 + $0xd8] sm:$0xf]
  %v126 = vld [vmem:[%s1 + $0xdc] sm:$0xf]
  %v127 = vld [vmem:[%s1 + $0xe0] sm:$0xf]
  %v128 = vld [vmem:[%s1 + $0xe4] sm:$0xf]
  %v129 = vld [vmem:[%s1 + $0xe8] sm:$0xf]
  %v130 = vld [vmem:[%s1 + $0xec] sm:$0xf]
  %v131 = vld [vmem:[%s1 + $0xf0] sm:$0xf]
  %v132 = vld [vmem:[%s1 + $0xf4] sm:$0xf]
  %v133 = vld [vmem:[%s1 + $0xf8] sm:$0xf]
  %v134 = vld [vmem:[%s1 + $0xfc] sm:$0xf]
  %v135 = vld [vmem:[%s1 + $0x100] sm:$0xf]
  %v136 = vld [vmem:[%s1 + $0x104] sm:$0xf]
  %v137 = vld [vmem:[%s1 + $0x108] sm:$0xf]
  %v138 = vld [vmem:[%s1 + $0x10c] sm:$0xf]
  %v139 = vld [vmem:[%s1 + $0x110] sm:$0xf]
  %v140 = vld [vmem:[%s1 + $0x114] sm:$0xf]
  %v141 = vld [vmem:[%s1 + $0x118] sm:$0xf]
  %v142 = vld [vmem:[%s1 + $0x11c] sm:$0xf]
  %v143 = vld [vmem:[%s1 + $0x120] sm:$0xf]
  %v144 = vld [vmem:[%s1 + $0x124] sm:$0xf]
  %v145 = vld [vmem:[%s1 + $0x128] sm:$0xf]
  %v146 = vld [vmem:[%s1 + $0x12c] sm:$0xf]
  %v147 = vld [vmem:[%s1 + $0x130] sm:$0xf]
  %v148 = vld [vmem:[%s1 + $0x134] sm:$0xf]
  %v149 = vld [vmem:[%s1 + $0x138] sm:$0xf]
  %v150 = vld [vmem:[%s1 + $0x13c] sm:$0xf]
  %v151 = vld [vmem:[%s1 + $0x140] sm:$0xf]
  %v152 = vld [vmem:[%s1 + $0x144] sm:$0xf]
  %v153 = vld [vmem:[%s1 + $0x148] sm:$0xf]
  %v154 = vld [vmem:[%s1 + $0x14c] sm:$0xf]
  %v155 = vld [vmem:[%s1 + $0x150] sm:$0xf]
  %v156 = vld [vmem:[%s1 + $0x154] sm:$0xf]
  %v157 = vld [vmem:[%s1 + $0x158] sm:$0xf]
  %v158 = vld [vmem:[%s1 + $0x15c] sm:$0xf]
  %v159 = vld [vmem:[%s1 + $0x160] sm:$0xf]
  %v160 = vld [vmem:[%s1 + $0x164] sm:$0xf]
  %v161 = vld [vmem:[%s1 + $0x168] sm:$0xf]
  %v162 = vld [vmem:[%s1 + $0x16c] sm:$0xf]
  %v163 = vld [vmem:[%s1 + $0x170] sm:$0xf]
  %v164 = vld [vmem:[%s1 + $0x174] sm:$0xf]
  %v165 = vld [vmem:[%s1 + $0x178] sm:$0xf]
  %v166 = vld [vmem:[%s1 + $0x17c] sm:$0xf]
  %v167 = vld [vmem:[%s1 + $0x180] sm:$0xf]
  %v168 = vld [vmem:[%s1 + $0x184] sm:$0xf]
  %v169 = vld [vmem:[%s1 + $0x188] sm:$0xf]
  %v170 = vld [vmem:[%s1 + $0x18c] sm:$0xf]
  %v171 = vld [vmem:[%s1 + $0x190] sm:$0xf]
  %v172 = vld [vmem:[%s1 + $0x194] sm:$0xf]
  %v173 = vld [vmem:[%s1 + $0x198] sm:$0xf]
  %v174 = vld [vmem:[%s1 + $0x19c] sm:$0xf]
  %v175 = vld [vmem:[%s1 + $0x1a0] sm:$0xf]
  %v176 = vld [vmem:[%s1 + $0x1a4] sm:$0xf]
  %v177 = vld [vmem:[%s1 + $0x1a8] sm:$0xf]
  %v178 = vld [vmem:[%s1 + $0x1ac] sm:$0xf]
  %v179 = vld [vmem:[%s1 + $0x1b0] sm:$0xf]
  %v180 = vld [vmem:[%s1 + $0x1b4] sm:$0xf]
  %v181 = vld [vmem:[%s1 + $0x1b8] sm:$0xf]
  %v182 = vld [vmem:[%s1 + $0x1bc] sm:$0xf]
  %v183 = vld [vmem:[%s1 + $0x1c0] sm:$0xf]
  %v184 = vld [vmem:[%s1 + $0x1c4] sm:$0xf]
  %v185 = vld [vmem:[%s1 + $0x1c8] sm:$0xf]
  %v186 = vld [vmem:[%s1 + $0x1cc] sm:$0xf]
  %v187 = vld [vmem:[%s1 + $0x1d0] sm:$0xf]
  %v188 = vld [vmem:[%s1 + $0x1d4] sm:$0xf]
  %v189 = vld [vmem:[%s1 + $0x1d8] sm:$0xf]
  %v190 = vld [vmem:[%s1 + $0x1dc] sm:$0xf]
  %v191 = vld [vmem:[%s1 + $0x1e0] sm:$0xf]
  %v192 = vld [vmem:[%s1 + $0x1e4] sm:$0xf]
  %v193 = vld [vmem:[%s1 + $0x1e8] sm:$0xf]
  %v194 = vld [vmem:[%s1 + $0x1ec] sm:$0xf]
  %v195 = vld [vmem:[%s1 + $0x1f0] sm:$0xf]
  %v196 = vld [vmem:[%s1 + $0x1f4] sm:$0xf]
  %v197 = vld [vmem:[%s1 + $0x1f8] sm:$0xf]
  %v198 = vld [vmem:[%s1 + $0x1fc] sm:$0xf]
  %v199 = vld [vmem:[%s1 + $0x200] sm:$0xf]
  %v200 = vld [vmem:[%s1 + $0x204] sm:$0xf]
  %v201 = vld [vmem:[%s1 + $0x208] sm:$0xf]
  %v202 = vld [vmem:[%s1 + $0x20c] sm:$0xf]
  %v203 = vld [vmem:[%s1 + $0x210] sm:$0xf]
  %v204 = vld [vmem:[%s1 + $0x214] sm:$0xf]
  %v205 = vld [vmem:[%s1 + $0x218] sm:$0xf]
  %v206 = vld [vmem:[%s1 + $0x21c] sm:$0xf]
  %v207 = vld [vmem:[%s1 + $0x220] sm:$0xf]
  %v208 = vld [vmem:[%s1 + $0x224] sm:$0xf]
  %v209 = vld [vmem:[%s1 + $0x228] sm:$0xf]
  %v210 = vld [vmem:[%s1 + $0x22c] sm:$0xf]
  %v211 = vld [vmem:[%s1 + $0x230] sm:$0xf]
  %v212 = vld [vmem:[%s1 + $0x234] sm:$0xf]
  %v213 = vld [vmem:[%s1 + $0x238] sm:$0xf]
  %v214 = vld [vmem:[%s1 + $0x23c] sm:$0xf]
  %v215 = vld [vmem:[%s1 + $0x240] sm:$0xf]
  %v216 = vld [vmem:[%s1 + $0x244] sm:$0xf]
  %v217 = vld [vmem:[%s1 + $0x248] sm:$0xf]
  %v218 = vld [vmem:[%s1 + $0x24c] sm:$0xf]
  %v219 = vld [vmem:[%s1 + $0x250] sm:$0xf]
  %v220 = vld [vmem:[%s1 + $0x254] sm:$0xf]
  %v221 = vld [vmem:[%s1 + $0x258] sm:$0xf]
  %v222 = vld [vmem:[%s1 + $0x25c] sm:$0xf]
  %v223 = vld [vmem:[%s1 + $0x260] sm:$0xf]
  %v224 = vld [vmem:[%s1 + $0x264] sm:$0xf]
  %v225 = vld [vmem:[%s1 + $0x268] sm:$0xf]
  %v226 = vld [vmem:[%s1 + $0x26c] sm:$0xf]
  %v227 = vld [vmem:[%s1 + $0x270] sm:$0xf]
  %v228 = vld [vmem:[%s1 + $0x274] sm:$0xf]
  %v229 = vld [vmem:[%s1 + $0x278] sm:$0xf]
  %v230 = vld [vmem:[%s1 + $0x27c] sm:$0xf]
  %v231 = vld [vmem:[%s1 + $0x280] sm:$0xf]
  %v232 = vld [vmem:[%s1 + $0x284] sm:$0xf]
  %v233 = vld [vmem:[%s1 + $0x288] sm:$0xf]
  %v234 = vld [vmem:[%s1 + $0x28c] sm:$0xf]
  %v235 = vld [vmem:[%s1 + $0x290] sm:$0xf]
  %v236 = vld [vmem:[%s1 + $0x294] sm:$0xf]
  %v237 = vld [vmem:[%s1 + $0x298] sm:$0xf]
  %v238 = vld [vmem:[%s1 + $0x29c] sm:$0xf]
  %v239 = vld [vmem:[%s1 + $0x2a0] sm:$0xf]
  %v240 = vld [vmem:[%s1 + $0x2a4] sm:$0xf]
  %v241 = vld [vmem:[%s1 + $0x2a8] sm:$0xf]
  %v242 = vld [vmem:[%s1 + $0x2ac] sm:$0xf]
  %v243 = vld [vmem:[%s1 + $0x2b0] sm:$0xf]
  %v244 = vld [vmem:[%s1 + $0x2b4] sm:$0xf]
  %v245 = vld [vmem:[%s1 + $0x2b8] sm:$0xf]
  %v246 = vld [vmem:[%s1 + $0x2bc] sm:$0xf]
  %v247 = vld [vmem:[%s1 + $0x2c0] sm:$0xf]
  %v248 = vld [vmem:[%s1 + $0x2c4] sm:$0xf]
  %v249 = vld [vmem:[%s1 + $0x2c8] sm:$0xf]
  %v250 = vld [vmem:[%s1 + $0x2cc] sm:$0xf]
  %v251 = vld [vmem:[%s1 + $0x2d0] sm:$0xf]
  %v252 = vld [vmem:[%s1 + $0x2d4] sm:$0xf]
  %v253 = vld [vmem:[%s1 + $0x2d8] sm:$0xf]
  %v254 = vld [vmem:[%s1 + $0x2dc] sm:$0xf]
  %v255 = vld [vmem:[%s1 + $0x2e0] sm:$0xf]
  %v256 = vld [vmem:[%s1 + $0x2e4] sm:$0xf]
  %v257 = vld [vmem:[%s1 + $0x2e8] sm:$0xf]
  %v258 = vld [vmem:[%s1 + $0x2ec] sm:$0xf]
  %v259 = vld [vmem:[%s1 + $0x2f0] sm:$0xf]
  %v260 = vld [vmem:[%s1 + $0x2f4] sm:$0xf]
  %v261 = vld [vmem:[%s1 + $0x2f8] sm:$0xf]
  %v262 = vld [vmem:[%s1 + $0x2fc] sm:$0xf]
  %v263 = vld [vmem:[%s1 + $0x300] sm:$0xf]
  %v264 = vld [vmem:[%s1 + $0x304] sm:$0xf]
  %v265 = vld [vmem:[%s1 + $0x308] sm:$0xf]
  %v266 = vld [vmem:[%s1 + $0x30c] sm:$0xf]
  %v267 = vld [vmem:[%s1 + $0x310] sm:$0xf]
  %v268 = vld [vmem:[%s1 + $0x314] sm:$0xf]
  %v269 = vld [vmem:[%s1 + $0x318] sm:$0xf]
  %v270 = vld [vmem:[%s1 + $0x31c] sm:$0xf]
  %v271 = vld [vmem:[%s1 + $0x320] sm:$0xf]
  %v272 = vld [vmem:[%s1 + $0x324] sm:$0xf]
  %v273 = vld [vmem:[%s1 + $0x328] sm:$0xf]
  %v274 = vld [vmem:[%s1 + $0x32c] sm:$0xf]
  %v275 = vld [vmem:[%s1 + $0x330] sm:$0xf]
  %v276 = vld [vmem:[%s1 + $0x334] sm:$0xf]
  %v277 = vld [vmem:[%s1 + $0x338] sm:$0xf]
  %v278 = vld [vmem:[%s1 + $0x33c] sm:$0xf]
  %v279 = vld [vmem:[%s1 + $0x340] sm:$0xf]
  %v280 = vld [vmem:[%s1 + $0x344] sm:$0xf]
  %v281 = vld [vmem:[%s1 + $0x348] sm:$0xf]
  %v282 = vld [vmem:[%s1 + $0x34c] sm:$0xf]
  %v283 = vld [vmem:[%s1 + $0x350] sm:$0xf]
  %v284 = vld [vmem:[%s1 + $0x354] sm:$0xf]
  %v285 = vld [vmem:[%s1 + $0x358] sm:$0xf]
  %v286 = vld [vmem:[%s1 + $0x35c] sm:$0xf]
  %v287 = vld [vmem:[%s1 + $0x360] sm:$0xf]
  %v288 = vld [vmem:[%s1 + $0x364] sm:$0xf]
  %v289 = vld [vmem:[%s1 + $0x368] sm:$0xf]
  %v290 = vld [vmem:[%s1 + $0x36c] sm:$0xf]
  %v291 = vld [vmem:[%s1 + $0x370] sm:$0xf]
  %v292 = vld [vmem:[%s1 + $0x374] sm:$0xf]
  %v293 = vld [vmem:[%s1 + $0x378] sm:$0xf]
  %v294 = vld [vmem:[%s1 + $0x37c] sm:$0xf]
  %v295 = vld [vmem:[%s1 + $0x380] sm:$0xf]
  %v296 = vld [vmem:[%s1 + $0x384] sm:$0xf]
  %v297 = vld [vmem:[%s1 + $0x388] sm:$0xf]
  %v298 = vld [vmem:[%s1 + $0x38c] sm:$0xf]
  %v299 = vld [vmem:[%s1 + $0x390] sm:$0xf]
  %v300 = vld [vmem:[%s1 + $0x394] sm:$0xf]
  %v301 = vld [vmem:[%s1 + $0x398] sm:$0xf]
  %v302 = vld [vmem:[%s1 + $0x39c] sm:$0xf]
  %v303 = vld [vmem:[%s1 + $0x3a0] sm:$0xf]
  %v304 = vld [vmem:[%s1 + $0x3a4] sm:$0xf]
  %v305 = vld [vmem:[%s1 + $0x3a8] sm:$0xf]
  %v306 = vld [vmem:[%s1 + $0x3ac] sm:$0xf]
  %v307 = vld [vmem:[%s1 + $0x3b0] sm:$0xf]
  %v308 = vld [vmem:[%s1 + $0x3b4] sm:$0xf]
  %v309 = vld [vmem:[%s1 + $0x3b8] sm:$0xf]
  %v310 = vld [vmem:[%s1 + $0x3bc] sm:$0xf]
  %v311 = vld [vmem:[%s1 + $0x3c0] sm:$0xf]
  %v312 = vld [vmem:[%s1 + $0x3c4] sm:$0xf]
  %v313 = vld [vmem:[%s1 + $0x3c8] sm:$0xf]
  %v314 = vld [vmem:[%s1 + $0x3cc] sm:$0xf]
  %v315 = vld [vmem:[%s1 + $0x3d0] sm:$0xf]
  %v316 = vld [vmem:[%s1 + $0x3d4] sm:$0xf]
  %v317 = vld [vmem:[%s1 + $0x3d8] sm:$0xf]
  %v318 = vld [vmem:[%s1 + $0x3dc] sm:$0xf]
  %v319 = vld [vmem:[%s1 + $0x3e0] sm:$0xf]
  %v320 = vld [vmem:[%s1 + $0x3e4] sm:$0xf]
  %v321 = vld [vmem:[%s1 + $0x3e8] sm:$0xf]
  %v322 = vld [vmem:[%s1 + $0x3ec] sm:$0xf]
  %v323 = vld [vmem:[%s1 + $0x3f0] sm:$0xf]
  %v324 = vld [vmem:[%s1 + $0x3f4] sm:$0xf]
  %v325 = vld [vmem:[%s1 + $0x3f8] sm:$0xf]
  %v326 = vld [vmem:[%s1 + $0x3fc] sm:$0xf]
  %v327 = vld [vmem:[%s1 + $0x400] sm:$0xf]
  %v328 = vld [vmem:[%s1 + $0x404] sm:$0xf]
  %v329 = vld [vmem:[%s1 + $0x408] sm:$0xf]
  %v330 = vld [vmem:[%s1 + $0x40c] sm:$0xf]
  %v331 = vld [vmem:[%s1 + $0x410] sm:$0xf]
  %v332 = vld [vmem:[%s1 + $0x414] sm:$0xf]
  %v333 = vld [vmem:[%s1 + $0x418] sm:$0xf]
  %v334 = vld [vmem:[%s1 + $0x41c] sm:$0xf]
  %v335 = vld [vmem:[%s1 + $0x420] sm:$0xf]
  %v336 = vld [vmem:[%s1 + $0x424] sm:$0xf]
  %v337 = vld [vmem:[%s1 + $0x428] sm:$0xf]
  %v338 = vld [vmem:[%s1 + $0x42c] sm:$0xf]
  %v339 = vld [vmem:[%s1 + $0x430] sm:$0xf]
  %v340 = vld [vmem:[%s1 + $0x434] sm:$0xf]
  %v341 = vld [vmem:[%s1 + $0x438] sm:$0xf]
  %v342 = vld [vmem:[%s1 + $0x43c] sm:$0xf]
  %v343 = vld [vmem:[%s1 + $0x440] sm:$0xf]
  %v344 = vld [vmem:[%s1 + $0x444] sm:$0xf]
  %v345 = vld [vmem:[%s1 + $0x448] sm:$0xf]
  %v346 = vld [vmem:[%s1 + $0x44c] sm:$0xf]
  %v347 = vld [vmem:[%s1 + $0x450] sm:$0xf]
  %v348 = vld [vmem:[%s1 + $0x454] sm:$0xf]
  %v349 = vld [vmem:[%s1 + $0x458] sm:$0xf]
  %v350 = vld [vmem:[%s1 + $0x45c] sm:$0xf]
  %v351 = vld [vmem:[%s1 + $0x460] sm:$0xf]
  %v352 = vld [vmem:[%s1 + $0x464] sm:$0xf]
  %v353 = vld [vmem:[%s1 + $0x468] sm:$0xf]
  %v354 = vld [vmem:[%s1 + $0x46c] sm:$0xf]
  %v355 = vld [vmem:[%s1 + $0x470] sm:$0xf]
  %v356 = vld [vmem:[%s1 + $0x474] sm:$0xf]
  %v357 = vld [vmem:[%s1 + $0x478] sm:$0xf]
  %v358 = vld [vmem:[%s1 + $0x47c] sm:$0xf]
  %v359 = vld [vmem:[%s1 + $0x480] sm:$0xf]
  %v360 = vld [vmem:[%s1 + $0x484] sm:$0xf]
  %v361 = vld [vmem:[%s1 + $0x488] sm:$0xf]
  %v362 = vld [vmem:[%s1 + $0x48c] sm:$0xf]
  %v363 = vld [vmem:[%s1 + $0x490] sm:$0xf]
  %v364 = vld [vmem:[%s1 + $0x494] sm:$0xf]
  %v365 = vld [vmem:[%s1 + $0x498] sm:$0xf]
  %v366 = vld [vmem:[%s1 + $0x49c] sm:$0xf]
  %v367 = vld [vmem:[%s1 + $0x4a0] sm:$0xf]
  %v368 = vld [vmem:[%s1 + $0x4a4] sm:$0xf]
  %v369 = vld [vmem:[%s1 + $0x4a8] sm:$0xf]
  %v370 = vld [vmem:[%s1 + $0x4ac] sm:$0xf]
  %v371 = vld [vmem:[%s1 + $0x4b0] sm:$0xf]
  %v372 = vld [vmem:[%s1 + $0x4b4] sm:$0xf]
  %v373 = vld [vmem:[%s1 + $0x4b8] sm:$0xf]
  %v374 = vld [vmem:[%s1 + $0x4bc] sm:$0xf]
  %v375 = vld [vmem:[%s1 + $0x4c0] sm:$0xf]
  %v376 = vld [vmem:[%s1 + $0x4c4] sm:$0xf]
  %v377 = vld [vmem:[%s1 + $0x4c8] sm:$0xf]
  %v378 = vld [vmem:[%s1 + $0x4cc] sm:$0xf]
  %v379 = vld [vmem:[%s1 + $0x4d0] sm:$0xf]
  %v380 = vld [vmem:[%s1 + $0x4d4] sm:$0xf]
  %v381 = vld [vmem:[%s1 + $0x4d8] sm:$0xf]
  %v382 = vld [vmem:[%s1 + $0x4dc] sm:$0xf]
  %v383 = vld [vmem:[%s1 + $0x4e0] sm:$0xf]
  %v384 = vld [vmem:[%s1 + $0x4e4] sm:$0xf]
  %v385 = vld [vmem:[%s1 + $0x4e8] sm:$0xf]
  %v386 = vld [vmem:[%s1 + $0x4ec] sm:$0xf]
  %v387 = vld [vmem:[%s1 + $0x4f0] sm:$0xf]
  %v388 = vld [vmem:[%s1 + $0x4f4] sm:$0xf]
  %v389 = vld [vmem:[%s1 + $0x4f8] sm:$0xf]
  %v390 = vld [vmem:[%s1 + $0x4fc] sm:$0xf]
  %v391 = vld [vmem:[%s1 + $0x500] sm:$0xf]
  %v392 = vld [vmem:[%s1 + $0x504] sm:$0xf]
  %v393 = vld [vmem:[%s1 + $0x508] sm:$0xf]
  %v394 = vld [vmem:[%s1 + $0x50c] sm:$0xf]
  %v395 = vld [vmem:[%s1 + $0x510] sm:$0xf]
  %v396 = vld [vmem:[%s1 + $0x514] sm:$0xf]
  %v397 = vld [vmem:[%s1 + $0x518] sm:$0xf]
  %v398 = vld [vmem:[%s1 + $0x51c] sm:$0xf]
  %v399 = vld [vmem:[%s1 + $0x520] sm:$0xf]
  %v400 = vld [vmem:[%s1 + $0x524] sm:$0xf]
  %v401 = vld [vmem:[%s1 + $0x528] sm:$0xf]
  %v402 = vld [vmem:[%s1 + $0x52c] sm:$0xf]
  %v403 = vld [vmem:[%s1 + $0x530] sm:$0xf]
  %v404 = vld [vmem:[%s1 + $0x534] sm:$0xf]
  %v405 = vld [vmem:[%s1 + $0x538] sm:$0xf]
  %v406 = vld [vmem:[%s1 + $0x53c] sm:$0xf]
  %v407 = vld [vmem:[%s1 + $0x540] sm:$0xf]
  %v408 = vld [vmem:[%s1 + $0x544] sm:$0xf]
  %v409 = vld [vmem:[%s1 + $0x548] sm:$0xf]
  %v410 = vld [vmem:[%s1 + $0x54c] sm:$0xf]
  %v411 = vld [vmem:[%s1 + $0x550] sm:$0xf]
  %v412 = vld [vmem:[%s1 + $0x554] sm:$0xf]
  %v413 = vld [vmem:[%s1 + $0x558] sm:$0xf]
  %v414 = vld [vmem:[%s1 + $0x55c] sm:$0xf]
  %v415 = vld [vmem:[%s1 + $0x560] sm:$0xf]
  %v416 = vld [vmem:[%s1 + $0x564] sm:$0xf]
  %v417 = vld [vmem:[%s1 + $0x568] sm:$0xf]
  %v418 = vld [vmem:[%s1 + $0x56c] sm:$0xf]
  %v419 = vld [vmem:[%s1 + $0x570] sm:$0xf]
  %v420 = vld [vmem:[%s1 + $0x574] sm:$0xf]
  %v421 = vld [vmem:[%s1 + $0x578] sm:$0xf]
  %v422 = vld [vmem:[%s1 + $0x57c] sm:$0xf]
  %v423 = vld [vmem:[%s1 + $0x580] sm:$0xf]
  %v424 = vld [vmem:[%s1 + $0x584] sm:$0xf]
  %v425 = vld [vmem:[%s1 + $0x588] sm:$0xf]
  %v426 = vld [vmem:[%s1 + $0x58c] sm:$0xf]
  %v427 = vld [vmem:[%s1 + $0x590] sm:$0xf]
  %v428 = vld [vmem:[%s1 + $0x594] sm:$0xf]
  %v429 = vld [vmem:[%s1 + $0x598] sm:$0xf]
  %v430 = vld [vmem:[%s1 + $0x59c] sm:$0xf]
  %v431 = vld [vmem:[%s1 + $0x5a0] sm:$0xf]
  %v432 = vld [vmem:[%s1 + $0x5a4] sm:$0xf]
  %v433 = vld [vmem:[%s1 + $0x5a8] sm:$0xf]
  %v434 = vld [vmem:[%s1 + $0x5ac] sm:$0xf]
  %v435 = vld [vmem:[%s1 + $0x5b0] sm:$0xf]
  %v436 = vld [vmem:[%s1 + $0x5b4] sm:$0xf]
  %v437 = vld [vmem:[%s1 + $0x5b8] sm:$0xf]
  %v438 = vld [vmem:[%s1 + $0x5bc] sm:$0xf]
  %v439 = vld [vmem:[%s1 + $0x5c0] sm:$0xf]
  %v440 = vld [vmem:[%s1 + $0x5c4] sm:$0xf]
  %v441 = vld [vmem:[%s1 + $0x5c8] sm:$0xf]
  %v442 = vld [vmem:[%s1 + $0x5cc] sm:$0xf]
  %v443 = vld [vmem:[%s1 + $0x5d0] sm:$0xf]
  %v444 = vld [vmem:[%s1 + $0x5d4] sm:$0xf]
  %v445 = vld [vmem:[%s1 + $0x5d8] sm:$0xf]
  %v446 = vld [vmem:[%s1 + $0x5dc] sm:$0xf]
  %v447 = vld [vmem:[%s1 + $0x5e0] sm:$0xf]
  %v448 = vld [vmem:[%s1 + $0x5e4] sm:$0xf]
  %v449 = vld [vmem:[%s1 + $0x5e8] sm:$0xf]
  %v450 = vld [vmem:[%s1 + $0x5ec] sm:$0xf]
  %v451 = vld [vmem:[%s1 + $0x5f0] sm:$0xf]
  %v452 = vld [vmem:[%s1 + $0x5f4] sm:$0xf]
  %v453 = vld [vmem:[%s1 + $0x5f8] sm:$0xf]
  %v454 = vld [vmem:[%s1 + $0x5fc] sm:$0xf]
  %v455 = vld [vmem:[%s1 + $0x600] sm:$0xf]
  %v456 = vld [vmem:[%s1 + $0x604] sm:$0xf]
  %v457 = vld [vmem:[%s1 + $0x608] sm:$0xf]
  %v458 = vld [vmem:[%s1 + $0x60c] sm:$0xf]
  %v459 = vld [vmem:[%s1 + $0x610] sm:$0xf]
  %v460 = vld [vmem:[%s1 + $0x614] sm:$0xf]
  %v461 = vld [vmem:[%s1 + $0x618] sm:$0xf]
  %v462 = vld [vmem:[%s1 + $0x61c] sm:$0xf]
  %v463 = vld [vmem:[%s1 + $0x620] sm:$0xf]
  %v464 = vld [vmem:[%s1 + $0x624] sm:$0xf]
  %v465 = vld [vmem:[%s1 + $0x628] sm:$0xf]
  %v466 = vld [vmem:[%s1 + $0x62c] sm:$0xf]
  %v467 = vld [vmem:[%s1 + $0x630] sm:$0xf]
  %v468 = vld [vmem:[%s1 + $0x634] sm:$0xf]
  %v469 = vld [vmem:[%s1 + $0x638] sm:$0xf]
  %v470 = vld [vmem:[%s1 + $0x63c] sm:$0xf]
  %v471 = vld [vmem:[%s1 + $0x640] sm:$0xf]
  %v472 = vld [vmem:[%s1 + $0x644] sm:$0xf]
  %v473 = vld [vmem:[%s1 + $0x648] sm:$0xf]
  %v474 = vld [vmem:[%s1 + $0x64c] sm:$0xf]
  %v475 = vld [vmem:[%s1 + $0x650] sm:$0xf]
  %v476 = vld [vmem:[%s1 + $0x654] sm:$0xf]
  %v477 = vld [vmem:[%s1 + $0x658] sm:$0xf]
  %v478 = vld [vmem:[%s1 + $0x65c] sm:$0xf]
  %v479 = vld [vmem:[%s1 + $0x660] sm:$0xf]
  %v480 = vld [vmem:[%s1 + $0x664] sm:$0xf]
  %v481 = vld [vmem:[%s1 + $0x668] sm:$0xf]
  %v482 = vld [vmem:[%s1 + $0x66c] sm:$0xf]
  %v483 = vld [vmem:[%s1 + $0x670] sm:$0xf]
  %v484 = vld [vmem:[%s1 + $0x674] sm:$0xf]
  %v485 = vld [vmem:[%s1 + $0x678] sm:$0xf]
  %v486 = vld [vmem:[%s1 + $0x67c] sm:$0xf]
  %v487 = vld [vmem:[%s1 + $0x680] sm:$0xf]
  %v488 = vld [vmem:[%s1 + $0x684] sm:$0xf]
  %v489 = vld [vmem:[%s1 + $0x688] sm:$0xf]
  %v490 = vld [vmem:[%s1 + $0x68c] sm:$0xf]
  %v491 = vld [vmem:[%s1 + $0x690] sm:$0xf]
  %v492 = vld [vmem:[%s1 + $0x694] sm:$0xf]
  %v493 = vld [vmem:[%s1 + $0x698] sm:$0xf]
  %v494 = vld [vmem:[%s1 + $0x69c] sm:$0xf]
  %v495 = vld [vmem:[%s1 + $0x6a0] sm:$0xf]
  %v496 = vld [vmem:[%s1 + $0x6a4] sm:$0xf]
  %v497 = vld [vmem:[%s1 + $0x6a8] sm:$0xf]
  %v498 = vld [vmem:[%s1 + $0x6ac] sm:$0xf]
  %v499 = vld [vmem:[%s1 + $0x6b0] sm:$0xf]
  %v500 = vld [vmem:[%s1 + $0x6b4] sm:$0xf]
  %v501 = vld [vmem:[%s1 + $0x6b8] sm:$0xf]
  %v502 = vld [vmem:[%s1 + $0x6bc] sm:$0xf]
  %v503 = vld [vmem:[%s1 + $0x6c0] sm:$0xf]
  %v504 = vld [vmem:[%s1 + $0x6c4] sm:$0xf]
  %v505 = vld [vmem:[%s1 + $0x6c8] sm:$0xf]
  %v506 = vld [vmem:[%s1 + $0x6cc] sm:$0xf]
  %v507 = vld [vmem:[%s1 + $0x6d0] sm:$0xf]
  %v508 = vld [vmem:[%s1 + $0x6d4] sm:$0xf]
  %v509 = vld [vmem:[%s1 + $0x6d8] sm:$0xf]
  %v510 = vld [vmem:[%s1 + $0x6dc] sm:$0xf]
  %v511 = vld [vmem:[%s1 + $0x6e0] sm:$0xf]
  %v512 = vld [vmem:[%s1 + $0x6e4] sm:$0xf]
  %v513 = vld [vmem:[%s1 + $0x6e8] sm:$0xf]
  %v514 = vld [vmem:[%s1 + $0x6ec] sm:$0xf]
  %v515 = vld [vmem:[%s1 + $0x6f0] sm:$0xf]
  %v516 = vld [vmem:[%s1 + $0x6f4] sm:$0xf]
  %v517 = vld [vmem:[%s1 + $0x6f8] sm:$0xf]
  %v518 = vld [vmem:[%s1 + $0x6fc] sm:$0xf]
  %v519 = vld [vmem:[%s1 + $0x700] sm:$0xf]
  %v520 = vld [vmem:[%s1 + $0x704] sm:$0xf]
  %v521 = vld [vmem:[%s1 + $0x708] sm:$0xf]
  %v522 = vld [vmem:[%s1 + $0x70c] sm:$0xf]
  %v523 = vld [vmem:[%s1 + $0x710] sm:$0xf]
  %v524 = vld [vmem:[%s1 + $0x714] sm:$0xf]
  %v525 = vld [vmem:[%s1 + $0x718] sm:$0xf]
  %v526 = vld [vmem:[%s1 + $0x71c] sm:$0xf]
  %v527 = vld [vmem:[%s1 + $0x720] sm:$0xf]
  %v528 = vld [vmem:[%s1 + $0x724] sm:$0xf]
  %v529 = vld [vmem:[%s1 + $0x728] sm:$0xf]
  %v530 = vld [vmem:[%s1 + $0x72c] sm:$0xf]
  %v531 = vld [vmem:[%s1 + $0x730] sm:$0xf]
  %v532 = vld [vmem:[%s1 + $0x734] sm:$0xf]
  %v533 = vld [vmem:[%s1 + $0x738] sm:$0xf]
  %v534 = vld [vmem:[%s1 + $0x73c] sm:$0xf]
  %v535 = vld [vmem:[%s1 + $0x740] sm:$0xf]
  %v536 = vld [vmem:[%s1 + $0x744] sm:$0xf]
  %v537 = vld [vmem:[%s1 + $0x748] sm:$0xf]
  %v538 = vld [vmem:[%s1 + $0x74c] sm:$0xf]
  %v539 = vld [vmem:[%s1 + $0x750] sm:$0xf]
  %v540 = vld [vmem:[%s1 + $0x754] sm:$0xf]
  %v541 = vld [vmem:[%s1 + $0x758] sm:$0xf]
  %v542 = vld [vmem:[%s1 + $0x75c] sm:$0xf]
  %v543 = vld [vmem:[%s1 + $0x760] sm:$0xf]
  %v544 = vld [vmem:[%s1 + $0x764] sm:$0xf]
  %v545 = vld [vmem:[%s1 + $0x768] sm:$0xf]
  %v546 = vld [vmem:[%s1 + $0x76c] sm:$0xf]
  %v547 = vld [vmem:[%s1 + $0x770] sm:$0xf]
  %v548 = vld [vmem:[%s1 + $0x774] sm:$0xf]
  %v549 = vld [vmem:[%s1 + $0x778] sm:$0xf]
  %v550 = vld [vmem:[%s1 + $0x77c] sm:$0xf]
  %v551 = vld [vmem:[%s1 + $0x780] sm:$0xf]
  %v552 = vld [vmem:[%s1 + $0x784] sm:$0xf]
  %v553 = vld [vmem:[%s1 + $0x788] sm:$0xf]
  %v554 = vld [vmem:[%s1 + $0x78c] sm:$0xf]
  %v555 = vld [vmem:[%s1 + $0x790] sm:$0xf]
  %v556 = vld [vmem:[%s1 + $0x794] sm:$0xf]
  %v557 = vld [vmem:[%s1 + $0x798] sm:$0xf]
  %v558 = vld [vmem:[%s1 + $0x79c] sm:$0xf]
  %v559 = vld [vmem:[%s1 + $0x7a0] sm:$0xf]
  %v560 = vld [vmem:[%s1 + $0x7a4] sm:$0xf]
  %v561 = vld [vmem:[%s1 + $0x7a8] sm:$0xf]
  %v562 = vld [vmem:[%s1 + $0x7ac] sm:$0xf]
  %v563 = vld [vmem:[%s1 + $0x7b0] sm:$0xf]
  %v564 = vld [vmem:[%s1 + $0x7b4] sm:$0xf]
  %v565 = vld [vmem:[%s1 + $0x7b8] sm:$0xf]
  %v566 = vld [vmem:[%s1 + $0x7bc] sm:$0xf]
  %v567 = vld [vmem:[%s1 + $0x7c0] sm:$0xf]
  %v568 = vld [vmem:[%s1 + $0x7c4] sm:$0xf]
  %v569 = vld [vmem:[%s1 + $0x7c8] sm:$0xf]
  %v570 = vld [vmem:[%s1 + $0x7cc] sm:$0xf]
  %v571 = vld [vmem:[%s1 + $0x7d0] sm:$0xf]
  %v572 = vld [vmem:[%s1 + $0x7d4] sm:$0xf]
  %v573 = vld [vmem:[%s1 + $0x7d8] sm:$0xf]
  %v574 = vld [vmem:[%s1 + $0x7dc] sm:$0xf]
  %v575 = vld [vmem:[%s1 + $0x7e0] sm:$0xf]
  %v576 = vld [vmem:[%s1 + $0x7e4] sm:$0xf]
  %v577 = vld [vmem:[%s1 + $0x7e8] sm:$0xf]
  %v578 = vld [vmem:[%s1 + $0x7ec] sm:$0xf]
  %v579 = vld [vmem:[%s1 + $0x7f0] sm:$0xf]
  %v580 = vld [vmem:[%s1 + $0x7f4] sm:$0xf]
  %v581 = vld [vmem:[%s1 + $0x7f8] sm:$0xf]
  %v582 = vld [vmem:[%s1 + $0x7fc] sm:$0xf]
  %v583 = vld [vmem:[%s1 + $0x800] sm:$0xf]
  %v584 = vld [vmem:[%s1 + $0x804] sm:$0xf]
  %v585 = vld [vmem:[%s1 + $0x808] sm:$0xf]
  %v586 = vld [vmem:[%s1 + $0x80c] sm:$0xf]
  %v587 = vld [vmem:[%s1 + $0x810] sm:$0xf]
  %v588 = vld [vmem:[%s1 + $0x814] sm:$0xf]
  %v589 = vld [vmem:[%s1 + $0x818] sm:$0xf]
  %v590 = vld [vmem:[%s1 + $0x81c] sm:$0xf]
  %v591 = vld [vmem:[%s1 + $0x820] sm:$0xf]
  %v592 = vld [vmem:[%s1 + $0x824] sm:$0xf]
  %v593 = vld [vmem:[%s1 + $0x828] sm:$0xf]
  %v594 = vld [vmem:[%s1 + $0x82c] sm:$0xf]
  %v595 = vld [vmem:[%s1 + $0x830] sm:$0xf]
  %v596 = vld [vmem:[%s1 + $0x834] sm:$0xf]
  %v597 = vld [vmem:[%s1 + $0x838] sm:$0xf]
  %v598 = vld [vmem:[%s1 + $0x83c] sm:$0xf]
  %v599 = vld [vmem:[%s1 + $0x840] sm:$0xf]
  %v600 = vld [vmem:[%s1 + $0x844] sm:$0xf]
  %v601 = vld [vmem:[%s1 + $0x848] sm:$0xf]
  %v602 = vld [vmem:[%s1 + $0x84c] sm:$0xf]
  %v603 = vld [vmem:[%s1 + $0x850] sm:$0xf]
  %v604 = vld [vmem:[%s1 + $0x854] sm:$0xf]
  %v605 = vld [vmem:[%s1 + $0x858] sm:$0xf]
  %v606 = vld [vmem:[%s1 + $0x85c] sm:$0xf]
  %v607 = vld [vmem:[%s1 + $0x860] sm:$0xf]
  %v608 = vld [vmem:[%s1 + $0x864] sm:$0xf]
  %v609 = vld [vmem:[%s1 + $0x868] sm:$0xf]
  %v610 = vld [vmem:[%s1 + $0x86c] sm:$0xf]
  %v611 = vld [vmem:[%s1 + $0x870] sm:$0xf]
  %v612 = vld [vmem:[%s1 + $0x874] sm:$0xf]
  %v613 = vld [vmem:[%s1 + $0x878] sm:$0xf]
  %v614 = vld [vmem:[%s1 + $0x87c] sm:$0xf]
  %v615 = vld [vmem:[%s1 + $0x880] sm:$0xf]
  %v616 = vld [vmem:[%s1 + $0x884] sm:$0xf]
  %v617 = vld [vmem:[%s1 + $0x888] sm:$0xf]
  %v618 = vld [vmem:[%s1 + $0x88c] sm:$0xf]
  %v619 = vld [vmem:[%s1 + $0x890] sm:$0xf]
  %v620 = vld [vmem:[%s1 + $0x894] sm:$0xf]
  %v621 = vld [vmem:[%s1 + $0x898] sm:$0xf]
  %v622 = vld [vmem:[%s1 + $0x89c] sm:$0xf]
  %v623 = vld [vmem:[%s1 + $0x8a0] sm:$0xf]
  %v624 = vld [vmem:[%s1 + $0x8a4] sm:$0xf]
  %v625 = vld [vmem:[%s1 + $0x8a8] sm:$0xf]
  %v626 = vld [vmem:[%s1 + $0x8ac] sm:$0xf]
  %v627 = vld [vmem:[%s1 + $0x8b0] sm:$0xf]
  %v628 = vld [vmem:[%s1 + $0x8b4] sm:$0xf]
  %v629 = vld [vmem:[%s1 + $0x8b8] sm:$0xf]
  %v630 = vld [vmem:[%s1 + $0x8bc] sm:$0xf]
  %v631 = vld [vmem:[%s1 + $0x8c0] sm:$0xf]
  %v632 = vld [vmem:[%s1 + $0x8c4] sm:$0xf]
  %v633 = vld [vmem:[%s1 + $0x8c8] sm:$0xf]
  %v634 = vld [vmem:[%s1 + $0x8cc] sm:$0xf]
  %v635 = vld [vmem:[%s1 + $0x8d0] sm:$0xf]
  %v636 = vld [vmem:[%s1 + $0x8d4] sm:$0xf]
  %v637 = vld [vmem:[%s1 + $0x8d8] sm:$0xf]
  %v638 = vld [vmem:[%s1 + $0x8dc] sm:$0xf]
  %v639 = vld [vmem:[%s1 + $0x8e0] sm:$0xf]
  %v640 = vld [vmem:[%s1 + $0x8e4] sm:$0xf]
  %v641 = vld [vmem:[%s1 + $0x8e8] sm:$0xf]
  %v642 = vld [vmem:[%s1 + $0x8ec] sm:$0xf]
  %v643 = vld [vmem:[%s1 + $0x8f0] sm:$0xf]
  %v644 = vld [vmem:[%s1 + $0x8f4] sm:$0xf]
  %v645 = vld [vmem:[%s1 + $0x8f8] sm:$0xf]
  %v646 = vld [vmem:[%s1 + $0x8fc] sm:$0xf]
  %v647 = vld [vmem:[%s1 + $0x900] sm:$0xf]
  %v648 = vld [vmem:[%s1 + $0x904] sm:$0xf]
  %v649 = vld [vmem:[%s1 + $0x908] sm:$0xf]
  %v650 = vld [vmem:[%s1 + $0x90c] sm:$0xf]
  %v651 = vld [vmem:[%s1 + $0x910] sm:$0xf]
  %v652 = vld [vmem:[%s1 + $0x914] sm:$0xf]
  %v653 = vld [vmem:[%s1 + $0x918] sm:$0xf]
  %v654 = vld [vmem:[%s1 + $0x91c] sm:$0xf]
  %v655 = vld [vmem:[%s1 + $0x920] sm:$0xf]
  %v656 = vld [vmem:[%s1 + $0x924] sm:$0xf]
  %v657 = vld [vmem:[%s1 + $0x928] sm:$0xf]
  %v658 = vld [vmem:[%s1 + $0x92c] sm:$0xf]
  %v659 = vld [vmem:[%s1 + $0x930] sm:$0xf]
  %v660 = vld [vmem:[%s1 + $0x934] sm:$0xf]
  %v661 = vld [vmem:[%s1 + $0x938] sm:$0xf]
  %v662 = vld [vmem:[%s1 + $0x93c] sm:$0xf]
  %v663 = vld [vmem:[%s1 + $0x940] sm:$0xf]
  %v664 = vld [vmem:[%s1 + $0x944] sm:$0xf]
  %v665 = vld [vmem:[%s1 + $0x948] sm:$0xf]
  %v666 = vld [vmem:[%s1 + $0x94c] sm:$0xf]
  %v667 = vld [vmem:[%s1 + $0x950] sm:$0xf]
  %v668 = vld [vmem:[%s1 + $0x954] sm:$0xf]
  %v669 = vld [vmem:[%s1 + $0x958] sm:$0xf]
  %v670 = vld [vmem:[%s1 + $0x95c] sm:$0xf]
  %v671 = vld [vmem:[%s1 + $0x960] sm:$0xf]
  %v672 = vld [vmem:[%s1 + $0x964] sm:$0xf]
  %v673 = vld [vmem:[%s1 + $0x968] sm:$0xf]
  %v674 = vld [vmem:[%s1 + $0x96c] sm:$0xf]
  %v675 = vld [vmem:[%s1 + $0x970] sm:$0xf]
  %v676 = vld [vmem:[%s1 + $0x974] sm:$0xf]
  %v677 = vld [vmem:[%s1 + $0x978] sm:$0xf]
  %v678 = vld [vmem:[%s1 + $0x97c] sm:$0xf]
  %v679 = vld [vmem:[%s1 + $0x980] sm:$0xf]
  %v680 = vld [vmem:[%s1 + $0x984] sm:$0xf]
  %v681 = vld [vmem:[%s1 + $0x988] sm:$0xf]
  %v682 = vld [vmem:[%s1 + $0x98c] sm:$0xf]
  %v683 = vld [vmem:[%s1 + $0x990] sm:$0xf]
  %v684 = vld [vmem:[%s1 + $0x994] sm:$0xf]
  %v685 = vld [vmem:[%s1 + $0x998] sm:$0xf]
  %v686 = vld [vmem:[%s1 + $0x99c] sm:$0xf]
  %v687 = vld [vmem:[%s1 + $0x9a0] sm:$0xf]
  %v688 = vld [vmem:[%s1 + $0x9a4] sm:$0xf]
  %v689 = vld [vmem:[%s1 + $0x9a8] sm:$0xf]
  %v690 = vld [vmem:[%s1 + $0x9ac] sm:$0xf]
  %v691 = vld [vmem:[%s1 + $0x9b0] sm:$0xf]
  %v692 = vld [vmem:[%s1 + $0x9b4] sm:$0xf]
  %v693 = vld [vmem:[%s1 + $0x9b8] sm:$0xf]
  %v694 = vld [vmem:[%s1 + $0x9bc] sm:$0xf]
  %v695 = vld [vmem:[%s1 + $0x9c0] sm:$0xf]
  %v696 = vld [vmem:[%s1 + $0x9c4] sm:$0xf]
  %v697 = vld [vmem:[%s1 + $0x9c8] sm:$0xf]
  %v698 = vld [vmem:[%s1 + $0x9cc] sm:$0xf]
  %v699 = vld [vmem:[%s1 + $0x9d0] sm:$0xf]
  %v700 = vld [vmem:[%s1 + $0x9d4] sm:$0xf]
  %v701 = vld [vmem:[%s1 + $0x9d8] sm:$0xf]
  %v702 = vld [vmem:[%s1 + $0x9dc] sm:$0xf]
  %v703 = vld [vmem:[%s1 + $0x9e0] sm:$0xf]
  %v704 = vld [vmem:[%s1 + $0x9e4] sm:$0xf]
  %v705 = vld [vmem:[%s1 + $0x9e8] sm:$0xf]
  %v706 = vld [vmem:[%s1 + $0x9ec] sm:$0xf]
  %v707 = vld [vmem:[%s1 + $0x9f0] sm:$0xf]
  %v708 = vld [vmem:[%s1 + $0x9f4] sm:$0xf]
  %v709 = vld [vmem:[%s1 + $0x9f8] sm:$0xf]
  %v710 = vld [vmem:[%s1 + $0x9fc] sm:$0xf]
  %v711 = vld [vmem:[%s1 + $0xa00] sm:$0xf]
  %v712 = vld [vmem:[%s1 + $0xa04] sm:$0xf]
  %v713 = vld [vmem:[%s1 + $0xa08] sm:$0xf]
  %v714 = vld [vmem:[%s1 + $0xa0c] sm:$0xf]
  %v715 = vld [vmem:[%s1 + $0xa10] sm:$0xf]
  %v716 = vld [vmem:[%s1 + $0xa14] sm:$0xf]
  %v717 = vld [vmem:[%s1 + $0xa18] sm:$0xf]
  %v718 = vld [vmem:[%s1 + $0xa1c] sm:$0xf]
  %v719 = vld [vmem:[%s1 + $0xa20] sm:$0xf]
  %v720 = vld [vmem:[%s1 + $0xa24] sm:$0xf]
  %v721 = vld [vmem:[%s1 + $0xa28] sm:$0xf]
  %v722 = vld [vmem:[%s1 + $0xa2c] sm:$0xf]
  %v723 = vld [vmem:[%s1 + $0xa30] sm:$0xf]
  %v724 = vld [vmem:[%s1 + $0xa34] sm:$0xf]
  %v725 = vld [vmem:[%s1 + $0xa38] sm:$0xf]
  %v726 = vld [vmem:[%s1 + $0xa3c] sm:$0xf]
  %v727 = vld [vmem:[%s1 + $0xa40] sm:$0xf]
  %v728 = vld [vmem:[%s1 + $0xa44] sm:$0xf]
  %v729 = vld [vmem:[%s1 + $0xa48] sm:$0xf]
  %v730 = vld [vmem:[%s1 + $0xa4c] sm:$0xf]
  %v731 = vld [vmem:[%s1 + $0xa50] sm:$0xf]
  %v732 = vld [vmem:[%s1 + $0xa54] sm:$0xf]
  %v733 = vld [vmem:[%s1 + $0xa58] sm:$0xf]
  %v734 = vld [vmem:[%s1 + $0xa5c] sm:$0xf]
  %v735 = vld [vmem:[%s1 + $0xa60] sm:$0xf]
  %v736 = vld [vmem:[%s1 + $0xa64] sm:$0xf]
  %v737 = vld [vmem:[%s1 + $0xa68] sm:$0xf]
  %v738 = vld [vmem:[%s1 + $0xa6c] sm:$0xf]
  %v739 = vld [vmem:[%s1 + $0xa70] sm:$0xf]
  %v740 = vld [vmem:[%s1 + $0xa74] sm:$0xf]
  %v741 = vld [vmem:[%s1 + $0xa78] sm:$0xf]
  %v742 = vld [vmem:[%s1 + $0xa7c] sm:$0xf]
  %v743 = vld [vmem:[%s1 + $0xa80] sm:$0xf]
  %v744 = vld [vmem:[%s1 + $0xa84] sm:$0xf]
  %v745 = vld [vmem:[%s1 + $0xa88] sm:$0xf]
  %v746 = vld [vmem:[%s1 + $0xa8c] sm:$0xf]
  %v747 = vld [vmem:[%s1 + $0xa90] sm:$0xf]
  %v748 = vld [vmem:[%s1 + $0xa94] sm:$0xf]
  %v749 = vld [vmem:[%s1 + $0xa98] sm:$0xf]
  %v750 = vld [vmem:[%s1 + $0xa9c] sm:$0xf]
  %v751 = vld [vmem:[%s1 + $0xaa0] sm:$0xf]
  %v752 = vld [vmem:[%s1 + $0xaa4] sm:$0xf]
  %v753 = vld [vmem:[%s1 + $0xaa8] sm:$0xf]
  %v754 = vld [vmem:[%s1 + $0xaac] sm:$0xf]
  %v755 = vld [vmem:[%s1 + $0xab0] sm:$0xf]
  %v756 = vld [vmem:[%s1 + $0xab4] sm:$0xf]
  %v757 = vld [vmem:[%s1 + $0xab8] sm:$0xf]
  %v758 = vld [vmem:[%s1 + $0xabc] sm:$0xf]
  %v759 = vld [vmem:[%s1 + $0xac0] sm:$0xf]
  %v760 = vld [vmem:[%s1 + $0xac4] sm:$0xf]
  %v761 = vld [vmem:[%s1 + $0xac8] sm:$0xf]
  %v762 = vld [vmem:[%s1 + $0xacc] sm:$0xf]
  %v763 = vld [vmem:[%s1 + $0xad0] sm:$0xf]
  %v764 = vld [vmem:[%s1 + $0xad4] sm:$0xf]
  %v765 = vld [vmem:[%s1 + $0xad8] sm:$0xf]
  %v766 = vld [vmem:[%s1 + $0xadc] sm:$0xf]
  %v767 = vld [vmem:[%s1 + $0xae0] sm:$0xf]
  %v768 = vld [vmem:[%s1 + $0xae4] sm:$0xf]
  %v769 = vld [vmem:[%s1 + $0xae8] sm:$0xf]
  %v770 = vld [vmem:[%s1 + $0xaec] sm:$0xf]
  %v771 = vld [vmem:[%s1 + $0xaf0] sm:$0xf]
  %v772 = vld [vmem:[%s1 + $0xaf4] sm:$0xf]
  %v773 = vld [vmem:[%s1 + $0xaf8] sm:$0xf]
  %v774 = vld [vmem:[%s1 + $0xafc] sm:$0xf]
  %v775 = vld [vmem:[%s1 + $0xb00] sm:$0xf]
  %v776 = vld [vmem:[%s1 + $0xb04] sm:$0xf]
  %v777 = vld [vmem:[%s1 + $0xb08] sm:$0xf]
  %v778 = vld [vmem:[%s1 + $0xb0c] sm:$0xf]
  %v779 = vld [vmem:[%s1 + $0xb10] sm:$0xf]
  %v780 = vld [vmem:[%s1 + $0xb14] sm:$0xf]
  %v781 = vld [vmem:[%s1 + $0xb18] sm:$0xf]
  %v782 = vld [vmem:[%s1 + $0xb1c] sm:$0xf]
  %v783 = vld [vmem:[%s1 + $0xb20] sm:$0xf]
  %v784 = vld [vmem:[%s1 + $0xb24] sm:$0xf]
  %v785 = vld [vmem:[%s1 + $0xb28] sm:$0xf]
  %v786 = vld [vmem:[%s1 + $0xb2c] sm:$0xf]
  %v787 = vld [vmem:[%s1 + $0xb30] sm:$0xf]
  %v788 = vld [vmem:[%s1 + $0xb34] sm:$0xf]
  %v789 = vld [vmem:[%s1 + $0xb38] sm:$0xf]
  %v790 = vld [vmem:[%s1 + $0xb3c] sm:$0xf]
  %v791 = vld [vmem:[%s1 + $0xb40] sm:$0xf]
  %v792 = vld [vmem:[%s1 + $0xb44] sm:$0xf]
  %v793 = vld [vmem:[%s1 + $0xb48] sm:$0xf]
  %v794 = vld [vmem:[%s1 + $0xb4c] sm:$0xf]
  %v795 = vld [vmem:[%s1 + $0xb50] sm:$0xf]
  %v796 = vld [vmem:[%s1 + $0xb54] sm:$0xf]
  %v797 = vld [vmem:[%s1 + $0xb58] sm:$0xf]
  %v798 = vld [vmem:[%s1 + $0xb5c] sm:$0xf]
  %v799 = vld [vmem:[%s1 + $0xb60] sm:$0xf]
  %v800 = vld [vmem:[%s1 + $0xb64] sm:$0xf]
  %v801 = vld [vmem:[%s1 + $0xb68] sm:$0xf]
  %v802 = vld [vmem:[%s1 + $0xb6c] sm:$0xf]
  %v803 = vld [vmem:[%s1 + $0xb70] sm:$0xf]
  %v804 = vld [vmem:[%s1 + $0xb74] sm:$0xf]
  %v805 = vld [vmem:[%s1 + $0xb78] sm:$0xf]
  %v806 = vld [vmem:[%s1 + $0xb7c] sm:$0xf]
  %v807 = vld [vmem:[%s1 + $0xb80] sm:$0xf]
  %v808 = vld [vmem:[%s1 + $0xb84] sm:$0xf]
  %v809 = vld [vmem:[%s1 + $0xb88] sm:$0xf]
  %v810 = vld [vmem:[%s1 + $0xb8c] sm:$0xf]
  %v811 = vld [vmem:[%s1 + $0xb90] sm:$0xf]
  %v812 = vld [vmem:[%s1 + $0xb94] sm:$0xf]
  %v813 = vld [vmem:[%s1 + $0xb98] sm:$0xf]
  %v814 = vld [vmem:[%s1 + $0xb9c] sm:$0xf]
  %v815 = vld [vmem:[%s1 + $0xba0] sm:$0xf]
  %v816 = vld [vmem:[%s1 + $0xba4] sm:$0xf]
  %v817 = vld [vmem:[%s1 + $0xba8] sm:$0xf]
  %v818 = vld [vmem:[%s1 + $0xbac] sm:$0xf]
  %v819 = vld [vmem:[%s1 + $0xbb0] sm:$0xf]
  %v820 = vld [vmem:[%s1 + $0xbb4] sm:$0xf]
  %v821 = vld [vmem:[%s1 + $0xbb8] sm:$0xf]
  %v822 = vld [vmem:[%s1 + $0xbbc] sm:$0xf]
  %v823 = vld [vmem:[%s1 + $0xbc0] sm:$0xf]
  %v824 = vld [vmem:[%s1 + $0xbc4] sm:$0xf]
  %v825 = vld [vmem:[%s1 + $0xbc8] sm:$0xf]
  %v826 = vld [vmem:[%s1 + $0xbcc] sm:$0xf]
  %v827 = vld [vmem:[%s1 + $0xbd0] sm:$0xf]
  %v828 = vld [vmem:[%s1 + $0xbd4] sm:$0xf]
  %v829 = vld [vmem:[%s1 + $0xbd8] sm:$0xf]
  %v830 = vld [vmem:[%s1 + $0xbdc] sm:$0xf]
  %v831 = vld [vmem:[%s1 + $0xbe0] sm:$0xf]
  %v832 = vld [vmem:[%s1 + $0xbe4] sm:$0xf]
  %v833 = vld [vmem:[%s1 + $0xbe8] sm:$0xf]
  %v834 = vld [vmem:[%s1 + $0xbec] sm:$0xf]
  %v835 = vld [vmem:[%s1 + $0xbf0] sm:$0xf]
  %v836 = vld [vmem:[%s1 + $0xbf4] sm:$0xf]
  %v837 = vld [vmem:[%s1 + $0xbf8] sm:$0xf]
  %v838 = vld [vmem:[%s1 + $0xbfc] sm:$0xf]
  %v839 = vld [vmem:[%s1 + $0xc00] sm:$0xf]
  %v840 = vld [vmem:[%s1 + $0xc04] sm:$0xf]
  %v841 = vld [vmem:[%s1 + $0xc08] sm:$0xf]
  %v842 = vld [vmem:[%s1 + $0xc0c] sm:$0xf]
  %v843 = vld [vmem:[%s1 + $0xc10] sm:$0xf]
  %v844 = vld [vmem:[%s1 + $0xc14] sm:$0xf]
  %v845 = vld [vmem:[%s1 + $0xc18] sm:$0xf]
  %v846 = vld [vmem:[%s1 + $0xc1c] sm:$0xf]
  %v847 = vld [vmem:[%s1 + $0xc20] sm:$0xf]
  %v848 = vld [vmem:[%s1 + $0xc24] sm:$0xf]
  %v849 = vld [vmem:[%s1 + $0xc28] sm:$0xf]
  %v850 = vld [vmem:[%s1 + $0xc2c] sm:$0xf]
  %v851 = vld [vmem:[%s1 + $0xc30] sm:$0xf]
  %v852 = vld [vmem:[%s1 + $0xc34] sm:$0xf]
  %v853 = vld [vmem:[%s1 + $0xc38] sm:$0xf]
  %v854 = vld [vmem:[%s1 + $0xc3c] sm:$0xf]
  %v855 = vld [vmem:[%s1 + $0xc40] sm:$0xf]
  %v856 = vld [vmem:[%s1 + $0xc44] sm:$0xf]
  %v857 = vld [vmem:[%s1 + $0xc48] sm:$0xf]
  %v858 = vld [vmem:[%s1 + $0xc4c] sm:$0xf]
  %v859 = vld [vmem:[%s1 + $0xc50] sm:$0xf]
  %v860 = vld [vmem:[%s1 + $0xc54] sm:$0xf]
  %v861 = vld [vmem:[%s1 + $0xc58] sm:$0xf]
  %v862 = vld [vmem:[%s1 + $0xc5c] sm:$0xf]
  %v863 = vld [vmem:[%s1 + $0xc60] sm:$0xf]
  %v864 = vld [vmem:[%s1 + $0xc64] sm:$0xf]
  %v865 = vld [vmem:[%s1 + $0xc68] sm:$0xf]
  %v866 = vld [vmem:[%s1 + $0xc6c] sm:$0xf]
  %v867 = vld [vmem:[%s1 + $0xc70] sm:$0xf]
  %v868 = vld [vmem:[%s1 + $0xc74] sm:$0xf]
  %v869 = vld [vmem:[%s1 + $0xc78] sm:$0xf]
  %v870 = vld [vmem:[%s1 + $0xc7c] sm:$0xf]
  %v871 = vld [vmem:[%s1 + $0xc80] sm:$0xf]
  %v872 = vld [vmem:[%s1 + $0xc84] sm:$0xf]
  %v873 = vld [vmem:[%s1 + $0xc88] sm:$0xf]
  %v874 = vld [vmem:[%s1 + $0xc8c] sm:$0xf]
  %v875 = vld [vmem:[%s1 + $0xc90] sm:$0xf]
  %v876 = vld [vmem:[%s1 + $0xc94] sm:$0xf]
  %v877 = vld [vmem:[%s1 + $0xc98] sm:$0xf]
  %v878 = vld [vmem:[%s1 + $0xc9c] sm:$0xf]
  %v879 = vld [vmem:[%s1 + $0xca0] sm:$0xf]
  %v880 = vld [vmem:[%s1 + $0xca4] sm:$0xf]
  %v881 = vld [vmem:[%s1 + $0xca8] sm:$0xf]
  %v882 = vld [vmem:[%s1 + $0xcac] sm:$0xf]
  %v883 = vld [vmem:[%s1 + $0xcb0] sm:$0xf]
  %v884 = vld [vmem:[%s1 + $0xcb4] sm:$0xf]
  %v885 = vld [vmem:[%s1 + $0xcb8] sm:$0xf]
  %v886 = vld [vmem:[%s1 + $0xcbc] sm:$0xf]
  %v887 = vld [vmem:[%s1 + $0xcc0] sm:$0xf]
  %v888 = vld [vmem:[%s1 + $0xcc4] sm:$0xf]
  %v889 = vld [vmem:[%s1 + $0xcc8] sm:$0xf]
  %v890 = vld [vmem:[%s1 + $0xccc] sm:$0xf]
  %v891 = vld [vmem:[%s1 + $0xcd0] sm:$0xf]
  %v892 = vld [vmem:[%s1 + $0xcd4] sm:$0xf]
  %v893 = vld [vmem:[%s1 + $0xcd8] sm:$0xf]
  %v894 = vld [vmem:[%s1 + $0xcdc] sm:$0xf]
  %v895 = vld [vmem:[%s1 + $0xce0] sm:$0xf]
  %v896 = vld [vmem:[%s1 + $0xce4] sm:$0xf]
  %v897 = vld [vmem:[%s1 + $0xce8] sm:$0xf]
  %v898 = vld [vmem:[%s1 + $0xcec] sm:$0xf]
  %v899 = vld [vmem:[%s1 + $0xcf0] sm:$0xf]
  %v900 = vld [vmem:[%s1 + $0xcf4] sm:$0xf]
  %v901 = vld [vmem:[%s1 + $0xcf8] sm:$0xf]
  %v902 = vld [vmem:[%s1 + $0xcfc] sm:$0xf]
  %v903 = vld [vmem:[%s1 + $0xd00] sm:$0xf]
  %v904 = vld [vmem:[%s1 + $0xd04] sm:$0xf]
  %v905 = vld [vmem:[%s1 + $0xd08] sm:$0xf]
  %v906 = vld [vmem:[%s1 + $0xd0c] sm:$0xf]
  %v907 = vld [vmem:[%s1 + $0xd10] sm:$0xf]
  %v908 = vld [vmem:[%s1 + $0xd14] sm:$0xf]
  %v909 = vld [vmem:[%s1 + $0xd18] sm:$0xf]
  %v910 = vld [vmem:[%s1 + $0xd1c] sm:$0xf]
  %v911 = vld [vmem:[%s1 + $0xd20] sm:$0xf]
  %v912 = vld [vmem:[%s1 + $0xd24] sm:$0xf]
  %v913 = vld [vmem:[%s1 + $0xd28] sm:$0xf]
  %v914 = vld [vmem:[%s1 + $0xd2c] sm:$0xf]
  %v915 = vld [vmem:[%s1 + $0xd30] sm:$0xf]
  %v916 = vld [vmem:[%s1 + $0xd34] sm:$0xf]
  %v917 = vld [vmem:[%s1 + $0xd38] sm:$0xf]
  %v918 = vld [vmem:[%s1 + $0xd3c] sm:$0xf]
  %v919 = vld [vmem:[%s1 + $0xd40] sm:$0xf]
  %v920 = vld [vmem:[%s1 + $0xd44] sm:$0xf]
  %v921 = vld [vmem:[%s1 + $0xd48] sm:$0xf]
  %v922 = vld [vmem:[%s1 + $0xd4c] sm:$0xf]
  %v923 = vld [vmem:[%s1 + $0xd50] sm:$0xf]
  %v924 = vld [vmem:[%s1 + $0xd54] sm:$0xf]
  %v925 = vld [vmem:[%s1 + $0xd58] sm:$0xf]
  %v926 = vld [vmem:[%s1 + $0xd5c] sm:$0xf]
  %v927 = vld [vmem:[%s1 + $0xd60] sm:$0xf]
  %v928 = vld [vmem:[%s1 + $0xd64] sm:$0xf]
  %v929 = vld [vmem:[%s1 + $0xd68] sm:$0xf]
  %v930 = vld [vmem:[%s1 + $0xd6c] sm:$0xf]
  %v931 = vld [vmem:[%s1 + $0xd70] sm:$0xf]
  %v932 = vld [vmem:[%s1 + $0xd74] sm:$0xf]
  %v933 = vld [vmem:[%s1 + $0xd78] sm:$0xf]
  %v934 = vld [vmem:[%s1 + $0xd7c] sm:$0xf]
  %v935 = vld [vmem:[%s1 + $0xd80] sm:$0xf]
  %v936 = vld [vmem:[%s1 + $0xd84] sm:$0xf]
  %v937 = vld [vmem:[%s1 + $0xd88] sm:$0xf]
  %v938 = vld [vmem:[%s1 + $0xd8c] sm:$0xf]
  %v939 = vld [vmem:[%s1 + $0xd90] sm:$0xf]
  %v940 = vld [vmem:[%s1 + $0xd94] sm:$0xf]
  %v941 = vld [vmem:[%s1 + $0xd98] sm:$0xf]
  %v942 = vld [vmem:[%s1 + $0xd9c] sm:$0xf]
  %v943 = vld [vmem:[%s1 + $0xda0] sm:$0xf]
  %v944 = vld [vmem:[%s1 + $0xda4] sm:$0xf]
  %v945 = vld [vmem:[%s1 + $0xda8] sm:$0xf]
  %v946 = vld [vmem:[%s1 + $0xdac] sm:$0xf]
  %v947 = vld [vmem:[%s1 + $0xdb0] sm:$0xf]
  %v948 = vld [vmem:[%s1 + $0xdb4] sm:$0xf]
  %v949 = vld [vmem:[%s1 + $0xdb8] sm:$0xf]
  %v950 = vld [vmem:[%s1 + $0xdbc] sm:$0xf]
  %v951 = vld [vmem:[%s1 + $0xdc0] sm:$0xf]
  %v952 = vld [vmem:[%s1 + $0xdc4] sm:$0xf]
  %v953 = vld [vmem:[%s2] sm:$0x1]
  %v955 = vperm.slane %v953, 0
  %v1013 = vunpack.c.l.b16 %v15
  %v1014 = vunpack.c.h.b16 %v15
  %v1015 = vunpack.c.l.b16 %v16
  %v1016 = vunpack.c.h.b16 %v16
  %v1017 = vunpack.c.l.b16 %v17
  %v1018 = vunpack.c.h.b16 %v17
  %v1019 = vunpack.c.l.b16 %v18
  %v1020 = vunpack.c.h.b16 %v18
  %v1021 = vunpack.c.l.b16 %v19
  %v1022 = vunpack.c.h.b16 %v19
  %v1023 = vunpack.c.l.b16 %v20
  %v1024 = vunpack.c.h.b16 %v20
  %v1025 = vunpack.c.l.b16 %v21
  %v1026 = vunpack.c.h.b16 %v21
  %v1027 = vunpack.c.l.b16 %v22
  %v1028 = vunpack.c.h.b16 %v22
  %v1029 = vunpack.c.l.b16 %v23
  %v1030 = vunpack.c.h.b16 %v23
  %v1031 = vunpack.c.l.b16 %v24
  %v1032 = vunpack.c.h.b16 %v24
  %v1033 = vunpack.c.l.b16 %v25
  %v1034 = vunpack.c.h.b16 %v25
  %v1035 = vunpack.c.l.b16 %v26
  %v1036 = vunpack.c.h.b16 %v26
  %v1037 = vunpack.c.l.b16 %v27
  %v1038 = vunpack.c.h.b16 %v27
  %v1039 = vunpack.c.l.b16 %v28
  %v1040 = vunpack.c.h.b16 %v28
  %v1041 = vunpack.c.l.b16 %v29
  %v1042 = vunpack.c.h.b16 %v29
  %v1043 = vunpack.c.l.b16 %v30
  %v1044 = vunpack.c.h.b16 %v30
  %v1045 = vunpack.c.l.b16 %v31
  %v1046 = vunpack.c.h.b16 %v31
  %v1047 = vunpack.c.l.b16 %v32
  %v1048 = vunpack.c.h.b16 %v32
  %v1049 = vunpack.c.l.b16 %v33
  %v1050 = vunpack.c.h.b16 %v33
  %v1051 = vunpack.c.l.b16 %v34
  %v1052 = vunpack.c.h.b16 %v34
  %v1053 = vunpack.c.l.b16 %v35
  %v1054 = vunpack.c.h.b16 %v35
  %v1055 = vunpack.c.l.b16 %v36
  %v1056 = vunpack.c.h.b16 %v36
  %v1057 = vunpack.c.l.b16 %v37
  %v1058 = vunpack.c.h.b16 %v37
  %v1059 = vunpack.c.l.b16 %v38
  %v1060 = vunpack.c.h.b16 %v38
  %v1061 = vunpack.c.l.b16 %v39
  %v1062 = vunpack.c.h.b16 %v39
  %v1063 = vunpack.c.l.b16 %v40
  %v1064 = vunpack.c.h.b16 %v40
  %v1065 = vunpack.c.l.b16 %v41
  %v1066 = vunpack.c.h.b16 %v41
  %v1067 = vunpack.c.l.b16 %v42
  %v1068 = vunpack.c.h.b16 %v42
  %v1069 = vunpack.c.l.b16 %v43
  %v1070 = vunpack.c.h.b16 %v43
  %v1071 = vunpack.c.l.b16 %v44
  %v1072 = vunpack.c.h.b16 %v44
  %v1073 = vunpack.c.l.b16 %v45
  %v1074 = vunpack.c.h.b16 %v45
  %v1075 = vunpack.c.l.b16 %v46
  %v1076 = vunpack.c.h.b16 %v46
  %v1077 = vunpack.c.l.b16 %v47
  %v1078 = vunpack.c.h.b16 %v47
  %v1079 = vunpack.c.l.b16 %v48
  %v1080 = vunpack.c.h.b16 %v48
  %v1081 = vunpack.c.l.b16 %v49
  %v1082 = vunpack.c.h.b16 %v49
  %v1083 = vunpack.c.l.b16 %v50
  %v1084 = vunpack.c.h.b16 %v50
  %v1085 = vunpack.c.l.b16 %v51
  %v1086 = vunpack.c.h.b16 %v51
  %v1087 = vunpack.c.l.b16 %v52
  %v1088 = vunpack.c.h.b16 %v52
  %v1089 = vunpack.c.l.b16 %v53
  %v1090 = vunpack.c.h.b16 %v53
  %v1091 = vunpack.c.l.b16 %v54
  %v1092 = vunpack.c.h.b16 %v54
  %v1093 = vunpack.c.l.b16 %v55
  %v1094 = vunpack.c.h.b16 %v55
  %v1095 = vunpack.c.l.b16 %v56
  %v1096 = vunpack.c.h.b16 %v56
  %v1097 = vunpack.c.l.b16 %v57
  %v1098 = vunpack.c.h.b16 %v57
  %v1099 = vunpack.c.l.b16 %v58
  %v1100 = vunpack.c.h.b16 %v58
  %v1101 = vunpack.c.l.b16 %v59
  %v1102 = vunpack.c.h.b16 %v59
  %v1103 = vunpack.c.l.b16 %v60
  %v1104 = vunpack.c.h.b16 %v60
  %v1105 = vunpack.c.l.b16 %v61
  %v1106 = vunpack.c.h.b16 %v61
  %v1107 = vunpack.c.l.b16 %v62
  %v1108 = vunpack.c.h.b16 %v62
  %v1109 = vunpack.c.l.b16 %v63
  %v1110 = vunpack.c.h.b16 %v63
  %v1111 = vunpack.c.l.b16 %v64
  %v1112 = vunpack.c.h.b16 %v64
  %v1113 = vunpack.c.l.b16 %v65
  %v1114 = vunpack.c.h.b16 %v65
  %v1115 = vunpack.c.l.b16 %v66
  %v1116 = vunpack.c.h.b16 %v66
  %v1117 = vunpack.c.l.b16 %v67
  %v1118 = vunpack.c.h.b16 %v67
  %v1119 = vunpack.c.l.b16 %v68
  %v1120 = vunpack.c.h.b16 %v68
  %v1121 = vunpack.c.l.b16 %v69
  %v1122 = vunpack.c.h.b16 %v69
  %v1123 = vunpack.c.l.b16 %v70
  %v1124 = vunpack.c.h.b16 %v70
  %v1125 = vpack.c.b16 %v1069, %v1013
  %v1126 = vpack.c.b16 %v1070, %v1014
  %v1127 = vpack.c.b16 %v1071, %v1015
  %v1128 = vpack.c.b16 %v1072, %v1016
  %v1129 = vpack.c.b16 %v1073, %v1017
  %v1130 = vpack.c.b16 %v1074, %v1018
  %v1131 = vpack.c.b16 %v1075, %v1019
  %v1132 = vpack.c.b16 %v1076, %v1020
  %v1133 = vpack.c.b16 %v1077, %v1021
  %v1134 = vpack.c.b16 %v1078, %v1022
  %v1135 = vpack.c.b16 %v1079, %v1023
  %v1136 = vpack.c.b16 %v1080, %v1024
  %v1137 = vpack.c.b16 %v1081, %v1025
  %v1138 = vpack.c.b16 %v1082, %v1026
  %v1139 = vpack.c.b16 %v1083, %v1027
  %v1140 = vpack.c.b16 %v1084, %v1028
  %v1141 = vpack.c.b16 %v1085, %v1029
  %v1142 = vpack.c.b16 %v1086, %v1030
  %v1143 = vpack.c.b16 %v1087, %v1031
  %v1144 = vpack.c.b16 %v1088, %v1032
  %v1145 = vpack.c.b16 %v1089, %v1033
  %v1146 = vpack.c.b16 %v1090, %v1034
  %v1147 = vpack.c.b16 %v1091, %v1035
  %v1148 = vpack.c.b16 %v1092, %v1036
  %v1149 = vpack.c.b16 %v1093, %v1037
  %v1150 = vpack.c.b16 %v1094, %v1038
  %v1151 = vpack.c.b16 %v1095, %v1039
  %v1152 = vpack.c.b16 %v1096, %v1040
  %v1153 = vpack.c.b16 %v1097, %v1041
  %v1154 = vpack.c.b16 %v1098, %v1042
  %v1155 = vpack.c.b16 %v1099, %v1043
  %v1156 = vpack.c.b16 %v1100, %v1044
  %v1157 = vpack.c.b16 %v1101, %v1045
  %v1158 = vpack.c.b16 %v1102, %v1046
  %v1159 = vpack.c.b16 %v1103, %v1047
  %v1160 = vpack.c.b16 %v1104, %v1048
  %v1161 = vpack.c.b16 %v1105, %v1049
  %v1162 = vpack.c.b16 %v1106, %v1050
  %v1163 = vpack.c.b16 %v1107, %v1051
  %v1164 = vpack.c.b16 %v1108, %v1052
  %v1165 = vpack.c.b16 %v1109, %v1053
  %v1166 = vpack.c.b16 %v1110, %v1054
  %v1167 = vpack.c.b16 %v1111, %v1055
  %v1168 = vpack.c.b16 %v1112, %v1056
  %v1169 = vpack.c.b16 %v1113, %v1057
  %v1170 = vpack.c.b16 %v1114, %v1058
  %v1171 = vpack.c.b16 %v1115, %v1059
  %v1172 = vpack.c.b16 %v1116, %v1060
  %v1173 = vpack.c.b16 %v1117, %v1061
  %v1174 = vpack.c.b16 %v1118, %v1062
  %v1175 = vpack.c.b16 %v1119, %v1063
  %v1176 = vpack.c.b16 %v1120, %v1064
  %v1177 = vpack.c.b16 %v1121, %v1065
  %v1178 = vpack.c.b16 %v1122, %v1066
  %v1179 = vpack.c.b16 %v1123, %v1067
  %v1180 = vpack.c.b16 %v1124, %v1068
  %v2118 = vunpack.c.l.b16 %v71
  %v2119 = vunpack.c.l.b16 %v72
  %v2120 = vunpack.c.l.b16 %v73
  %v2121 = vunpack.c.l.b16 %v74
  %v2122 = vunpack.c.l.b16 %v75
  %v2123 = vunpack.c.l.b16 %v76
  %v2124 = vunpack.c.l.b16 %v77
  %v2125 = vunpack.c.l.b16 %v78
  %v2126 = vunpack.c.l.b16 %v79
  %v2127 = vunpack.c.l.b16 %v80
  %v2128 = vunpack.c.l.b16 %v81
  %v2129 = vunpack.c.l.b16 %v82
  %v2130 = vunpack.c.l.b16 %v83
  %v2131 = vunpack.c.l.b16 %v84
  %v2132 = vunpack.c.l.b16 %v85
  %v2133 = vunpack.c.l.b16 %v86
  %v2134 = vunpack.c.l.b16 %v87
  %v2135 = vunpack.c.l.b16 %v88
  %v2136 = vunpack.c.l.b16 %v89
  %v2137 = vunpack.c.l.b16 %v90
  %v2138 = vunpack.c.l.b16 %v91
  %v2139 = vunpack.c.l.b16 %v92
  %v2140 = vunpack.c.l.b16 %v93
  %v2141 = vunpack.c.l.b16 %v94
  %v2142 = vunpack.c.l.b16 %v95
  %v2143 = vunpack.c.l.b16 %v96
  %v2144 = vunpack.c.l.b16 %v97
  %v2145 = vunpack.c.l.b16 %v98
  %v2146 = vunpack.c.l.b16 %v99
  %v2147 = vunpack.c.l.b16 %v100
  %v2148 = vunpack.c.l.b16 %v101
  %v2149 = vunpack.c.l.b16 %v102
  %v2150 = vunpack.c.l.b16 %v103
  %v2151 = vunpack.c.l.b16 %v104
  %v2152 = vunpack.c.l.b16 %v105
  %v2153 = vunpack.c.l.b16 %v106
  %v2154 = vunpack.c.l.b16 %v107
  %v2155 = vunpack.c.l.b16 %v108
  %v2156 = vunpack.c.l.b16 %v109
  %v2157 = vunpack.c.l.b16 %v110
  %v2158 = vunpack.c.l.b16 %v111
  %v2159 = vunpack.c.l.b16 %v112
  %v2160 = vunpack.c.l.b16 %v113
  %v2161 = vunpack.c.l.b16 %v114
  %v2162 = vunpack.c.l.b16 %v115
  %v2163 = vunpack.c.l.b16 %v116
  %v2164 = vunpack.c.l.b16 %v117
  %v2165 = vunpack.c.l.b16 %v118
  %v2166 = vunpack.c.l.b16 %v119
  %v2167 = vunpack.c.l.b16 %v120
  %v2168 = vunpack.c.l.b16 %v121
  %v2169 = vunpack.c.l.b16 %v122
  %v2170 = vunpack.c.l.b16 %v123
  %v2171 = vunpack.c.l.b16 %v124
  %v2172 = vunpack.c.l.b16 %v125
  %v2173 = vunpack.c.l.b16 %v126
  %v2174 = vunpack.c.l.b16 %v127
  %v2175 = vunpack.c.l.b16 %v128
  %v2176 = vunpack.c.l.b16 %v129
  %v2177 = vunpack.c.l.b16 %v130
  %v2178 = vunpack.c.l.b16 %v131
  %v2179 = vunpack.c.l.b16 %v132
  %v2180 = vunpack.c.l.b16 %v133
  %v2181 = vunpack.c.l.b16 %v134
  %v2182 = vunpack.c.l.b16 %v135
  %v2183 = vunpack.c.l.b16 %v136
  %v2184 = vunpack.c.l.b16 %v137
  %v2185 = vunpack.c.l.b16 %v138
  %v2186 = vunpack.c.l.b16 %v139
  %v2187 = vunpack.c.l.b16 %v140
  %v2188 = vunpack.c.l.b16 %v141
  %v2189 = vunpack.c.l.b16 %v142
  %v2190 = vunpack.c.l.b16 %v143
  %v2191 = vunpack.c.l.b16 %v144
  %v2192 = vunpack.c.l.b16 %v145
  %v2193 = vunpack.c.l.b16 %v146
  %v2194 = vunpack.c.l.b16 %v147
  %v2195 = vunpack.c.l.b16 %v148
  %v2196 = vunpack.c.l.b16 %v149
  %v2197 = vunpack.c.l.b16 %v150
  %v2198 = vunpack.c.l.b16 %v151
  %v2199 = vunpack.c.l.b16 %v152
  %v2200 = vunpack.c.l.b16 %v153
  %v2201 = vunpack.c.l.b16 %v154
  %v2202 = vunpack.c.l.b16 %v155
  %v2203 = vunpack.c.l.b16 %v156
  %v2204 = vunpack.c.l.b16 %v157
  %v2205 = vunpack.c.l.b16 %v158
  %v2206 = vunpack.c.l.b16 %v159
  %v2207 = vunpack.c.l.b16 %v160
  %v2208 = vunpack.c.l.b16 %v161
  %v2209 = vunpack.c.l.b16 %v162
  %v2210 = vunpack.c.l.b16 %v163
  %v2211 = vunpack.c.l.b16 %v164
  %v2212 = vunpack.c.l.b16 %v165
  %v2213 = vunpack.c.l.b16 %v166
  %v2214 = vunpack.c.l.b16 %v167
  %v2215 = vunpack.c.l.b16 %v168
  %v2216 = vunpack.c.l.b16 %v169
  %v2217 = vunpack.c.l.b16 %v170
  %v2218 = vunpack.c.l.b16 %v171
  %v2219 = vunpack.c.l.b16 %v172
  %v2220 = vunpack.c.l.b16 %v173
  %v2221 = vunpack.c.l.b16 %v174
  %v2222 = vunpack.c.l.b16 %v175
  %v2223 = vunpack.c.l.b16 %v176
  %v2224 = vunpack.c.l.b16 %v177
  %v2225 = vunpack.c.l.b16 %v178
  %v2226 = vunpack.c.l.b16 %v179
  %v2227 = vunpack.c.l.b16 %v180
  %v2228 = vunpack.c.l.b16 %v181
  %v2229 = vunpack.c.l.b16 %v182
  %v2230 = vunpack.c.l.b16 %v183
  %v2231 = vunpack.c.l.b16 %v184
  %v2232 = vunpack.c.l.b16 %v185
  %v2233 = vunpack.c.l.b16 %v186
  %v2234 = vunpack.c.l.b16 %v187
  %v2235 = vunpack.c.l.b16 %v188
  %v2236 = vunpack.c.l.b16 %v189
  %v2237 = vunpack.c.l.b16 %v190
  %v2238 = vunpack.c.l.b16 %v191
  %v2239 = vunpack.c.l.b16 %v192
  %v2240 = vunpack.c.l.b16 %v193
  %v2241 = vunpack.c.l.b16 %v194
  %v2242 = vunpack.c.l.b16 %v195
  %v2243 = vunpack.c.l.b16 %v196
  %v2244 = vunpack.c.l.b16 %v197
  %v2245 = vunpack.c.l.b16 %v198
  %v2246 = vunpack.c.l.b16 %v199
  %v2247 = vunpack.c.l.b16 %v200
  %v2248 = vunpack.c.l.b16 %v201
  %v2249 = vunpack.c.l.b16 %v202
  %v2250 = vunpack.c.l.b16 %v203
  %v2251 = vunpack.c.l.b16 %v204
  %v2252 = vunpack.c.l.b16 %v205
  %v2253 = vunpack.c.l.b16 %v206
  %v2254 = vunpack.c.l.b16 %v207
  %v2255 = vunpack.c.l.b16 %v208
  %v2256 = vunpack.c.l.b16 %v209
  %v2257 = vunpack.c.l.b16 %v210
  %v2258 = vunpack.c.l.b16 %v211
  %v2259 = vunpack.c.l.b16 %v212
  %v2260 = vunpack.c.l.b16 %v213
  %v2261 = vunpack.c.l.b16 %v214
  %v2262 = vunpack.c.l.b16 %v215
  %v2263 = vunpack.c.l.b16 %v216
  %v2264 = vunpack.c.l.b16 %v217
  %v2265 = vunpack.c.l.b16 %v218
  %v2266 = vunpack.c.l.b16 %v219
  %v2267 = vunpack.c.l.b16 %v220
  %v2268 = vunpack.c.l.b16 %v221
  %v2269 = vunpack.c.l.b16 %v222
  %v2270 = vunpack.c.l.b16 %v223
  %v2271 = vunpack.c.l.b16 %v224
  %v2272 = vunpack.c.l.b16 %v225
  %v2273 = vunpack.c.l.b16 %v226
  %v2274 = vunpack.c.l.b16 %v227
  %v2275 = vunpack.c.l.b16 %v228
  %v2276 = vunpack.c.l.b16 %v229
  %v2277 = vunpack.c.l.b16 %v230
  %v2278 = vunpack.c.l.b16 %v231
  %v2279 = vunpack.c.l.b16 %v232
  %v2280 = vunpack.c.l.b16 %v233
  %v2281 = vunpack.c.l.b16 %v234
  %v2282 = vunpack.c.l.b16 %v235
  %v2283 = vunpack.c.l.b16 %v236
  %v2284 = vunpack.c.l.b16 %v237
  %v2285 = vunpack.c.l.b16 %v238
  %v2286 = vunpack.c.l.b16 %v239
  %v2287 = vunpack.c.l.b16 %v240
  %v2288 = vunpack.c.l.b16 %v241
  %v2289 = vunpack.c.l.b16 %v242
  %v2290 = vunpack.c.l.b16 %v243
  %v2291 = vunpack.c.l.b16 %v244
  %v2292 = vunpack.c.l.b16 %v245
  %v2293 = vunpack.c.l.b16 %v246
  %v2294 = vunpack.c.l.b16 %v247
  %v2295 = vunpack.c.l.b16 %v248
  %v2296 = vunpack.c.l.b16 %v249
  %v2297 = vunpack.c.l.b16 %v250
  %v2298 = vunpack.c.l.b16 %v251
  %v2299 = vunpack.c.l.b16 %v252
  %v2300 = vunpack.c.l.b16 %v253
  %v2301 = vunpack.c.l.b16 %v254
  %v2302 = vunpack.c.l.b16 %v255
  %v2303 = vunpack.c.l.b16 %v256
  %v2304 = vunpack.c.l.b16 %v257
  %v2305 = vunpack.c.l.b16 %v258
  %v2306 = vunpack.c.l.b16 %v259
  %v2307 = vunpack.c.l.b16 %v260
  %v2308 = vunpack.c.l.b16 %v261
  %v2309 = vunpack.c.l.b16 %v262
  %v2310 = vunpack.c.l.b16 %v263
  %v2311 = vunpack.c.l.b16 %v264
  %v2312 = vunpack.c.l.b16 %v265
  %v2313 = vunpack.c.l.b16 %v266
  %v2314 = vunpack.c.l.b16 %v267
  %v2315 = vunpack.c.l.b16 %v268
  %v2316 = vunpack.c.l.b16 %v269
  %v2317 = vunpack.c.l.b16 %v270
  %v2318 = vunpack.c.l.b16 %v271
  %v2319 = vunpack.c.l.b16 %v272
  %v2320 = vunpack.c.l.b16 %v273
  %v2321 = vunpack.c.l.b16 %v274
  %v2322 = vunpack.c.l.b16 %v275
  %v2323 = vunpack.c.l.b16 %v276
  %v2324 = vunpack.c.l.b16 %v277
  %v2325 = vunpack.c.l.b16 %v278
  %v2326 = vunpack.c.l.b16 %v279
  %v2327 = vunpack.c.l.b16 %v280
  %v2328 = vunpack.c.l.b16 %v281
  %v2329 = vunpack.c.l.b16 %v282
  %v2330 = vunpack.c.l.b16 %v283
  %v2331 = vunpack.c.l.b16 %v284
  %v2332 = vunpack.c.l.b16 %v285
  %v2333 = vunpack.c.l.b16 %v286
  %v2334 = vunpack.c.l.b16 %v287
  %v2335 = vunpack.c.l.b16 %v288
  %v2336 = vunpack.c.l.b16 %v289
  %v2337 = vunpack.c.l.b16 %v290
  %v2338 = vunpack.c.l.b16 %v291
  %v2339 = vunpack.c.l.b16 %v292
  %v2340 = vunpack.c.l.b16 %v293
  %v2341 = vunpack.c.l.b16 %v294
  %v2342 = vunpack.c.l.b16 %v295
  %v2343 = vunpack.c.l.b16 %v296
  %v2344 = vunpack.c.l.b16 %v297
  %v2345 = vunpack.c.l.b16 %v298
  %v2346 = vunpack.c.l.b16 %v299
  %v2347 = vunpack.c.l.b16 %v300
  %v2348 = vunpack.c.l.b16 %v301
  %v2349 = vunpack.c.l.b16 %v302
  %v2350 = vunpack.c.l.b16 %v303
  %v2351 = vunpack.c.l.b16 %v304
  %v2352 = vunpack.c.l.b16 %v305
  %v2353 = vunpack.c.l.b16 %v306
  %v2354 = vunpack.c.l.b16 %v307
  %v2355 = vunpack.c.l.b16 %v308
  %v2356 = vunpack.c.l.b16 %v309
  %v2357 = vunpack.c.l.b16 %v310
  %v2358 = vunpack.c.l.b16 %v311
  %v2359 = vunpack.c.l.b16 %v312
  %v2360 = vunpack.c.l.b16 %v313
  %v2361 = vunpack.c.l.b16 %v314
  %v2362 = vunpack.c.l.b16 %v315
  %v2363 = vunpack.c.l.b16 %v316
  %v2364 = vunpack.c.l.b16 %v317
  %v2365 = vunpack.c.l.b16 %v318
  %v2366 = vunpack.c.l.b16 %v319
  %v2367 = vunpack.c.l.b16 %v320
  %v2368 = vunpack.c.l.b16 %v321
  %v2369 = vunpack.c.l.b16 %v322
  %v2370 = vunpack.c.l.b16 %v323
  %v2371 = vunpack.c.l.b16 %v324
  %v2372 = vunpack.c.l.b16 %v325
  %v2373 = vunpack.c.l.b16 %v326
  %v2374 = vunpack.c.l.b16 %v327
  %v2375 = vunpack.c.l.b16 %v328
  %v2376 = vunpack.c.l.b16 %v329
  %v2377 = vunpack.c.l.b16 %v330
  %v2378 = vunpack.c.l.b16 %v331
  %v2379 = vunpack.c.l.b16 %v332
  %v2380 = vunpack.c.l.b16 %v333
  %v2381 = vunpack.c.l.b16 %v334
  %v2382 = vunpack.c.l.b16 %v335
  %v2383 = vunpack.c.l.b16 %v336
  %v2384 = vunpack.c.l.b16 %v337
  %v2385 = vunpack.c.l.b16 %v338
  %v2386 = vunpack.c.l.b16 %v339
  %v2387 = vunpack.c.l.b16 %v340
  %v2388 = vunpack.c.l.b16 %v341
  %v2389 = vunpack.c.l.b16 %v342
  %v2390 = vunpack.c.l.b16 %v343
  %v2391 = vunpack.c.l.b16 %v344
  %v2392 = vunpack.c.l.b16 %v345
  %v2393 = vunpack.c.l.b16 %v346
  %v2394 = vunpack.c.l.b16 %v347
  %v2395 = vunpack.c.l.b16 %v348
  %v2396 = vunpack.c.l.b16 %v349
  %v2397 = vunpack.c.l.b16 %v350
  %v2398 = vunpack.c.l.b16 %v351
  %v2399 = vunpack.c.l.b16 %v352
  %v2400 = vunpack.c.l.b16 %v353
  %v2401 = vunpack.c.l.b16 %v354
  %v2402 = vunpack.c.l.b16 %v355
  %v2403 = vunpack.c.l.b16 %v356
  %v2404 = vunpack.c.l.b16 %v357
  %v2405 = vunpack.c.l.b16 %v358
  %v2406 = vunpack.c.l.b16 %v359
  %v2407 = vunpack.c.l.b16 %v360
  %v2408 = vunpack.c.l.b16 %v361
  %v2409 = vunpack.c.l.b16 %v362
  %v2410 = vunpack.c.l.b16 %v363
  %v2411 = vunpack.c.l.b16 %v364
  %v2412 = vunpack.c.l.b16 %v365
  %v2413 = vunpack.c.l.b16 %v366
  %v2414 = vunpack.c.l.b16 %v367
  %v2415 = vunpack.c.l.b16 %v368
  %v2416 = vunpack.c.l.b16 %v369
  %v2417 = vunpack.c.l.b16 %v370
  %v2418 = vunpack.c.l.b16 %v371
  %v2419 = vunpack.c.l.b16 %v372
  %v2420 = vunpack.c.l.b16 %v373
  %v2421 = vunpack.c.l.b16 %v374
  %v2422 = vunpack.c.l.b16 %v375
  %v2423 = vunpack.c.l.b16 %v376
  %v2424 = vunpack.c.l.b16 %v377
  %v2425 = vunpack.c.l.b16 %v378
  %v2426 = vunpack.c.l.b16 %v379
  %v2427 = vunpack.c.l.b16 %v380
  %v2428 = vunpack.c.l.b16 %v381
  %v2429 = vunpack.c.l.b16 %v382
  %v2430 = vunpack.c.l.b16 %v383
  %v2431 = vunpack.c.l.b16 %v384
  %v2432 = vunpack.c.l.b16 %v385
  %v2433 = vunpack.c.l.b16 %v386
  %v2434 = vunpack.c.l.b16 %v387
  %v2435 = vunpack.c.l.b16 %v388
  %v2436 = vunpack.c.l.b16 %v389
  %v2437 = vunpack.c.l.b16 %v390
  %v2438 = vunpack.c.l.b16 %v391
  %v2439 = vunpack.c.l.b16 %v392
  %v2440 = vunpack.c.l.b16 %v393
  %v2441 = vunpack.c.l.b16 %v394
  %v2442 = vunpack.c.l.b16 %v395
  %v2443 = vunpack.c.l.b16 %v396
  %v2444 = vunpack.c.l.b16 %v397
  %v2445 = vunpack.c.l.b16 %v398
  %v2446 = vunpack.c.l.b16 %v399
  %v2447 = vunpack.c.l.b16 %v400
  %v2448 = vunpack.c.l.b16 %v401
  %v2449 = vunpack.c.l.b16 %v402
  %v2450 = vunpack.c.l.b16 %v403
  %v2451 = vunpack.c.l.b16 %v404
  %v2452 = vunpack.c.l.b16 %v405
  %v2453 = vunpack.c.l.b16 %v406
  %v2454 = vunpack.c.l.b16 %v407
  %v2455 = vunpack.c.l.b16 %v408
  %v2456 = vunpack.c.l.b16 %v409
  %v2457 = vunpack.c.l.b16 %v410
  %v2458 = vunpack.c.l.b16 %v411
  %v2459 = vunpack.c.l.b16 %v412
  %v2460 = vunpack.c.l.b16 %v413
  %v2461 = vunpack.c.l.b16 %v414
  %v2462 = vunpack.c.l.b16 %v415
  %v2463 = vunpack.c.l.b16 %v416
  %v2464 = vunpack.c.l.b16 %v417
  %v2465 = vunpack.c.l.b16 %v418
  %v2466 = vunpack.c.l.b16 %v419
  %v2467 = vunpack.c.l.b16 %v420
  %v2468 = vunpack.c.l.b16 %v421
  %v2469 = vunpack.c.l.b16 %v422
  %v2470 = vunpack.c.l.b16 %v423
  %v2471 = vunpack.c.l.b16 %v424
  %v2472 = vunpack.c.l.b16 %v425
  %v2473 = vunpack.c.l.b16 %v426
  %v2474 = vunpack.c.l.b16 %v427
  %v2475 = vunpack.c.l.b16 %v428
  %v2476 = vunpack.c.l.b16 %v429
  %v2477 = vunpack.c.l.b16 %v430
  %v2478 = vunpack.c.l.b16 %v431
  %v2479 = vunpack.c.l.b16 %v432
  %v2480 = vunpack.c.l.b16 %v433
  %v2481 = vunpack.c.l.b16 %v434
  %v2482 = vunpack.c.l.b16 %v435
  %v2483 = vunpack.c.l.b16 %v436
  %v2484 = vunpack.c.l.b16 %v437
  %v2485 = vunpack.c.l.b16 %v438
  %v2486 = vunpack.c.l.b16 %v439
  %v2487 = vunpack.c.l.b16 %v440
  %v2488 = vunpack.c.l.b16 %v441
  %v2489 = vunpack.c.l.b16 %v442
  %v2490 = vunpack.c.l.b16 %v443
  %v2491 = vunpack.c.l.b16 %v444
  %v2492 = vunpack.c.l.b16 %v445
  %v2493 = vunpack.c.l.b16 %v446
  %v2494 = vunpack.c.l.b16 %v447
  %v2495 = vunpack.c.l.b16 %v448
  %v2496 = vunpack.c.l.b16 %v449
  %v2497 = vunpack.c.l.b16 %v450
  %v2498 = vunpack.c.l.b16 %v451
  %v2499 = vunpack.c.l.b16 %v452
  %v2500 = vunpack.c.l.b16 %v453
  %v2501 = vunpack.c.l.b16 %v454
  %v2502 = vunpack.c.l.b16 %v455
  %v2503 = vunpack.c.l.b16 %v456
  %v2504 = vunpack.c.l.b16 %v457
  %v2505 = vunpack.c.l.b16 %v458
  %v2506 = vunpack.c.l.b16 %v459
  %v2507 = vunpack.c.l.b16 %v460
  %v2508 = vunpack.c.l.b16 %v461
  %v2509 = vunpack.c.l.b16 %v462
  %v2510 = vunpack.c.l.b16 %v463
  %v2511 = vunpack.c.l.b16 %v464
  %v2512 = vunpack.c.l.b16 %v465
  %v2513 = vunpack.c.l.b16 %v466
  %v2514 = vunpack.c.l.b16 %v467
  %v2515 = vunpack.c.l.b16 %v468
  %v2516 = vunpack.c.l.b16 %v469
  %v2517 = vunpack.c.l.b16 %v470
  %v2518 = vunpack.c.l.b16 %v471
  %v2519 = vunpack.c.l.b16 %v472
  %v2520 = vunpack.c.l.b16 %v473
  %v2521 = vunpack.c.l.b16 %v474
  %v2522 = vunpack.c.l.b16 %v475
  %v2523 = vunpack.c.l.b16 %v476
  %v2524 = vunpack.c.l.b16 %v477
  %v2525 = vunpack.c.l.b16 %v478
  %v2526 = vunpack.c.l.b16 %v479
  %v2527 = vunpack.c.l.b16 %v480
  %v2528 = vunpack.c.l.b16 %v481
  %v2529 = vunpack.c.l.b16 %v482
  %v2530 = vunpack.c.l.b16 %v483
  %v2531 = vunpack.c.l.b16 %v484
  %v2532 = vunpack.c.l.b16 %v485
  %v2533 = vunpack.c.l.b16 %v486
  %v2534 = vunpack.c.l.b16 %v487
  %v2535 = vunpack.c.l.b16 %v488
  %v2536 = vunpack.c.l.b16 %v489
  %v2537 = vunpack.c.l.b16 %v490
  %v2538 = vunpack.c.l.b16 %v491
  %v2539 = vunpack.c.l.b16 %v492
  %v2540 = vunpack.c.l.b16 %v493
  %v2541 = vunpack.c.l.b16 %v494
  %v2542 = vunpack.c.l.b16 %v495
  %v2543 = vunpack.c.l.b16 %v496
  %v2544 = vunpack.c.l.b16 %v497
  %v2545 = vunpack.c.l.b16 %v498
  %v2546 = vunpack.c.l.b16 %v499
  %v2547 = vunpack.c.l.b16 %v500
  %v2548 = vunpack.c.l.b16 %v501
  %v2549 = vunpack.c.l.b16 %v502
  %v2550 = vunpack.c.l.b16 %v503
  %v2551 = vunpack.c.l.b16 %v504
  %v2552 = vunpack.c.l.b16 %v505
  %v2553 = vunpack.c.l.b16 %v506
  %v2554 = vunpack.c.l.b16 %v507
  %v2555 = vunpack.c.l.b16 %v508
  %v2556 = vunpack.c.l.b16 %v509
  %v2557 = vunpack.c.l.b16 %v510
  %v2558 = vunpack.c.l.b16 %v511
  %v2559 = vunpack.c.l.b16 %v512
  %v2560 = vunpack.c.l.b16 %v513
  %v2561 = vunpack.c.l.b16 %v514
  %v2562 = vunpack.c.l.b16 %v515
  %v2563 = vunpack.c.l.b16 %v516
  %v2564 = vunpack.c.l.b16 %v517
  %v2565 = vunpack.c.l.b16 %v518
  %v2566 = vunpack.c.l.b16 %v519
  %v2567 = vunpack.c.l.b16 %v520
  %v2568 = vunpack.c.l.b16 %v521
  %v2569 = vunpack.c.l.b16 %v522
  %v2570 = vunpack.c.l.b16 %v523
  %v2571 = vunpack.c.l.b16 %v524
  %v2572 = vunpack.c.l.b16 %v525
  %v2573 = vunpack.c.l.b16 %v526
  %v2574 = vunpack.c.l.b16 %v527
  %v2575 = vunpack.c.l.b16 %v528
  %v2576 = vunpack.c.l.b16 %v529
  %v2577 = vunpack.c.l.b16 %v530
  %v2578 = vunpack.c.l.b16 %v531
  %v2579 = vunpack.c.l.b16 %v532
  %v2580 = vunpack.c.l.b16 %v533
  %v2581 = vunpack.c.l.b16 %v534
  %v2582 = vunpack.c.l.b16 %v535
  %v2583 = vunpack.c.l.b16 %v536
  %v2584 = vunpack.c.l.b16 %v537
  %v2585 = vunpack.c.l.b16 %v538
  %v2586 = vunpack.c.l.b16 %v539
  %v2587 = vunpack.c.l.b16 %v540
  %v2588 = vunpack.c.l.b16 %v541
  %v2589 = vunpack.c.l.b16 %v542
  %v2590 = vunpack.c.l.b16 %v543
  %v2591 = vunpack.c.l.b16 %v544
  %v2592 = vunpack.c.l.b16 %v545
  %v2593 = vunpack.c.l.b16 %v546
  %v2594 = vunpack.c.l.b16 %v547
  %v2595 = vunpack.c.l.b16 %v548
  %v2596 = vunpack.c.l.b16 %v549
  %v2597 = vunpack.c.l.b16 %v550
  %v2598 = vunpack.c.l.b16 %v551
  %v2599 = vunpack.c.l.b16 %v552
  %v2600 = vunpack.c.l.b16 %v553
  %v2601 = vunpack.c.l.b16 %v554
  %v2602 = vunpack.c.l.b16 %v555
  %v2603 = vunpack.c.l.b16 %v556
  %v2604 = vunpack.c.l.b16 %v557
  %v2605 = vunpack.c.l.b16 %v558
  %v2606 = vunpack.c.l.b16 %v559
  %v2607 = vunpack.c.l.b16 %v560
  %v2608 = vunpack.c.l.b16 %v561
  %v2609 = vunpack.c.l.b16 %v562
  %v2610 = vunpack.c.l.b16 %v563
  %v2611 = vunpack.c.l.b16 %v564
  %v2612 = vunpack.c.l.b16 %v565
  %v2613 = vunpack.c.l.b16 %v566
  %v2614 = vunpack.c.l.b16 %v567
  %v2615 = vunpack.c.l.b16 %v568
  %v2616 = vunpack.c.l.b16 %v569
  %v2617 = vunpack.c.l.b16 %v570
  %v2618 = vunpack.c.l.b16 %v571
  %v2619 = vunpack.c.l.b16 %v572
  %v2620 = vunpack.c.l.b16 %v573
  %v2621 = vunpack.c.l.b16 %v574
  %v2622 = vunpack.c.l.b16 %v575
  %v2623 = vunpack.c.l.b16 %v576
  %v2624 = vunpack.c.l.b16 %v577
  %v2625 = vunpack.c.l.b16 %v578
  %v2626 = vunpack.c.l.b16 %v579
  %v2627 = vunpack.c.l.b16 %v580
  %v2628 = vunpack.c.l.b16 %v581
  %v2629 = vunpack.c.l.b16 %v582
  %v2630 = vunpack.c.l.b16 %v583
  %v2631 = vunpack.c.l.b16 %v584
  %v2632 = vunpack.c.l.b16 %v585
  %v2633 = vunpack.c.l.b16 %v586
  %v2634 = vunpack.c.l.b16 %v587
  %v2635 = vunpack.c.l.b16 %v588
  %v2636 = vunpack.c.l.b16 %v589
  %v2637 = vunpack.c.l.b16 %v590
  %v2638 = vunpack.c.l.b16 %v591
  %v2639 = vunpack.c.l.b16 %v592
  %v2640 = vunpack.c.l.b16 %v593
  %v2641 = vunpack.c.l.b16 %v594
  %v2642 = vunpack.c.l.b16 %v595
  %v2643 = vunpack.c.l.b16 %v596
  %v2644 = vunpack.c.l.b16 %v597
  %v2645 = vunpack.c.l.b16 %v598
  %v2646 = vunpack.c.l.b16 %v599
  %v2647 = vunpack.c.l.b16 %v600
  %v2648 = vunpack.c.l.b16 %v601
  %v2649 = vunpack.c.l.b16 %v602
  %v2650 = vunpack.c.l.b16 %v603
  %v2651 = vunpack.c.l.b16 %v604
  %v2652 = vunpack.c.l.b16 %v605
  %v2653 = vunpack.c.l.b16 %v606
  %v2654 = vunpack.c.l.b16 %v607
  %v2655 = vunpack.c.l.b16 %v608
  %v2656 = vunpack.c.l.b16 %v609
  %v2657 = vunpack.c.l.b16 %v610
  %v2658 = vunpack.c.l.b16 %v611
  %v2659 = vunpack.c.l.b16 %v612
  %v2660 = vunpack.c.l.b16 %v613
  %v2661 = vunpack.c.l.b16 %v614
  %v2662 = vunpack.c.l.b16 %v615
  %v2663 = vunpack.c.l.b16 %v616
  %v2664 = vunpack.c.l.b16 %v617
  %v2665 = vunpack.c.l.b16 %v618
  %v2666 = vunpack.c.l.b16 %v619
  %v2667 = vunpack.c.l.b16 %v620
  %v2668 = vunpack.c.l.b16 %v621
  %v2669 = vunpack.c.l.b16 %v622
  %v2670 = vunpack.c.l.b16 %v623
  %v2671 = vunpack.c.l.b16 %v624
  %v2672 = vunpack.c.l.b16 %v625
  %v2673 = vunpack.c.l.b16 %v626
  %v2674 = vunpack.c.l.b16 %v627
  %v2675 = vunpack.c.l.b16 %v628
  %v2676 = vunpack.c.l.b16 %v629
  %v2677 = vunpack.c.l.b16 %v630
  %v2678 = vunpack.c.l.b16 %v631
  %v2679 = vunpack.c.l.b16 %v632
  %v2680 = vunpack.c.l.b16 %v633
  %v2681 = vunpack.c.l.b16 %v634
  %v2682 = vunpack.c.l.b16 %v635
  %v2683 = vunpack.c.l.b16 %v636
  %v2684 = vunpack.c.l.b16 %v637
  %v2685 = vunpack.c.l.b16 %v638
  %v2686 = vunpack.c.l.b16 %v639
  %v2687 = vunpack.c.l.b16 %v640
  %v2688 = vunpack.c.l.b16 %v641
  %v2689 = vunpack.c.l.b16 %v642
  %v2690 = vunpack.c.l.b16 %v643
  %v2691 = vunpack.c.l.b16 %v644
  %v2692 = vunpack.c.l.b16 %v645
  %v2693 = vunpack.c.l.b16 %v646
  %v2694 = vunpack.c.l.b16 %v647
  %v2695 = vunpack.c.l.b16 %v648
  %v2696 = vunpack.c.l.b16 %v649
  %v2697 = vunpack.c.l.b16 %v650
  %v2698 = vunpack.c.l.b16 %v651
  %v2699 = vunpack.c.l.b16 %v652
  %v2700 = vunpack.c.l.b16 %v653
  %v2701 = vunpack.c.l.b16 %v654
  %v2702 = vunpack.c.l.b16 %v655
  %v2703 = vunpack.c.l.b16 %v656
  %v2704 = vunpack.c.l.b16 %v657
  %v2705 = vunpack.c.l.b16 %v658
  %v2706 = vunpack.c.l.b16 %v659
  %v2707 = vunpack.c.l.b16 %v660
  %v2708 = vunpack.c.l.b16 %v661
  %v2709 = vunpack.c.l.b16 %v662
  %v2710 = vunpack.c.l.b16 %v663
  %v2711 = vunpack.c.l.b16 %v664
  %v2712 = vunpack.c.l.b16 %v665
  %v2713 = vunpack.c.l.b16 %v666
  %v2714 = vunpack.c.l.b16 %v667
  %v2715 = vunpack.c.l.b16 %v668
  %v2716 = vunpack.c.l.b16 %v669
  %v2717 = vunpack.c.l.b16 %v670
  %v2718 = vunpack.c.l.b16 %v671
  %v2719 = vunpack.c.l.b16 %v672
  %v2720 = vunpack.c.l.b16 %v673
  %v2721 = vunpack.c.l.b16 %v674
  %v2722 = vunpack.c.l.b16 %v675
  %v2723 = vunpack.c.l.b16 %v676
  %v2724 = vunpack.c.l.b16 %v677
  %v2725 = vunpack.c.l.b16 %v678
  %v2726 = vunpack.c.l.b16 %v679
  %v2727 = vunpack.c.l.b16 %v680
  %v2728 = vunpack.c.l.b16 %v681
  %v2729 = vunpack.c.l.b16 %v682
  %v2730 = vunpack.c.l.b16 %v683
  %v2731 = vunpack.c.l.b16 %v684
  %v2732 = vunpack.c.l.b16 %v685
  %v2733 = vunpack.c.l.b16 %v686
  %v2734 = vunpack.c.l.b16 %v687
  %v2735 = vunpack.c.l.b16 %v688
  %v2736 = vunpack.c.l.b16 %v689
  %v2737 = vunpack.c.l.b16 %v690
  %v2738 = vunpack.c.l.b16 %v691
  %v2739 = vunpack.c.l.b16 %v692
  %v2740 = vunpack.c.l.b16 %v693
  %v2741 = vunpack.c.l.b16 %v694
  %v2742 = vunpack.c.l.b16 %v695
  %v2743 = vunpack.c.l.b16 %v696
  %v2744 = vunpack.c.l.b16 %v697
  %v2745 = vunpack.c.l.b16 %v698
  %v2746 = vunpack.c.l.b16 %v699
  %v2747 = vunpack.c.l.b16 %v700
  %v2748 = vunpack.c.l.b16 %v701
  %v2749 = vunpack.c.l.b16 %v702
  %v2750 = vunpack.c.l.b16 %v703
  %v2751 = vunpack.c.l.b16 %v704
  %v2752 = vunpack.c.l.b16 %v705
  %v2753 = vunpack.c.l.b16 %v706
  %v2754 = vunpack.c.l.b16 %v707
  %v2755 = vunpack.c.l.b16 %v708
  %v2756 = vunpack.c.l.b16 %v709
  %v2757 = vunpack.c.l.b16 %v710
  %v2758 = vunpack.c.l.b16 %v711
  %v2759 = vunpack.c.l.b16 %v712
  %v2760 = vunpack.c.l.b16 %v713
  %v2761 = vunpack.c.l.b16 %v714
  %v2762 = vunpack.c.l.b16 %v715
  %v2763 = vunpack.c.l.b16 %v716
  %v2764 = vunpack.c.l.b16 %v717
  %v2765 = vunpack.c.l.b16 %v718
  %v2766 = vunpack.c.l.b16 %v719
  %v2767 = vunpack.c.l.b16 %v720
  %v2768 = vunpack.c.l.b16 %v721
  %v2769 = vunpack.c.l.b16 %v722
  %v2770 = vunpack.c.l.b16 %v723
  %v2771 = vunpack.c.l.b16 %v724
  %v2772 = vunpack.c.l.b16 %v725
  %v2773 = vunpack.c.l.b16 %v726
  %v2774 = vunpack.c.l.b16 %v727
  %v2775 = vunpack.c.l.b16 %v728
  %v2776 = vunpack.c.l.b16 %v729
  %v2777 = vunpack.c.l.b16 %v730
  %v2778 = vunpack.c.l.b16 %v731
  %v2779 = vunpack.c.l.b16 %v732
  %v2780 = vunpack.c.l.b16 %v733
  %v2781 = vunpack.c.l.b16 %v734
  %v2782 = vunpack.c.l.b16 %v735
  %v2783 = vunpack.c.l.b16 %v736
  %v2784 = vunpack.c.l.b16 %v737
  %v2785 = vunpack.c.l.b16 %v738
  %v2786 = vunpack.c.l.b16 %v739
  %v2787 = vunpack.c.l.b16 %v740
  %v2788 = vunpack.c.l.b16 %v741
  %v2789 = vunpack.c.l.b16 %v742
  %v2790 = vunpack.c.l.b16 %v743
  %v2791 = vunpack.c.l.b16 %v744
  %v2792 = vunpack.c.l.b16 %v745
  %v2793 = vunpack.c.l.b16 %v746
  %v2794 = vunpack.c.l.b16 %v747
  %v2795 = vunpack.c.l.b16 %v748
  %v2796 = vunpack.c.l.b16 %v749
  %v2797 = vunpack.c.l.b16 %v750
  %v2798 = vunpack.c.l.b16 %v751
  %v2799 = vunpack.c.l.b16 %v752
  %v2800 = vunpack.c.l.b16 %v753
  %v2801 = vunpack.c.l.b16 %v754
  %v2802 = vunpack.c.l.b16 %v755
  %v2803 = vunpack.c.l.b16 %v756
  %v2804 = vunpack.c.l.b16 %v757
  %v2805 = vunpack.c.l.b16 %v758
  %v2806 = vunpack.c.l.b16 %v759
  %v2807 = vunpack.c.l.b16 %v760
  %v2808 = vunpack.c.l.b16 %v761
  %v2809 = vunpack.c.l.b16 %v762
  %v2810 = vunpack.c.l.b16 %v763
  %v2811 = vunpack.c.l.b16 %v764
  %v2812 = vunpack.c.l.b16 %v765
  %v2813 = vunpack.c.l.b16 %v766
  %v2814 = vunpack.c.l.b16 %v767
  %v2815 = vunpack.c.l.b16 %v768
  %v2816 = vunpack.c.l.b16 %v769
  %v2817 = vunpack.c.l.b16 %v770
  %v2818 = vunpack.c.l.b16 %v771
  %v2819 = vunpack.c.l.b16 %v772
  %v2820 = vunpack.c.l.b16 %v773
  %v2821 = vunpack.c.l.b16 %v774
  %v2822 = vunpack.c.l.b16 %v775
  %v2823 = vunpack.c.l.b16 %v776
  %v2824 = vunpack.c.l.b16 %v777
  %v2825 = vunpack.c.l.b16 %v778
  %v2826 = vunpack.c.l.b16 %v779
  %v2827 = vunpack.c.l.b16 %v780
  %v2828 = vunpack.c.l.b16 %v781
  %v2829 = vunpack.c.l.b16 %v782
  %v2830 = vunpack.c.l.b16 %v783
  %v2831 = vunpack.c.l.b16 %v784
  %v2832 = vunpack.c.l.b16 %v785
  %v2833 = vunpack.c.l.b16 %v786
  %v2834 = vunpack.c.l.b16 %v787
  %v2835 = vunpack.c.l.b16 %v788
  %v2836 = vunpack.c.l.b16 %v789
  %v2837 = vunpack.c.l.b16 %v790
  %v2838 = vunpack.c.l.b16 %v791
  %v2839 = vunpack.c.l.b16 %v792
  %v2840 = vunpack.c.l.b16 %v793
  %v2841 = vunpack.c.l.b16 %v794
  %v2842 = vunpack.c.l.b16 %v795
  %v2843 = vunpack.c.l.b16 %v796
  %v2844 = vunpack.c.l.b16 %v797
  %v2845 = vunpack.c.l.b16 %v798
  %v2846 = vunpack.c.l.b16 %v799
  %v2847 = vunpack.c.l.b16 %v800
  %v2848 = vunpack.c.l.b16 %v801
  %v2849 = vunpack.c.l.b16 %v802
  %v2850 = vunpack.c.l.b16 %v803
  %v2851 = vunpack.c.l.b16 %v804
  %v2852 = vunpack.c.l.b16 %v805
  %v2853 = vunpack.c.l.b16 %v806
  %v2854 = vunpack.c.l.b16 %v807
  %v2855 = vunpack.c.l.b16 %v808
  %v2856 = vunpack.c.l.b16 %v809
  %v2857 = vunpack.c.l.b16 %v810
  %v2858 = vunpack.c.l.b16 %v811
  %v2859 = vunpack.c.l.b16 %v812
  %v2860 = vunpack.c.l.b16 %v813
  %v2861 = vunpack.c.l.b16 %v814
  %v2862 = vunpack.c.l.b16 %v815
  %v2863 = vunpack.c.l.b16 %v816
  %v2864 = vunpack.c.l.b16 %v817
  %v2865 = vunpack.c.l.b16 %v818
  %v2866 = vunpack.c.l.b16 %v819
  %v2867 = vunpack.c.l.b16 %v820
  %v2868 = vunpack.c.l.b16 %v821
  %v2869 = vunpack.c.l.b16 %v822
  %v2870 = vunpack.c.l.b16 %v823
  %v2871 = vunpack.c.l.b16 %v824
  %v2872 = vunpack.c.l.b16 %v825
  %v2873 = vunpack.c.l.b16 %v826
  %v2874 = vunpack.c.l.b16 %v827
  %v2875 = vunpack.c.l.b16 %v828
  %v2876 = vunpack.c.l.b16 %v829
  %v2877 = vunpack.c.l.b16 %v830
  %v2878 = vunpack.c.l.b16 %v831
  %v2879 = vunpack.c.l.b16 %v832
  %v2880 = vunpack.c.l.b16 %v833
  %v2881 = vunpack.c.l.b16 %v834
  %v2882 = vunpack.c.l.b16 %v835
  %v2883 = vunpack.c.l.b16 %v836
  %v2884 = vunpack.c.l.b16 %v837
  %v2885 = vunpack.c.l.b16 %v838
  %v2886 = vunpack.c.l.b16 %v839
  %v2887 = vunpack.c.l.b16 %v840
  %v2888 = vunpack.c.l.b16 %v841
  %v2889 = vunpack.c.l.b16 %v842
  %v2890 = vunpack.c.l.b16 %v843
  %v2891 = vunpack.c.l.b16 %v844
  %v2892 = vunpack.c.l.b16 %v845
  %v2893 = vunpack.c.l.b16 %v846
  %v2894 = vunpack.c.l.b16 %v847
  %v2895 = vunpack.c.l.b16 %v848
  %v2896 = vunpack.c.l.b16 %v849
  %v2897 = vunpack.c.l.b16 %v850
  %v2898 = vunpack.c.l.b16 %v851
  %v2899 = vunpack.c.l.b16 %v852
  %v2900 = vunpack.c.l.b16 %v853
  %v2901 = vunpack.c.l.b16 %v854
  %v2902 = vunpack.c.l.b16 %v855
  %v2903 = vunpack.c.l.b16 %v856
  %v2904 = vunpack.c.l.b16 %v857
  %v2905 = vunpack.c.l.b16 %v858
  %v2906 = vunpack.c.l.b16 %v859
  %v2907 = vunpack.c.l.b16 %v860
  %v2908 = vunpack.c.l.b16 %v861
  %v2909 = vunpack.c.l.b16 %v862
  %v2910 = vunpack.c.l.b16 %v863
  %v2911 = vunpack.c.l.b16 %v864
  %v2912 = vunpack.c.l.b16 %v865
  %v2913 = vunpack.c.l.b16 %v866
  %v2914 = vunpack.c.l.b16 %v867
  %v2915 = vunpack.c.l.b16 %v868
  %v2916 = vunpack.c.l.b16 %v869
  %v2917 = vunpack.c.l.b16 %v870
  %v2918 = vunpack.c.l.b16 %v871
  %v2919 = vunpack.c.l.b16 %v872
  %v2920 = vunpack.c.l.b16 %v873
  %v2921 = vunpack.c.l.b16 %v874
  %v2922 = vunpack.c.l.b16 %v875
  %v2923 = vunpack.c.l.b16 %v876
  %v2924 = vunpack.c.l.b16 %v877
  %v2925 = vunpack.c.l.b16 %v878
  %v2926 = vunpack.c.l.b16 %v879
  %v2927 = vunpack.c.l.b16 %v880
  %v2928 = vunpack.c.l.b16 %v881
  %v2929 = vunpack.c.l.b16 %v882
  %v2930 = vunpack.c.l.b16 %v883
  %v2931 = vunpack.c.l.b16 %v884
  %v2932 = vunpack.c.l.b16 %v885
  %v2933 = vunpack.c.l.b16 %v886
  %v2934 = vunpack.c.l.b16 %v887
  %v2935 = vunpack.c.l.b16 %v888
  %v2936 = vunpack.c.l.b16 %v889
  %v2937 = vunpack.c.l.b16 %v890
  %v2938 = vunpack.c.l.b16 %v891
  %v2939 = vunpack.c.l.b16 %v892
  %v2940 = vunpack.c.l.b16 %v893
  %v2941 = vunpack.c.l.b16 %v894
  %v2942 = vunpack.c.l.b16 %v895
  %v2943 = vunpack.c.l.b16 %v896
  %v2944 = vunpack.c.l.b16 %v897
  %v2945 = vunpack.c.l.b16 %v898
  %v2946 = vunpack.c.l.b16 %v899
  %v2947 = vunpack.c.l.b16 %v900
  %v2948 = vunpack.c.l.b16 %v901
  %v2949 = vunpack.c.l.b16 %v902
  %v2950 = vunpack.c.l.b16 %v903
  %v2951 = vunpack.c.l.b16 %v904
  %v2952 = vunpack.c.l.b16 %v905
  %v2953 = vunpack.c.l.b16 %v906
  %v2954 = vunpack.c.l.b16 %v907
  %v2955 = vunpack.c.l.b16 %v908
  %v2956 = vunpack.c.l.b16 %v909
  %v2957 = vunpack.c.l.b16 %v910
  %v2958 = vunpack.c.l.b16 %v911
  %v2959 = vunpack.c.l.b16 %v912
  %v2960 = vunpack.c.l.b16 %v913
  %v2961 = vunpack.c.l.b16 %v914
  %v2962 = vunpack.c.l.b16 %v915
  %v2963 = vunpack.c.l.b16 %v916
  %v2964 = vunpack.c.l.b16 %v917
  %v2965 = vunpack.c.l.b16 %v918
  %v2966 = vunpack.c.l.b16 %v919
  %v2967 = vunpack.c.l.b16 %v920
  %v2968 = vunpack.c.l.b16 %v921
  %v2969 = vunpack.c.l.b16 %v922
  %v2970 = vunpack.c.l.b16 %v923
  %v2971 = vunpack.c.l.b16 %v924
  %v2972 = vunpack.c.l.b16 %v925
  %v2973 = vunpack.c.l.b16 %v926
  %v2974 = vunpack.c.l.b16 %v927
  %v2975 = vunpack.c.l.b16 %v928
  %v2976 = vunpack.c.l.b16 %v929
  %v2977 = vunpack.c.l.b16 %v930
  %v2978 = vunpack.c.l.b16 %v931
  %v2979 = vunpack.c.l.b16 %v932
  %v2980 = vunpack.c.l.b16 %v933
  %v2981 = vunpack.c.l.b16 %v934
  %v2982 = vunpack.c.l.b16 %v935
  %v2983 = vunpack.c.l.b16 %v936
  %v2984 = vunpack.c.l.b16 %v937
  %v2985 = vunpack.c.l.b16 %v938
  %v2986 = vunpack.c.l.b16 %v939
  %v2987 = vunpack.c.l.b16 %v940
  %v2988 = vunpack.c.l.b16 %v941
  %v2989 = vunpack.c.l.b16 %v942
  %v2990 = vunpack.c.l.b16 %v943
  %v2991 = vunpack.c.l.b16 %v944
  %v2992 = vunpack.c.l.b16 %v945
  %v2993 = vunpack.c.l.b16 %v946
  %v2994 = vunpack.c.l.b16 %v947
  %v2995 = vunpack.c.l.b16 %v948
  %v2996 = vunpack.c.l.b16 %v949
  %v2997 = vunpack.c.l.b16 %v950
  %v2998 = vunpack.c.l.b16 %v951
  %v2999 = vunpack.c.l.b16 %v952
  %v3000 = vpack.c.b16 %v2119, %v2118
  %v3001 = vpack.c.b16 %v2121, %v2120
  %v3002 = vpack.c.b16 %v2123, %v2122
  %v3003 = vpack.c.b16 %v2125, %v2124
  %v3004 = vpack.c.b16 %v2127, %v2126
  %v3005 = vpack.c.b16 %v2129, %v2128
  %v3006 = vpack.c.b16 %v2131, %v2130
  %v3007 = vpack.c.b16 %v2133, %v2132
  %v3008 = vpack.c.b16 %v2135, %v2134
  %v3009 = vpack.c.b16 %v2137, %v2136
  %v3010 = vpack.c.b16 %v2139, %v2138
  %v3011 = vpack.c.b16 %v2141, %v2140
  %v3012 = vpack.c.b16 %v2143, %v2142
  %v3013 = vpack.c.b16 %v2145, %v2144
  %v3014 = vpack.c.b16 %v2147, %v2146
  %v3015 = vpack.c.b16 %v2149, %v2148
  %v3016 = vpack.c.b16 %v2151, %v2150
  %v3017 = vpack.c.b16 %v2153, %v2152
  %v3018 = vpack.c.b16 %v2155, %v2154
  %v3019 = vpack.c.b16 %v2157, %v2156
  %v3020 = vpack.c.b16 %v2159, %v2158
  %v3021 = vpack.c.b16 %v2161, %v2160
  %v3022 = vpack.c.b16 %v2163, %v2162
  %v3023 = vpack.c.b16 %v2165, %v2164
  %v3024 = vpack.c.b16 %v2167, %v2166
  %v3025 = vpack.c.b16 %v2169, %v2168
  %v3026 = vpack.c.b16 %v2171, %v2170
  %v3027 = vpack.c.b16 %v2173, %v2172
  %v3028 = vpack.c.b16 %v2175, %v2174
  %v3029 = vpack.c.b16 %v2177, %v2176
  %v3030 = vpack.c.b16 %v2179, %v2178
  %v3031 = vpack.c.b16 %v2181, %v2180
  %v3032 = vpack.c.b16 %v2183, %v2182
  %v3033 = vpack.c.b16 %v2185, %v2184
  %v3034 = vpack.c.b16 %v2187, %v2186
  %v3035 = vpack.c.b16 %v2189, %v2188
  %v3036 = vpack.c.b16 %v2191, %v2190
  %v3037 = vpack.c.b16 %v2193, %v2192
  %v3038 = vpack.c.b16 %v2195, %v2194
  %v3039 = vpack.c.b16 %v2197, %v2196
  %v3040 = vpack.c.b16 %v2199, %v2198
  %v3041 = vpack.c.b16 %v2201, %v2200
  %v3042 = vpack.c.b16 %v2203, %v2202
  %v3043 = vpack.c.b16 %v2205, %v2204
  %v3044 = vpack.c.b16 %v2207, %v2206
  %v3045 = vpack.c.b16 %v2209, %v2208
  %v3046 = vpack.c.b16 %v2211, %v2210
  %v3047 = vpack.c.b16 %v2213, %v2212
  %v3048 = vpack.c.b16 %v2215, %v2214
  %v3049 = vpack.c.b16 %v2217, %v2216
  %v3050 = vpack.c.b16 %v2219, %v2218
  %v3051 = vpack.c.b16 %v2221, %v2220
  %v3052 = vpack.c.b16 %v2223, %v2222
  %v3053 = vpack.c.b16 %v2225, %v2224
  %v3054 = vpack.c.b16 %v2227, %v2226
  %v3055 = vpack.c.b16 %v2229, %v2228
  %v3056 = vpack.c.b16 %v2231, %v2230
  %v3057 = vpack.c.b16 %v2233, %v2232
  %v3058 = vpack.c.b16 %v2235, %v2234
  %v3059 = vpack.c.b16 %v2237, %v2236
  %v3060 = vpack.c.b16 %v2239, %v2238
  %v3061 = vpack.c.b16 %v2241, %v2240
  %v3062 = vpack.c.b16 %v2243, %v2242
  %v3063 = vpack.c.b16 %v2245, %v2244
  %v3064 = vpack.c.b16 %v2247, %v2246
  %v3065 = vpack.c.b16 %v2249, %v2248
  %v3066 = vpack.c.b16 %v2251, %v2250
  %v3067 = vpack.c.b16 %v2253, %v2252
  %v3068 = vpack.c.b16 %v2255, %v2254
  %v3069 = vpack.c.b16 %v2257, %v2256
  %v3070 = vpack.c.b16 %v2259, %v2258
  %v3071 = vpack.c.b16 %v2261, %v2260
  %v3072 = vpack.c.b16 %v2263, %v2262
  %v3073 = vpack.c.b16 %v2265, %v2264
  %v3074 = vpack.c.b16 %v2267, %v2266
  %v3075 = vpack.c.b16 %v2269, %v2268
  %v3076 = vpack.c.b16 %v2271, %v2270
  %v3077 = vpack.c.b16 %v2273, %v2272
  %v3078 = vpack.c.b16 %v2275, %v2274
  %v3079 = vpack.c.b16 %v2277, %v2276
  %v3080 = vpack.c.b16 %v2279, %v2278
  %v3081 = vpack.c.b16 %v2281, %v2280
  %v3082 = vpack.c.b16 %v2283, %v2282
  %v3083 = vpack.c.b16 %v2285, %v2284
  %v3084 = vpack.c.b16 %v2287, %v2286
  %v3085 = vpack.c.b16 %v2289, %v2288
  %v3086 = vpack.c.b16 %v2291, %v2290
  %v3087 = vpack.c.b16 %v2293, %v2292
  %v3088 = vpack.c.b16 %v2295, %v2294
  %v3089 = vpack.c.b16 %v2297, %v2296
  %v3090 = vpack.c.b16 %v2299, %v2298
  %v3091 = vpack.c.b16 %v2301, %v2300
  %v3092 = vpack.c.b16 %v2303, %v2302
  %v3093 = vpack.c.b16 %v2305, %v2304
  %v3094 = vpack.c.b16 %v2307, %v2306
  %v3095 = vpack.c.b16 %v2309, %v2308
  %v3096 = vpack.c.b16 %v2311, %v2310
  %v3097 = vpack.c.b16 %v2313, %v2312
  %v3098 = vpack.c.b16 %v2315, %v2314
  %v3099 = vpack.c.b16 %v2317, %v2316
  %v3100 = vpack.c.b16 %v2319, %v2318
  %v3101 = vpack.c.b16 %v2321, %v2320
  %v3102 = vpack.c.b16 %v2323, %v2322
  %v3103 = vpack.c.b16 %v2325, %v2324
  %v3104 = vpack.c.b16 %v2327, %v2326
  %v3105 = vpack.c.b16 %v2329, %v2328
  %v3106 = vpack.c.b16 %v2331, %v2330
  %v3107 = vpack.c.b16 %v2333, %v2332
  %v3108 = vpack.c.b16 %v2335, %v2334
  %v3109 = vpack.c.b16 %v2337, %v2336
  %v3110 = vpack.c.b16 %v2339, %v2338
  %v3111 = vpack.c.b16 %v2341, %v2340
  %v3112 = vpack.c.b16 %v2343, %v2342
  %v3113 = vpack.c.b16 %v2345, %v2344
  %v3114 = vpack.c.b16 %v2347, %v2346
  %v3115 = vpack.c.b16 %v2349, %v2348
  %v3116 = vpack.c.b16 %v2351, %v2350
  %v3117 = vpack.c.b16 %v2353, %v2352
  %v3118 = vpack.c.b16 %v2355, %v2354
  %v3119 = vpack.c.b16 %v2357, %v2356
  %v3120 = vpack.c.b16 %v2359, %v2358
  %v3121 = vpack.c.b16 %v2361, %v2360
  %v3122 = vpack.c.b16 %v2363, %v2362
  %v3123 = vpack.c.b16 %v2365, %v2364
  %v3124 = vpack.c.b16 %v2367, %v2366
  %v3125 = vpack.c.b16 %v2369, %v2368
  %v3126 = vpack.c.b16 %v2371, %v2370
  %v3127 = vpack.c.b16 %v2373, %v2372
  %v3128 = vpack.c.b16 %v2375, %v2374
  %v3129 = vpack.c.b16 %v2377, %v2376
  %v3130 = vpack.c.b16 %v2379, %v2378
  %v3131 = vpack.c.b16 %v2381, %v2380
  %v3132 = vpack.c.b16 %v2383, %v2382
  %v3133 = vpack.c.b16 %v2385, %v2384
  %v3134 = vpack.c.b16 %v2387, %v2386
  %v3135 = vpack.c.b16 %v2389, %v2388
  %v3136 = vpack.c.b16 %v2391, %v2390
  %v3137 = vpack.c.b16 %v2393, %v2392
  %v3138 = vpack.c.b16 %v2395, %v2394
  %v3139 = vpack.c.b16 %v2397, %v2396
  %v3140 = vpack.c.b16 %v2399, %v2398
  %v3141 = vpack.c.b16 %v2401, %v2400
  %v3142 = vpack.c.b16 %v2403, %v2402
  %v3143 = vpack.c.b16 %v2405, %v2404
  %v3144 = vpack.c.b16 %v2407, %v2406
  %v3145 = vpack.c.b16 %v2409, %v2408
  %v3146 = vpack.c.b16 %v2411, %v2410
  %v3147 = vpack.c.b16 %v2413, %v2412
  %v3148 = vpack.c.b16 %v2415, %v2414
  %v3149 = vpack.c.b16 %v2417, %v2416
  %v3150 = vpack.c.b16 %v2419, %v2418
  %v3151 = vpack.c.b16 %v2421, %v2420
  %v3152 = vpack.c.b16 %v2423, %v2422
  %v3153 = vpack.c.b16 %v2425, %v2424
  %v3154 = vpack.c.b16 %v2427, %v2426
  %v3155 = vpack.c.b16 %v2429, %v2428
  %v3156 = vpack.c.b16 %v2431, %v2430
  %v3157 = vpack.c.b16 %v2433, %v2432
  %v3158 = vpack.c.b16 %v2435, %v2434
  %v3159 = vpack.c.b16 %v2437, %v2436
  %v3160 = vpack.c.b16 %v2439, %v2438
  %v3161 = vpack.c.b16 %v2441, %v2440
  %v3162 = vpack.c.b16 %v2443, %v2442
  %v3163 = vpack.c.b16 %v2445, %v2444
  %v3164 = vpack.c.b16 %v2447, %v2446
  %v3165 = vpack.c.b16 %v2449, %v2448
  %v3166 = vpack.c.b16 %v2451, %v2450
  %v3167 = vpack.c.b16 %v2453, %v2452
  %v3168 = vpack.c.b16 %v2455, %v2454
  %v3169 = vpack.c.b16 %v2457, %v2456
  %v3170 = vpack.c.b16 %v2459, %v2458
  %v3171 = vpack.c.b16 %v2461, %v2460
  %v3172 = vpack.c.b16 %v2463, %v2462
  %v3173 = vpack.c.b16 %v2465, %v2464
  %v3174 = vpack.c.b16 %v2467, %v2466
  %v3175 = vpack.c.b16 %v2469, %v2468
  %v3176 = vpack.c.b16 %v2471, %v2470
  %v3177 = vpack.c.b16 %v2473, %v2472
  %v3178 = vpack.c.b16 %v2475, %v2474
  %v3179 = vpack.c.b16 %v2477, %v2476
  %v3180 = vpack.c.b16 %v2479, %v2478
  %v3181 = vpack.c.b16 %v2481, %v2480
  %v3182 = vpack.c.b16 %v2483, %v2482
  %v3183 = vpack.c.b16 %v2485, %v2484
  %v3184 = vpack.c.b16 %v2487, %v2486
  %v3185 = vpack.c.b16 %v2489, %v2488
  %v3186 = vpack.c.b16 %v2491, %v2490
  %v3187 = vpack.c.b16 %v2493, %v2492
  %v3188 = vpack.c.b16 %v2495, %v2494
  %v3189 = vpack.c.b16 %v2497, %v2496
  %v3190 = vpack.c.b16 %v2499, %v2498
  %v3191 = vpack.c.b16 %v2501, %v2500
  %v3192 = vpack.c.b16 %v2503, %v2502
  %v3193 = vpack.c.b16 %v2505, %v2504
  %v3194 = vpack.c.b16 %v2507, %v2506
  %v3195 = vpack.c.b16 %v2509, %v2508
  %v3196 = vpack.c.b16 %v2511, %v2510
  %v3197 = vpack.c.b16 %v2513, %v2512
  %v3198 = vpack.c.b16 %v2515, %v2514
  %v3199 = vpack.c.b16 %v2517, %v2516
  %v3200 = vpack.c.b16 %v2519, %v2518
  %v3201 = vpack.c.b16 %v2521, %v2520
  %v3202 = vpack.c.b16 %v2523, %v2522
  %v3203 = vpack.c.b16 %v2525, %v2524
  %v3204 = vpack.c.b16 %v2527, %v2526
  %v3205 = vpack.c.b16 %v2529, %v2528
  %v3206 = vpack.c.b16 %v2531, %v2530
  %v3207 = vpack.c.b16 %v2533, %v2532
  %v3208 = vpack.c.b16 %v2535, %v2534
  %v3209 = vpack.c.b16 %v2537, %v2536
  %v3210 = vpack.c.b16 %v2539, %v2538
  %v3211 = vpack.c.b16 %v2541, %v2540
  %v3212 = vpack.c.b16 %v2543, %v2542
  %v3213 = vpack.c.b16 %v2545, %v2544
  %v3214 = vpack.c.b16 %v2547, %v2546
  %v3215 = vpack.c.b16 %v2549, %v2548
  %v3216 = vpack.c.b16 %v2551, %v2550
  %v3217 = vpack.c.b16 %v2553, %v2552
  %v3218 = vpack.c.b16 %v2555, %v2554
  %v3219 = vpack.c.b16 %v2557, %v2556
  %v3220 = vpack.c.b16 %v2559, %v2558
  %v3221 = vpack.c.b16 %v2561, %v2560
  %v3222 = vpack.c.b16 %v2563, %v2562
  %v3223 = vpack.c.b16 %v2565, %v2564
  %v3224 = vpack.c.b16 %v2567, %v2566
  %v3225 = vpack.c.b16 %v2569, %v2568
  %v3226 = vpack.c.b16 %v2571, %v2570
  %v3227 = vpack.c.b16 %v2573, %v2572
  %v3228 = vpack.c.b16 %v2575, %v2574
  %v3229 = vpack.c.b16 %v2577, %v2576
  %v3230 = vpack.c.b16 %v2579, %v2578
  %v3231 = vpack.c.b16 %v2581, %v2580
  %v3232 = vpack.c.b16 %v2583, %v2582
  %v3233 = vpack.c.b16 %v2585, %v2584
  %v3234 = vpack.c.b16 %v2587, %v2586
  %v3235 = vpack.c.b16 %v2589, %v2588
  %v3236 = vpack.c.b16 %v2591, %v2590
  %v3237 = vpack.c.b16 %v2593, %v2592
  %v3238 = vpack.c.b16 %v2595, %v2594
  %v3239 = vpack.c.b16 %v2597, %v2596
  %v3240 = vpack.c.b16 %v2599, %v2598
  %v3241 = vpack.c.b16 %v2601, %v2600
  %v3242 = vpack.c.b16 %v2603, %v2602
  %v3243 = vpack.c.b16 %v2605, %v2604
  %v3244 = vpack.c.b16 %v2607, %v2606
  %v3245 = vpack.c.b16 %v2609, %v2608
  %v3246 = vpack.c.b16 %v2611, %v2610
  %v3247 = vpack.c.b16 %v2613, %v2612
  %v3248 = vpack.c.b16 %v2615, %v2614
  %v3249 = vpack.c.b16 %v2617, %v2616
  %v3250 = vpack.c.b16 %v2619, %v2618
  %v3251 = vpack.c.b16 %v2621, %v2620
  %v3252 = vpack.c.b16 %v2623, %v2622
  %v3253 = vpack.c.b16 %v2625, %v2624
  %v3254 = vpack.c.b16 %v2627, %v2626
  %v3255 = vpack.c.b16 %v2629, %v2628
  %v3256 = vpack.c.b16 %v2631, %v2630
  %v3257 = vpack.c.b16 %v2633, %v2632
  %v3258 = vpack.c.b16 %v2635, %v2634
  %v3259 = vpack.c.b16 %v2637, %v2636
  %v3260 = vpack.c.b16 %v2639, %v2638
  %v3261 = vpack.c.b16 %v2641, %v2640
  %v3262 = vpack.c.b16 %v2643, %v2642
  %v3263 = vpack.c.b16 %v2645, %v2644
  %v3264 = vpack.c.b16 %v2647, %v2646
  %v3265 = vpack.c.b16 %v2649, %v2648
  %v3266 = vpack.c.b16 %v2651, %v2650
  %v3267 = vpack.c.b16 %v2653, %v2652
  %v3268 = vpack.c.b16 %v2655, %v2654
  %v3269 = vpack.c.b16 %v2657, %v2656
  %v3270 = vpack.c.b16 %v2659, %v2658
  %v3271 = vpack.c.b16 %v2661, %v2660
  %v3272 = vpack.c.b16 %v2663, %v2662
  %v3273 = vpack.c.b16 %v2665, %v2664
  %v3274 = vpack.c.b16 %v2667, %v2666
  %v3275 = vpack.c.b16 %v2669, %v2668
  %v3276 = vpack.c.b16 %v2671, %v2670
  %v3277 = vpack.c.b16 %v2673, %v2672
  %v3278 = vpack.c.b16 %v2675, %v2674
  %v3279 = vpack.c.b16 %v2677, %v2676
  %v3280 = vpack.c.b16 %v2679, %v2678
  %v3281 = vpack.c.b16 %v2681, %v2680
  %v3282 = vpack.c.b16 %v2683, %v2682
  %v3283 = vpack.c.b16 %v2685, %v2684
  %v3284 = vpack.c.b16 %v2687, %v2686
  %v3285 = vpack.c.b16 %v2689, %v2688
  %v3286 = vpack.c.b16 %v2691, %v2690
  %v3287 = vpack.c.b16 %v2693, %v2692
  %v3288 = vpack.c.b16 %v2695, %v2694
  %v3289 = vpack.c.b16 %v2697, %v2696
  %v3290 = vpack.c.b16 %v2699, %v2698
  %v3291 = vpack.c.b16 %v2701, %v2700
  %v3292 = vpack.c.b16 %v2703, %v2702
  %v3293 = vpack.c.b16 %v2705, %v2704
  %v3294 = vpack.c.b16 %v2707, %v2706
  %v3295 = vpack.c.b16 %v2709, %v2708
  %v3296 = vpack.c.b16 %v2711, %v2710
  %v3297 = vpack.c.b16 %v2713, %v2712
  %v3298 = vpack.c.b16 %v2715, %v2714
  %v3299 = vpack.c.b16 %v2717, %v2716
  %v3300 = vpack.c.b16 %v2719, %v2718
  %v3301 = vpack.c.b16 %v2721, %v2720
  %v3302 = vpack.c.b16 %v2723, %v2722
  %v3303 = vpack.c.b16 %v2725, %v2724
  %v3304 = vpack.c.b16 %v2727, %v2726
  %v3305 = vpack.c.b16 %v2729, %v2728
  %v3306 = vpack.c.b16 %v2731, %v2730
  %v3307 = vpack.c.b16 %v2733, %v2732
  %v3308 = vpack.c.b16 %v2735, %v2734
  %v3309 = vpack.c.b16 %v2737, %v2736
  %v3310 = vpack.c.b16 %v2739, %v2738
  %v3311 = vpack.c.b16 %v2741, %v2740
  %v3312 = vpack.c.b16 %v2743, %v2742
  %v3313 = vpack.c.b16 %v2745, %v2744
  %v3314 = vpack.c.b16 %v2747, %v2746
  %v3315 = vpack.c.b16 %v2749, %v2748
  %v3316 = vpack.c.b16 %v2751, %v2750
  %v3317 = vpack.c.b16 %v2753, %v2752
  %v3318 = vpack.c.b16 %v2755, %v2754
  %v3319 = vpack.c.b16 %v2757, %v2756
  %v3320 = vpack.c.b16 %v2759, %v2758
  %v3321 = vpack.c.b16 %v2761, %v2760
  %v3322 = vpack.c.b16 %v2763, %v2762
  %v3323 = vpack.c.b16 %v2765, %v2764
  %v3324 = vpack.c.b16 %v2767, %v2766
  %v3325 = vpack.c.b16 %v2769, %v2768
  %v3326 = vpack.c.b16 %v2771, %v2770
  %v3327 = vpack.c.b16 %v2773, %v2772
  %v3328 = vpack.c.b16 %v2775, %v2774
  %v3329 = vpack.c.b16 %v2777, %v2776
  %v3330 = vpack.c.b16 %v2779, %v2778
  %v3331 = vpack.c.b16 %v2781, %v2780
  %v3332 = vpack.c.b16 %v2783, %v2782
  %v3333 = vpack.c.b16 %v2785, %v2784
  %v3334 = vpack.c.b16 %v2787, %v2786
  %v3335 = vpack.c.b16 %v2789, %v2788
  %v3336 = vpack.c.b16 %v2791, %v2790
  %v3337 = vpack.c.b16 %v2793, %v2792
  %v3338 = vpack.c.b16 %v2795, %v2794
  %v3339 = vpack.c.b16 %v2797, %v2796
  %v3340 = vpack.c.b16 %v2799, %v2798
  %v3341 = vpack.c.b16 %v2801, %v2800
  %v3342 = vpack.c.b16 %v2803, %v2802
  %v3343 = vpack.c.b16 %v2805, %v2804
  %v3344 = vpack.c.b16 %v2807, %v2806
  %v3345 = vpack.c.b16 %v2809, %v2808
  %v3346 = vpack.c.b16 %v2811, %v2810
  %v3347 = vpack.c.b16 %v2813, %v2812
  %v3348 = vpack.c.b16 %v2815, %v2814
  %v3349 = vpack.c.b16 %v2817, %v2816
  %v3350 = vpack.c.b16 %v2819, %v2818
  %v3351 = vpack.c.b16 %v2821, %v2820
  %v3352 = vpack.c.b16 %v2823, %v2822
  %v3353 = vpack.c.b16 %v2825, %v2824
  %v3354 = vpack.c.b16 %v2827, %v2826
  %v3355 = vpack.c.b16 %v2829, %v2828
  %v3356 = vpack.c.b16 %v2831, %v2830
  %v3357 = vpack.c.b16 %v2833, %v2832
  %v3358 = vpack.c.b16 %v2835, %v2834
  %v3359 = vpack.c.b16 %v2837, %v2836
  %v3360 = vpack.c.b16 %v2839, %v2838
  %v3361 = vpack.c.b16 %v2841, %v2840
  %v3362 = vpack.c.b16 %v2843, %v2842
  %v3363 = vpack.c.b16 %v2845, %v2844
  %v3364 = vpack.c.b16 %v2847, %v2846
  %v3365 = vpack.c.b16 %v2849, %v2848
  %v3366 = vpack.c.b16 %v2851, %v2850
  %v3367 = vpack.c.b16 %v2853, %v2852
  %v3368 = vpack.c.b16 %v2855, %v2854
  %v3369 = vpack.c.b16 %v2857, %v2856
  %v3370 = vpack.c.b16 %v2859, %v2858
  %v3371 = vpack.c.b16 %v2861, %v2860
  %v3372 = vpack.c.b16 %v2863, %v2862
  %v3373 = vpack.c.b16 %v2865, %v2864
  %v3374 = vpack.c.b16 %v2867, %v2866
  %v3375 = vpack.c.b16 %v2869, %v2868
  %v3376 = vpack.c.b16 %v2871, %v2870
  %v3377 = vpack.c.b16 %v2873, %v2872
  %v3378 = vpack.c.b16 %v2875, %v2874
  %v3379 = vpack.c.b16 %v2877, %v2876
  %v3380 = vpack.c.b16 %v2879, %v2878
  %v3381 = vpack.c.b16 %v2881, %v2880
  %v3382 = vpack.c.b16 %v2883, %v2882
  %v3383 = vpack.c.b16 %v2885, %v2884
  %v3384 = vpack.c.b16 %v2887, %v2886
  %v3385 = vpack.c.b16 %v2889, %v2888
  %v3386 = vpack.c.b16 %v2891, %v2890
  %v3387 = vpack.c.b16 %v2893, %v2892
  %v3388 = vpack.c.b16 %v2895, %v2894
  %v3389 = vpack.c.b16 %v2897, %v2896
  %v3390 = vpack.c.b16 %v2899, %v2898
  %v3391 = vpack.c.b16 %v2901, %v2900
  %v3392 = vpack.c.b16 %v2903, %v2902
  %v3393 = vpack.c.b16 %v2905, %v2904
  %v3394 = vpack.c.b16 %v2907, %v2906
  %v3395 = vpack.c.b16 %v2909, %v2908
  %v3396 = vpack.c.b16 %v2911, %v2910
  %v3397 = vpack.c.b16 %v2913, %v2912
  %v3398 = vpack.c.b16 %v2915, %v2914
  %v3399 = vpack.c.b16 %v2917, %v2916
  %v3400 = vpack.c.b16 %v2919, %v2918
  %v3401 = vpack.c.b16 %v2921, %v2920
  %v3402 = vpack.c.b16 %v2923, %v2922
  %v3403 = vpack.c.b16 %v2925, %v2924
  %v3404 = vpack.c.b16 %v2927, %v2926
  %v3405 = vpack.c.b16 %v2929, %v2928
  %v3406 = vpack.c.b16 %v2931, %v2930
  %v3407 = vpack.c.b16 %v2933, %v2932
  %v3408 = vpack.c.b16 %v2935, %v2934
  %v3409 = vpack.c.b16 %v2937, %v2936
  %v3410 = vpack.c.b16 %v2939, %v2938
  %v3411 = vpack.c.b16 %v2941, %v2940
  %v3412 = vpack.c.b16 %v2943, %v2942
  %v3413 = vpack.c.b16 %v2945, %v2944
  %v3414 = vpack.c.b16 %v2947, %v2946
  %v3415 = vpack.c.b16 %v2949, %v2948
  %v3416 = vpack.c.b16 %v2951, %v2950
  %v3417 = vpack.c.b16 %v2953, %v2952
  %v3418 = vpack.c.b16 %v2955, %v2954
  %v3419 = vpack.c.b16 %v2957, %v2956
  %v3420 = vpack.c.b16 %v2959, %v2958
  %v3421 = vpack.c.b16 %v2961, %v2960
  %v3422 = vpack.c.b16 %v2963, %v2962
  %v3423 = vpack.c.b16 %v2965, %v2964
  %v3424 = vpack.c.b16 %v2967, %v2966
  %v3425 = vpack.c.b16 %v2969, %v2968
  %v3426 = vpack.c.b16 %v2971, %v2970
  %v3427 = vpack.c.b16 %v2973, %v2972
  %v3428 = vpack.c.b16 %v2975, %v2974
  %v3429 = vpack.c.b16 %v2977, %v2976
  %v3430 = vpack.c.b16 %v2979, %v2978
  %v3431 = vpack.c.b16 %v2981, %v2980
  %v3432 = vpack.c.b16 %v2983, %v2982
  %v3433 = vpack.c.b16 %v2985, %v2984
  %v3434 = vpack.c.b16 %v2987, %v2986
  %v3435 = vpack.c.b16 %v2989, %v2988
  %v3436 = vpack.c.b16 %v2991, %v2990
  %v3437 = vpack.c.b16 %v2993, %v2992
  %v3438 = vpack.c.b16 %v2995, %v2994
  %v3439 = vpack.c.b16 %v2997, %v2996
  %v3440 = vpack.c.b16 %v2999, %v2998
  %vm3882 = vcmask 130048
  %v3884 = vsel %vm3882, %v1180, 0
  %3886 = vmatpush.bf16.msra.mxu0 %v3007
  %3887 = vmatpush.bf16.msra.mxu0 %v3006
  %3888 = vmatpush.bf16.msra.mxu0 %v3005
  %3889 = vmatpush.bf16.msra.mxu0 %v3004
  %3890 = vmatpush.bf16.msra.mxu0 %v3003
  %3891 = vmatpush.bf16.msra.mxu0 %v3002
  %3892 = vmatpush.bf16.msra.mxu0 %v3001
  %3893 = vmatpush.bf16.msra.mxu0 %v3000
  %3894 = vmatmul.bf16.gmra.mxu0 %v1125
  %v3895 = vpop.f32.mrf.mxu0
  %v3896 = vadd.f32 %v955, %v3895
  %v3897 = vpop.f32.mrf.mxu0
  %v3898 = vadd.f32 %v955, %v3897
  %3899 = vdwg.mxu0
  %3900 = vmatpush.bf16.msra.mxu0 %v3015
  %3901 = vmatpush.bf16.msra.mxu0 %v3014
  %3902 = vmatpush.bf16.msra.mxu0 %v3013
  %3903 = vmatpush.bf16.msra.mxu0 %v3012
  %3904 = vmatpush.bf16.msra.mxu0 %v3011
  %3905 = vmatpush.bf16.msra.mxu0 %v3010
  %3906 = vmatpush.bf16.msra.mxu0 %v3009
  %3907 = vmatpush.bf16.msra.mxu0 %v3008
  %3908 = vmatmul.bf16.gmra.mxu0 %v1126
  %v3909 = vpop.f32.mrf.mxu0
  %v3910 = vadd.f32 %v3896, %v3909
  %v3911 = vpop.f32.mrf.mxu0
  %v3912 = vadd.f32 %v3898, %v3911
  %3913 = vdwg.mxu0
  %3914 = vmatpush.bf16.msra.mxu0 %v3023
  %3915 = vmatpush.bf16.msra.mxu0 %v3022
  %3916 = vmatpush.bf16.msra.mxu0 %v3021
  %3917 = vmatpush.bf16.msra.mxu0 %v3020
  %3918 = vmatpush.bf16.msra.mxu0 %v3019
  %3919 = vmatpush.bf16.msra.mxu0 %v3018
  %3920 = vmatpush.bf16.msra.mxu0 %v3017
  %3921 = vmatpush.bf16.msra.mxu0 %v3016
  %3922 = vmatmul.bf16.gmra.mxu0 %v1127
  %v3923 = vpop.f32.mrf.mxu0
  %v3924 = vadd.f32 %v3910, %v3923
  %v3925 = vpop.f32.mrf.mxu0
  %v3926 = vadd.f32 %v3912, %v3925
  %3927 = vdwg.mxu0
  %3928 = vmatpush.bf16.msra.mxu0 %v3031
  %3929 = vmatpush.bf16.msra.mxu0 %v3030
  %3930 = vmatpush.bf16.msra.mxu0 %v3029
  %3931 = vmatpush.bf16.msra.mxu0 %v3028
  %3932 = vmatpush.bf16.msra.mxu0 %v3027
  %3933 = vmatpush.bf16.msra.mxu0 %v3026
  %3934 = vmatpush.bf16.msra.mxu0 %v3025
  %3935 = vmatpush.bf16.msra.mxu0 %v3024
  %3936 = vmatmul.bf16.gmra.mxu0 %v1128
  %v3937 = vpop.f32.mrf.mxu0
  %v3938 = vadd.f32 %v3924, %v3937
  %v3939 = vpop.f32.mrf.mxu0
  %v3940 = vadd.f32 %v3926, %v3939
  %3941 = vdwg.mxu0
  %3942 = vmatpush.bf16.msra.mxu0 %v3039
  %3943 = vmatpush.bf16.msra.mxu0 %v3038
  %3944 = vmatpush.bf16.msra.mxu0 %v3037
  %3945 = vmatpush.bf16.msra.mxu0 %v3036
  %3946 = vmatpush.bf16.msra.mxu0 %v3035
  %3947 = vmatpush.bf16.msra.mxu0 %v3034
  %3948 = vmatpush.bf16.msra.mxu0 %v3033
  %3949 = vmatpush.bf16.msra.mxu0 %v3032
  %3950 = vmatmul.bf16.gmra.mxu0 %v1129
  %v3951 = vpop.f32.mrf.mxu0
  %v3952 = vadd.f32 %v3938, %v3951
  %v3953 = vpop.f32.mrf.mxu0
  %v3954 = vadd.f32 %v3940, %v3953
  %3955 = vdwg.mxu0
  %3956 = vmatpush.bf16.msra.mxu0 %v3047
  %3957 = vmatpush.bf16.msra.mxu0 %v3046
  %3958 = vmatpush.bf16.msra.mxu0 %v3045
  %3959 = vmatpush.bf16.msra.mxu0 %v3044
  %3960 = vmatpush.bf16.msra.mxu0 %v3043
  %3961 = vmatpush.bf16.msra.mxu0 %v3042
  %3962 = vmatpush.bf16.msra.mxu0 %v3041
  %3963 = vmatpush.bf16.msra.mxu0 %v3040
  %3964 = vmatmul.bf16.gmra.mxu0 %v1130
  %v3965 = vpop.f32.mrf.mxu0
  %v3966 = vadd.f32 %v3952, %v3965
  %v3967 = vpop.f32.mrf.mxu0
  %v3968 = vadd.f32 %v3954, %v3967
  %3969 = vdwg.mxu0
  %3970 = vmatpush.bf16.msra.mxu0 %v3055
  %3971 = vmatpush.bf16.msra.mxu0 %v3054
  %3972 = vmatpush.bf16.msra.mxu0 %v3053
  %3973 = vmatpush.bf16.msra.mxu0 %v3052
  %3974 = vmatpush.bf16.msra.mxu0 %v3051
  %3975 = vmatpush.bf16.msra.mxu0 %v3050
  %3976 = vmatpush.bf16.msra.mxu0 %v3049
  %3977 = vmatpush.bf16.msra.mxu0 %v3048
  %3978 = vmatmul.bf16.gmra.mxu0 %v1131
  %v3979 = vpop.f32.mrf.mxu0
  %v3980 = vadd.f32 %v3966, %v3979
  %v3981 = vpop.f32.mrf.mxu0
  %v3982 = vadd.f32 %v3968, %v3981
  %3983 = vdwg.mxu0
  %3984 = vmatpush.bf16.msra.mxu0 %v3063
  %3985 = vmatpush.bf16.msra.mxu0 %v3062
  %3986 = vmatpush.bf16.msra.mxu0 %v3061
  %3987 = vmatpush.bf16.msra.mxu0 %v3060
  %3988 = vmatpush.bf16.msra.mxu0 %v3059
  %3989 = vmatpush.bf16.msra.mxu0 %v3058
  %3990 = vmatpush.bf16.msra.mxu0 %v3057
  %3991 = vmatpush.bf16.msra.mxu0 %v3056
  %3992 = vmatmul.bf16.gmra.mxu0 %v1132
  %v3993 = vpop.f32.mrf.mxu0
  %v3994 = vadd.f32 %v3980, %v3993
  %v3995 = vpop.f32.mrf.mxu0
  %v3996 = vadd.f32 %v3982, %v3995
  %3997 = vdwg.mxu0
  %3998 = vmatpush.bf16.msra.mxu0 %v3071
  %3999 = vmatpush.bf16.msra.mxu0 %v3070
  %4000 = vmatpush.bf16.msra.mxu0 %v3069
  %4001 = vmatpush.bf16.msra.mxu0 %v3068
  %4002 = vmatpush.bf16.msra.mxu0 %v3067
  %4003 = vmatpush.bf16.msra.mxu0 %v3066
  %4004 = vmatpush.bf16.msra.mxu0 %v3065
  %4005 = vmatpush.bf16.msra.mxu0 %v3064
  %4006 = vmatmul.bf16.gmra.mxu0 %v1133
  %v4007 = vpop.f32.mrf.mxu0
  %v4008 = vadd.f32 %v3994, %v4007
  %v4009 = vpop.f32.mrf.mxu0
  %v4010 = vadd.f32 %v3996, %v4009
  %4011 = vdwg.mxu0
  %4012 = vmatpush.bf16.msra.mxu0 %v3079
  %4013 = vmatpush.bf16.msra.mxu0 %v3078
  %4014 = vmatpush.bf16.msra.mxu0 %v3077
  %4015 = vmatpush.bf16.msra.mxu0 %v3076
  %4016 = vmatpush.bf16.msra.mxu0 %v3075
  %4017 = vmatpush.bf16.msra.mxu0 %v3074
  %4018 = vmatpush.bf16.msra.mxu0 %v3073
  %4019 = vmatpush.bf16.msra.mxu0 %v3072
  %4020 = vmatmul.bf16.gmra.mxu0 %v1134
  %v4021 = vpop.f32.mrf.mxu0
  %v4022 = vadd.f32 %v4008, %v4021
  %v4023 = vpop.f32.mrf.mxu0
  %v4024 = vadd.f32 %v4010, %v4023
  %4025 = vdwg.mxu0
  %4026 = vmatpush.bf16.msra.mxu0 %v3087
  %4027 = vmatpush.bf16.msra.mxu0 %v3086
  %4028 = vmatpush.bf16.msra.mxu0 %v3085
  %4029 = vmatpush.bf16.msra.mxu0 %v3084
  %4030 = vmatpush.bf16.msra.mxu0 %v3083
  %4031 = vmatpush.bf16.msra.mxu0 %v3082
  %4032 = vmatpush.bf16.msra.mxu0 %v3081
  %4033 = vmatpush.bf16.msra.mxu0 %v3080
  %4034 = vmatmul.bf16.gmra.mxu0 %v1135
  %v4035 = vpop.f32.mrf.mxu0
  %v4036 = vadd.f32 %v4022, %v4035
  %v4037 = vpop.f32.mrf.mxu0
  %v4038 = vadd.f32 %v4024, %v4037
  %4039 = vdwg.mxu0
  %4040 = vmatpush.bf16.msra.mxu0 %v3095
  %4041 = vmatpush.bf16.msra.mxu0 %v3094
  %4042 = vmatpush.bf16.msra.mxu0 %v3093
  %4043 = vmatpush.bf16.msra.mxu0 %v3092
  %4044 = vmatpush.bf16.msra.mxu0 %v3091
  %4045 = vmatpush.bf16.msra.mxu0 %v3090
  %4046 = vmatpush.bf16.msra.mxu0 %v3089
  %4047 = vmatpush.bf16.msra.mxu0 %v3088
  %4048 = vmatmul.bf16.gmra.mxu0 %v1136
  %v4049 = vpop.f32.mrf.mxu0
  %v4050 = vadd.f32 %v4036, %v4049
  %v4051 = vpop.f32.mrf.mxu0
  %v4052 = vadd.f32 %v4038, %v4051
  %4053 = vdwg.mxu0
  %4054 = vmatpush.bf16.msra.mxu0 %v3103
  %4055 = vmatpush.bf16.msra.mxu0 %v3102
  %4056 = vmatpush.bf16.msra.mxu0 %v3101
  %4057 = vmatpush.bf16.msra.mxu0 %v3100
  %4058 = vmatpush.bf16.msra.mxu0 %v3099
  %4059 = vmatpush.bf16.msra.mxu0 %v3098
  %4060 = vmatpush.bf16.msra.mxu0 %v3097
  %4061 = vmatpush.bf16.msra.mxu0 %v3096
  %4062 = vmatmul.bf16.gmra.mxu0 %v1137
  %v4063 = vpop.f32.mrf.mxu0
  %v4064 = vadd.f32 %v4050, %v4063
  %v4065 = vpop.f32.mrf.mxu0
  %v4066 = vadd.f32 %v4052, %v4065
  %4067 = vdwg.mxu0
  %4068 = vmatpush.bf16.msra.mxu0 %v3111
  %4069 = vmatpush.bf16.msra.mxu0 %v3110
  %4070 = vmatpush.bf16.msra.mxu0 %v3109
  %4071 = vmatpush.bf16.msra.mxu0 %v3108
  %4072 = vmatpush.bf16.msra.mxu0 %v3107
  %4073 = vmatpush.bf16.msra.mxu0 %v3106
  %4074 = vmatpush.bf16.msra.mxu0 %v3105
  %4075 = vmatpush.bf16.msra.mxu0 %v3104
  %4076 = vmatmul.bf16.gmra.mxu0 %v1138
  %v4077 = vpop.f32.mrf.mxu0
  %v4078 = vadd.f32 %v4064, %v4077
  %v4079 = vpop.f32.mrf.mxu0
  %v4080 = vadd.f32 %v4066, %v4079
  %4081 = vdwg.mxu0
  %4082 = vmatpush.bf16.msra.mxu0 %v3119
  %4083 = vmatpush.bf16.msra.mxu0 %v3118
  %4084 = vmatpush.bf16.msra.mxu0 %v3117
  %4085 = vmatpush.bf16.msra.mxu0 %v3116
  %4086 = vmatpush.bf16.msra.mxu0 %v3115
  %4087 = vmatpush.bf16.msra.mxu0 %v3114
  %4088 = vmatpush.bf16.msra.mxu0 %v3113
  %4089 = vmatpush.bf16.msra.mxu0 %v3112
  %4090 = vmatmul.bf16.gmra.mxu0 %v1139
  %v4091 = vpop.f32.mrf.mxu0
  %v4092 = vadd.f32 %v4078, %v4091
  %v4093 = vpop.f32.mrf.mxu0
  %v4094 = vadd.f32 %v4080, %v4093
  %4095 = vdwg.mxu0
  %4096 = vmatpush.bf16.msra.mxu0 %v3127
  %4097 = vmatpush.bf16.msra.mxu0 %v3126
  %4098 = vmatpush.bf16.msra.mxu0 %v3125
  %4099 = vmatpush.bf16.msra.mxu0 %v3124
  %4100 = vmatpush.bf16.msra.mxu0 %v3123
  %4101 = vmatpush.bf16.msra.mxu0 %v3122
  %4102 = vmatpush.bf16.msra.mxu0 %v3121
  %4103 = vmatpush.bf16.msra.mxu0 %v3120
  %4104 = vmatmul.bf16.gmra.mxu0 %v1140
  %v4105 = vpop.f32.mrf.mxu0
  %v4106 = vadd.f32 %v4092, %v4105
  %v4107 = vpop.f32.mrf.mxu0
  %v4108 = vadd.f32 %v4094, %v4107
  %4109 = vdwg.mxu0
  %4110 = vmatpush.bf16.msra.mxu0 %v3135
  %4111 = vmatpush.bf16.msra.mxu0 %v3134
  %4112 = vmatpush.bf16.msra.mxu0 %v3133
  %4113 = vmatpush.bf16.msra.mxu0 %v3132
  %4114 = vmatpush.bf16.msra.mxu0 %v3131
  %4115 = vmatpush.bf16.msra.mxu0 %v3130
  %4116 = vmatpush.bf16.msra.mxu0 %v3129
  %4117 = vmatpush.bf16.msra.mxu0 %v3128
  %4118 = vmatmul.bf16.gmra.mxu0 %v1141
  %v4119 = vpop.f32.mrf.mxu0
  %v4120 = vadd.f32 %v4106, %v4119
  %v4121 = vpop.f32.mrf.mxu0
  %v4122 = vadd.f32 %v4108, %v4121
  %4123 = vdwg.mxu0
  %4124 = vmatpush.bf16.msra.mxu0 %v3143
  %4125 = vmatpush.bf16.msra.mxu0 %v3142
  %4126 = vmatpush.bf16.msra.mxu0 %v3141
  %4127 = vmatpush.bf16.msra.mxu0 %v3140
  %4128 = vmatpush.bf16.msra.mxu0 %v3139
  %4129 = vmatpush.bf16.msra.mxu0 %v3138
  %4130 = vmatpush.bf16.msra.mxu0 %v3137
  %4131 = vmatpush.bf16.msra.mxu0 %v3136
  %4132 = vmatmul.bf16.gmra.mxu0 %v1142
  %v4133 = vpop.f32.mrf.mxu0
  %v4134 = vadd.f32 %v4120, %v4133
  %v4135 = vpop.f32.mrf.mxu0
  %v4136 = vadd.f32 %v4122, %v4135
  %4137 = vdwg.mxu0
  %4138 = vmatpush.bf16.msra.mxu0 %v3151
  %4139 = vmatpush.bf16.msra.mxu0 %v3150
  %4140 = vmatpush.bf16.msra.mxu0 %v3149
  %4141 = vmatpush.bf16.msra.mxu0 %v3148
  %4142 = vmatpush.bf16.msra.mxu0 %v3147
  %4143 = vmatpush.bf16.msra.mxu0 %v3146
  %4144 = vmatpush.bf16.msra.mxu0 %v3145
  %4145 = vmatpush.bf16.msra.mxu0 %v3144
  %4146 = vmatmul.bf16.gmra.mxu0 %v1143
  %v4147 = vpop.f32.mrf.mxu0
  %v4148 = vadd.f32 %v4134, %v4147
  %v4149 = vpop.f32.mrf.mxu0
  %v4150 = vadd.f32 %v4136, %v4149
  %4151 = vdwg.mxu0
  %4152 = vmatpush.bf16.msra.mxu0 %v3159
  %4153 = vmatpush.bf16.msra.mxu0 %v3158
  %4154 = vmatpush.bf16.msra.mxu0 %v3157
  %4155 = vmatpush.bf16.msra.mxu0 %v3156
  %4156 = vmatpush.bf16.msra.mxu0 %v3155
  %4157 = vmatpush.bf16.msra.mxu0 %v3154
  %4158 = vmatpush.bf16.msra.mxu0 %v3153
  %4159 = vmatpush.bf16.msra.mxu0 %v3152
  %4160 = vmatmul.bf16.gmra.mxu0 %v1144
  %v4161 = vpop.f32.mrf.mxu0
  %v4162 = vadd.f32 %v4148, %v4161
  %v4163 = vpop.f32.mrf.mxu0
  %v4164 = vadd.f32 %v4150, %v4163
  %4165 = vdwg.mxu0
  %4166 = vmatpush.bf16.msra.mxu0 %v3167
  %4167 = vmatpush.bf16.msra.mxu0 %v3166
  %4168 = vmatpush.bf16.msra.mxu0 %v3165
  %4169 = vmatpush.bf16.msra.mxu0 %v3164
  %4170 = vmatpush.bf16.msra.mxu0 %v3163
  %4171 = vmatpush.bf16.msra.mxu0 %v3162
  %4172 = vmatpush.bf16.msra.mxu0 %v3161
  %4173 = vmatpush.bf16.msra.mxu0 %v3160
  %4174 = vmatmul.bf16.gmra.mxu0 %v1145
  %v4175 = vpop.f32.mrf.mxu0
  %v4176 = vadd.f32 %v4162, %v4175
  %v4177 = vpop.f32.mrf.mxu0
  %v4178 = vadd.f32 %v4164, %v4177
  %4179 = vdwg.mxu0
  %4180 = vmatpush.bf16.msra.mxu0 %v3175
  %4181 = vmatpush.bf16.msra.mxu0 %v3174
  %4182 = vmatpush.bf16.msra.mxu0 %v3173
  %4183 = vmatpush.bf16.msra.mxu0 %v3172
  %4184 = vmatpush.bf16.msra.mxu0 %v3171
  %4185 = vmatpush.bf16.msra.mxu0 %v3170
  %4186 = vmatpush.bf16.msra.mxu0 %v3169
  %4187 = vmatpush.bf16.msra.mxu0 %v3168
  %4188 = vmatmul.bf16.gmra.mxu0 %v1146
  %v4189 = vpop.f32.mrf.mxu0
  %v4190 = vadd.f32 %v4176, %v4189
  %v4191 = vpop.f32.mrf.mxu0
  %v4192 = vadd.f32 %v4178, %v4191
  %4193 = vdwg.mxu0
  %4194 = vmatpush.bf16.msra.mxu0 %v3183
  %4195 = vmatpush.bf16.msra.mxu0 %v3182
  %4196 = vmatpush.bf16.msra.mxu0 %v3181
  %4197 = vmatpush.bf16.msra.mxu0 %v3180
  %4198 = vmatpush.bf16.msra.mxu0 %v3179
  %4199 = vmatpush.bf16.msra.mxu0 %v3178
  %4200 = vmatpush.bf16.msra.mxu0 %v3177
  %4201 = vmatpush.bf16.msra.mxu0 %v3176
  %4202 = vmatmul.bf16.gmra.mxu0 %v1147
  %v4203 = vpop.f32.mrf.mxu0
  %v4204 = vadd.f32 %v4190, %v4203
  %v4205 = vpop.f32.mrf.mxu0
  %v4206 = vadd.f32 %v4192, %v4205
  %4207 = vdwg.mxu0
  %4208 = vmatpush.bf16.msra.mxu0 %v3191
  %4209 = vmatpush.bf16.msra.mxu0 %v3190
  %4210 = vmatpush.bf16.msra.mxu0 %v3189
  %4211 = vmatpush.bf16.msra.mxu0 %v3188
  %4212 = vmatpush.bf16.msra.mxu0 %v3187
  %4213 = vmatpush.bf16.msra.mxu0 %v3186
  %4214 = vmatpush.bf16.msra.mxu0 %v3185
  %4215 = vmatpush.bf16.msra.mxu0 %v3184
  %4216 = vmatmul.bf16.gmra.mxu0 %v1148
  %v4217 = vpop.f32.mrf.mxu0
  %v4218 = vadd.f32 %v4204, %v4217
  %v4219 = vpop.f32.mrf.mxu0
  %v4220 = vadd.f32 %v4206, %v4219
  %4221 = vdwg.mxu0
  %4222 = vmatpush.bf16.msra.mxu0 %v3199
  %4223 = vmatpush.bf16.msra.mxu0 %v3198
  %4224 = vmatpush.bf16.msra.mxu0 %v3197
  %4225 = vmatpush.bf16.msra.mxu0 %v3196
  %4226 = vmatpush.bf16.msra.mxu0 %v3195
  %4227 = vmatpush.bf16.msra.mxu0 %v3194
  %4228 = vmatpush.bf16.msra.mxu0 %v3193
  %4229 = vmatpush.bf16.msra.mxu0 %v3192
  %4230 = vmatmul.bf16.gmra.mxu0 %v1149
  %v4231 = vpop.f32.mrf.mxu0
  %v4232 = vadd.f32 %v4218, %v4231
  %v4233 = vpop.f32.mrf.mxu0
  %v4234 = vadd.f32 %v4220, %v4233
  %4235 = vdwg.mxu0
  %4236 = vmatpush.bf16.msra.mxu0 %v3207
  %4237 = vmatpush.bf16.msra.mxu0 %v3206
  %4238 = vmatpush.bf16.msra.mxu0 %v3205
  %4239 = vmatpush.bf16.msra.mxu0 %v3204
  %4240 = vmatpush.bf16.msra.mxu0 %v3203
  %4241 = vmatpush.bf16.msra.mxu0 %v3202
  %4242 = vmatpush.bf16.msra.mxu0 %v3201
  %4243 = vmatpush.bf16.msra.mxu0 %v3200
  %4244 = vmatmul.bf16.gmra.mxu0 %v1150
  %v4245 = vpop.f32.mrf.mxu0
  %v4246 = vadd.f32 %v4232, %v4245
  %v4247 = vpop.f32.mrf.mxu0
  %v4248 = vadd.f32 %v4234, %v4247
  %4249 = vdwg.mxu0
  %4250 = vmatpush.bf16.msra.mxu0 %v3215
  %4251 = vmatpush.bf16.msra.mxu0 %v3214
  %4252 = vmatpush.bf16.msra.mxu0 %v3213
  %4253 = vmatpush.bf16.msra.mxu0 %v3212
  %4254 = vmatpush.bf16.msra.mxu0 %v3211
  %4255 = vmatpush.bf16.msra.mxu0 %v3210
  %4256 = vmatpush.bf16.msra.mxu0 %v3209
  %4257 = vmatpush.bf16.msra.mxu0 %v3208
  %4258 = vmatmul.bf16.gmra.mxu0 %v1151
  %v4259 = vpop.f32.mrf.mxu0
  %v4260 = vadd.f32 %v4246, %v4259
  %v4261 = vpop.f32.mrf.mxu0
  %v4262 = vadd.f32 %v4248, %v4261
  %4263 = vdwg.mxu0
  %4264 = vmatpush.bf16.msra.mxu0 %v3223
  %4265 = vmatpush.bf16.msra.mxu0 %v3222
  %4266 = vmatpush.bf16.msra.mxu0 %v3221
  %4267 = vmatpush.bf16.msra.mxu0 %v3220
  %4268 = vmatpush.bf16.msra.mxu0 %v3219
  %4269 = vmatpush.bf16.msra.mxu0 %v3218
  %4270 = vmatpush.bf16.msra.mxu0 %v3217
  %4271 = vmatpush.bf16.msra.mxu0 %v3216
  %4272 = vmatmul.bf16.gmra.mxu0 %v1152
  %v4273 = vpop.f32.mrf.mxu0
  %v4274 = vadd.f32 %v4260, %v4273
  %v4275 = vpop.f32.mrf.mxu0
  %v4276 = vadd.f32 %v4262, %v4275
  %4277 = vdwg.mxu0
  %4278 = vmatpush.bf16.msra.mxu0 %v3231
  %4279 = vmatpush.bf16.msra.mxu0 %v3230
  %4280 = vmatpush.bf16.msra.mxu0 %v3229
  %4281 = vmatpush.bf16.msra.mxu0 %v3228
  %4282 = vmatpush.bf16.msra.mxu0 %v3227
  %4283 = vmatpush.bf16.msra.mxu0 %v3226
  %4284 = vmatpush.bf16.msra.mxu0 %v3225
  %4285 = vmatpush.bf16.msra.mxu0 %v3224
  %4286 = vmatmul.bf16.gmra.mxu0 %v1153
  %v4287 = vpop.f32.mrf.mxu0
  %v4288 = vadd.f32 %v4274, %v4287
  %v4289 = vpop.f32.mrf.mxu0
  %v4290 = vadd.f32 %v4276, %v4289
  %4291 = vdwg.mxu0
  %4292 = vmatpush.bf16.msra.mxu0 %v3239
  %4293 = vmatpush.bf16.msra.mxu0 %v3238
  %4294 = vmatpush.bf16.msra.mxu0 %v3237
  %4295 = vmatpush.bf16.msra.mxu0 %v3236
  %4296 = vmatpush.bf16.msra.mxu0 %v3235
  %4297 = vmatpush.bf16.msra.mxu0 %v3234
  %4298 = vmatpush.bf16.msra.mxu0 %v3233
  %4299 = vmatpush.bf16.msra.mxu0 %v3232
  %4300 = vmatmul.bf16.gmra.mxu0 %v1154
  %v4301 = vpop.f32.mrf.mxu0
  %v4302 = vadd.f32 %v4288, %v4301
  %v4303 = vpop.f32.mrf.mxu0
  %v4304 = vadd.f32 %v4290, %v4303
  %4305 = vdwg.mxu0
  %4306 = vmatpush.bf16.msra.mxu0 %v3247
  %4307 = vmatpush.bf16.msra.mxu0 %v3246
  %4308 = vmatpush.bf16.msra.mxu0 %v3245
  %4309 = vmatpush.bf16.msra.mxu0 %v3244
  %4310 = vmatpush.bf16.msra.mxu0 %v3243
  %4311 = vmatpush.bf16.msra.mxu0 %v3242
  %4312 = vmatpush.bf16.msra.mxu0 %v3241
  %4313 = vmatpush.bf16.msra.mxu0 %v3240
  %4314 = vmatmul.bf16.gmra.mxu0 %v1155
  %v4315 = vpop.f32.mrf.mxu0
  %v4316 = vadd.f32 %v4302, %v4315
  %v4317 = vpop.f32.mrf.mxu0
  %v4318 = vadd.f32 %v4304, %v4317
  %4319 = vdwg.mxu0
  %4320 = vmatpush.bf16.msra.mxu0 %v3255
  %4321 = vmatpush.bf16.msra.mxu0 %v3254
  %4322 = vmatpush.bf16.msra.mxu0 %v3253
  %4323 = vmatpush.bf16.msra.mxu0 %v3252
  %4324 = vmatpush.bf16.msra.mxu0 %v3251
  %4325 = vmatpush.bf16.msra.mxu0 %v3250
  %4326 = vmatpush.bf16.msra.mxu0 %v3249
  %4327 = vmatpush.bf16.msra.mxu0 %v3248
  %4328 = vmatmul.bf16.gmra.mxu0 %v1156
  %v4329 = vpop.f32.mrf.mxu0
  %v4330 = vadd.f32 %v4316, %v4329
  %v4331 = vpop.f32.mrf.mxu0
  %v4332 = vadd.f32 %v4318, %v4331
  %4333 = vdwg.mxu0
  %4334 = vmatpush.bf16.msra.mxu0 %v3263
  %4335 = vmatpush.bf16.msra.mxu0 %v3262
  %4336 = vmatpush.bf16.msra.mxu0 %v3261
  %4337 = vmatpush.bf16.msra.mxu0 %v3260
  %4338 = vmatpush.bf16.msra.mxu0 %v3259
  %4339 = vmatpush.bf16.msra.mxu0 %v3258
  %4340 = vmatpush.bf16.msra.mxu0 %v3257
  %4341 = vmatpush.bf16.msra.mxu0 %v3256
  %4342 = vmatmul.bf16.gmra.mxu0 %v1157
  %v4343 = vpop.f32.mrf.mxu0
  %v4344 = vadd.f32 %v4330, %v4343
  %v4345 = vpop.f32.mrf.mxu0
  %v4346 = vadd.f32 %v4332, %v4345
  %4347 = vdwg.mxu0
  %4348 = vmatpush.bf16.msra.mxu0 %v3271
  %4349 = vmatpush.bf16.msra.mxu0 %v3270
  %4350 = vmatpush.bf16.msra.mxu0 %v3269
  %4351 = vmatpush.bf16.msra.mxu0 %v3268
  %4352 = vmatpush.bf16.msra.mxu0 %v3267
  %4353 = vmatpush.bf16.msra.mxu0 %v3266
  %4354 = vmatpush.bf16.msra.mxu0 %v3265
  %4355 = vmatpush.bf16.msra.mxu0 %v3264
  %4356 = vmatmul.bf16.gmra.mxu0 %v1158
  %v4357 = vpop.f32.mrf.mxu0
  %v4358 = vadd.f32 %v4344, %v4357
  %v4359 = vpop.f32.mrf.mxu0
  %v4360 = vadd.f32 %v4346, %v4359
  %4361 = vdwg.mxu0
  %4362 = vmatpush.bf16.msra.mxu0 %v3279
  %4363 = vmatpush.bf16.msra.mxu0 %v3278
  %4364 = vmatpush.bf16.msra.mxu0 %v3277
  %4365 = vmatpush.bf16.msra.mxu0 %v3276
  %4366 = vmatpush.bf16.msra.mxu0 %v3275
  %4367 = vmatpush.bf16.msra.mxu0 %v3274
  %4368 = vmatpush.bf16.msra.mxu0 %v3273
  %4369 = vmatpush.bf16.msra.mxu0 %v3272
  %4370 = vmatmul.bf16.gmra.mxu0 %v1159
  %v4371 = vpop.f32.mrf.mxu0
  %v4372 = vadd.f32 %v4358, %v4371
  %v4373 = vpop.f32.mrf.mxu0
  %v4374 = vadd.f32 %v4360, %v4373
  %4375 = vdwg.mxu0
  %4376 = vmatpush.bf16.msra.mxu0 %v3287
  %4377 = vmatpush.bf16.msra.mxu0 %v3286
  %4378 = vmatpush.bf16.msra.mxu0 %v3285
  %4379 = vmatpush.bf16.msra.mxu0 %v3284
  %4380 = vmatpush.bf16.msra.mxu0 %v3283
  %4381 = vmatpush.bf16.msra.mxu0 %v3282
  %4382 = vmatpush.bf16.msra.mxu0 %v3281
  %4383 = vmatpush.bf16.msra.mxu0 %v3280
  %4384 = vmatmul.bf16.gmra.mxu0 %v1160
  %v4385 = vpop.f32.mrf.mxu0
  %v4386 = vadd.f32 %v4372, %v4385
  %v4387 = vpop.f32.mrf.mxu0
  %v4388 = vadd.f32 %v4374, %v4387
  %4389 = vdwg.mxu0
  %4390 = vmatpush.bf16.msra.mxu0 %v3295
  %4391 = vmatpush.bf16.msra.mxu0 %v3294
  %4392 = vmatpush.bf16.msra.mxu0 %v3293
  %4393 = vmatpush.bf16.msra.mxu0 %v3292
  %4394 = vmatpush.bf16.msra.mxu0 %v3291
  %4395 = vmatpush.bf16.msra.mxu0 %v3290
  %4396 = vmatpush.bf16.msra.mxu0 %v3289
  %4397 = vmatpush.bf16.msra.mxu0 %v3288
  %4398 = vmatmul.bf16.gmra.mxu0 %v1161
  %v4399 = vpop.f32.mrf.mxu0
  %v4400 = vadd.f32 %v4386, %v4399
  %v4401 = vpop.f32.mrf.mxu0
  %v4402 = vadd.f32 %v4388, %v4401
  %4403 = vdwg.mxu0
  %4404 = vmatpush.bf16.msra.mxu0 %v3303
  %4405 = vmatpush.bf16.msra.mxu0 %v3302
  %4406 = vmatpush.bf16.msra.mxu0 %v3301
  %4407 = vmatpush.bf16.msra.mxu0 %v3300
  %4408 = vmatpush.bf16.msra.mxu0 %v3299
  %4409 = vmatpush.bf16.msra.mxu0 %v3298
  %4410 = vmatpush.bf16.msra.mxu0 %v3297
  %4411 = vmatpush.bf16.msra.mxu0 %v3296
  %4412 = vmatmul.bf16.gmra.mxu0 %v1162
  %v4413 = vpop.f32.mrf.mxu0
  %v4414 = vadd.f32 %v4400, %v4413
  %v4415 = vpop.f32.mrf.mxu0
  %v4416 = vadd.f32 %v4402, %v4415
  %4417 = vdwg.mxu0
  %4418 = vmatpush.bf16.msra.mxu0 %v3311
  %4419 = vmatpush.bf16.msra.mxu0 %v3310
  %4420 = vmatpush.bf16.msra.mxu0 %v3309
  %4421 = vmatpush.bf16.msra.mxu0 %v3308
  %4422 = vmatpush.bf16.msra.mxu0 %v3307
  %4423 = vmatpush.bf16.msra.mxu0 %v3306
  %4424 = vmatpush.bf16.msra.mxu0 %v3305
  %4425 = vmatpush.bf16.msra.mxu0 %v3304
  %4426 = vmatmul.bf16.gmra.mxu0 %v1163
  %v4427 = vpop.f32.mrf.mxu0
  %v4428 = vadd.f32 %v4414, %v4427
  %v4429 = vpop.f32.mrf.mxu0
  %v4430 = vadd.f32 %v4416, %v4429
  %4431 = vdwg.mxu0
  %4432 = vmatpush.bf16.msra.mxu0 %v3319
  %4433 = vmatpush.bf16.msra.mxu0 %v3318
  %4434 = vmatpush.bf16.msra.mxu0 %v3317
  %4435 = vmatpush.bf16.msra.mxu0 %v3316
  %4436 = vmatpush.bf16.msra.mxu0 %v3315
  %4437 = vmatpush.bf16.msra.mxu0 %v3314
  %4438 = vmatpush.bf16.msra.mxu0 %v3313
  %4439 = vmatpush.bf16.msra.mxu0 %v3312
  %4440 = vmatmul.bf16.gmra.mxu0 %v1164
  %v4441 = vpop.f32.mrf.mxu0
  %v4442 = vadd.f32 %v4428, %v4441
  %v4443 = vpop.f32.mrf.mxu0
  %v4444 = vadd.f32 %v4430, %v4443
  %4445 = vdwg.mxu0
  %4446 = vmatpush.bf16.msra.mxu0 %v3327
  %4447 = vmatpush.bf16.msra.mxu0 %v3326
  %4448 = vmatpush.bf16.msra.mxu0 %v3325
  %4449 = vmatpush.bf16.msra.mxu0 %v3324
  %4450 = vmatpush.bf16.msra.mxu0 %v3323
  %4451 = vmatpush.bf16.msra.mxu0 %v3322
  %4452 = vmatpush.bf16.msra.mxu0 %v3321
  %4453 = vmatpush.bf16.msra.mxu0 %v3320
  %4454 = vmatmul.bf16.gmra.mxu0 %v1165
  %v4455 = vpop.f32.mrf.mxu0
  %v4456 = vadd.f32 %v4442, %v4455
  %v4457 = vpop.f32.mrf.mxu0
  %v4458 = vadd.f32 %v4444, %v4457
  %4459 = vdwg.mxu0
  %4460 = vmatpush.bf16.msra.mxu0 %v3335
  %4461 = vmatpush.bf16.msra.mxu0 %v3334
  %4462 = vmatpush.bf16.msra.mxu0 %v3333
  %4463 = vmatpush.bf16.msra.mxu0 %v3332
  %4464 = vmatpush.bf16.msra.mxu0 %v3331
  %4465 = vmatpush.bf16.msra.mxu0 %v3330
  %4466 = vmatpush.bf16.msra.mxu0 %v3329
  %4467 = vmatpush.bf16.msra.mxu0 %v3328
  %4468 = vmatmul.bf16.gmra.mxu0 %v1166
  %v4469 = vpop.f32.mrf.mxu0
  %v4470 = vadd.f32 %v4456, %v4469
  %v4471 = vpop.f32.mrf.mxu0
  %v4472 = vadd.f32 %v4458, %v4471
  %4473 = vdwg.mxu0
  %4474 = vmatpush.bf16.msra.mxu0 %v3343
  %4475 = vmatpush.bf16.msra.mxu0 %v3342
  %4476 = vmatpush.bf16.msra.mxu0 %v3341
  %4477 = vmatpush.bf16.msra.mxu0 %v3340
  %4478 = vmatpush.bf16.msra.mxu0 %v3339
  %4479 = vmatpush.bf16.msra.mxu0 %v3338
  %4480 = vmatpush.bf16.msra.mxu0 %v3337
  %4481 = vmatpush.bf16.msra.mxu0 %v3336
  %4482 = vmatmul.bf16.gmra.mxu0 %v1167
  %v4483 = vpop.f32.mrf.mxu0
  %v4484 = vadd.f32 %v4470, %v4483
  %v4485 = vpop.f32.mrf.mxu0
  %v4486 = vadd.f32 %v4472, %v4485
  %4487 = vdwg.mxu0
  %4488 = vmatpush.bf16.msra.mxu0 %v3351
  %4489 = vmatpush.bf16.msra.mxu0 %v3350
  %4490 = vmatpush.bf16.msra.mxu0 %v3349
  %4491 = vmatpush.bf16.msra.mxu0 %v3348
  %4492 = vmatpush.bf16.msra.mxu0 %v3347
  %4493 = vmatpush.bf16.msra.mxu0 %v3346
  %4494 = vmatpush.bf16.msra.mxu0 %v3345
  %4495 = vmatpush.bf16.msra.mxu0 %v3344
  %4496 = vmatmul.bf16.gmra.mxu0 %v1168
  %v4497 = vpop.f32.mrf.mxu0
  %v4498 = vadd.f32 %v4484, %v4497
  %v4499 = vpop.f32.mrf.mxu0
  %v4500 = vadd.f32 %v4486, %v4499
  %4501 = vdwg.mxu0
  %4502 = vmatpush.bf16.msra.mxu0 %v3359
  %4503 = vmatpush.bf16.msra.mxu0 %v3358
  %4504 = vmatpush.bf16.msra.mxu0 %v3357
  %4505 = vmatpush.bf16.msra.mxu0 %v3356
  %4506 = vmatpush.bf16.msra.mxu0 %v3355
  %4507 = vmatpush.bf16.msra.mxu0 %v3354
  %4508 = vmatpush.bf16.msra.mxu0 %v3353
  %4509 = vmatpush.bf16.msra.mxu0 %v3352
  %4510 = vmatmul.bf16.gmra.mxu0 %v1169
  %v4511 = vpop.f32.mrf.mxu0
  %v4512 = vadd.f32 %v4498, %v4511
  %v4513 = vpop.f32.mrf.mxu0
  %v4514 = vadd.f32 %v4500, %v4513
  %4515 = vdwg.mxu0
  %4516 = vmatpush.bf16.msra.mxu0 %v3367
  %4517 = vmatpush.bf16.msra.mxu0 %v3366
  %4518 = vmatpush.bf16.msra.mxu0 %v3365
  %4519 = vmatpush.bf16.msra.mxu0 %v3364
  %4520 = vmatpush.bf16.msra.mxu0 %v3363
  %4521 = vmatpush.bf16.msra.mxu0 %v3362
  %4522 = vmatpush.bf16.msra.mxu0 %v3361
  %4523 = vmatpush.bf16.msra.mxu0 %v3360
  %4524 = vmatmul.bf16.gmra.mxu0 %v1170
  %v4525 = vpop.f32.mrf.mxu0
  %v4526 = vadd.f32 %v4512, %v4525
  %v4527 = vpop.f32.mrf.mxu0
  %v4528 = vadd.f32 %v4514, %v4527
  %4529 = vdwg.mxu0
  %4530 = vmatpush.bf16.msra.mxu0 %v3375
  %4531 = vmatpush.bf16.msra.mxu0 %v3374
  %4532 = vmatpush.bf16.msra.mxu0 %v3373
  %4533 = vmatpush.bf16.msra.mxu0 %v3372
  %4534 = vmatpush.bf16.msra.mxu0 %v3371
  %4535 = vmatpush.bf16.msra.mxu0 %v3370
  %4536 = vmatpush.bf16.msra.mxu0 %v3369
  %4537 = vmatpush.bf16.msra.mxu0 %v3368
  %4538 = vmatmul.bf16.gmra.mxu0 %v1171
  %v4539 = vpop.f32.mrf.mxu0
  %v4540 = vadd.f32 %v4526, %v4539
  %v4541 = vpop.f32.mrf.mxu0
  %v4542 = vadd.f32 %v4528, %v4541
  %4543 = vdwg.mxu0
  %4544 = vmatpush.bf16.msra.mxu0 %v3383
  %4545 = vmatpush.bf16.msra.mxu0 %v3382
  %4546 = vmatpush.bf16.msra.mxu0 %v3381
  %4547 = vmatpush.bf16.msra.mxu0 %v3380
  %4548 = vmatpush.bf16.msra.mxu0 %v3379
  %4549 = vmatpush.bf16.msra.mxu0 %v3378
  %4550 = vmatpush.bf16.msra.mxu0 %v3377
  %4551 = vmatpush.bf16.msra.mxu0 %v3376
  %4552 = vmatmul.bf16.gmra.mxu0 %v1172
  %v4553 = vpop.f32.mrf.mxu0
  %v4554 = vadd.f32 %v4540, %v4553
  %v4555 = vpop.f32.mrf.mxu0
  %v4556 = vadd.f32 %v4542, %v4555
  %4557 = vdwg.mxu0
  %4558 = vmatpush.bf16.msra.mxu0 %v3391
  %4559 = vmatpush.bf16.msra.mxu0 %v3390
  %4560 = vmatpush.bf16.msra.mxu0 %v3389
  %4561 = vmatpush.bf16.msra.mxu0 %v3388
  %4562 = vmatpush.bf16.msra.mxu0 %v3387
  %4563 = vmatpush.bf16.msra.mxu0 %v3386
  %4564 = vmatpush.bf16.msra.mxu0 %v3385
  %4565 = vmatpush.bf16.msra.mxu0 %v3384
  %4566 = vmatmul.bf16.gmra.mxu0 %v1173
  %v4567 = vpop.f32.mrf.mxu0
  %v4568 = vadd.f32 %v4554, %v4567
  %v4569 = vpop.f32.mrf.mxu0
  %v4570 = vadd.f32 %v4556, %v4569
  %4571 = vdwg.mxu0
  %4572 = vmatpush.bf16.msra.mxu0 %v3399
  %4573 = vmatpush.bf16.msra.mxu0 %v3398
  %4574 = vmatpush.bf16.msra.mxu0 %v3397
  %4575 = vmatpush.bf16.msra.mxu0 %v3396
  %4576 = vmatpush.bf16.msra.mxu0 %v3395
  %4577 = vmatpush.bf16.msra.mxu0 %v3394
  %4578 = vmatpush.bf16.msra.mxu0 %v3393
  %4579 = vmatpush.bf16.msra.mxu0 %v3392
  %4580 = vmatmul.bf16.gmra.mxu0 %v1174
  %v4581 = vpop.f32.mrf.mxu0
  %v4582 = vadd.f32 %v4568, %v4581
  %v4583 = vpop.f32.mrf.mxu0
  %v4584 = vadd.f32 %v4570, %v4583
  %4585 = vdwg.mxu0
  %4586 = vmatpush.bf16.msra.mxu0 %v3407
  %4587 = vmatpush.bf16.msra.mxu0 %v3406
  %4588 = vmatpush.bf16.msra.mxu0 %v3405
  %4589 = vmatpush.bf16.msra.mxu0 %v3404
  %4590 = vmatpush.bf16.msra.mxu0 %v3403
  %4591 = vmatpush.bf16.msra.mxu0 %v3402
  %4592 = vmatpush.bf16.msra.mxu0 %v3401
  %4593 = vmatpush.bf16.msra.mxu0 %v3400
  %4594 = vmatmul.bf16.gmra.mxu0 %v1175
  %v4595 = vpop.f32.mrf.mxu0
  %v4596 = vadd.f32 %v4582, %v4595
  %v4597 = vpop.f32.mrf.mxu0
  %v4598 = vadd.f32 %v4584, %v4597
  %4599 = vdwg.mxu0
  %4600 = vmatpush.bf16.msra.mxu0 %v3415
  %4601 = vmatpush.bf16.msra.mxu0 %v3414
  %4602 = vmatpush.bf16.msra.mxu0 %v3413
  %4603 = vmatpush.bf16.msra.mxu0 %v3412
  %4604 = vmatpush.bf16.msra.mxu0 %v3411
  %4605 = vmatpush.bf16.msra.mxu0 %v3410
  %4606 = vmatpush.bf16.msra.mxu0 %v3409
  %4607 = vmatpush.bf16.msra.mxu0 %v3408
  %4608 = vmatmul.bf16.gmra.mxu0 %v1176
  %v4609 = vpop.f32.mrf.mxu0
  %v4610 = vadd.f32 %v4596, %v4609
  %v4611 = vpop.f32.mrf.mxu0
  %v4612 = vadd.f32 %v4598, %v4611
  %4613 = vdwg.mxu0
  %4614 = vmatpush.bf16.msra.mxu0 %v3423
  %4615 = vmatpush.bf16.msra.mxu0 %v3422
  %4616 = vmatpush.bf16.msra.mxu0 %v3421
  %4617 = vmatpush.bf16.msra.mxu0 %v3420
  %4618 = vmatpush.bf16.msra.mxu0 %v3419
  %4619 = vmatpush.bf16.msra.mxu0 %v3418
  %4620 = vmatpush.bf16.msra.mxu0 %v3417
  %4621 = vmatpush.bf16.msra.mxu0 %v3416
  %4622 = vmatmul.bf16.gmra.mxu0 %v1177
  %v4623 = vpop.f32.mrf.mxu0
  %v4624 = vadd.f32 %v4610, %v4623
  %v4625 = vpop.f32.mrf.mxu0
  %v4626 = vadd.f32 %v4612, %v4625
  %4627 = vdwg.mxu0
  %4628 = vmatpush.bf16.msra.mxu0 %v3431
  %4629 = vmatpush.bf16.msra.mxu0 %v3430
  %4630 = vmatpush.bf16.msra.mxu0 %v3429
  %4631 = vmatpush.bf16.msra.mxu0 %v3428
  %4632 = vmatpush.bf16.msra.mxu0 %v3427
  %4633 = vmatpush.bf16.msra.mxu0 %v3426
  %4634 = vmatpush.bf16.msra.mxu0 %v3425
  %4635 = vmatpush.bf16.msra.mxu0 %v3424
  %4636 = vmatmul.bf16.gmra.mxu0 %v1178
  %v4637 = vpop.f32.mrf.mxu0
  %v4638 = vadd.f32 %v4624, %v4637
  %v4639 = vpop.f32.mrf.mxu0
  %v4640 = vadd.f32 %v4626, %v4639
  %4641 = vdwg.mxu0
  %4642 = vmatpush.bf16.msra.mxu0 %v3439
  %4643 = vmatpush.bf16.msra.mxu0 %v3438
  %4644 = vmatpush.bf16.msra.mxu0 %v3437
  %4645 = vmatpush.bf16.msra.mxu0 %v3436
  %4646 = vmatpush.bf16.msra.mxu0 %v3435
  %4647 = vmatpush.bf16.msra.mxu0 %v3434
  %4648 = vmatpush.bf16.msra.mxu0 %v3433
  %4649 = vmatpush.bf16.msra.mxu0 %v3432
  %4650 = vmatmul.bf16.gmra.mxu0 %v1179
  %v4651 = vpop.f32.mrf.mxu0
  %v4652 = vadd.f32 %v4638, %v4651
  %v4653 = vpop.f32.mrf.mxu0
  %v4654 = vadd.f32 %v4640, %v4653
  %4655 = vdwg.mxu0
  %4656 = vmatpush.bf16.msra.mxu0 0
  %4657 = vmatpush.bf16.msra.mxu0 0
  %4658 = vmatpush.bf16.msra.mxu0 0
  %4659 = vmatpush.bf16.msra.mxu0 0
  %4660 = vmatpush.bf16.msra.mxu0 0
  %4661 = vmatpush.bf16.msra.mxu0 0
  %4662 = vmatpush.bf16.msra.mxu0 0
  %4663 = vmatpush.bf16.msra.mxu0 %v3440
  %4664 = vmatmul.bf16.gmra.mxu0 %v3884
  %v4665 = vpop.f32.mrf.mxu0
  %v4666 = vadd.f32 %v4652, %v4665
  %v4667 = vpop.f32.mrf.mxu0
  %v4668 = vadd.f32 %v4654, %v4667
  %4669 = vdwg.mxu0
  %v4670 = vxor.u32 %v4666, 2147483648
  %v4671 = vxor.u32 %v4668, 2147483648
  %v4672 = vmul.f32 %v4670, 1.442695
  %v4673 = vpow.pop %v4672
  %v4674 = vmul.f32 %v4671, 1.442695
  %v4675 = vpow.pop %v4674
  %v4676 = vadd.f32 %v4673, 1.0
  %v4677 = vadd.f32 %v4675, 1.0
  %v4678 = vrcp.pop %v4676
  %v4679 = vmul.f32 %v4676, %v4678
  %v4680 = vsub.f32 1.0, %v4679
  %v4681 = vmul.f32 %v4678, %v4680
  %v4682 = vadd.f32 %v4678, %v4681
  %vm4683 = vweird.f32 %v4676
  %vm4684 = vweird.f32 %v4678
  %vm4685 = vmor %vm4683, %vm4684
  %v4686 = vsel %vm4685, %v4678, %v4682
  %v4687 = vand.u32 2147483647, %v4676
  %vm4688 = vcmp.eq.f32.partialorder %v4687, 8.507059e+37
  %v4689 = vand.u32 %v4676, 2147483648
  %v4690 = vor.u32 1.1754944e-38, %v4689
  %v4691 = vsel %vm4688, %v4690, %v4686
  %v4692 = vmul.f32 1.0, %v4691
  %v4693 = vrcp.pop %v4677
  %v4694 = vmul.f32 %v4677, %v4693
  %v4695 = vsub.f32 1.0, %v4694
  %v4696 = vmul.f32 %v4693, %v4695
  %v4697 = vadd.f32 %v4693, %v4696
  %vm4698 = vweird.f32 %v4677
  %vm4699 = vweird.f32 %v4693
  %vm4700 = vmor %vm4698, %vm4699
  %v4701 = vsel %vm4700, %v4693, %v4697
  %v4702 = vand.u32 2147483647, %v4677
  %vm4703 = vcmp.eq.f32.partialorder %v4702, 8.507059e+37
  %v4704 = vand.u32 %v4677, 2147483648
  %v4705 = vor.u32 1.1754944e-38, %v4704
  %v4706 = vsel %vm4703, %v4705, %v4701
  %v4707 = vmul.f32 1.0, %v4706
  %vm4708 = vcmask 80896
  %4709 = vst.msk [vmem:[%s3] sm:$0xff] %vm4708, %v4692
  %4710 = vst.msk [vmem:[%s3 + $0x8] sm:$0xff] %vm4708, %v4707
  // Predicated region
  $region14: #{deeper_conv_model.9} parent=0 // pred_check
    _
  $region15: #{deeper_conv_model.9} parent=0 // pred_check_branch
    %4712 = sbr.rel (0) target = $region17
  $region16: #{deeper_conv_model.9} parent=0 // pred_region
    _
  $region17: #{deeper_conv_model.9} parent=0 // pred_fallthru
    _
  // Predicated region
  $region18: #{deeper_conv_model.9} parent=0 // pred_check
    _
  $region19: #{deeper_conv_model.9} parent=0 // pred_check_branch
    %4714 = sbr.rel (0) target = $region21
  $region20: #{deeper_conv_model.9} parent=0 // pred_region
    _
  $region21: #{deeper_conv_model.9} parent=0 // pred_fallthru
    _

</llo_original>
